<compile_context>
chip_gen: v5e
topology: v5e:2x2
jax: 0.10.0
libtpu: 0.0.40
codegen_flags: <defaults>
</compile_context>

<pallas_src>
import math
import functools

import jax
import jax.numpy as jnp
from jax.experimental import pallas as pl

# ----------------------------- small config ---------------------------------
HIDDEN = 32          # hidden_inplanes
HEADS = 4            # head_nums
QUERY_NUMS = 16      # query_nums
FFN = 64             # feedforward_planes
ENC_LAYERS = 2       # encoder_layer_nums
DEC_LAYERS = 2       # decoder_layer_nums
NUM_CLASSES = 8      # num_classes
GN_GROUPS = 32       # GroupNorm(32, hidden_inplanes) as in the module
BACKBONE_CH = (8, 16)            # stand-in backbone out_channels
LEVELS = len(BACKBONE_CH) + 1    # feature levels used here (extra stride-2 level)
NEG_INF = -1e9
BSLAB_W = max(HIDDEN, FFN)       # lane width of the packed bias/LN slabs

# With this configuration GroupNorm(32, 32) has one channel per group, i.e. per-channel
# (instance-norm) statistics — the group selector matmuls of the old kernel are identities.
assert GN_GROUPS == HIDDEN


# ========================= in-kernel helper functions ========================

def _mm(x, w, b=None):
    y = jnp.dot(x, w, preferred_element_type=jnp.float32)
    if b is not None:
        y = y + b
    return y


def _ln(x, g, b, eps=1e-5):
    mu = jnp.mean(x, axis=-1, keepdims=True)
    var = jnp.mean(jnp.square(x - mu), axis=-1, keepdims=True)
    return (x - mu) * jax.lax.rsqrt(var + eps) * g + b


def _softmax_rows(s):
    s = s - jnp.max(s, axis=-1, keepdims=True)
    p = jnp.exp(s)
    # EUP reciprocal frees the VALU slot
    return p * pl.reciprocal(jnp.sum(p, axis=-1, keepdims=True), approx=True)


def _sigmoid(x):
    return 1.0 / (1.0 + jnp.exp(-x))


def _inverse_sigmoid(x, eps=1e-4):
    x = jnp.clip(x, 0.0, 1.0)
    x1 = jnp.maximum(x, eps)
    x2 = jnp.maximum(1.0 - x, eps)
    return jnp.log(x1 / x2)


def _head_masks(C, heads):
    dh = C // heads
    lane = jax.lax.broadcasted_iota(jnp.int32, (1, C), 1)
    return [((lane >= h * dh) & (lane < (h + 1) * dh)).astype(jnp.float32)
            for h in range(heads)]


def _mha(q, k, v, wo, bo, mask_add, head_masks, scale):
    """Multi-head attention over flattened (batch*tokens, C).

    mask_add (Tq, Tk) is additive: -1e9 for cross-batch pairs / padded keys, 0 otherwise.
    Head splitting uses channel masks (no unaligned lane slicing).  Masking q alone is
    enough to restrict the contraction to the head's channels; per-head outputs live in
    disjoint channel blocks so summing them equals concatenation, allowing a single
    output-projection matmul after the loop.
    """
    oh_sum = None
    for hm in head_masks:
        s = jax.lax.dot_general(q * (hm * scale), k, (((1,), (1,)), ((), ())),
                                preferred_element_type=jnp.float32)
        p = _softmax_rows(s + mask_add)
        oh = jnp.dot(p, v * hm, preferred_element_type=jnp.float32)
        oh_sum = oh if oh_sum is None else oh_sum + oh
    return jnp.dot(oh_sum, wo, preferred_element_type=jnp.float32) + bo


def _brow(b_ref, l, r, w=HIDDEN):
    """Read one packed bias/LN row as a (1, w) array (lane offset 0)."""
    return b_ref[l, r:r + 1, 0:w]


# ============================== Pallas kernels ===============================

def _proj_gn_kernel(x_ref, w_ref, sel_ref, selT_ref, vec_ref, o_ref, *, inv_n):
    """1x1 / im2col'd 3x3 conv as a matmul, fused with GroupNorm.

    Per-batch (per-channel) statistics via selector matmuls; vec rows = [bias; gamma; beta].
    """
    y = _mm(x_ref[...], w_ref[...], vec_ref[0:1, :])                     # (R, C)
    mu_bc = jnp.dot(selT_ref[...], y, preferred_element_type=jnp.float32) * inv_n   # (B, C)
    mu = jnp.dot(sel_ref[...], mu_bc, preferred_element_type=jnp.float32)           # (R, C)
    d = y - mu
    var_bc = jnp.dot(selT_ref[...], d * d, preferred_element_type=jnp.float32) * inv_n
    var = jnp.dot(sel_ref[...], var_bc, preferred_element_type=jnp.float32)
    o_ref[...] = d * jax.lax.rsqrt(var + 1e-5) * vec_ref[1:2, :] + vec_ref[2:3, :]


# encoder bias slab rows (per layer, lane offset 0):
#  0 bq, 1 bk, 2 bv, 3 bo, 4 n1g, 5 n1b, 6 fb1(64), 7 fb2, 8 n2g, 9 n2b
# encoder weight stack rows: 0 wq, 1 wk, 2 wv, 3 wo
# head weight stack rows: 0 enc_out_w, 1 rw1, 2 rw2, 3 rw3(pad to 32), 4 clsw(pad to 32)
# head bias rows: 0 enc_out_b, 1 norm_g, 2 norm_b, 3 rb1, 4 rb2, 5 rb3(pad), 6 clsb(pad)
def _encoder_kernel(x_ref, pos_ref, bidc_ref, bidr_ref, kpad_ref, valid_ref,
                    w_ref, f1_ref, f2_ref, b_ref, hw_ref, hb_ref, o_ref,
                    *, layers, heads):
    """All encoder layers + the two-stage encoder head, fused in one kernel.
    TODO(synk): deformable multi-scale attention replaced by standard masked global MHA."""
    x = x_ref[...]
    pos = pos_ref[...]

    # additive attention mask generated in-kernel (no (T,T) HBM input)
    allow = (bidc_ref[...] == bidr_ref[...]) & (kpad_ref[...] == 0.0)
    mask_add = jnp.where(allow, 0.0, NEG_INF).astype(jnp.float32)

    hms = _head_masks(HIDDEN, heads)
    scale = 1.0 / math.sqrt(HIDDEN // heads)

    for l in range(layers):
        xq = x + pos
        q = _mm(xq, w_ref[l, 0], _brow(b_ref, l, 0))
        k = _mm(xq, w_ref[l, 1], _brow(b_ref, l, 1))
        v = _mm(x, w_ref[l, 2], _brow(b_ref, l, 2))
        attn = _mha(q, k, v, w_ref[l, 3], _brow(b_ref, l, 3), mask_add, hms, scale)
        x = _ln(x + attn, _brow(b_ref, l, 4), _brow(b_ref, l, 5))
        h1 = jnp.maximum(_mm(x, f1_ref[l], b_ref[l, 6:7, 0:FFN]), 0.0)
        x = _ln(x + _mm(h1, f2_ref[l], _brow(b_ref, l, 7)),
                _brow(b_ref, l, 8), _brow(b_ref, l, 9))

    # --- two-stage encoder head on masked memory (enc_output + LN, cls head, bbox MLP) ---
    om_in = x * valid_ref[...]
    om = _ln(_mm(om_in, hw_ref[0], hb_ref[0:1, 0:HIDDEN]),
             hb_ref[1:2, 0:HIDDEN], hb_ref[2:3, 0:HIDDEN])
    cls_full = _mm(om, hw_ref[4], hb_ref[6:7, 0:HIDDEN])        # lanes 0:NUM_CLASSES real
    r = jnp.maximum(_mm(om, hw_ref[1], hb_ref[3:4, 0:HIDDEN]), 0.0)
    r = jnp.maximum(_mm(r, hw_ref[2], hb_ref[4:5, 0:HIDDEN]), 0.0)
    delta_full = _mm(r, hw_ref[3], hb_ref[5:6, 0:HIDDEN])       # lanes 0:4 real

    o_ref[0] = x            # encoder memory
    o_ref[1] = cls_full
    o_ref[2] = delta_full


# decoder bias slab rows (per layer):
#  0 sa_bq, 1 sa_bk, 2 sa_bv, 3 sa_bo, 4 n1g, 5 n1b,
#  6 ca_bq, 7 ca_bk, 8 ca_bv, 9 ca_bo, 10 n2g, 11 n2b,
#  12 fb1(64), 13 fb2, 14 n3g, 15 n3b, 16 rb1, 17 rb2, 18 rb3(pad), 19 clsb(pad)
# decoder weight stack rows:
#  0-3 sa wq/wk/wv/wo, 4-7 ca wq/wk/wv/wo, 8 rw1, 9 rw2, 10 rw3(pad), 11 clsw(pad)
def _decoder_kernel(tgt_ref, ref0_ref, mem_ref, pos_ref,
                    qbc_ref, qbr_ref, mbr_ref, kpad_ref,
                    w_ref, f1_ref, f2_ref, b_ref, qpw_ref, qpb_ref, o_ref,
                    *, layers, heads):
    """All decoder layers + per-layer bbox/cls heads + iterative reference refinement.
    TODO(synk): DINO uses sine-embedded reference points for query_pos (simplified to MLP(ref))
    and deformable cross-attention sampling (replaced by standard masked global MHA)."""
    x = tgt_ref[...]
    ref = ref0_ref[...]                  # (Tq, 32); lanes 0:4 carry the sigmoid-space refs
    mem = mem_ref[...]
    memk = mem + pos_ref[...]

    # masks generated in-kernel from tiny batch-id / key-padding vectors
    self_mask = jnp.where(qbc_ref[...] == qbr_ref[...], 0.0, NEG_INF).astype(jnp.float32)
    cross_allow = (qbc_ref[...] == mbr_ref[...]) & (kpad_ref[...] == 0.0)
    cross_mask = jnp.where(cross_allow, 0.0, NEG_INF).astype(jnp.float32)

    hms = _head_masks(HIDDEN, heads)
    scale = 1.0 / math.sqrt(HIDDEN // heads)

    for l in range(layers):
        # query positional embedding from the current reference points
        qp = jnp.maximum(_mm(ref, qpw_ref[0], qpb_ref[0:1, :]), 0.0)
        qp = _mm(qp, qpw_ref[1], qpb_ref[1:2, :])

        # --- self attention ---
        xq = x + qp
        q = _mm(xq, w_ref[l, 0], _brow(b_ref, l, 0))
        k = _mm(xq, w_ref[l, 1], _brow(b_ref, l, 1))
        v = _mm(x, w_ref[l, 2], _brow(b_ref, l, 2))
        attn = _mha(q, k, v, w_ref[l, 3], _brow(b_ref, l, 3), self_mask, hms, scale)
        x = _ln(x + attn, _brow(b_ref, l, 4), _brow(b_ref, l, 5))

        # --- cross attention over the encoder memory ---
        qc = _mm(x + qp, w_ref[l, 4], _brow(b_ref, l, 6))
        kc = _mm(memk, w_ref[l, 5], _brow(b_ref, l, 7))
        vc = _mm(mem, w_ref[l, 6], _brow(b_ref, l, 8))
        attn = _mha(qc, kc, vc, w_ref[l, 7], _brow(b_ref, l, 9), cross_mask, hms, scale)
        x = _ln(x + attn, _brow(b_ref, l, 10), _brow(b_ref, l, 11))

        # --- FFN ---
        h1 = jnp.maximum(_mm(x, f1_ref[l], b_ref[l, 12:13, 0:FFN]), 0.0)
        x = _ln(x + _mm(h1, f2_ref[l], _brow(b_ref, l, 13)),
                _brow(b_ref, l, 14), _brow(b_ref, l, 15))

        # --- fused per-layer heads + iterative box refinement ---
        r = jnp.maximum(_mm(x, w_ref[l, 8], _brow(b_ref, l, 16)), 0.0)
        r = jnp.maximum(_mm(r, w_ref[l, 9], _brow(b_ref, l, 17)), 0.0)
        delta = _mm(r, w_ref[l, 10], _brow(b_ref, l, 18))      # lanes 0:4 real, rest 0
        cls = _mm(x, w_ref[l, 11], _brow(b_ref, l, 19))        # lanes 0:NUM_CLASSES real

        new_ref = _sigmoid(delta + _inverse_sigmoid(ref))
        o_ref[l, 0] = new_ref
        o_ref[l, 1] = cls
        ref = new_ref


# ============================ pallas_call wrappers ===========================
# No grid: every activation / packed-weight slab is a few KB, so whole-array VMEM
# blocks keep everything resident for the entire fused kernel.

def fused_proj_gn(x2d, w, vec, batch):
    n_rows = x2d.shape[0]
    hw = n_rows // batch
    sel = (jnp.arange(n_rows)[:, None] // hw
           == jnp.arange(batch)[None, :]).astype(jnp.float32)
    kern = functools.partial(_proj_gn_kernel, inv_n=1.0 / float(hw))
    return pl.pallas_call(
        kern, out_shape=jax.ShapeDtypeStruct((n_rows, HIDDEN), jnp.float32),
    )(x2d, w, sel, sel.T, vec)


def fused_encoder(src2, pos2, bid, kpad, valid_col, packed):
    T = src2.shape[0]
    w32, fw1, fw2, bias, hw, hb = packed
    kern = functools.partial(_encoder_kernel, layers=ENC_LAYERS, heads=HEADS)
    return pl.pallas_call(
        kern, out_shape=jax.ShapeDtypeStruct((3, T, HIDDEN), jnp.float32),
    )(src2, pos2, bid.reshape(T, 1), bid.reshape(1, T), kpad.reshape(1, T),
      valid_col, w32, fw1, fw2, bias, hw, hb)


def fused_decoder(tgt2, ref0, memory2, pos2, qbid, mbid, kpad, packed):
    Tq = tgt2.shape[0]
    T = memory2.shape[0]
    w32, fw1, fw2, bias, qpw, qpb = packed
    kern = functools.partial(_decoder_kernel, layers=DEC_LAYERS, heads=HEADS)
    return pl.pallas_call(
        kern, out_shape=jax.ShapeDtypeStruct((DEC_LAYERS, 2, Tq, HIDDEN), jnp.float32),
    )(tgt2, ref0, memory2, pos2,
      qbid.reshape(Tq, 1), qbid.reshape(1, Tq), mbid.reshape(1, T), kpad.reshape(1, T),
      w32, fw1, fw2, bias, qpw, qpb)


# =========================== host-side parameter packing =====================

def _pad_lanes(v, width):
    return jnp.pad(v, [(0, 0)] * (v.ndim - 1) + [(0, width - v.shape[-1])])


def pack_encoder_params(p):
    w32, fw1, fw2, bias = [], [], [], []
    for lp in p['enc_layers']:
        sa = lp['sa']
        w32.append(jnp.stack([sa['wq'], sa['wk'], sa['wv'], sa['wo']]))
        fw1.append(lp['fw1'])
        fw2.append(lp['fw2'])
        rows = [sa['bq'], sa['bk'], sa['bv'], sa['bo'], lp['n1g'], lp['n1b'],
                lp['fb1'], lp['fb2'], lp['n2g'], lp['n2b']]
        bias.append(jnp.concatenate([_pad_lanes(v, BSLAB_W) for v in rows], axis=0))
    rb = p['enc_bbox']
    hw = jnp.stack([p['enc_out_w'], rb['w1'], rb['w2'],
                    _pad_lanes(rb['w3'], HIDDEN), _pad_lanes(p['enc_cls_w'], HIDDEN)])
    hb_rows = [p['enc_out_b'], p['enc_norm_g'], p['enc_norm_b'],
               rb['b1'], rb['b2'], rb['b3'], p['enc_cls_b']]
    hb = jnp.concatenate([_pad_lanes(v, BSLAB_W) for v in hb_rows], axis=0)
    return (jnp.stack(w32), jnp.stack(fw1), jnp.stack(fw2), jnp.stack(bias), hw, hb)


def pack_decoder_params(p):
    w32, fw1, fw2, bias = [], [], [], []
    for l in range(DEC_LAYERS):
        lp, rp, cp = p['dec_layers'][l], p['bbox_embed'][l], p['class_embed'][l]
        sa, ca = lp['sa'], lp['ca']
        w32.append(jnp.stack([sa['wq'], sa['wk'], sa['wv'], sa['wo'],
                              ca['wq'], ca['wk'], ca['wv'], ca['wo'],
                              rp['w1'], rp['w2'],
                              _pad_lanes(rp['w3'], HIDDEN), _pad_lanes(cp['w'], HIDDEN)]))
        fw1.append(lp['fw1'])
        fw2.append(lp['fw2'])
        rows = [sa['bq'], sa['bk'], sa['bv'], sa['bo'], lp['n1g'], lp['n1b'],
                ca['bq'], ca['bk'], ca['bv'], ca['bo'], lp['n2g'], lp['n2b'],
                lp['fb1'], lp['fb2'], lp['n3g'], lp['n3b'],
                rp['b1'], rp['b2'], rp['b3'], cp['b']]
        bias.append(jnp.concatenate([_pad_lanes(v, BSLAB_W) for v in rows], axis=0))
    qph = p['ref_point_head']
    qpw = jnp.stack([jnp.pad(qph['w1'], ((0, HIDDEN - qph['w1'].shape[0]), (0, 0))),
                     qph['w2']])
    qpb = jnp.concatenate([qph['b1'], qph['b2']], axis=0)
    return (jnp.stack(w32), jnp.stack(fw1), jnp.stack(fw2), jnp.stack(bias), qpw, qpb)


def prepare_params(p):
    q = {k: p[k] for k in ('bb_w1', 'bb_b1', 'bb_w2', 'bb_b2',
                           'level_embed', 'tgt_embed', 'label_enc')}
    q['proj_pack'] = [(pr['w'], jnp.concatenate([pr['b'], pr['gn_g'], pr['gn_b']], axis=0))
                      for pr in p['proj']]
    pr5 = p['proj5']
    q['proj5_pack'] = (pr5['w'], jnp.concatenate([pr5['b'], pr5['gn_g'], pr5['gn_b']], axis=0))
    q['enc_pack'] = pack_encoder_params(p)
    q['dec_pack'] = pack_decoder_params(p)
    return q


# ============================ model glue (plain JAX) =========================

def interpolate_mask_nearest(mask, Ho, Wo):
    # matches F.interpolate(mode='nearest') on the 0/1 float mask + cast to bool
    B, H, W = mask.shape
    ys = jnp.floor(jnp.arange(Ho) * (H / Ho)).astype(jnp.int32)
    xs = jnp.floor(jnp.arange(Wo) * (W / Wo)).astype(jnp.int32)
    return mask[:, ys][:, :, xs]


def position_embedding(mask, num_pos_feats, temperature=10000.0, eps=1e-6):
    # DINOPositionEmbeddingBlock (sine embedding from the padding mask), NHWC output
    not_mask = (~mask).astype(jnp.float32)
    y_embed = jnp.cumsum(not_mask, axis=1)
    x_embed = jnp.cumsum(not_mask, axis=2)
    scale = 2.0 * math.pi
    y_embed = y_embed / (y_embed[:, -1:, :] + eps) * scale
    x_embed = x_embed / (x_embed[:, :, -1:] + eps) * scale
    dim_t = jnp.arange(num_pos_feats, dtype=jnp.float32)
    dim_t = temperature ** (2.0 * jnp.floor(dim_t / 2.0) / num_pos_feats)
    pos_x = x_embed[..., None] / dim_t
    pos_y = y_embed[..., None] / dim_t
    B, H, W = x_embed.shape
    pos_x = jnp.stack([jnp.sin(pos_x[..., 0::2]), jnp.cos(pos_x[..., 1::2])],
                      axis=4).reshape(B, H, W, -1)
    pos_y = jnp.stack([jnp.sin(pos_y[..., 0::2]), jnp.cos(pos_y[..., 1::2])],
                      axis=4).reshape(B, H, W, -1)
    return jnp.concatenate([pos_y, pos_x], axis=3)        # (B, H, W, 2*num_pos_feats)


def backbone_forward(p, x_nhwc):
    # TODO(synk): backbone_type refers to an external backbone registry; stand-in
    #             2-level conv pyramid (strides 8, 16), channels-last throughout.
    f1 = jax.lax.conv_general_dilated(
        x_nhwc, p['bb_w1'], (8, 8), 'SAME',
        dimension_numbers=('NHWC', 'HWIO', 'NHWC'))
    f1 = jnp.maximum(f1 + p['bb_b1'], 0.0)
    f2 = jax.lax.conv_general_dilated(
        f1, p['bb_w2'], (2, 2), 'SAME',
        dimension_numbers=('NHWC', 'HWIO', 'NHWC'))
    f2 = jnp.maximum(f2 + p['bb_b2'], 0.0)
    return [f1, f2]


def im2col_3x3_s2(x_nhwc):
    # glue im2col for Conv2d(k=3, s=2, p=1); flattening order (in_channel, kh, kw)
    B, H, W, C = x_nhwc.shape
    xp = jnp.pad(x_nhwc, ((0, 0), (1, 1), (1, 1), (0, 0)))
    Ho = (H + 2 - 3) // 2 + 1
    Wo = (W + 2 - 3) // 2 + 1
    cols = []
    for kh in range(3):
        for kw in range(3):
            cols.append(xp[:, kh:kh + 2 * (Ho - 1) + 1:2,
                           kw:kw + 2 * (Wo - 1) + 1:2, :])
    patches = jnp.stack(cols, axis=4)                     # (B, Ho, Wo, C, 9)
    return patches.reshape(B * Ho * Wo, C * 9), Ho, Wo


def gen_encoder_output_proposals(mask_flat, spatial_shapes):
    """Proposal boxes + validity from the padding masks only (memory masking is in-kernel)."""
    B = mask_flat.shape[0]
    proposals = []
    cur = 0
    for lvl, (H, W) in enumerate(spatial_shapes):
        mask_lvl = mask_flat[:, cur:cur + H * W].reshape(B, H, W)
        valid_H = jnp.sum((~mask_lvl[:, :, 0]).astype(jnp.float32), axis=1)
        valid_W = jnp.sum((~mask_lvl[:, 0, :]).astype(jnp.float32), axis=1)
        gy, gx = jnp.meshgrid(jnp.arange(H, dtype=jnp.float32),
                              jnp.arange(W, dtype=jnp.float32), indexing='ij')
        grid = jnp.stack([gx, gy], -1)[None]              # (1, H, W, 2)
        denom = jnp.stack([valid_W, valid_H], -1).reshape(B, 1, 1, 2)
        grid = (grid + 0.5) / denom
        wh = jnp.ones_like(grid) * 0.05 * (2.0 ** lvl)
        proposals.append(jnp.concatenate([grid, wh], -1).reshape(B, H * W, 4))
        cur += H * W
    output_proposals = jnp.concatenate(proposals, axis=1)            # (B, S, 4)
    valid = jnp.all((output_proposals > 0.01) & (output_proposals < 0.99),
                    axis=-1, keepdims=True)
    p_c = jnp.clip(output_proposals, 0.01, 0.99)
    unsig = jnp.log(p_c / (1.0 - p_c))
    big = jnp.full_like(unsig, 1e4)
    output_proposals = jnp.where(mask_flat[..., None] | (~valid), big, unsig)
    return output_proposals, valid


def transformer_forward(p, feats2d, spatial_shapes, masks_l, poss):
    B = masks_l[0].shape[0]
    src_l, mask_l, pos_l = [], [], []
    for lvl, (f2d, (H, W), m, pos) in enumerate(zip(feats2d, spatial_shapes, masks_l, poss)):
        src_l.append(f2d.reshape(B, H * W, HIDDEN))
        mask_l.append(m.reshape(B, H * W))
        pos_l.append(pos.reshape(B, H * W, HIDDEN)
                     + p['level_embed'][lvl].reshape(1, 1, HIDDEN))
    src = jnp.concatenate(src_l, axis=1)                  # (B, S, C)
    mask = jnp.concatenate(mask_l, axis=1)                # (B, S) bool, True = pad
    lvl_pos = jnp.concatenate(pos_l, axis=1)              # (B, S, C)
    S = src.shape[1]
    T = B * S

    src2 = src.reshape(T, HIDDEN)
    pos2 = lvl_pos.reshape(T, HIDDEN)
    bid = jnp.repeat(jnp.arange(B, dtype=jnp.float32), S)            # (T,)
    kpad = mask.astype(jnp.float32).reshape(T)                       # (T,) 1.0 = padded

    output_proposals, valid = gen_encoder_output_proposals(mask, spatial_shapes)
    valid_col = ((~mask)[..., None] & valid).astype(jnp.float32).reshape(T, 1)

    # --- encoder (all layers + two-stage head) in one fused kernel ---
    enc_out = fused_encoder(src2, pos2, bid, kpad, valid_col, p['enc_pack'])
    memory2 = enc_out[0]                                             # (T, C)
    enc_class = enc_out[1, :, :NUM_CLASSES].reshape(B, S, NUM_CLASSES)
    enc_delta = enc_out[2, :, :4].reshape(B, S, 4)
    enc_coord_unsig = enc_delta + output_proposals

    topk_scores = jnp.max(enc_class, axis=-1)
    _, topk_idx = jax.lax.top_k(topk_scores, QUERY_NUMS)

    def gather(arr):
        idx = jnp.broadcast_to(topk_idx[..., None], (B, QUERY_NUMS, arr.shape[-1]))
        return jnp.take_along_axis(arr, idx, axis=1)

    refpoint_unsig = gather(enc_coord_unsig)                         # (B, Q, 4)
    ref_enc = jax.nn.sigmoid(refpoint_unsig)                         # (B, Q, 4)
    # enc_out_class_embed(hs_enc[-1]) == gather of the already-computed class logits
    interm_class = gather(enc_class)

    # --- decoder (all layers + per-layer heads) in one fused kernel ---
    Tq = B * QUERY_NUMS
    tgt2 = jnp.broadcast_to(p['tgt_embed'][None],
                            (B, QUERY_NUMS, HIDDEN)).reshape(Tq, HIDDEN)
    ref0 = jnp.pad(ref_enc.reshape(Tq, 4), ((0, 0), (0, HIDDEN - 4)))
    qbid = jnp.repeat(jnp.arange(B, dtype=jnp.float32), QUERY_NUMS)

    dec_out = fused_decoder(tgt2, ref0, memory2, pos2, qbid, bid, kpad, p['dec_pack'])
    coords = dec_out[:, 0, :, :4].reshape(DEC_LAYERS, B, QUERY_NUMS, 4)
    clss = dec_out[:, 1, :, :NUM_CLASSES].reshape(DEC_LAYERS, B, QUERY_NUMS, NUM_CLASSES)
    return coords, clss, ref_enc, interm_class


def dinodetr_forward(p, inputs, masks):
    # NCHW images (PyTorch convention) -> channels-last once at the model boundary
    x = inputs.transpose(0, 2, 3, 1)
    B = x.shape[0]
    features = backbone_forward(p, x)

    feats2d, spatial_shapes, total_masks, total_positions = [], [], [], []
    for idx, f in enumerate(features):
        _, H, W, Cin = f.shape
        m = interpolate_mask_nearest(masks, H, W)
        pos = position_embedding(m, HIDDEN // 2)
        pw, pvec = p['proj_pack'][idx]
        proj = fused_proj_gn(f.reshape(B * H * W, Cin), pw, pvec, B)
        feats2d.append(proj)
        spatial_shapes.append((H, W))
        total_masks.append(m)
        total_positions.append(pos)

    # extra stride-2 level from the last backbone feature (3x3/s2 conv as im2col matmul + GN)
    cols5, Ho, Wo = im2col_3x3_s2(features[-1])
    pw5, pvec5 = p['proj5_pack']
    f5 = fused_proj_gn(cols5, pw5, pvec5, B)
    m5 = interpolate_mask_nearest(masks, Ho, Wo)
    pos5 = position_embedding(m5, HIDDEN // 2)
    feats2d.append(f5)
    spatial_shapes.append((Ho, Wo))
    total_masks.append(m5)
    total_positions.append(pos5)

    # targets is None at inference -> DN branch skipped (matches the reference forward)
    coords, clss, ref_enc, interm_class = transformer_forward(
        p, feats2d, spatial_shapes, total_masks, total_positions)

    # hs[0] += label_encoder.weight[0, 0] * 0.0 is an exact numerical no-op; the
    # class/bbox heads are fused into the decoder kernel so the zero term is omitted.

    out = {'pred_logits': clss[-1], 'pred_boxes': coords[-1]}
    out['aux_outputs'] = [{'pred_logits': a, 'pred_boxes': b}
                          for a, b in zip(clss[:-1], coords[:-1])]
    out['interm_outputs'] = {'pred_logits': interm_class, 'pred_boxes': ref_enc}
    out['dn_meta'] = None
    return out


# ================================ parameters =================================

class ParamFactory:
    def __init__(self, key):
        self._key = key

    def _next(self):
        self._key, sub = jax.random.split(self._key)
        return sub

    def normal(self, shape, scale=0.02):
        return jax.random.normal(self._next(), shape, jnp.float32) * scale

    def xavier(self, shape):
        fan_in, fan_out = shape
        lim = math.sqrt(6.0 / (fan_in + fan_out))
        return jax.random.uniform(self._next(), shape, jnp.float32, -lim, lim)

    def mha(self, dim):
        d = {}
        for n in ('q', 'k', 'v', 'o'):
            d['w' + n] = self.xavier((dim, dim))
            d['b' + n] = jnp.zeros((1, dim), jnp.float32)
        return d

    def reghead(self, dim, out_dim=4):
        return {'w1': self.xavier((dim, dim)), 'b1': jnp.zeros((1, dim), jnp.float32),
                'w2': self.xavier((dim, dim)), 'b2': jnp.zeros((1, dim), jnp.float32),
                'w3': self.xavier((dim, out_dim)), 'b3': jnp.zeros((1, out_dim), jnp.float32)}


def init_params(key):
    pf = ParamFactory(key)
    C = HIDDEN
    ones = lambda n: jnp.ones((1, n), jnp.float32)
    zeros = lambda n: jnp.zeros((1, n), jnp.float32)
    p = {}
    # stand-in backbone (HWIO weights, channels-last)
    p['bb_w1'] = pf.normal((8, 8, 3, BACKBONE_CH[0]), 0.05)
    p['bb_b1'] = jnp.zeros((BACKBONE_CH[0],), jnp.float32)
    p['bb_w2'] = pf.normal((3, 3, BACKBONE_CH[0], BACKBONE_CH[1]), 0.05)
    p['bb_b2'] = jnp.zeros((BACKBONE_CH[1],), jnp.float32)
    # label encoder embedding (dn_labelbook_size + 1, hidden) — DN branch unused at inference
    p['label_enc'] = pf.normal((NUM_CLASSES + 1, C), 0.02)
    # input projection layers (1x1 conv + GroupNorm) per backbone level
    p['proj'] = []
    for cin in BACKBONE_CH:
        p['proj'].append({'w': pf.xavier((cin, C)), 'b': zeros(C),
                          'gn_g': ones(C), 'gn_b': zeros(C)})
    # extra level: 3x3 stride-2 conv (im2col) + GroupNorm on last backbone feature
    p['proj5'] = {'w': pf.xavier((BACKBONE_CH[-1] * 9, C)), 'b': zeros(C),
                  'gn_g': ones(C), 'gn_b': zeros(C)}
    p['level_embed'] = pf.normal((LEVELS, C), 0.02)
    # encoder layers
    p['enc_layers'] = []
    for _ in range(ENC_LAYERS):
        p['enc_layers'].append({
            'sa': pf.mha(C),
            'n1g': ones(C), 'n1b': zeros(C),
            'fw1': pf.xavier((C, FFN)), 'fb1': zeros(FFN),
            'fw2': pf.xavier((FFN, C)), 'fb2': zeros(C),
            'n2g': ones(C), 'n2b': zeros(C),
        })
    # two-stage encoder output heads
    p['enc_out_w'] = pf.xavier((C, C))
    p['enc_out_b'] = zeros(C)
    p['enc_norm_g'] = ones(C)
    p['enc_norm_b'] = zeros(C)
    p['enc_cls_w'] = pf.xavier((C, NUM_CLASSES))
    p['enc_cls_b'] = zeros(NUM_CLASSES)
    p['enc_bbox'] = pf.reghead(C)
    # decoder
    p['tgt_embed'] = pf.normal((QUERY_NUMS, C), 0.02)
    p['ref_point_head'] = {'w1': pf.xavier((4, C)), 'b1': zeros(C),
                           'w2': pf.xavier((C, C)), 'b2': zeros(C)}
    p['dec_layers'] = []
    for _ in range(DEC_LAYERS):
        p['dec_layers'].append({
            'sa': pf.mha(C), 'n1g': ones(C), 'n1b': zeros(C),
            'ca': pf.mha(C), 'n2g': ones(C), 'n2b': zeros(C),
            'fw1': pf.xavier((C, FFN)), 'fb1': zeros(FFN),
            'fw2': pf.xavier((FFN, C)), 'fb2': zeros(C),
            'n3g': ones(C), 'n3b': zeros(C),
        })
    # per-layer prediction heads (shared with decoder for iterative refinement)
    p['bbox_embed'] = [pf.reghead(C) for _ in range(DEC_LAYERS)]
    p['class_embed'] = [{'w': pf.xavier((C, NUM_CLASSES)), 'b': zeros(NUM_CLASSES)}
                        for _ in range(DEC_LAYERS)]
    return p


# =================================== main ====================================

if __name__ == "__main__":
    key = jax.random.PRNGKey(0)
    k_param, k_in = jax.random.split(key)

    raw_params = init_params(k_param)
    params = prepare_params(raw_params)       # host-side one-time slab packing

    B, IMG = 2, 32
    inputs = jax.random.normal(k_in, (B, 3, IMG, IMG), jnp.float32)   # NCHW images
    # padding mask: True = padded pixel (right quarter of each image padded)
    masks = jnp.zeros((B, IMG, IMG), dtype=bool).at[:, :, IMG - 8:].set(True)

    fwd = jax.jit(dinodetr_forward)
    out = fwd(params, inputs, masks)
    out = jax.block_until_ready(out)

    assert out['pred_logits'].shape == (B, QUERY_NUMS, NUM_CLASSES)
    assert out['pred_boxes'].shape == (B, QUERY_NUMS, 4)
    assert out['interm_outputs']['pred_boxes'].shape == (B, QUERY_NUMS, 4)
    assert len(out['aux_outputs']) == DEC_LAYERS - 1
    assert bool(jnp.all(jnp.isfinite(out['pred_boxes'])))
    assert bool(jnp.all(jnp.isfinite(out['pred_logits'])))
    print("KERNEL_OK")
</pallas_src>

<mosaic_0001>
module attributes {stable_mosaic.version = 11 : i64} {
  func.func @_proj_gn_kernel(%arg0: memref<2x144xf32, #tpu.memory_space<vmem>>, %arg1: memref<144x32xf32, #tpu.memory_space<vmem>>, %arg2: memref<2x2xf32, #tpu.memory_space<vmem>>, %arg3: memref<2x2xf32, #tpu.memory_space<vmem>>, %arg4: memref<3x32xf32, #tpu.memory_space<vmem>>, %arg5: memref<2x32xf32, #tpu.memory_space<vmem>>) attributes {dimension_semantics = [], scalar_prefetch = 0 : i64, scratch_operands = 0 : i64, tpu.core_type = #tpu.core_type<tc>} {
    %c0 = arith.constant 0 : index
    %c0_0 = arith.constant 0 : index
    %0 = vector.load %arg0[%c0, %c0_0] : memref<2x144xf32, #tpu.memory_space<vmem>>, vector<2x144xf32>
    %c0_1 = arith.constant 0 : index
    %c0_2 = arith.constant 0 : index
    %1 = vector.load %arg1[%c0_1, %c0_2] : memref<144x32xf32, #tpu.memory_space<vmem>>, vector<144x32xf32>
    %c0_3 = arith.constant 0 : index
    %c0_4 = arith.constant 0 : index
    %2 = vector.load %arg4[%c0_3, %c0_4] : memref<3x32xf32, #tpu.memory_space<vmem>>, vector<1x32xf32>
    %cst = arith.constant dense<0.000000e+00> : vector<2x32xf32>
    %3 = tpu.matmul %0, %1, %cst {dimension_numbers = #tpu.dot_dimension_numbers<[1], [0], [0], [1], [0, 0, 1, 1], [], []>} : vector<2x144xf32>, vector<144x32xf32>, vector<2x32xf32> -> vector<2x32xf32>
    %4 = vector.broadcast %2 : vector<1x32xf32> to vector<2x32xf32>
    %5 = arith.addf %3, %4 : vector<2x32xf32>
    %c0_5 = arith.constant 0 : index
    %c0_6 = arith.constant 0 : index
    %6 = vector.load %arg3[%c0_5, %c0_6] : memref<2x2xf32, #tpu.memory_space<vmem>>, vector<2x2xf32>
    %cst_7 = arith.constant dense<0.000000e+00> : vector<2x32xf32>
    %7 = tpu.matmul %6, %5, %cst_7 {dimension_numbers = #tpu.dot_dimension_numbers<[1], [0], [0], [1], [0, 0, 1, 1], [], []>} : vector<2x2xf32>, vector<2x32xf32>, vector<2x32xf32> -> vector<2x32xf32>
    %cst_8 = arith.constant 1.000000e+00 : f32
    %8 = vector.broadcast %cst_8 : f32 to vector<2x32xf32>
    %9 = arith.mulf %7, %8 : vector<2x32xf32>
    %c0_9 = arith.constant 0 : index
    %c0_10 = arith.constant 0 : index
    %10 = vector.load %arg2[%c0_9, %c0_10] : memref<2x2xf32, #tpu.memory_space<vmem>>, vector<2x2xf32>
    %cst_11 = arith.constant dense<0.000000e+00> : vector<2x32xf32>
    %11 = tpu.matmul %10, %9, %cst_11 {dimension_numbers = #tpu.dot_dimension_numbers<[1], [0], [0], [1], [0, 0, 1, 1], [], []>} : vector<2x2xf32>, vector<2x32xf32>, vector<2x32xf32> -> vector<2x32xf32>
    %12 = arith.subf %5, %11 : vector<2x32xf32>
    %c0_12 = arith.constant 0 : index
    %c0_13 = arith.constant 0 : index
    %13 = vector.load %arg3[%c0_12, %c0_13] : memref<2x2xf32, #tpu.memory_space<vmem>>, vector<2x2xf32>
    %14 = arith.mulf %12, %12 : vector<2x32xf32>
    %cst_14 = arith.constant dense<0.000000e+00> : vector<2x32xf32>
    %15 = tpu.matmul %13, %14, %cst_14 {dimension_numbers = #tpu.dot_dimension_numbers<[1], [0], [0], [1], [0, 0, 1, 1], [], []>} : vector<2x2xf32>, vector<2x32xf32>, vector<2x32xf32> -> vector<2x32xf32>
    %cst_15 = arith.constant 1.000000e+00 : f32
    %16 = vector.broadcast %cst_15 : f32 to vector<2x32xf32>
    %17 = arith.mulf %15, %16 : vector<2x32xf32>
    %c0_16 = arith.constant 0 : index
    %c0_17 = arith.constant 0 : index
    %18 = vector.load %arg2[%c0_16, %c0_17] : memref<2x2xf32, #tpu.memory_space<vmem>>, vector<2x2xf32>
    %cst_18 = arith.constant dense<0.000000e+00> : vector<2x32xf32>
    %19 = tpu.matmul %18, %17, %cst_18 {dimension_numbers = #tpu.dot_dimension_numbers<[1], [0], [0], [1], [0, 0, 1, 1], [], []>} : vector<2x2xf32>, vector<2x32xf32>, vector<2x32xf32> -> vector<2x32xf32>
    %cst_19 = arith.constant 9.99999974E-6 : f32
    %20 = vector.broadcast %cst_19 : f32 to vector<2x32xf32>
    %21 = arith.addf %19, %20 : vector<2x32xf32>
    %22 = math.rsqrt %21 : vector<2x32xf32>
    %23 = arith.mulf %12, %22 : vector<2x32xf32>
    %c1 = arith.constant 1 : index
    %c0_20 = arith.constant 0 : index
    %24 = vector.load %arg4[%c1, %c0_20] : memref<3x32xf32, #tpu.memory_space<vmem>>, vector<1x32xf32>
    %25 = vector.broadcast %24 : vector<1x32xf32> to vector<2x32xf32>
    %26 = arith.mulf %23, %25 : vector<2x32xf32>
    %c2 = arith.constant 2 : index
    %c0_21 = arith.constant 0 : index
    %27 = vector.load %arg4[%c2, %c0_21] : memref<3x32xf32, #tpu.memory_space<vmem>>, vector<1x32xf32>
    %28 = vector.broadcast %27 : vector<1x32xf32> to vector<2x32xf32>
    %29 = arith.addf %26, %28 : vector<2x32xf32>
    %c0_22 = arith.constant 0 : index
    %c0_23 = arith.constant 0 : index
    %30 = vector.load %arg5[%c0_22, %c0_23] : memref<2x32xf32, #tpu.memory_space<vmem>>, vector<2x32xf32>
    tpu.vector_store %arg5[%c0_22, %c0_23], %29 {strides = array<i32>} : memref<2x32xf32, #tpu.memory_space<vmem>>, vector<2x32xf32>,
    return
  }
}

module attributes {stable_mosaic.version = 11 : i64} {
  func.func @_proj_gn_kernel(%arg0: memref<8x16xf32, #tpu.memory_space<vmem>>, %arg1: memref<16x32xf32, #tpu.memory_space<vmem>>, %arg2: memref<8x2xf32, #tpu.memory_space<vmem>>, %arg3: memref<2x8xf32, #tpu.memory_space<vmem>>, %arg4: memref<3x32xf32, #tpu.memory_space<vmem>>, %arg5: memref<8x32xf32, #tpu.memory_space<vmem>>) attributes {dimension_semantics = [], scalar_prefetch = 0 : i64, scratch_operands = 0 : i64, tpu.core_type = #tpu.core_type<tc>} {
    %c0 = arith.constant 0 : index
    %c0_0 = arith.constant 0 : index
    %0 = vector.load %arg0[%c0, %c0_0] : memref<8x16xf32, #tpu.memory_space<vmem>>, vector<8x16xf32>
    %c0_1 = arith.constant 0 : index
    %c0_2 = arith.constant 0 : index
    %1 = vector.load %arg1[%c0_1, %c0_2] : memref<16x32xf32, #tpu.memory_space<vmem>>, vector<16x32xf32>
    %c0_3 = arith.constant 0 : index
    %c0_4 = arith.constant 0 : index
    %2 = vector.load %arg4[%c0_3, %c0_4] : memref<3x32xf32, #tpu.memory_space<vmem>>, vector<1x32xf32>
    %cst = arith.constant dense<0.000000e+00> : vector<8x32xf32>
    %3 = tpu.matmul %0, %1, %cst {dimension_numbers = #tpu.dot_dimension_numbers<[1], [0], [0], [1], [0, 0, 1, 1], [], []>} : vector<8x16xf32>, vector<16x32xf32>, vector<8x32xf32> -> vector<8x32xf32>
    %4 = vector.broadcast %2 : vector<1x32xf32> to vector<8x32xf32>
    %5 = arith.addf %3, %4 : vector<8x32xf32>
    %c0_5 = arith.constant 0 : index
    %c0_6 = arith.constant 0 : index
    %6 = vector.load %arg3[%c0_5, %c0_6] : memref<2x8xf32, #tpu.memory_space<vmem>>, vector<2x8xf32>
    %cst_7 = arith.constant dense<0.000000e+00> : vector<2x32xf32>
    %7 = tpu.matmul %6, %5, %cst_7 {dimension_numbers = #tpu.dot_dimension_numbers<[1], [0], [0], [1], [0, 0, 1, 1], [], []>} : vector<2x8xf32>, vector<8x32xf32>, vector<2x32xf32> -> vector<2x32xf32>
    %cst_8 = arith.constant 2.500000e-01 : f32
    %8 = vector.broadcast %cst_8 : f32 to vector<2x32xf32>
    %9 = arith.mulf %7, %8 : vector<2x32xf32>
    %c0_9 = arith.constant 0 : index
    %c0_10 = arith.constant 0 : index
    %10 = vector.load %arg2[%c0_9, %c0_10] : memref<8x2xf32, #tpu.memory_space<vmem>>, vector<8x2xf32>
    %cst_11 = arith.constant dense<0.000000e+00> : vector<8x32xf32>
    %11 = tpu.matmul %10, %9, %cst_11 {dimension_numbers = #tpu.dot_dimension_numbers<[1], [0], [0], [1], [0, 0, 1, 1], [], []>} : vector<8x2xf32>, vector<2x32xf32>, vector<8x32xf32> -> vector<8x32xf32>
    %12 = arith.subf %5, %11 : vector<8x32xf32>
    %c0_12 = arith.constant 0 : index
    %c0_13 = arith.constant 0 : index
    %13 = vector.load %arg3[%c0_12, %c0_13] : memref<2x8xf32, #tpu.memory_space<vmem>>, vector<2x8xf32>
    %14 = arith.mulf %12, %12 : vector<8x32xf32>
    %cst_14 = arith.constant dense<0.000000e+00> : vector<2x32xf32>
    %15 = tpu.matmul %13, %14, %cst_14 {dimension_numbers = #tpu.dot_dimension_numbers<[1], [0], [0], [1], [0, 0, 1, 1], [], []>} : vector<2x8xf32>, vector<8x32xf32>, vector<2x32xf32> -> vector<2x32xf32>
    %cst_15 = arith.constant 2.500000e-01 : f32
    %16 = vector.broadcast %cst_15 : f32 to vector<2x32xf32>
    %17 = arith.mulf %15, %16 : vector<2x32xf32>
    %c0_16 = arith.constant 0 : index
    %c0_17 = arith.constant 0 : index
    %18 = vector.load %arg2[%c0_16, %c0_17] : memref<8x2xf32, #tpu.memory_space<vmem>>, vector<8x2xf32>
    %cst_18 = arith.constant dense<0.000000e+00> : vector<8x32xf32>
    %19 = tpu.matmul %18, %17, %cst_18 {dimension_numbers = #tpu.dot_dimension_numbers<[1], [0], [0], [1], [0, 0, 1, 1], [], []>} : vector<8x2xf32>, vector<2x32xf32>, vector<8x32xf32> -> vector<8x32xf32>
    %cst_19 = arith.constant 9.99999974E-6 : f32
    %20 = vector.broadcast %cst_19 : f32 to vector<8x32xf32>
    %21 = arith.addf %19, %20 : vector<8x32xf32>
    %22 = math.rsqrt %21 : vector<8x32xf32>
    %23 = arith.mulf %12, %22 : vector<8x32xf32>
    %c1 = arith.constant 1 : index
    %c0_20 = arith.constant 0 : index
    %24 = vector.load %arg4[%c1, %c0_20] : memref<3x32xf32, #tpu.memory_space<vmem>>, vector<1x32xf32>
    %25 = vector.broadcast %24 : vector<1x32xf32> to vector<8x32xf32>
    %26 = arith.mulf %23, %25 : vector<8x32xf32>
    %c2 = arith.constant 2 : index
    %c0_21 = arith.constant 0 : index
    %27 = vector.load %arg4[%c2, %c0_21] : memref<3x32xf32, #tpu.memory_space<vmem>>, vector<1x32xf32>
    %28 = vector.broadcast %27 : vector<1x32xf32> to vector<8x32xf32>
    %29 = arith.addf %26, %28 : vector<8x32xf32>
    %c0_22 = arith.constant 0 : index
    %c0_23 = arith.constant 0 : index
    %30 = vector.load %arg5[%c0_22, %c0_23] : memref<8x32xf32, #tpu.memory_space<vmem>>, vector<8x32xf32>
    tpu.vector_store %arg5[%c0_22, %c0_23], %29 {strides = array<i32>} : memref<8x32xf32, #tpu.memory_space<vmem>>, vector<8x32xf32>,
    return
  }
}

module attributes {stable_mosaic.version = 11 : i64} {
  func.func @_proj_gn_kernel(%arg0: memref<32x8xf32, #tpu.memory_space<vmem>>, %arg1: memref<8x32xf32, #tpu.memory_space<vmem>>, %arg2: memref<32x2xf32, #tpu.memory_space<vmem>>, %arg3: memref<2x32xf32, #tpu.memory_space<vmem>>, %arg4: memref<3x32xf32, #tpu.memory_space<vmem>>, %arg5: memref<32x32xf32, #tpu.memory_space<vmem>>) attributes {dimension_semantics = [], scalar_prefetch = 0 : i64, scratch_operands = 0 : i64, tpu.core_type = #tpu.core_type<tc>} {
    %c0 = arith.constant 0 : index
    %c0_0 = arith.constant 0 : index
    %0 = vector.load %arg0[%c0, %c0_0] : memref<32x8xf32, #tpu.memory_space<vmem>>, vector<32x8xf32>
    %c0_1 = arith.constant 0 : index
    %c0_2 = arith.constant 0 : index
    %1 = vector.load %arg1[%c0_1, %c0_2] : memref<8x32xf32, #tpu.memory_space<vmem>>, vector<8x32xf32>
    %c0_3 = arith.constant 0 : index
    %c0_4 = arith.constant 0 : index
    %2 = vector.load %arg4[%c0_3, %c0_4] : memref<3x32xf32, #tpu.memory_space<vmem>>, vector<1x32xf32>
    %cst = arith.constant dense<0.000000e+00> : vector<32x32xf32>
    %3 = tpu.matmul %0, %1, %cst {dimension_numbers = #tpu.dot_dimension_numbers<[1], [0], [0], [1], [0, 0, 1, 1], [], []>} : vector<32x8xf32>, vector<8x32xf32>, vector<32x32xf32> -> vector<32x32xf32>
    %4 = vector.broadcast %2 : vector<1x32xf32> to vector<32x32xf32>
    %5 = arith.addf %3, %4 : vector<32x32xf32>
    %c0_5 = arith.constant 0 : index
    %c0_6 = arith.constant 0 : index
    %6 = vector.load %arg3[%c0_5, %c0_6] : memref<2x32xf32, #tpu.memory_space<vmem>>, vector<2x32xf32>
    %cst_7 = arith.constant dense<0.000000e+00> : vector<2x32xf32>
    %7 = tpu.matmul %6, %5, %cst_7 {dimension_numbers = #tpu.dot_dimension_numbers<[1], [0], [0], [1], [0, 0, 1, 1], [], []>} : vector<2x32xf32>, vector<32x32xf32>, vector<2x32xf32> -> vector<2x32xf32>
    %cst_8 = arith.constant 6.250000e-02 : f32
    %8 = vector.broadcast %cst_8 : f32 to vector<2x32xf32>
    %9 = arith.mulf %7, %8 : vector<2x32xf32>
    %c0_9 = arith.constant 0 : index
    %c0_10 = arith.constant 0 : index
    %10 = vector.load %arg2[%c0_9, %c0_10] : memref<32x2xf32, #tpu.memory_space<vmem>>, vector<32x2xf32>
    %cst_11 = arith.constant dense<0.000000e+00> : vector<32x32xf32>
    %11 = tpu.matmul %10, %9, %cst_11 {dimension_numbers = #tpu.dot_dimension_numbers<[1], [0], [0], [1], [0, 0, 1, 1], [], []>} : vector<32x2xf32>, vector<2x32xf32>, vector<32x32xf32> -> vector<32x32xf32>
    %12 = arith.subf %5, %11 : vector<32x32xf32>
    %c0_12 = arith.constant 0 : index
    %c0_13 = arith.constant 0 : index
    %13 = vector.load %arg3[%c0_12, %c0_13] : memref<2x32xf32, #tpu.memory_space<vmem>>, vector<2x32xf32>
    %14 = arith.mulf %12, %12 : vector<32x32xf32>
    %cst_14 = arith.constant dense<0.000000e+00> : vector<2x32xf32>
    %15 = tpu.matmul %13, %14, %cst_14 {dimension_numbers = #tpu.dot_dimension_numbers<[1], [0], [0], [1], [0, 0, 1, 1], [], []>} : vector<2x32xf32>, vector<32x32xf32>, vector<2x32xf32> -> vector<2x32xf32>
    %cst_15 = arith.constant 6.250000e-02 : f32
    %16 = vector.broadcast %cst_15 : f32 to vector<2x32xf32>
    %17 = arith.mulf %15, %16 : vector<2x32xf32>
    %c0_16 = arith.constant 0 : index
    %c0_17 = arith.constant 0 : index
    %18 = vector.load %arg2[%c0_16, %c0_17] : memref<32x2xf32, #tpu.memory_space<vmem>>, vector<32x2xf32>
    %cst_18 = arith.constant dense<0.000000e+00> : vector<32x32xf32>
    %19 = tpu.matmul %18, %17, %cst_18 {dimension_numbers = #tpu.dot_dimension_numbers<[1], [0], [0], [1], [0, 0, 1, 1], [], []>} : vector<32x2xf32>, vector<2x32xf32>, vector<32x32xf32> -> vector<32x32xf32>
    %cst_19 = arith.constant 9.99999974E-6 : f32
    %20 = vector.broadcast %cst_19 : f32 to vector<32x32xf32>
    %21 = arith.addf %19, %20 : vector<32x32xf32>
    %22 = math.rsqrt %21 : vector<32x32xf32>
    %23 = arith.mulf %12, %22 : vector<32x32xf32>
    %c1 = arith.constant 1 : index
    %c0_20 = arith.constant 0 : index
    %24 = vector.load %arg4[%c1, %c0_20] : memref<3x32xf32, #tpu.memory_space<vmem>>, vector<1x32xf32>
    %25 = vector.broadcast %24 : vector<1x32xf32> to vector<32x32xf32>
    %26 = arith.mulf %23, %25 : vector<32x32xf32>
    %c2 = arith.constant 2 : index
    %c0_21 = arith.constant 0 : index
    %27 = vector.load %arg4[%c2, %c0_21] : memref<3x32xf32, #tpu.memory_space<vmem>>, vector<1x32xf32>
    %28 = vector.broadcast %27 : vector<1x32xf32> to vector<32x32xf32>
    %29 = arith.addf %26, %28 : vector<32x32xf32>
    %c0_22 = arith.constant 0 : index
    %c0_23 = arith.constant 0 : index
    %30 = vector.load %arg5[%c0_22, %c0_23] : memref<32x32xf32, #tpu.memory_space<vmem>>, vector<32x32xf32>
    tpu.vector_store %arg5[%c0_22, %c0_23], %29 {strides = array<i32>} : memref<32x32xf32, #tpu.memory_space<vmem>>, vector<32x32xf32>,
    return
  }
}

module attributes {stable_mosaic.version = 11 : i64} {
  func.func @_encoder_kernel(%arg0: memref<42x32xf32, #tpu.memory_space<vmem>>, %arg1: memref<42x32xf32, #tpu.memory_space<vmem>>, %arg2: memref<42x1xf32, #tpu.memory_space<vmem>>, %arg3: memref<1x42xf32, #tpu.memory_space<vmem>>, %arg4: memref<1x42xf32, #tpu.memory_space<vmem>>, %arg5: memref<42x1xf32, #tpu.memory_space<vmem>>, %arg6: memref<2x4x32x32xf32, #tpu.memory_space<vmem>>, %arg7: memref<2x32x64xf32, #tpu.memory_space<vmem>>, %arg8: memref<2x64x32xf32, #tpu.memory_space<vmem>>, %arg9: memref<2x10x64xf32, #tpu.memory_space<vmem>>, %arg10: memref<5x32x32xf32, #tpu.memory_space<vmem>>, %arg11: memref<7x64xf32, #tpu.memory_space<vmem>>, %arg12: memref<3x42x32xf32, #tpu.memory_space<vmem>>) attributes {dimension_semantics = [], scalar_prefetch = 0 : i64, scratch_operands = 0 : i64, tpu.core_type = #tpu.core_type<tc>} {
    %c0 = arith.constant 0 : index
    %c0_0 = arith.constant 0 : index
    %0 = vector.load %arg0[%c0, %c0_0] : memref<42x32xf32, #tpu.memory_space<vmem>>, vector<42x32xf32>
    %c0_1 = arith.constant 0 : index
    %c0_2 = arith.constant 0 : index
    %1 = vector.load %arg1[%c0_1, %c0_2] : memref<42x32xf32, #tpu.memory_space<vmem>>, vector<42x32xf32>
    %c0_3 = arith.constant 0 : index
    %c0_4 = arith.constant 0 : index
    %2 = vector.load %arg2[%c0_3, %c0_4] : memref<42x1xf32, #tpu.memory_space<vmem>>, vector<42x1xf32>
    %c0_5 = arith.constant 0 : index
    %c0_6 = arith.constant 0 : index
    %3 = vector.load %arg3[%c0_5, %c0_6] : memref<1x42xf32, #tpu.memory_space<vmem>>, vector<1x42xf32>
    %4 = vector.broadcast %2 : vector<42x1xf32> to vector<42x42xf32>
    %5 = vector.broadcast %3 : vector<1x42xf32> to vector<42x42xf32>
    %6 = arith.cmpf oeq, %4, %5 : vector<42x42xf32>
    %c0_7 = arith.constant 0 : index
    %c0_8 = arith.constant 0 : index
    %7 = vector.load %arg4[%c0_7, %c0_8] : memref<1x42xf32, #tpu.memory_space<vmem>>, vector<1x42xf32>
    %cst = arith.constant 0.000000e+00 : f32
    %8 = vector.broadcast %cst : f32 to vector<1x42xf32>
    %9 = arith.cmpf oeq, %7, %8 : vector<1x42xf32>
    %10 = vector.broadcast %9 : vector<1x42xi1> to vector<42x42xi1>
    %11 = arith.andi %6, %10 : vector<42x42xi1>
    %cst_9 = arith.constant 0.000000e+00 : f32
    %cst_10 = arith.constant -1.000000e+09 : f32
    %12 = vector.broadcast %cst_9 : f32 to vector<42x42xf32>
    %13 = vector.broadcast %cst_10 : f32 to vector<42x42xf32>
    %14 = arith.select %11, %12, %13 : vector<42x42xi1>, vector<42x42xf32>
    %15 = tpu.iota {dimensions = array<i32: 1>} : vector<1x32xi32>
    %c0_i32 = arith.constant 0 : i32
    %16 = vector.broadcast %c0_i32 : i32 to vector<1x32xi32>
    %17 = arith.cmpi sge, %15, %16 : vector<1x32xi32>
    %c8_i32 = arith.constant 8 : i32
    %18 = vector.broadcast %c8_i32 : i32 to vector<1x32xi32>
    %19 = arith.cmpi slt, %15, %18 : vector<1x32xi32>
    %20 = arith.andi %17, %19 : vector<1x32xi1>
    %21 = arith.extui %20 : vector<1x32xi1> to vector<1x32xi32>
    %22 = arith.sitofp %21 : vector<1x32xi32> to vector<1x32xf32>
    %c8_i32_11 = arith.constant 8 : i32
    %23 = vector.broadcast %c8_i32_11 : i32 to vector<1x32xi32>
    %24 = arith.cmpi sge, %15, %23 : vector<1x32xi32>
    %c16_i32 = arith.constant 16 : i32
    %25 = vector.broadcast %c16_i32 : i32 to vector<1x32xi32>
    %26 = arith.cmpi slt, %15, %25 : vector<1x32xi32>
    %27 = arith.andi %24, %26 : vector<1x32xi1>
    %28 = arith.extui %27 : vector<1x32xi1> to vector<1x32xi32>
    %29 = arith.sitofp %28 : vector<1x32xi32> to vector<1x32xf32>
    %c16_i32_12 = arith.constant 16 : i32
    %30 = vector.broadcast %c16_i32_12 : i32 to vector<1x32xi32>
    %31 = arith.cmpi sge, %15, %30 : vector<1x32xi32>
    %c24_i32 = arith.constant 24 : i32
    %32 = vector.broadcast %c24_i32 : i32 to vector<1x32xi32>
    %33 = arith.cmpi slt, %15, %32 : vector<1x32xi32>
    %34 = arith.andi %31, %33 : vector<1x32xi1>
    %35 = arith.extui %34 : vector<1x32xi1> to vector<1x32xi32>
    %36 = arith.sitofp %35 : vector<1x32xi32> to vector<1x32xf32>
    %c24_i32_13 = arith.constant 24 : i32
    %37 = vector.broadcast %c24_i32_13 : i32 to vector<1x32xi32>
    %38 = arith.cmpi sge, %15, %37 : vector<1x32xi32>
    %c32_i32 = arith.constant 32 : i32
    %39 = vector.broadcast %c32_i32 : i32 to vector<1x32xi32>
    %40 = arith.cmpi slt, %15, %39 : vector<1x32xi32>
    %41 = arith.andi %38, %40 : vector<1x32xi1>
    %42 = arith.extui %41 : vector<1x32xi1> to vector<1x32xi32>
    %43 = arith.sitofp %42 : vector<1x32xi32> to vector<1x32xf32>
    %44 = arith.addf %0, %1 : vector<42x32xf32>
    %c0_14 = arith.constant 0 : index
    %c0_15 = arith.constant 0 : index
    %c0_16 = arith.constant 0 : index
    %c0_17 = arith.constant 0 : index
    %45 = vector.load %arg6[%c0_14, %c0_15, %c0_16, %c0_17] : memref<2x4x32x32xf32, #tpu.memory_space<vmem>>, vector<1x1x32x32xf32>
    %46 = vector.shape_cast %45 : vector<1x1x32x32xf32> to vector<32x32xf32>
    %c0_18 = arith.constant 0 : index
    %c0_19 = arith.constant 0 : index
    %c0_20 = arith.constant 0 : index
    %47 = vector.load %arg9[%c0_18, %c0_19, %c0_20] : memref<2x10x64xf32, #tpu.memory_space<vmem>>, vector<1x1x32xf32>
    %48 = vector.shape_cast %47 : vector<1x1x32xf32> to vector<1x32xf32>
    %cst_21 = arith.constant dense<0.000000e+00> : vector<42x32xf32>
    %49 = tpu.matmul %44, %46, %cst_21 {dimension_numbers = #tpu.dot_dimension_numbers<[1], [0], [0], [1], [0, 0, 1, 1], [], []>} : vector<42x32xf32>, vector<32x32xf32>, vector<42x32xf32> -> vector<42x32xf32>
    %50 = vector.broadcast %48 : vector<1x32xf32> to vector<42x32xf32>
    %51 = arith.addf %49, %50 : vector<42x32xf32>
    %c0_22 = arith.constant 0 : index
    %c1 = arith.constant 1 : index
    %c0_23 = arith.constant 0 : index
    %c0_24 = arith.constant 0 : index
    %52 = vector.load %arg6[%c0_22, %c1, %c0_23, %c0_24] : memref<2x4x32x32xf32, #tpu.memory_space<vmem>>, vector<1x1x32x32xf32>
    %53 = vector.shape_cast %52 : vector<1x1x32x32xf32> to vector<32x32xf32>
    %c0_25 = arith.constant 0 : index
    %c1_26 = arith.constant 1 : index
    %c0_27 = arith.constant 0 : index
    %54 = vector.load %arg9[%c0_25, %c1_26, %c0_27] : memref<2x10x64xf32, #tpu.memory_space<vmem>>, vector<1x1x32xf32>
    %55 = vector.shape_cast %54 : vector<1x1x32xf32> to vector<1x32xf32>
    %cst_28 = arith.constant dense<0.000000e+00> : vector<42x32xf32>
    %56 = tpu.matmul %44, %53, %cst_28 {dimension_numbers = #tpu.dot_dimension_numbers<[1], [0], [0], [1], [0, 0, 1, 1], [], []>} : vector<42x32xf32>, vector<32x32xf32>, vector<42x32xf32> -> vector<42x32xf32>
    %57 = vector.broadcast %55 : vector<1x32xf32> to vector<42x32xf32>
    %58 = arith.addf %56, %57 : vector<42x32xf32>
    %c0_29 = arith.constant 0 : index
    %c2 = arith.constant 2 : index
    %c0_30 = arith.constant 0 : index
    %c0_31 = arith.constant 0 : index
    %59 = vector.load %arg6[%c0_29, %c2, %c0_30, %c0_31] : memref<2x4x32x32xf32, #tpu.memory_space<vmem>>, vector<1x1x32x32xf32>
    %60 = vector.shape_cast %59 : vector<1x1x32x32xf32> to vector<32x32xf32>
    %c0_32 = arith.constant 0 : index
    %c2_33 = arith.constant 2 : index
    %c0_34 = arith.constant 0 : index
    %61 = vector.load %arg9[%c0_32, %c2_33, %c0_34] : memref<2x10x64xf32, #tpu.memory_space<vmem>>, vector<1x1x32xf32>
    %62 = vector.shape_cast %61 : vector<1x1x32xf32> to vector<1x32xf32>
    %cst_35 = arith.constant dense<0.000000e+00> : vector<42x32xf32>
    %63 = tpu.matmul %0, %60, %cst_35 {dimension_numbers = #tpu.dot_dimension_numbers<[1], [0], [0], [1], [0, 0, 1, 1], [], []>} : vector<42x32xf32>, vector<32x32xf32>, vector<42x32xf32> -> vector<42x32xf32>
    %64 = vector.broadcast %62 : vector<1x32xf32> to vector<42x32xf32>
    %65 = arith.addf %63, %64 : vector<42x32xf32>
    %c0_36 = arith.constant 0 : index
    %c3 = arith.constant 3 : index
    %c0_37 = arith.constant 0 : index
    %c0_38 = arith.constant 0 : index
    %66 = vector.load %arg6[%c0_36, %c3, %c0_37, %c0_38] : memref<2x4x32x32xf32, #tpu.memory_space<vmem>>, vector<1x1x32x32xf32>
    %67 = vector.shape_cast %66 : vector<1x1x32x32xf32> to vector<32x32xf32>
    %c0_39 = arith.constant 0 : index
    %c3_40 = arith.constant 3 : index
    %c0_41 = arith.constant 0 : index
    %68 = vector.load %arg9[%c0_39, %c3_40, %c0_41] : memref<2x10x64xf32, #tpu.memory_space<vmem>>, vector<1x1x32xf32>
    %69 = vector.shape_cast %68 : vector<1x1x32xf32> to vector<1x32xf32>
    %cst_42 = arith.constant 0.353553385 : f32
    %70 = vector.broadcast %cst_42 : f32 to vector<1x32xf32>
    %71 = arith.mulf %22, %70 : vector<1x32xf32>
    %72 = vector.broadcast %71 : vector<1x32xf32> to vector<42x32xf32>
    %73 = arith.mulf %51, %72 : vector<42x32xf32>
    %cst_43 = arith.constant dense<0.000000e+00> : vector<42x42xf32>
    %74 = tpu.matmul %73, %58, %cst_43 {dimension_numbers = #tpu.dot_dimension_numbers<[1], [1], [0], [0], [0, 0, 1, 0], [], []>} : vector<42x32xf32>, vector<42x32xf32>, vector<42x42xf32> -> vector<42x42xf32>
    %75 = arith.addf %74, %14 : vector<42x42xf32>
    %cst_44 = arith.constant dense<0xFF800000> : vector<42xf32>
    %76 = vector.multi_reduction <maximumf>, %75, %cst_44 [1] : vector<42x42xf32> to vector<42xf32>
    %77 = vector.shape_cast %76 : vector<42xf32> to vector<42x1xf32>
    %78 = vector.broadcast %77 : vector<42x1xf32> to vector<42x42xf32>
    %79 = arith.subf %75, %78 : vector<42x42xf32>
    %80 = math.exp %79 : vector<42x42xf32>
    %cst_45 = arith.constant dense<0.000000e+00> : vector<42xf32>
    %81 = vector.multi_reduction <add>, %80, %cst_45 [1] : vector<42x42xf32> to vector<42xf32>
    %82 = vector.shape_cast %81 : vector<42xf32> to vector<42x1xf32>
    %83 = tpu.reciprocal %82 {approx = true} : vector<42x1xf32> -> vector<42x1xf32>
    %84 = vector.broadcast %83 : vector<42x1xf32> to vector<42x42xf32>
    %85 = arith.mulf %80, %84 : vector<42x42xf32>
    %86 = vector.broadcast %22 : vector<1x32xf32> to vector<42x32xf32>
    %87 = arith.mulf %65, %86 : vector<42x32xf32>
    %cst_46 = arith.constant dense<0.000000e+00> : vector<42x32xf32>
    %88 = tpu.matmul %85, %87, %cst_46 {dimension_numbers = #tpu.dot_dimension_numbers<[1], [0], [0], [1], [0, 0, 1, 1], [], []>} : vector<42x42xf32>, vector<42x32xf32>, vector<42x32xf32> -> vector<42x32xf32>
    %cst_47 = arith.constant 0.353553385 : f32
    %89 = vector.broadcast %cst_47 : f32 to vector<1x32xf32>
    %90 = arith.mulf %29, %89 : vector<1x32xf32>
    %91 = vector.broadcast %90 : vector<1x32xf32> to vector<42x32xf32>
    %92 = arith.mulf %51, %91 : vector<42x32xf32>
    %cst_48 = arith.constant dense<0.000000e+00> : vector<42x42xf32>
    %93 = tpu.matmul %92, %58, %cst_48 {dimension_numbers = #tpu.dot_dimension_numbers<[1], [1], [0], [0], [0, 0, 1, 0], [], []>} : vector<42x32xf32>, vector<42x32xf32>, vector<42x42xf32> -> vector<42x42xf32>
    %94 = arith.addf %93, %14 : vector<42x42xf32>
    %cst_49 = arith.constant dense<0xFF800000> : vector<42xf32>
    %95 = vector.multi_reduction <maximumf>, %94, %cst_49 [1] : vector<42x42xf32> to vector<42xf32>
    %96 = vector.shape_cast %95 : vector<42xf32> to vector<42x1xf32>
    %97 = vector.broadcast %96 : vector<42x1xf32> to vector<42x42xf32>
    %98 = arith.subf %94, %97 : vector<42x42xf32>
    %99 = math.exp %98 : vector<42x42xf32>
    %cst_50 = arith.constant dense<0.000000e+00> : vector<42xf32>
    %100 = vector.multi_reduction <add>, %99, %cst_50 [1] : vector<42x42xf32> to vector<42xf32>
    %101 = vector.shape_cast %100 : vector<42xf32> to vector<42x1xf32>
    %102 = tpu.reciprocal %101 {approx = true} : vector<42x1xf32> -> vector<42x1xf32>
    %103 = vector.broadcast %102 : vector<42x1xf32> to vector<42x42xf32>
    %104 = arith.mulf %99, %103 : vector<42x42xf32>
    %105 = vector.broadcast %29 : vector<1x32xf32> to vector<42x32xf32>
    %106 = arith.mulf %65, %105 : vector<42x32xf32>
    %cst_51 = arith.constant dense<0.000000e+00> : vector<42x32xf32>
    %107 = tpu.matmul %104, %106, %cst_51 {dimension_numbers = #tpu.dot_dimension_numbers<[1], [0], [0], [1], [0, 0, 1, 1], [], []>} : vector<42x42xf32>, vector<42x32xf32>, vector<42x32xf32> -> vector<42x32xf32>
    %108 = arith.addf %88, %107 : vector<42x32xf32>
    %cst_52 = arith.constant 0.353553385 : f32
    %109 = vector.broadcast %cst_52 : f32 to vector<1x32xf32>
    %110 = arith.mulf %36, %109 : vector<1x32xf32>
    %111 = vector.broadcast %110 : vector<1x32xf32> to vector<42x32xf32>
    %112 = arith.mulf %51, %111 : vector<42x32xf32>
    %cst_53 = arith.constant dense<0.000000e+00> : vector<42x42xf32>
    %113 = tpu.matmul %112, %58, %cst_53 {dimension_numbers = #tpu.dot_dimension_numbers<[1], [1], [0], [0], [0, 0, 1, 0], [], []>} : vector<42x32xf32>, vector<42x32xf32>, vector<42x42xf32> -> vector<42x42xf32>
    %114 = arith.addf %113, %14 : vector<42x42xf32>
    %cst_54 = arith.constant dense<0xFF800000> : vector<42xf32>
    %115 = vector.multi_reduction <maximumf>, %114, %cst_54 [1] : vector<42x42xf32> to vector<42xf32>
    %116 = vector.shape_cast %115 : vector<42xf32> to vector<42x1xf32>
    %117 = vector.broadcast %116 : vector<42x1xf32> to vector<42x42xf32>
    %118 = arith.subf %114, %117 : vector<42x42xf32>
    %119 = math.exp %118 : vector<42x42xf32>
    %cst_55 = arith.constant dense<0.000000e+00> : vector<42xf32>
    %120 = vector.multi_reduction <add>, %119, %cst_55 [1] : vector<42x42xf32> to vector<42xf32>
    %121 = vector.shape_cast %120 : vector<42xf32> to vector<42x1xf32>
    %122 = tpu.reciprocal %121 {approx = true} : vector<42x1xf32> -> vector<42x1xf32>
    %123 = vector.broadcast %122 : vector<42x1xf32> to vector<42x42xf32>
    %124 = arith.mulf %119, %123 : vector<42x42xf32>
    %125 = vector.broadcast %36 : vector<1x32xf32> to vector<42x32xf32>
    %126 = arith.mulf %65, %125 : vector<42x32xf32>
    %cst_56 = arith.constant dense<0.000000e+00> : vector<42x32xf32>
    %127 = tpu.matmul %124, %126, %cst_56 {dimension_numbers = #tpu.dot_dimension_numbers<[1], [0], [0], [1], [0, 0, 1, 1], [], []>} : vector<42x42xf32>, vector<42x32xf32>, vector<42x32xf32> -> vector<42x32xf32>
    %128 = arith.addf %108, %127 : vector<42x32xf32>
    %cst_57 = arith.constant 0.353553385 : f32
    %129 = vector.broadcast %cst_57 : f32 to vector<1x32xf32>
    %130 = arith.mulf %43, %129 : vector<1x32xf32>
    %131 = vector.broadcast %130 : vector<1x32xf32> to vector<42x32xf32>
    %132 = arith.mulf %51, %131 : vector<42x32xf32>
    %cst_58 = arith.constant dense<0.000000e+00> : vector<42x42xf32>
    %133 = tpu.matmul %132, %58, %cst_58 {dimension_numbers = #tpu.dot_dimension_numbers<[1], [1], [0], [0], [0, 0, 1, 0], [], []>} : vector<42x32xf32>, vector<42x32xf32>, vector<42x42xf32> -> vector<42x42xf32>
    %134 = arith.addf %133, %14 : vector<42x42xf32>
    %cst_59 = arith.constant dense<0xFF800000> : vector<42xf32>
    %135 = vector.multi_reduction <maximumf>, %134, %cst_59 [1] : vector<42x42xf32> to vector<42xf32>
    %136 = vector.shape_cast %135 : vector<42xf32> to vector<42x1xf32>
    %137 = vector.broadcast %136 : vector<42x1xf32> to vector<42x42xf32>
    %138 = arith.subf %134, %137 : vector<42x42xf32>
    %139 = math.exp %138 : vector<42x42xf32>
    %cst_60 = arith.constant dense<0.000000e+00> : vector<42xf32>
    %140 = vector.multi_reduction <add>, %139, %cst_60 [1] : vector<42x42xf32> to vector<42xf32>
    %141 = vector.shape_cast %140 : vector<42xf32> to vector<42x1xf32>
    %142 = tpu.reciprocal %141 {approx = true} : vector<42x1xf32> -> vector<42x1xf32>
    %143 = vector.broadcast %142 : vector<42x1xf32> to vector<42x42xf32>
    %144 = arith.mulf %139, %143 : vector<42x42xf32>
    %145 = vector.broadcast %43 : vector<1x32xf32> to vector<42x32xf32>
    %146 = arith.mulf %65, %145 : vector<42x32xf32>
    %cst_61 = arith.constant dense<0.000000e+00> : vector<42x32xf32>
    %147 = tpu.matmul %144, %146, %cst_61 {dimension_numbers = #tpu.dot_dimension_numbers<[1], [0], [0], [1], [0, 0, 1, 1], [], []>} : vector<42x42xf32>, vector<42x32xf32>, vector<42x32xf32> -> vector<42x32xf32>
    %148 = arith.addf %128, %147 : vector<42x32xf32>
    %cst_62 = arith.constant dense<0.000000e+00> : vector<42x32xf32>
    %149 = tpu.matmul %148, %67, %cst_62 {dimension_numbers = #tpu.dot_dimension_numbers<[1], [0], [0], [1], [0, 0, 1, 1], [], []>} : vector<42x32xf32>, vector<32x32xf32>, vector<42x32xf32> -> vector<42x32xf32>
    %150 = vector.broadcast %69 : vector<1x32xf32> to vector<42x32xf32>
    %151 = arith.addf %149, %150 : vector<42x32xf32>
    %152 = arith.addf %0, %151 : vector<42x32xf32>
    %c0_63 = arith.constant 0 : index
    %c4 = arith.constant 4 : index
    %c0_64 = arith.constant 0 : index
    %153 = vector.load %arg9[%c0_63, %c4, %c0_64] : memref<2x10x64xf32, #tpu.memory_space<vmem>>, vector<1x1x32xf32>
    %154 = vector.shape_cast %153 : vector<1x1x32xf32> to vector<1x32xf32>
    %c0_65 = arith.constant 0 : index
    %c5 = arith.constant 5 : index
    %c0_66 = arith.constant 0 : index
    %155 = vector.load %arg9[%c0_65, %c5, %c0_66] : memref<2x10x64xf32, #tpu.memory_space<vmem>>, vector<1x1x32xf32>
    %156 = vector.shape_cast %155 : vector<1x1x32xf32> to vector<1x32xf32>
    %cst_67 = arith.constant dense<0.000000e+00> : vector<42xf32>
    %157 = vector.multi_reduction <add>, %152, %cst_67 [1] : vector<42x32xf32> to vector<42xf32>
    %158 = vector.shape_cast %157 : vector<42xf32> to vector<42x1xf32>
    %cst_68 = arith.constant 3.200000e+01 : f32
    %159 = vector.broadcast %cst_68 : f32 to vector<42x1xf32>
    %160 = arith.divf %158, %159 : vector<42x1xf32>
    %161 = vector.broadcast %160 : vector<42x1xf32> to vector<42x32xf32>
    %162 = arith.subf %152, %161 : vector<42x32xf32>
    %163 = arith.mulf %162, %162 : vector<42x32xf32>
    %cst_69 = arith.constant dense<0.000000e+00> : vector<42xf32>
    %164 = vector.multi_reduction <add>, %163, %cst_69 [1] : vector<42x32xf32> to vector<42xf32>
    %165 = vector.shape_cast %164 : vector<42xf32> to vector<42x1xf32>
    %cst_70 = arith.constant 3.200000e+01 : f32
    %166 = vector.broadcast %cst_70 : f32 to vector<42x1xf32>
    %167 = arith.divf %165, %166 : vector<42x1xf32>
    %168 = vector.broadcast %160 : vector<42x1xf32> to vector<42x32xf32>
    %169 = arith.subf %152, %168 : vector<42x32xf32>
    %cst_71 = arith.constant 9.99999974E-6 : f32
    %170 = vector.broadcast %cst_71 : f32 to vector<42x1xf32>
    %171 = arith.addf %167, %170 : vector<42x1xf32>
    %172 = math.rsqrt %171 : vector<42x1xf32>
    %173 = vector.broadcast %172 : vector<42x1xf32> to vector<42x32xf32>
    %174 = arith.mulf %169, %173 : vector<42x32xf32>
    %175 = vector.broadcast %154 : vector<1x32xf32> to vector<42x32xf32>
    %176 = arith.mulf %174, %175 : vector<42x32xf32>
    %177 = vector.broadcast %156 : vector<1x32xf32> to vector<42x32xf32>
    %178 = arith.addf %176, %177 : vector<42x32xf32>
    %c0_72 = arith.constant 0 : index
    %c0_73 = arith.constant 0 : index
    %c0_74 = arith.constant 0 : index
    %179 = vector.load %arg7[%c0_72, %c0_73, %c0_74] : memref<2x32x64xf32, #tpu.memory_space<vmem>>, vector<1x32x64xf32>
    %180 = vector.shape_cast %179 : vector<1x32x64xf32> to vector<32x64xf32>
    %c0_75 = arith.constant 0 : index
    %c6 = arith.constant 6 : index
    %c0_76 = arith.constant 0 : index
    %181 = vector.load %arg9[%c0_75, %c6, %c0_76] : memref<2x10x64xf32, #tpu.memory_space<vmem>>, vector<1x1x64xf32>
    %182 = vector.shape_cast %181 : vector<1x1x64xf32> to vector<1x64xf32>
    %cst_77 = arith.constant dense<0.000000e+00> : vector<42x64xf32>
    %183 = tpu.matmul %178, %180, %cst_77 {dimension_numbers = #tpu.dot_dimension_numbers<[1], [0], [0], [1], [0, 0, 1, 1], [], []>} : vector<42x32xf32>, vector<32x64xf32>, vector<42x64xf32> -> vector<42x64xf32>
    %184 = vector.broadcast %182 : vector<1x64xf32> to vector<42x64xf32>
    %185 = arith.addf %183, %184 : vector<42x64xf32>
    %cst_78 = arith.constant 0.000000e+00 : f32
    %186 = vector.broadcast %cst_78 : f32 to vector<42x64xf32>
    %187 = arith.maximumf %185, %186 : vector<42x64xf32>
    %c0_79 = arith.constant 0 : index
    %c0_80 = arith.constant 0 : index
    %c0_81 = arith.constant 0 : index
    %188 = vector.load %arg8[%c0_79, %c0_80, %c0_81] : memref<2x64x32xf32, #tpu.memory_space<vmem>>, vector<1x64x32xf32>
    %189 = vector.shape_cast %188 : vector<1x64x32xf32> to vector<64x32xf32>
    %c0_82 = arith.constant 0 : index
    %c7 = arith.constant 7 : index
    %c0_83 = arith.constant 0 : index
    %190 = vector.load %arg9[%c0_82, %c7, %c0_83] : memref<2x10x64xf32, #tpu.memory_space<vmem>>, vector<1x1x32xf32>
    %191 = vector.shape_cast %190 : vector<1x1x32xf32> to vector<1x32xf32>
    %cst_84 = arith.constant dense<0.000000e+00> : vector<42x32xf32>
    %192 = tpu.matmul %187, %189, %cst_84 {dimension_numbers = #tpu.dot_dimension_numbers<[1], [0], [0], [1], [0, 0, 1, 1], [], []>} : vector<42x64xf32>, vector<64x32xf32>, vector<42x32xf32> -> vector<42x32xf32>
    %193 = vector.broadcast %191 : vector<1x32xf32> to vector<42x32xf32>
    %194 = arith.addf %192, %193 : vector<42x32xf32>
    %195 = arith.addf %178, %194 : vector<42x32xf32>
    %c0_85 = arith.constant 0 : index
    %c8 = arith.constant 8 : index
    %c0_86 = arith.constant 0 : index
    %196 = vector.load %arg9[%c0_85, %c8, %c0_86] : memref<2x10x64xf32, #tpu.memory_space<vmem>>, vector<1x1x32xf32>
    %197 = vector.shape_cast %196 : vector<1x1x32xf32> to vector<1x32xf32>
    %c0_87 = arith.constant 0 : index
    %c9 = arith.constant 9 : index
    %c0_88 = arith.constant 0 : index
    %198 = vector.load %arg9[%c0_87, %c9, %c0_88] : memref<2x10x64xf32, #tpu.memory_space<vmem>>, vector<1x1x32xf32>
    %199 = vector.shape_cast %198 : vector<1x1x32xf32> to vector<1x32xf32>
    %cst_89 = arith.constant dense<0.000000e+00> : vector<42xf32>
    %200 = vector.multi_reduction <add>, %195, %cst_89 [1] : vector<42x32xf32> to vector<42xf32>
    %201 = vector.shape_cast %200 : vector<42xf32> to vector<42x1xf32>
    %cst_90 = arith.constant 3.200000e+01 : f32
    %202 = vector.broadcast %cst_90 : f32 to vector<42x1xf32>
    %203 = arith.divf %201, %202 : vector<42x1xf32>
    %204 = vector.broadcast %203 : vector<42x1xf32> to vector<42x32xf32>
    %205 = arith.subf %195, %204 : vector<42x32xf32>
    %206 = arith.mulf %205, %205 : vector<42x32xf32>
    %cst_91 = arith.constant dense<0.000000e+00> : vector<42xf32>
    %207 = vector.multi_reduction <add>, %206, %cst_91 [1] : vector<42x32xf32> to vector<42xf32>
    %208 = vector.shape_cast %207 : vector<42xf32> to vector<42x1xf32>
    %cst_92 = arith.constant 3.200000e+01 : f32
    %209 = vector.broadcast %cst_92 : f32 to vector<42x1xf32>
    %210 = arith.divf %208, %209 : vector<42x1xf32>
    %211 = vector.broadcast %203 : vector<42x1xf32> to vector<42x32xf32>
    %212 = arith.subf %195, %211 : vector<42x32xf32>
    %cst_93 = arith.constant 9.99999974E-6 : f32
    %213 = vector.broadcast %cst_93 : f32 to vector<42x1xf32>
    %214 = arith.addf %210, %213 : vector<42x1xf32>
    %215 = math.rsqrt %214 : vector<42x1xf32>
    %216 = vector.broadcast %215 : vector<42x1xf32> to vector<42x32xf32>
    %217 = arith.mulf %212, %216 : vector<42x32xf32>
    %218 = vector.broadcast %197 : vector<1x32xf32> to vector<42x32xf32>
    %219 = arith.mulf %217, %218 : vector<42x32xf32>
    %220 = vector.broadcast %199 : vector<1x32xf32> to vector<42x32xf32>
    %221 = arith.addf %219, %220 : vector<42x32xf32>
    %222 = arith.addf %221, %1 : vector<42x32xf32>
    %c1_94 = arith.constant 1 : index
    %c0_95 = arith.constant 0 : index
    %c0_96 = arith.constant 0 : index
    %c0_97 = arith.constant 0 : index
    %223 = vector.load %arg6[%c1_94, %c0_95, %c0_96, %c0_97] : memref<2x4x32x32xf32, #tpu.memory_space<vmem>>, vector<1x1x32x32xf32>
    %224 = vector.shape_cast %223 : vector<1x1x32x32xf32> to vector<32x32xf32>
    %c1_98 = arith.constant 1 : index
    %c0_99 = arith.constant 0 : index
    %c0_100 = arith.constant 0 : index
    %225 = vector.load %arg9[%c1_98, %c0_99, %c0_100] : memref<2x10x64xf32, #tpu.memory_space<vmem>>, vector<1x1x32xf32>
    %226 = vector.shape_cast %225 : vector<1x1x32xf32> to vector<1x32xf32>
    %cst_101 = arith.constant dense<0.000000e+00> : vector<42x32xf32>
    %227 = tpu.matmul %222, %224, %cst_101 {dimension_numbers = #tpu.dot_dimension_numbers<[1], [0], [0], [1], [0, 0, 1, 1], [], []>} : vector<42x32xf32>, vector<32x32xf32>, vector<42x32xf32> -> vector<42x32xf32>
    %228 = vector.broadcast %226 : vector<1x32xf32> to vector<42x32xf32>
    %229 = arith.addf %227, %228 : vector<42x32xf32>
    %c1_102 = arith.constant 1 : index
    %c1_103 = arith.constant 1 : index
    %c0_104 = arith.constant 0 : index
    %c0_105 = arith.constant 0 : index
    %230 = vector.load %arg6[%c1_102, %c1_103, %c0_104, %c0_105] : memref<2x4x32x32xf32, #tpu.memory_space<vmem>>, vector<1x1x32x32xf32>
    %231 = vector.shape_cast %230 : vector<1x1x32x32xf32> to vector<32x32xf32>
    %c1_106 = arith.constant 1 : index
    %c1_107 = arith.constant 1 : index
    %c0_108 = arith.constant 0 : index
    %232 = vector.load %arg9[%c1_106, %c1_107, %c0_108] : memref<2x10x64xf32, #tpu.memory_space<vmem>>, vector<1x1x32xf32>
    %233 = vector.shape_cast %232 : vector<1x1x32xf32> to vector<1x32xf32>
    %cst_109 = arith.constant dense<0.000000e+00> : vector<42x32xf32>
    %234 = tpu.matmul %222, %231, %cst_109 {dimension_numbers = #tpu.dot_dimension_numbers<[1], [0], [0], [1], [0, 0, 1, 1], [], []>} : vector<42x32xf32>, vector<32x32xf32>, vector<42x32xf32> -> vector<42x32xf32>
    %235 = vector.broadcast %233 : vector<1x32xf32> to vector<42x32xf32>
    %236 = arith.addf %234, %235 : vector<42x32xf32>
    %c1_110 = arith.constant 1 : index
    %c2_111 = arith.constant 2 : index
    %c0_112 = arith.constant 0 : index
    %c0_113 = arith.constant 0 : index
    %237 = vector.load %arg6[%c1_110, %c2_111, %c0_112, %c0_113] : memref<2x4x32x32xf32, #tpu.memory_space<vmem>>, vector<1x1x32x32xf32>
    %238 = vector.shape_cast %237 : vector<1x1x32x32xf32> to vector<32x32xf32>
    %c1_114 = arith.constant 1 : index
    %c2_115 = arith.constant 2 : index
    %c0_116 = arith.constant 0 : index
    %239 = vector.load %arg9[%c1_114, %c2_115, %c0_116] : memref<2x10x64xf32, #tpu.memory_space<vmem>>, vector<1x1x32xf32>
    %240 = vector.shape_cast %239 : vector<1x1x32xf32> to vector<1x32xf32>
    %cst_117 = arith.constant dense<0.000000e+00> : vector<42x32xf32>
    %241 = tpu.matmul %221, %238, %cst_117 {dimension_numbers = #tpu.dot_dimension_numbers<[1], [0], [0], [1], [0, 0, 1, 1], [], []>} : vector<42x32xf32>, vector<32x32xf32>, vector<42x32xf32> -> vector<42x32xf32>
    %242 = vector.broadcast %240 : vector<1x32xf32> to vector<42x32xf32>
    %243 = arith.addf %241, %242 : vector<42x32xf32>
    %c1_118 = arith.constant 1 : index
    %c3_119 = arith.constant 3 : index
    %c0_120 = arith.constant 0 : index
    %c0_121 = arith.constant 0 : index
    %244 = vector.load %arg6[%c1_118, %c3_119, %c0_120, %c0_121] : memref<2x4x32x32xf32, #tpu.memory_space<vmem>>, vector<1x1x32x32xf32>
    %245 = vector.shape_cast %244 : vector<1x1x32x32xf32> to vector<32x32xf32>
    %c1_122 = arith.constant 1 : index
    %c3_123 = arith.constant 3 : index
    %c0_124 = arith.constant 0 : index
    %246 = vector.load %arg9[%c1_122, %c3_123, %c0_124] : memref<2x10x64xf32, #tpu.memory_space<vmem>>, vector<1x1x32xf32>
    %247 = vector.shape_cast %246 : vector<1x1x32xf32> to vector<1x32xf32>
    %cst_125 = arith.constant 0.353553385 : f32
    %248 = vector.broadcast %cst_125 : f32 to vector<1x32xf32>
    %249 = arith.mulf %22, %248 : vector<1x32xf32>
    %250 = vector.broadcast %249 : vector<1x32xf32> to vector<42x32xf32>
    %251 = arith.mulf %229, %250 : vector<42x32xf32>
    %cst_126 = arith.constant dense<0.000000e+00> : vector<42x42xf32>
    %252 = tpu.matmul %251, %236, %cst_126 {dimension_numbers = #tpu.dot_dimension_numbers<[1], [1], [0], [0], [0, 0, 1, 0], [], []>} : vector<42x32xf32>, vector<42x32xf32>, vector<42x42xf32> -> vector<42x42xf32>
    %253 = arith.addf %252, %14 : vector<42x42xf32>
    %cst_127 = arith.constant dense<0xFF800000> : vector<42xf32>
    %254 = vector.multi_reduction <maximumf>, %253, %cst_127 [1] : vector<42x42xf32> to vector<42xf32>
    %255 = vector.shape_cast %254 : vector<42xf32> to vector<42x1xf32>
    %256 = vector.broadcast %255 : vector<42x1xf32> to vector<42x42xf32>
    %257 = arith.subf %253, %256 : vector<42x42xf32>
    %258 = math.exp %257 : vector<42x42xf32>
    %cst_128 = arith.constant dense<0.000000e+00> : vector<42xf32>
    %259 = vector.multi_reduction <add>, %258, %cst_128 [1] : vector<42x42xf32> to vector<42xf32>
    %260 = vector.shape_cast %259 : vector<42xf32> to vector<42x1xf32>
    %261 = tpu.reciprocal %260 {approx = true} : vector<42x1xf32> -> vector<42x1xf32>
    %262 = vector.broadcast %261 : vector<42x1xf32> to vector<42x42xf32>
    %263 = arith.mulf %258, %262 : vector<42x42xf32>
    %264 = vector.broadcast %22 : vector<1x32xf32> to vector<42x32xf32>
    %265 = arith.mulf %243, %264 : vector<42x32xf32>
    %cst_129 = arith.constant dense<0.000000e+00> : vector<42x32xf32>
    %266 = tpu.matmul %263, %265, %cst_129 {dimension_numbers = #tpu.dot_dimension_numbers<[1], [0], [0], [1], [0, 0, 1, 1], [], []>} : vector<42x42xf32>, vector<42x32xf32>, vector<42x32xf32> -> vector<42x32xf32>
    %cst_130 = arith.constant 0.353553385 : f32
    %267 = vector.broadcast %cst_130 : f32 to vector<1x32xf32>
    %268 = arith.mulf %29, %267 : vector<1x32xf32>
    %269 = vector.broadcast %268 : vector<1x32xf32> to vector<42x32xf32>
    %270 = arith.mulf %229, %269 : vector<42x32xf32>
    %cst_131 = arith.constant dense<0.000000e+00> : vector<42x42xf32>
    %271 = tpu.matmul %270, %236, %cst_131 {dimension_numbers = #tpu.dot_dimension_numbers<[1], [1], [0], [0], [0, 0, 1, 0], [], []>} : vector<42x32xf32>, vector<42x32xf32>, vector<42x42xf32> -> vector<42x42xf32>
    %272 = arith.addf %271, %14 : vector<42x42xf32>
    %cst_132 = arith.constant dense<0xFF800000> : vector<42xf32>
    %273 = vector.multi_reduction <maximumf>, %272, %cst_132 [1] : vector<42x42xf32> to vector<42xf32>
    %274 = vector.shape_cast %273 : vector<42xf32> to vector<42x1xf32>
    %275 = vector.broadcast %274 : vector<42x1xf32> to vector<42x42xf32>
    %276 = arith.subf %272, %275 : vector<42x42xf32>
    %277 = math.exp %276 : vector<42x42xf32>
    %cst_133 = arith.constant dense<0.000000e+00> : vector<42xf32>
    %278 = vector.multi_reduction <add>, %277, %cst_133 [1] : vector<42x42xf32> to vector<42xf32>
    %279 = vector.shape_cast %278 : vector<42xf32> to vector<42x1xf32>
    %280 = tpu.reciprocal %279 {approx = true} : vector<42x1xf32> -> vector<42x1xf32>
    %281 = vector.broadcast %280 : vector<42x1xf32> to vector<42x42xf32>
    %282 = arith.mulf %277, %281 : vector<42x42xf32>
    %283 = vector.broadcast %29 : vector<1x32xf32> to vector<42x32xf32>
    %284 = arith.mulf %243, %283 : vector<42x32xf32>
    %cst_134 = arith.constant dense<0.000000e+00> : vector<42x32xf32>
    %285 = tpu.matmul %282, %284, %cst_134 {dimension_numbers = #tpu.dot_dimension_numbers<[1], [0], [0], [1], [0, 0, 1, 1], [], []>} : vector<42x42xf32>, vector<42x32xf32>, vector<42x32xf32> -> vector<42x32xf32>
    %286 = arith.addf %266, %285 : vector<42x32xf32>
    %cst_135 = arith.constant 0.353553385 : f32
    %287 = vector.broadcast %cst_135 : f32 to vector<1x32xf32>
    %288 = arith.mulf %36, %287 : vector<1x32xf32>
    %289 = vector.broadcast %288 : vector<1x32xf32> to vector<42x32xf32>
    %290 = arith.mulf %229, %289 : vector<42x32xf32>
    %cst_136 = arith.constant dense<0.000000e+00> : vector<42x42xf32>
    %291 = tpu.matmul %290, %236, %cst_136 {dimension_numbers = #tpu.dot_dimension_numbers<[1], [1], [0], [0], [0, 0, 1, 0], [], []>} : vector<42x32xf32>, vector<42x32xf32>, vector<42x42xf32> -> vector<42x42xf32>
    %292 = arith.addf %291, %14 : vector<42x42xf32>
    %cst_137 = arith.constant dense<0xFF800000> : vector<42xf32>
    %293 = vector.multi_reduction <maximumf>, %292, %cst_137 [1] : vector<42x42xf32> to vector<42xf32>
    %294 = vector.shape_cast %293 : vector<42xf32> to vector<42x1xf32>
    %295 = vector.broadcast %294 : vector<42x1xf32> to vector<42x42xf32>
    %296 = arith.subf %292, %295 : vector<42x42xf32>
    %297 = math.exp %296 : vector<42x42xf32>
    %cst_138 = arith.constant dense<0.000000e+00> : vector<42xf32>
    %298 = vector.multi_reduction <add>, %297, %cst_138 [1] : vector<42x42xf32> to vector<42xf32>
    %299 = vector.shape_cast %298 : vector<42xf32> to vector<42x1xf32>
    %300 = tpu.reciprocal %299 {approx = true} : vector<42x1xf32> -> vector<42x1xf32>
    %301 = vector.broadcast %300 : vector<42x1xf32> to vector<42x42xf32>
    %302 = arith.mulf %297, %301 : vector<42x42xf32>
    %303 = vector.broadcast %36 : vector<1x32xf32> to vector<42x32xf32>
    %304 = arith.mulf %243, %303 : vector<42x32xf32>
    %cst_139 = arith.constant dense<0.000000e+00> : vector<42x32xf32>
    %305 = tpu.matmul %302, %304, %cst_139 {dimension_numbers = #tpu.dot_dimension_numbers<[1], [0], [0], [1], [0, 0, 1, 1], [], []>} : vector<42x42xf32>, vector<42x32xf32>, vector<42x32xf32> -> vector<42x32xf32>
    %306 = arith.addf %286, %305 : vector<42x32xf32>
    %cst_140 = arith.constant 0.353553385 : f32
    %307 = vector.broadcast %cst_140 : f32 to vector<1x32xf32>
    %308 = arith.mulf %43, %307 : vector<1x32xf32>
    %309 = vector.broadcast %308 : vector<1x32xf32> to vector<42x32xf32>
    %310 = arith.mulf %229, %309 : vector<42x32xf32>
    %cst_141 = arith.constant dense<0.000000e+00> : vector<42x42xf32>
    %311 = tpu.matmul %310, %236, %cst_141 {dimension_numbers = #tpu.dot_dimension_numbers<[1], [1], [0], [0], [0, 0, 1, 0], [], []>} : vector<42x32xf32>, vector<42x32xf32>, vector<42x42xf32> -> vector<42x42xf32>
    %312 = arith.addf %311, %14 : vector<42x42xf32>
    %cst_142 = arith.constant dense<0xFF800000> : vector<42xf32>
    %313 = vector.multi_reduction <maximumf>, %312, %cst_142 [1] : vector<42x42xf32> to vector<42xf32>
    %314 = vector.shape_cast %313 : vector<42xf32> to vector<42x1xf32>
    %315 = vector.broadcast %314 : vector<42x1xf32> to vector<42x42xf32>
    %316 = arith.subf %312, %315 : vector<42x42xf32>
    %317 = math.exp %316 : vector<42x42xf32>
    %cst_143 = arith.constant dense<0.000000e+00> : vector<42xf32>
    %318 = vector.multi_reduction <add>, %317, %cst_143 [1] : vector<42x42xf32> to vector<42xf32>
    %319 = vector.shape_cast %318 : vector<42xf32> to vector<42x1xf32>
    %320 = tpu.reciprocal %319 {approx = true} : vector<42x1xf32> -> vector<42x1xf32>
    %321 = vector.broadcast %320 : vector<42x1xf32> to vector<42x42xf32>
    %322 = arith.mulf %317, %321 : vector<42x42xf32>
    %323 = vector.broadcast %43 : vector<1x32xf32> to vector<42x32xf32>
    %324 = arith.mulf %243, %323 : vector<42x32xf32>
    %cst_144 = arith.constant dense<0.000000e+00> : vector<42x32xf32>
    %325 = tpu.matmul %322, %324, %cst_144 {dimension_numbers = #tpu.dot_dimension_numbers<[1], [0], [0], [1], [0, 0, 1, 1], [], []>} : vector<42x42xf32>, vector<42x32xf32>, vector<42x32xf32> -> vector<42x32xf32>
    %326 = arith.addf %306, %325 : vector<42x32xf32>
    %cst_145 = arith.constant dense<0.000000e+00> : vector<42x32xf32>
    %327 = tpu.matmul %326, %245, %cst_145 {dimension_numbers = #tpu.dot_dimension_numbers<[1], [0], [0], [1], [0, 0, 1, 1], [], []>} : vector<42x32xf32>, vector<32x32xf32>, vector<42x32xf32> -> vector<42x32xf32>
    %328 = vector.broadcast %247 : vector<1x32xf32> to vector<42x32xf32>
    %329 = arith.addf %327, %328 : vector<42x32xf32>
    %330 = arith.addf %221, %329 : vector<42x32xf32>
    %c1_146 = arith.constant 1 : index
    %c4_147 = arith.constant 4 : index
    %c0_148 = arith.constant 0 : index
    %331 = vector.load %arg9[%c1_146, %c4_147, %c0_148] : memref<2x10x64xf32, #tpu.memory_space<vmem>>, vector<1x1x32xf32>
    %332 = vector.shape_cast %331 : vector<1x1x32xf32> to vector<1x32xf32>
    %c1_149 = arith.constant 1 : index
    %c5_150 = arith.constant 5 : index
    %c0_151 = arith.constant 0 : index
    %333 = vector.load %arg9[%c1_149, %c5_150, %c0_151] : memref<2x10x64xf32, #tpu.memory_space<vmem>>, vector<1x1x32xf32>
    %334 = vector.shape_cast %333 : vector<1x1x32xf32> to vector<1x32xf32>
    %cst_152 = arith.constant dense<0.000000e+00> : vector<42xf32>
    %335 = vector.multi_reduction <add>, %330, %cst_152 [1] : vector<42x32xf32> to vector<42xf32>
    %336 = vector.shape_cast %335 : vector<42xf32> to vector<42x1xf32>
    %cst_153 = arith.constant 3.200000e+01 : f32
    %337 = vector.broadcast %cst_153 : f32 to vector<42x1xf32>
    %338 = arith.divf %336, %337 : vector<42x1xf32>
    %339 = vector.broadcast %338 : vector<42x1xf32> to vector<42x32xf32>
    %340 = arith.subf %330, %339 : vector<42x32xf32>
    %341 = arith.mulf %340, %340 : vector<42x32xf32>
    %cst_154 = arith.constant dense<0.000000e+00> : vector<42xf32>
    %342 = vector.multi_reduction <add>, %341, %cst_154 [1] : vector<42x32xf32> to vector<42xf32>
    %343 = vector.shape_cast %342 : vector<42xf32> to vector<42x1xf32>
    %cst_155 = arith.constant 3.200000e+01 : f32
    %344 = vector.broadcast %cst_155 : f32 to vector<42x1xf32>
    %345 = arith.divf %343, %344 : vector<42x1xf32>
    %346 = vector.broadcast %338 : vector<42x1xf32> to vector<42x32xf32>
    %347 = arith.subf %330, %346 : vector<42x32xf32>
    %cst_156 = arith.constant 9.99999974E-6 : f32
    %348 = vector.broadcast %cst_156 : f32 to vector<42x1xf32>
    %349 = arith.addf %345, %348 : vector<42x1xf32>
    %350 = math.rsqrt %349 : vector<42x1xf32>
    %351 = vector.broadcast %350 : vector<42x1xf32> to vector<42x32xf32>
    %352 = arith.mulf %347, %351 : vector<42x32xf32>
    %353 = vector.broadcast %332 : vector<1x32xf32> to vector<42x32xf32>
    %354 = arith.mulf %352, %353 : vector<42x32xf32>
    %355 = vector.broadcast %334 : vector<1x32xf32> to vector<42x32xf32>
    %356 = arith.addf %354, %355 : vector<42x32xf32>
    %c1_157 = arith.constant 1 : index
    %c0_158 = arith.constant 0 : index
    %c0_159 = arith.constant 0 : index
    %357 = vector.load %arg7[%c1_157, %c0_158, %c0_159] : memref<2x32x64xf32, #tpu.memory_space<vmem>>, vector<1x32x64xf32>
    %358 = vector.shape_cast %357 : vector<1x32x64xf32> to vector<32x64xf32>
    %c1_160 = arith.constant 1 : index
    %c6_161 = arith.constant 6 : index
    %c0_162 = arith.constant 0 : index
    %359 = vector.load %arg9[%c1_160, %c6_161, %c0_162] : memref<2x10x64xf32, #tpu.memory_space<vmem>>, vector<1x1x64xf32>
    %360 = vector.shape_cast %359 : vector<1x1x64xf32> to vector<1x64xf32>
    %cst_163 = arith.constant dense<0.000000e+00> : vector<42x64xf32>
    %361 = tpu.matmul %356, %358, %cst_163 {dimension_numbers = #tpu.dot_dimension_numbers<[1], [0], [0], [1], [0, 0, 1, 1], [], []>} : vector<42x32xf32>, vector<32x64xf32>, vector<42x64xf32> -> vector<42x64xf32>
    %362 = vector.broadcast %360 : vector<1x64xf32> to vector<42x64xf32>
    %363 = arith.addf %361, %362 : vector<42x64xf32>
    %cst_164 = arith.constant 0.000000e+00 : f32
    %364 = vector.broadcast %cst_164 : f32 to vector<42x64xf32>
    %365 = arith.maximumf %363, %364 : vector<42x64xf32>
    %c1_165 = arith.constant 1 : index
    %c0_166 = arith.constant 0 : index
    %c0_167 = arith.constant 0 : index
    %366 = vector.load %arg8[%c1_165, %c0_166, %c0_167] : memref<2x64x32xf32, #tpu.memory_space<vmem>>, vector<1x64x32xf32>
    %367 = vector.shape_cast %366 : vector<1x64x32xf32> to vector<64x32xf32>
    %c1_168 = arith.constant 1 : index
    %c7_169 = arith.constant 7 : index
    %c0_170 = arith.constant 0 : index
    %368 = vector.load %arg9[%c1_168, %c7_169, %c0_170] : memref<2x10x64xf32, #tpu.memory_space<vmem>>, vector<1x1x32xf32>
    %369 = vector.shape_cast %368 : vector<1x1x32xf32> to vector<1x32xf32>
    %cst_171 = arith.constant dense<0.000000e+00> : vector<42x32xf32>
    %370 = tpu.matmul %365, %367, %cst_171 {dimension_numbers = #tpu.dot_dimension_numbers<[1], [0], [0], [1], [0, 0, 1, 1], [], []>} : vector<42x64xf32>, vector<64x32xf32>, vector<42x32xf32> -> vector<42x32xf32>
    %371 = vector.broadcast %369 : vector<1x32xf32> to vector<42x32xf32>
    %372 = arith.addf %370, %371 : vector<42x32xf32>
    %373 = arith.addf %356, %372 : vector<42x32xf32>
    %c1_172 = arith.constant 1 : index
    %c8_173 = arith.constant 8 : index
    %c0_174 = arith.constant 0 : index
    %374 = vector.load %arg9[%c1_172, %c8_173, %c0_174] : memref<2x10x64xf32, #tpu.memory_space<vmem>>, vector<1x1x32xf32>
    %375 = vector.shape_cast %374 : vector<1x1x32xf32> to vector<1x32xf32>
    %c1_175 = arith.constant 1 : index
    %c9_176 = arith.constant 9 : index
    %c0_177 = arith.constant 0 : index
    %376 = vector.load %arg9[%c1_175, %c9_176, %c0_177] : memref<2x10x64xf32, #tpu.memory_space<vmem>>, vector<1x1x32xf32>
    %377 = vector.shape_cast %376 : vector<1x1x32xf32> to vector<1x32xf32>
    %cst_178 = arith.constant dense<0.000000e+00> : vector<42xf32>
    %378 = vector.multi_reduction <add>, %373, %cst_178 [1] : vector<42x32xf32> to vector<42xf32>
    %379 = vector.shape_cast %378 : vector<42xf32> to vector<42x1xf32>
    %cst_179 = arith.constant 3.200000e+01 : f32
    %380 = vector.broadcast %cst_179 : f32 to vector<42x1xf32>
    %381 = arith.divf %379, %380 : vector<42x1xf32>
    %382 = vector.broadcast %381 : vector<42x1xf32> to vector<42x32xf32>
    %383 = arith.subf %373, %382 : vector<42x32xf32>
    %384 = arith.mulf %383, %383 : vector<42x32xf32>
    %cst_180 = arith.constant dense<0.000000e+00> : vector<42xf32>
    %385 = vector.multi_reduction <add>, %384, %cst_180 [1] : vector<42x32xf32> to vector<42xf32>
    %386 = vector.shape_cast %385 : vector<42xf32> to vector<42x1xf32>
    %cst_181 = arith.constant 3.200000e+01 : f32
    %387 = vector.broadcast %cst_181 : f32 to vector<42x1xf32>
    %388 = arith.divf %386, %387 : vector<42x1xf32>
    %389 = vector.broadcast %381 : vector<42x1xf32> to vector<42x32xf32>
    %390 = arith.subf %373, %389 : vector<42x32xf32>
    %cst_182 = arith.constant 9.99999974E-6 : f32
    %391 = vector.broadcast %cst_182 : f32 to vector<42x1xf32>
    %392 = arith.addf %388, %391 : vector<42x1xf32>
    %393 = math.rsqrt %392 : vector<42x1xf32>
    %394 = vector.broadcast %393 : vector<42x1xf32> to vector<42x32xf32>
    %395 = arith.mulf %390, %394 : vector<42x32xf32>
    %396 = vector.broadcast %375 : vector<1x32xf32> to vector<42x32xf32>
    %397 = arith.mulf %395, %396 : vector<42x32xf32>
    %398 = vector.broadcast %377 : vector<1x32xf32> to vector<42x32xf32>
    %399 = arith.addf %397, %398 : vector<42x32xf32>
    %c0_183 = arith.constant 0 : index
    %c0_184 = arith.constant 0 : index
    %400 = vector.load %arg5[%c0_183, %c0_184] : memref<42x1xf32, #tpu.memory_space<vmem>>, vector<42x1xf32>
    %401 = vector.broadcast %400 : vector<42x1xf32> to vector<42x32xf32>
    %402 = arith.mulf %399, %401 : vector<42x32xf32>
    %c0_185 = arith.constant 0 : index
    %c0_186 = arith.constant 0 : index
    %c0_187 = arith.constant 0 : index
    %403 = vector.load %arg10[%c0_185, %c0_186, %c0_187] : memref<5x32x32xf32, #tpu.memory_space<vmem>>, vector<1x32x32xf32>
    %404 = vector.shape_cast %403 : vector<1x32x32xf32> to vector<32x32xf32>
    %c0_188 = arith.constant 0 : index
    %c0_189 = arith.constant 0 : index
    %405 = vector.load %arg11[%c0_188, %c0_189] : memref<7x64xf32, #tpu.memory_space<vmem>>, vector<1x32xf32>
    %cst_190 = arith.constant dense<0.000000e+00> : vector<42x32xf32>
    %406 = tpu.matmul %402, %404, %cst_190 {dimension_numbers = #tpu.dot_dimension_numbers<[1], [0], [0], [1], [0, 0, 1, 1], [], []>} : vector<42x32xf32>, vector<32x32xf32>, vector<42x32xf32> -> vector<42x32xf32>
    %407 = vector.broadcast %405 : vector<1x32xf32> to vector<42x32xf32>
    %408 = arith.addf %406, %407 : vector<42x32xf32>
    %c1_191 = arith.constant 1 : index
    %c0_192 = arith.constant 0 : index
    %409 = vector.load %arg11[%c1_191, %c0_192] : memref<7x64xf32, #tpu.memory_space<vmem>>, vector<1x32xf32>
    %c2_193 = arith.constant 2 : index
    %c0_194 = arith.constant 0 : index
    %410 = vector.load %arg11[%c2_193, %c0_194] : memref<7x64xf32, #tpu.memory_space<vmem>>, vector<1x32xf32>
    %cst_195 = arith.constant dense<0.000000e+00> : vector<42xf32>
    %411 = vector.multi_reduction <add>, %408, %cst_195 [1] : vector<42x32xf32> to vector<42xf32>
    %412 = vector.shape_cast %411 : vector<42xf32> to vector<42x1xf32>
    %cst_196 = arith.constant 3.200000e+01 : f32
    %413 = vector.broadcast %cst_196 : f32 to vector<42x1xf32>
    %414 = arith.divf %412, %413 : vector<42x1xf32>
    %415 = vector.broadcast %414 : vector<42x1xf32> to vector<42x32xf32>
    %416 = arith.subf %408, %415 : vector<42x32xf32>
    %417 = arith.mulf %416, %416 : vector<42x32xf32>
    %cst_197 = arith.constant dense<0.000000e+00> : vector<42xf32>
    %418 = vector.multi_reduction <add>, %417, %cst_197 [1] : vector<42x32xf32> to vector<42xf32>
    %419 = vector.shape_cast %418 : vector<42xf32> to vector<42x1xf32>
    %cst_198 = arith.constant 3.200000e+01 : f32
    %420 = vector.broadcast %cst_198 : f32 to vector<42x1xf32>
    %421 = arith.divf %419, %420 : vector<42x1xf32>
    %422 = vector.broadcast %414 : vector<42x1xf32> to vector<42x32xf32>
    %423 = arith.subf %408, %422 : vector<42x32xf32>
    %cst_199 = arith.constant 9.99999974E-6 : f32
    %424 = vector.broadcast %cst_199 : f32 to vector<42x1xf32>
    %425 = arith.addf %421, %424 : vector<42x1xf32>
    %426 = math.rsqrt %425 : vector<42x1xf32>
    %427 = vector.broadcast %426 : vector<42x1xf32> to vector<42x32xf32>
    %428 = arith.mulf %423, %427 : vector<42x32xf32>
    %429 = vector.broadcast %409 : vector<1x32xf32> to vector<42x32xf32>
    %430 = arith.mulf %428, %429 : vector<42x32xf32>
    %431 = vector.broadcast %410 : vector<1x32xf32> to vector<42x32xf32>
    %432 = arith.addf %430, %431 : vector<42x32xf32>
    %c4_200 = arith.constant 4 : index
    %c0_201 = arith.constant 0 : index
    %c0_202 = arith.constant 0 : index
    %433 = vector.load %arg10[%c4_200, %c0_201, %c0_202] : memref<5x32x32xf32, #tpu.memory_space<vmem>>, vector<1x32x32xf32>
    %434 = vector.shape_cast %433 : vector<1x32x32xf32> to vector<32x32xf32>
    %c6_203 = arith.constant 6 : index
    %c0_204 = arith.constant 0 : index
    %435 = vector.load %arg11[%c6_203, %c0_204] : memref<7x64xf32, #tpu.memory_space<vmem>>, vector<1x32xf32>
    %cst_205 = arith.constant dense<0.000000e+00> : vector<42x32xf32>
    %436 = tpu.matmul %432, %434, %cst_205 {dimension_numbers = #tpu.dot_dimension_numbers<[1], [0], [0], [1], [0, 0, 1, 1], [], []>} : vector<42x32xf32>, vector<32x32xf32>, vector<42x32xf32> -> vector<42x32xf32>
    %437 = vector.broadcast %435 : vector<1x32xf32> to vector<42x32xf32>
    %438 = arith.addf %436, %437 : vector<42x32xf32>
    %c1_206 = arith.constant 1 : index
    %c0_207 = arith.constant 0 : index
    %c0_208 = arith.constant 0 : index
    %439 = vector.load %arg10[%c1_206, %c0_207, %c0_208] : memref<5x32x32xf32, #tpu.memory_space<vmem>>, vector<1x32x32xf32>
    %440 = vector.shape_cast %439 : vector<1x32x32xf32> to vector<32x32xf32>
    %c3_209 = arith.constant 3 : index
    %c0_210 = arith.constant 0 : index
    %441 = vector.load %arg11[%c3_209, %c0_210] : memref<7x64xf32, #tpu.memory_space<vmem>>, vector<1x32xf32>
    %cst_211 = arith.constant dense<0.000000e+00> : vector<42x32xf32>
    %442 = tpu.matmul %432, %440, %cst_211 {dimension_numbers = #tpu.dot_dimension_numbers<[1], [0], [0], [1], [0, 0, 1, 1], [], []>} : vector<42x32xf32>, vector<32x32xf32>, vector<42x32xf32> -> vector<42x32xf32>
    %443 = vector.broadcast %441 : vector<1x32xf32> to vector<42x32xf32>
    %444 = arith.addf %442, %443 : vector<42x32xf32>
    %cst_212 = arith.constant 0.000000e+00 : f32
    %445 = vector.broadcast %cst_212 : f32 to vector<42x32xf32>
    %446 = arith.maximumf %444, %445 : vector<42x32xf32>
    %c2_213 = arith.constant 2 : index
    %c0_214 = arith.constant 0 : index
    %c0_215 = arith.constant 0 : index
    %447 = vector.load %arg10[%c2_213, %c0_214, %c0_215] : memref<5x32x32xf32, #tpu.memory_space<vmem>>, vector<1x32x32xf32>
    %448 = vector.shape_cast %447 : vector<1x32x32xf32> to vector<32x32xf32>
    %c4_216 = arith.constant 4 : index
    %c0_217 = arith.constant 0 : index
    %449 = vector.load %arg11[%c4_216, %c0_217] : memref<7x64xf32, #tpu.memory_space<vmem>>, vector<1x32xf32>
    %cst_218 = arith.constant dense<0.000000e+00> : vector<42x32xf32>
    %450 = tpu.matmul %446, %448, %cst_218 {dimension_numbers = #tpu.dot_dimension_numbers<[1], [0], [0], [1], [0, 0, 1, 1], [], []>} : vector<42x32xf32>, vector<32x32xf32>, vector<42x32xf32> -> vector<42x32xf32>
    %451 = vector.broadcast %449 : vector<1x32xf32> to vector<42x32xf32>
    %452 = arith.addf %450, %451 : vector<42x32xf32>
    %cst_219 = arith.constant 0.000000e+00 : f32
    %453 = vector.broadcast %cst_219 : f32 to vector<42x32xf32>
    %454 = arith.maximumf %452, %453 : vector<42x32xf32>
    %c3_220 = arith.constant 3 : index
    %c0_221 = arith.constant 0 : index
    %c0_222 = arith.constant 0 : index
    %455 = vector.load %arg10[%c3_220, %c0_221, %c0_222] : memref<5x32x32xf32, #tpu.memory_space<vmem>>, vector<1x32x32xf32>
    %456 = vector.shape_cast %455 : vector<1x32x32xf32> to vector<32x32xf32>
    %c5_223 = arith.constant 5 : index
    %c0_224 = arith.constant 0 : index
    %457 = vector.load %arg11[%c5_223, %c0_224] : memref<7x64xf32, #tpu.memory_space<vmem>>, vector<1x32xf32>
    %cst_225 = arith.constant dense<0.000000e+00> : vector<42x32xf32>
    %458 = tpu.matmul %454, %456, %cst_225 {dimension_numbers = #tpu.dot_dimension_numbers<[1], [0], [0], [1], [0, 0, 1, 1], [], []>} : vector<42x32xf32>, vector<32x32xf32>, vector<42x32xf32> -> vector<42x32xf32>
    %459 = vector.broadcast %457 : vector<1x32xf32> to vector<42x32xf32>
    %460 = arith.addf %458, %459 : vector<42x32xf32>
    %c0_226 = arith.constant 0 : index
    %c0_227 = arith.constant 0 : index
    %c0_228 = arith.constant 0 : index
    %461 = vector.load %arg12[%c0_226, %c0_227, %c0_228] : memref<3x42x32xf32, #tpu.memory_space<vmem>>, vector<1x42x32xf32>
    %462 = vector.shape_cast %461 : vector<1x42x32xf32> to vector<42x32xf32>
    %463 = vector.shape_cast %399 : vector<42x32xf32> to vector<1x42x32xf32>
    tpu.vector_store %arg12[%c0_226, %c0_227, %c0_228], %463 {strides = array<i32>} : memref<3x42x32xf32, #tpu.memory_space<vmem>>, vector<1x42x32xf32>,
    %c1_229 = arith.constant 1 : index
    %c0_230 = arith.constant 0 : index
    %c0_231 = arith.constant 0 : index
    %464 = vector.load %arg12[%c1_229, %c0_230, %c0_231] : memref<3x42x32xf32, #tpu.memory_space<vmem>>, vector<1x42x32xf32>
    %465 = vector.shape_cast %464 : vector<1x42x32xf32> to vector<42x32xf32>
    %466 = vector.shape_cast %438 : vector<42x32xf32> to vector<1x42x32xf32>
    tpu.vector_store %arg12[%c1_229, %c0_230, %c0_231], %466 {strides = array<i32>} : memref<3x42x32xf32, #tpu.memory_space<vmem>>, vector<1x42x32xf32>,
    %c2_232 = arith.constant 2 : index
    %c0_233 = arith.constant 0 : index
    %c0_234 = arith.constant 0 : index
    %467 = vector.load %arg12[%c2_232, %c0_233, %c0_234] : memref<3x42x32xf32, #tpu.memory_space<vmem>>, vector<1x42x32xf32>
    %468 = vector.shape_cast %467 : vector<1x42x32xf32> to vector<42x32xf32>
    %469 = vector.shape_cast %460 : vector<42x32xf32> to vector<1x42x32xf32>
    tpu.vector_store %arg12[%c2_232, %c0_233, %c0_234], %469 {strides = array<i32>} : memref<3x42x32xf32, #tpu.memory_space<vmem>>, vector<1x42x32xf32>,
    return
  }
}

module attributes {stable_mosaic.version = 11 : i64} {
  func.func @_decoder_kernel(%arg0: memref<32x32xf32, #tpu.memory_space<vmem>>, %arg1: memref<32x32xf32, #tpu.memory_space<vmem>>, %arg2: memref<42x32xf32, #tpu.memory_space<vmem>>, %arg3: memref<42x32xf32, #tpu.memory_space<vmem>>, %arg4: memref<32x1xf32, #tpu.memory_space<vmem>>, %arg5: memref<1x32xf32, #tpu.memory_space<vmem>>, %arg6: memref<1x42xf32, #tpu.memory_space<vmem>>, %arg7: memref<1x42xf32, #tpu.memory_space<vmem>>, %arg8: memref<2x12x32x32xf32, #tpu.memory_space<vmem>>, %arg9: memref<2x32x64xf32, #tpu.memory_space<vmem>>, %arg10: memref<2x64x32xf32, #tpu.memory_space<vmem>>, %arg11: memref<2x20x64xf32, #tpu.memory_space<vmem>>, %arg12: memref<2x32x32xf32, #tpu.memory_space<vmem>>, %arg13: memref<2x32xf32, #tpu.memory_space<vmem>>, %arg14: memref<2x2x32x32xf32, #tpu.memory_space<vmem>>) attributes {dimension_semantics = [], scalar_prefetch = 0 : i64, scratch_operands = 0 : i64, tpu.core_type = #tpu.core_type<tc>} {
    %c0 = arith.constant 0 : index
    %c0_0 = arith.constant 0 : index
    %0 = vector.load %arg0[%c0, %c0_0] : memref<32x32xf32, #tpu.memory_space<vmem>>, vector<32x32xf32>
    %c0_1 = arith.constant 0 : index
    %c0_2 = arith.constant 0 : index
    %1 = vector.load %arg1[%c0_1, %c0_2] : memref<32x32xf32, #tpu.memory_space<vmem>>, vector<32x32xf32>
    %c0_3 = arith.constant 0 : index
    %c0_4 = arith.constant 0 : index
    %2 = vector.load %arg2[%c0_3, %c0_4] : memref<42x32xf32, #tpu.memory_space<vmem>>, vector<42x32xf32>
    %c0_5 = arith.constant 0 : index
    %c0_6 = arith.constant 0 : index
    %3 = vector.load %arg3[%c0_5, %c0_6] : memref<42x32xf32, #tpu.memory_space<vmem>>, vector<42x32xf32>
    %4 = arith.addf %2, %3 : vector<42x32xf32>
    %c0_7 = arith.constant 0 : index
    %c0_8 = arith.constant 0 : index
    %5 = vector.load %arg4[%c0_7, %c0_8] : memref<32x1xf32, #tpu.memory_space<vmem>>, vector<32x1xf32>
    %c0_9 = arith.constant 0 : index
    %c0_10 = arith.constant 0 : index
    %6 = vector.load %arg5[%c0_9, %c0_10] : memref<1x32xf32, #tpu.memory_space<vmem>>, vector<1x32xf32>
    %7 = vector.broadcast %5 : vector<32x1xf32> to vector<32x32xf32>
    %8 = vector.broadcast %6 : vector<1x32xf32> to vector<32x32xf32>
    %9 = arith.cmpf oeq, %7, %8 : vector<32x32xf32>
    %cst = arith.constant 0.000000e+00 : f32
    %cst_11 = arith.constant -1.000000e+09 : f32
    %10 = vector.broadcast %cst : f32 to vector<32x32xf32>
    %11 = vector.broadcast %cst_11 : f32 to vector<32x32xf32>
    %12 = arith.select %9, %10, %11 : vector<32x32xi1>, vector<32x32xf32>
    %c0_12 = arith.constant 0 : index
    %c0_13 = arith.constant 0 : index
    %13 = vector.load %arg4[%c0_12, %c0_13] : memref<32x1xf32, #tpu.memory_space<vmem>>, vector<32x1xf32>
    %c0_14 = arith.constant 0 : index
    %c0_15 = arith.constant 0 : index
    %14 = vector.load %arg6[%c0_14, %c0_15] : memref<1x42xf32, #tpu.memory_space<vmem>>, vector<1x42xf32>
    %15 = vector.broadcast %13 : vector<32x1xf32> to vector<32x42xf32>
    %16 = vector.broadcast %14 : vector<1x42xf32> to vector<32x42xf32>
    %17 = arith.cmpf oeq, %15, %16 : vector<32x42xf32>
    %c0_16 = arith.constant 0 : index
    %c0_17 = arith.constant 0 : index
    %18 = vector.load %arg7[%c0_16, %c0_17] : memref<1x42xf32, #tpu.memory_space<vmem>>, vector<1x42xf32>
    %cst_18 = arith.constant 0.000000e+00 : f32
    %19 = vector.broadcast %cst_18 : f32 to vector<1x42xf32>
    %20 = arith.cmpf oeq, %18, %19 : vector<1x42xf32>
    %21 = vector.broadcast %20 : vector<1x42xi1> to vector<32x42xi1>
    %22 = arith.andi %17, %21 : vector<32x42xi1>
    %cst_19 = arith.constant 0.000000e+00 : f32
    %cst_20 = arith.constant -1.000000e+09 : f32
    %23 = vector.broadcast %cst_19 : f32 to vector<32x42xf32>
    %24 = vector.broadcast %cst_20 : f32 to vector<32x42xf32>
    %25 = arith.select %22, %23, %24 : vector<32x42xi1>, vector<32x42xf32>
    %26 = tpu.iota {dimensions = array<i32: 1>} : vector<1x32xi32>
    %c0_i32 = arith.constant 0 : i32
    %27 = vector.broadcast %c0_i32 : i32 to vector<1x32xi32>
    %28 = arith.cmpi sge, %26, %27 : vector<1x32xi32>
    %c8_i32 = arith.constant 8 : i32
    %29 = vector.broadcast %c8_i32 : i32 to vector<1x32xi32>
    %30 = arith.cmpi slt, %26, %29 : vector<1x32xi32>
    %31 = arith.andi %28, %30 : vector<1x32xi1>
    %32 = arith.extui %31 : vector<1x32xi1> to vector<1x32xi32>
    %33 = arith.sitofp %32 : vector<1x32xi32> to vector<1x32xf32>
    %c8_i32_21 = arith.constant 8 : i32
    %34 = vector.broadcast %c8_i32_21 : i32 to vector<1x32xi32>
    %35 = arith.cmpi sge, %26, %34 : vector<1x32xi32>
    %c16_i32 = arith.constant 16 : i32
    %36 = vector.broadcast %c16_i32 : i32 to vector<1x32xi32>
    %37 = arith.cmpi slt, %26, %36 : vector<1x32xi32>
    %38 = arith.andi %35, %37 : vector<1x32xi1>
    %39 = arith.extui %38 : vector<1x32xi1> to vector<1x32xi32>
    %40 = arith.sitofp %39 : vector<1x32xi32> to vector<1x32xf32>
    %c16_i32_22 = arith.constant 16 : i32
    %41 = vector.broadcast %c16_i32_22 : i32 to vector<1x32xi32>
    %42 = arith.cmpi sge, %26, %41 : vector<1x32xi32>
    %c24_i32 = arith.constant 24 : i32
    %43 = vector.broadcast %c24_i32 : i32 to vector<1x32xi32>
    %44 = arith.cmpi slt, %26, %43 : vector<1x32xi32>
    %45 = arith.andi %42, %44 : vector<1x32xi1>
    %46 = arith.extui %45 : vector<1x32xi1> to vector<1x32xi32>
    %47 = arith.sitofp %46 : vector<1x32xi32> to vector<1x32xf32>
    %c24_i32_23 = arith.constant 24 : i32
    %48 = vector.broadcast %c24_i32_23 : i32 to vector<1x32xi32>
    %49 = arith.cmpi sge, %26, %48 : vector<1x32xi32>
    %c32_i32 = arith.constant 32 : i32
    %50 = vector.broadcast %c32_i32 : i32 to vector<1x32xi32>
    %51 = arith.cmpi slt, %26, %50 : vector<1x32xi32>
    %52 = arith.andi %49, %51 : vector<1x32xi1>
    %53 = arith.extui %52 : vector<1x32xi1> to vector<1x32xi32>
    %54 = arith.sitofp %53 : vector<1x32xi32> to vector<1x32xf32>
    %c0_24 = arith.constant 0 : index
    %c0_25 = arith.constant 0 : index
    %c0_26 = arith.constant 0 : index
    %55 = vector.load %arg12[%c0_24, %c0_25, %c0_26] : memref<2x32x32xf32, #tpu.memory_space<vmem>>, vector<1x32x32xf32>
    %56 = vector.shape_cast %55 : vector<1x32x32xf32> to vector<32x32xf32>
    %c0_27 = arith.constant 0 : index
    %c0_28 = arith.constant 0 : index
    %57 = vector.load %arg13[%c0_27, %c0_28] : memref<2x32xf32, #tpu.memory_space<vmem>>, vector<1x32xf32>
    %cst_29 = arith.constant dense<0.000000e+00> : vector<32x32xf32>
    %58 = tpu.matmul %1, %56, %cst_29 {dimension_numbers = #tpu.dot_dimension_numbers<[1], [0], [0], [1], [0, 0, 1, 1], [], []>} : vector<32x32xf32>, vector<32x32xf32>, vector<32x32xf32> -> vector<32x32xf32>
    %59 = vector.broadcast %57 : vector<1x32xf32> to vector<32x32xf32>
    %60 = arith.addf %58, %59 : vector<32x32xf32>
    %cst_30 = arith.constant 0.000000e+00 : f32
    %61 = vector.broadcast %cst_30 : f32 to vector<32x32xf32>
    %62 = arith.maximumf %60, %61 : vector<32x32xf32>
    %c1 = arith.constant 1 : index
    %c0_31 = arith.constant 0 : index
    %c0_32 = arith.constant 0 : index
    %63 = vector.load %arg12[%c1, %c0_31, %c0_32] : memref<2x32x32xf32, #tpu.memory_space<vmem>>, vector<1x32x32xf32>
    %64 = vector.shape_cast %63 : vector<1x32x32xf32> to vector<32x32xf32>
    %c1_33 = arith.constant 1 : index
    %c0_34 = arith.constant 0 : index
    %65 = vector.load %arg13[%c1_33, %c0_34] : memref<2x32xf32, #tpu.memory_space<vmem>>, vector<1x32xf32>
    %cst_35 = arith.constant dense<0.000000e+00> : vector<32x32xf32>
    %66 = tpu.matmul %62, %64, %cst_35 {dimension_numbers = #tpu.dot_dimension_numbers<[1], [0], [0], [1], [0, 0, 1, 1], [], []>} : vector<32x32xf32>, vector<32x32xf32>, vector<32x32xf32> -> vector<32x32xf32>
    %67 = vector.broadcast %65 : vector<1x32xf32> to vector<32x32xf32>
    %68 = arith.addf %66, %67 : vector<32x32xf32>
    %69 = arith.addf %0, %68 : vector<32x32xf32>
    %c0_36 = arith.constant 0 : index
    %c0_37 = arith.constant 0 : index
    %c0_38 = arith.constant 0 : index
    %c0_39 = arith.constant 0 : index
    %70 = vector.load %arg8[%c0_36, %c0_37, %c0_38, %c0_39] : memref<2x12x32x32xf32, #tpu.memory_space<vmem>>, vector<1x1x32x32xf32>
    %71 = vector.shape_cast %70 : vector<1x1x32x32xf32> to vector<32x32xf32>
    %c0_40 = arith.constant 0 : index
    %c0_41 = arith.constant 0 : index
    %c0_42 = arith.constant 0 : index
    %72 = vector.load %arg11[%c0_40, %c0_41, %c0_42] : memref<2x20x64xf32, #tpu.memory_space<vmem>>, vector<1x1x32xf32>
    %73 = vector.shape_cast %72 : vector<1x1x32xf32> to vector<1x32xf32>
    %cst_43 = arith.constant dense<0.000000e+00> : vector<32x32xf32>
    %74 = tpu.matmul %69, %71, %cst_43 {dimension_numbers = #tpu.dot_dimension_numbers<[1], [0], [0], [1], [0, 0, 1, 1], [], []>} : vector<32x32xf32>, vector<32x32xf32>, vector<32x32xf32> -> vector<32x32xf32>
    %75 = vector.broadcast %73 : vector<1x32xf32> to vector<32x32xf32>
    %76 = arith.addf %74, %75 : vector<32x32xf32>
    %c0_44 = arith.constant 0 : index
    %c1_45 = arith.constant 1 : index
    %c0_46 = arith.constant 0 : index
    %c0_47 = arith.constant 0 : index
    %77 = vector.load %arg8[%c0_44, %c1_45, %c0_46, %c0_47] : memref<2x12x32x32xf32, #tpu.memory_space<vmem>>, vector<1x1x32x32xf32>
    %78 = vector.shape_cast %77 : vector<1x1x32x32xf32> to vector<32x32xf32>
    %c0_48 = arith.constant 0 : index
    %c1_49 = arith.constant 1 : index
    %c0_50 = arith.constant 0 : index
    %79 = vector.load %arg11[%c0_48, %c1_49, %c0_50] : memref<2x20x64xf32, #tpu.memory_space<vmem>>, vector<1x1x32xf32>
    %80 = vector.shape_cast %79 : vector<1x1x32xf32> to vector<1x32xf32>
    %cst_51 = arith.constant dense<0.000000e+00> : vector<32x32xf32>
    %81 = tpu.matmul %69, %78, %cst_51 {dimension_numbers = #tpu.dot_dimension_numbers<[1], [0], [0], [1], [0, 0, 1, 1], [], []>} : vector<32x32xf32>, vector<32x32xf32>, vector<32x32xf32> -> vector<32x32xf32>
    %82 = vector.broadcast %80 : vector<1x32xf32> to vector<32x32xf32>
    %83 = arith.addf %81, %82 : vector<32x32xf32>
    %c0_52 = arith.constant 0 : index
    %c2 = arith.constant 2 : index
    %c0_53 = arith.constant 0 : index
    %c0_54 = arith.constant 0 : index
    %84 = vector.load %arg8[%c0_52, %c2, %c0_53, %c0_54] : memref<2x12x32x32xf32, #tpu.memory_space<vmem>>, vector<1x1x32x32xf32>
    %85 = vector.shape_cast %84 : vector<1x1x32x32xf32> to vector<32x32xf32>
    %c0_55 = arith.constant 0 : index
    %c2_56 = arith.constant 2 : index
    %c0_57 = arith.constant 0 : index
    %86 = vector.load %arg11[%c0_55, %c2_56, %c0_57] : memref<2x20x64xf32, #tpu.memory_space<vmem>>, vector<1x1x32xf32>
    %87 = vector.shape_cast %86 : vector<1x1x32xf32> to vector<1x32xf32>
    %cst_58 = arith.constant dense<0.000000e+00> : vector<32x32xf32>
    %88 = tpu.matmul %0, %85, %cst_58 {dimension_numbers = #tpu.dot_dimension_numbers<[1], [0], [0], [1], [0, 0, 1, 1], [], []>} : vector<32x32xf32>, vector<32x32xf32>, vector<32x32xf32> -> vector<32x32xf32>
    %89 = vector.broadcast %87 : vector<1x32xf32> to vector<32x32xf32>
    %90 = arith.addf %88, %89 : vector<32x32xf32>
    %c0_59 = arith.constant 0 : index
    %c3 = arith.constant 3 : index
    %c0_60 = arith.constant 0 : index
    %c0_61 = arith.constant 0 : index
    %91 = vector.load %arg8[%c0_59, %c3, %c0_60, %c0_61] : memref<2x12x32x32xf32, #tpu.memory_space<vmem>>, vector<1x1x32x32xf32>
    %92 = vector.shape_cast %91 : vector<1x1x32x32xf32> to vector<32x32xf32>
    %c0_62 = arith.constant 0 : index
    %c3_63 = arith.constant 3 : index
    %c0_64 = arith.constant 0 : index
    %93 = vector.load %arg11[%c0_62, %c3_63, %c0_64] : memref<2x20x64xf32, #tpu.memory_space<vmem>>, vector<1x1x32xf32>
    %94 = vector.shape_cast %93 : vector<1x1x32xf32> to vector<1x32xf32>
    %cst_65 = arith.constant 0.353553385 : f32
    %95 = vector.broadcast %cst_65 : f32 to vector<1x32xf32>
    %96 = arith.mulf %33, %95 : vector<1x32xf32>
    %97 = vector.broadcast %96 : vector<1x32xf32> to vector<32x32xf32>
    %98 = arith.mulf %76, %97 : vector<32x32xf32>
    %cst_66 = arith.constant dense<0.000000e+00> : vector<32x32xf32>
    %99 = tpu.matmul %98, %83, %cst_66 {dimension_numbers = #tpu.dot_dimension_numbers<[1], [1], [0], [0], [0, 0, 1, 0], [], []>} : vector<32x32xf32>, vector<32x32xf32>, vector<32x32xf32> -> vector<32x32xf32>
    %100 = arith.addf %99, %12 : vector<32x32xf32>
    %cst_67 = arith.constant dense<0xFF800000> : vector<32xf32>
    %101 = vector.multi_reduction <maximumf>, %100, %cst_67 [1] : vector<32x32xf32> to vector<32xf32>
    %102 = vector.shape_cast %101 : vector<32xf32> to vector<32x1xf32>
    %103 = vector.broadcast %102 : vector<32x1xf32> to vector<32x32xf32>
    %104 = arith.subf %100, %103 : vector<32x32xf32>
    %105 = math.exp %104 : vector<32x32xf32>
    %cst_68 = arith.constant dense<0.000000e+00> : vector<32xf32>
    %106 = vector.multi_reduction <add>, %105, %cst_68 [1] : vector<32x32xf32> to vector<32xf32>
    %107 = vector.shape_cast %106 : vector<32xf32> to vector<32x1xf32>
    %108 = tpu.reciprocal %107 {approx = true} : vector<32x1xf32> -> vector<32x1xf32>
    %109 = vector.broadcast %108 : vector<32x1xf32> to vector<32x32xf32>
    %110 = arith.mulf %105, %109 : vector<32x32xf32>
    %111 = vector.broadcast %33 : vector<1x32xf32> to vector<32x32xf32>
    %112 = arith.mulf %90, %111 : vector<32x32xf32>
    %cst_69 = arith.constant dense<0.000000e+00> : vector<32x32xf32>
    %113 = tpu.matmul %110, %112, %cst_69 {dimension_numbers = #tpu.dot_dimension_numbers<[1], [0], [0], [1], [0, 0, 1, 1], [], []>} : vector<32x32xf32>, vector<32x32xf32>, vector<32x32xf32> -> vector<32x32xf32>
    %cst_70 = arith.constant 0.353553385 : f32
    %114 = vector.broadcast %cst_70 : f32 to vector<1x32xf32>
    %115 = arith.mulf %40, %114 : vector<1x32xf32>
    %116 = vector.broadcast %115 : vector<1x32xf32> to vector<32x32xf32>
    %117 = arith.mulf %76, %116 : vector<32x32xf32>
    %cst_71 = arith.constant dense<0.000000e+00> : vector<32x32xf32>
    %118 = tpu.matmul %117, %83, %cst_71 {dimension_numbers = #tpu.dot_dimension_numbers<[1], [1], [0], [0], [0, 0, 1, 0], [], []>} : vector<32x32xf32>, vector<32x32xf32>, vector<32x32xf32> -> vector<32x32xf32>
    %119 = arith.addf %118, %12 : vector<32x32xf32>
    %cst_72 = arith.constant dense<0xFF800000> : vector<32xf32>
    %120 = vector.multi_reduction <maximumf>, %119, %cst_72 [1] : vector<32x32xf32> to vector<32xf32>
    %121 = vector.shape_cast %120 : vector<32xf32> to vector<32x1xf32>
    %122 = vector.broadcast %121 : vector<32x1xf32> to vector<32x32xf32>
    %123 = arith.subf %119, %122 : vector<32x32xf32>
    %124 = math.exp %123 : vector<32x32xf32>
    %cst_73 = arith.constant dense<0.000000e+00> : vector<32xf32>
    %125 = vector.multi_reduction <add>, %124, %cst_73 [1] : vector<32x32xf32> to vector<32xf32>
    %126 = vector.shape_cast %125 : vector<32xf32> to vector<32x1xf32>
    %127 = tpu.reciprocal %126 {approx = true} : vector<32x1xf32> -> vector<32x1xf32>
    %128 = vector.broadcast %127 : vector<32x1xf32> to vector<32x32xf32>
    %129 = arith.mulf %124, %128 : vector<32x32xf32>
    %130 = vector.broadcast %40 : vector<1x32xf32> to vector<32x32xf32>
    %131 = arith.mulf %90, %130 : vector<32x32xf32>
    %cst_74 = arith.constant dense<0.000000e+00> : vector<32x32xf32>
    %132 = tpu.matmul %129, %131, %cst_74 {dimension_numbers = #tpu.dot_dimension_numbers<[1], [0], [0], [1], [0, 0, 1, 1], [], []>} : vector<32x32xf32>, vector<32x32xf32>, vector<32x32xf32> -> vector<32x32xf32>
    %133 = arith.addf %113, %132 : vector<32x32xf32>
    %cst_75 = arith.constant 0.353553385 : f32
    %134 = vector.broadcast %cst_75 : f32 to vector<1x32xf32>
    %135 = arith.mulf %47, %134 : vector<1x32xf32>
    %136 = vector.broadcast %135 : vector<1x32xf32> to vector<32x32xf32>
    %137 = arith.mulf %76, %136 : vector<32x32xf32>
    %cst_76 = arith.constant dense<0.000000e+00> : vector<32x32xf32>
    %138 = tpu.matmul %137, %83, %cst_76 {dimension_numbers = #tpu.dot_dimension_numbers<[1], [1], [0], [0], [0, 0, 1, 0], [], []>} : vector<32x32xf32>, vector<32x32xf32>, vector<32x32xf32> -> vector<32x32xf32>
    %139 = arith.addf %138, %12 : vector<32x32xf32>
    %cst_77 = arith.constant dense<0xFF800000> : vector<32xf32>
    %140 = vector.multi_reduction <maximumf>, %139, %cst_77 [1] : vector<32x32xf32> to vector<32xf32>
    %141 = vector.shape_cast %140 : vector<32xf32> to vector<32x1xf32>
    %142 = vector.broadcast %141 : vector<32x1xf32> to vector<32x32xf32>
    %143 = arith.subf %139, %142 : vector<32x32xf32>
    %144 = math.exp %143 : vector<32x32xf32>
    %cst_78 = arith.constant dense<0.000000e+00> : vector<32xf32>
    %145 = vector.multi_reduction <add>, %144, %cst_78 [1] : vector<32x32xf32> to vector<32xf32>
    %146 = vector.shape_cast %145 : vector<32xf32> to vector<32x1xf32>
    %147 = tpu.reciprocal %146 {approx = true} : vector<32x1xf32> -> vector<32x1xf32>
    %148 = vector.broadcast %147 : vector<32x1xf32> to vector<32x32xf32>
    %149 = arith.mulf %144, %148 : vector<32x32xf32>
    %150 = vector.broadcast %47 : vector<1x32xf32> to vector<32x32xf32>
    %151 = arith.mulf %90, %150 : vector<32x32xf32>
    %cst_79 = arith.constant dense<0.000000e+00> : vector<32x32xf32>
    %152 = tpu.matmul %149, %151, %cst_79 {dimension_numbers = #tpu.dot_dimension_numbers<[1], [0], [0], [1], [0, 0, 1, 1], [], []>} : vector<32x32xf32>, vector<32x32xf32>, vector<32x32xf32> -> vector<32x32xf32>
    %153 = arith.addf %133, %152 : vector<32x32xf32>
    %cst_80 = arith.constant 0.353553385 : f32
    %154 = vector.broadcast %cst_80 : f32 to vector<1x32xf32>
    %155 = arith.mulf %54, %154 : vector<1x32xf32>
    %156 = vector.broadcast %155 : vector<1x32xf32> to vector<32x32xf32>
    %157 = arith.mulf %76, %156 : vector<32x32xf32>
    %cst_81 = arith.constant dense<0.000000e+00> : vector<32x32xf32>
    %158 = tpu.matmul %157, %83, %cst_81 {dimension_numbers = #tpu.dot_dimension_numbers<[1], [1], [0], [0], [0, 0, 1, 0], [], []>} : vector<32x32xf32>, vector<32x32xf32>, vector<32x32xf32> -> vector<32x32xf32>
    %159 = arith.addf %158, %12 : vector<32x32xf32>
    %cst_82 = arith.constant dense<0xFF800000> : vector<32xf32>
    %160 = vector.multi_reduction <maximumf>, %159, %cst_82 [1] : vector<32x32xf32> to vector<32xf32>
    %161 = vector.shape_cast %160 : vector<32xf32> to vector<32x1xf32>
    %162 = vector.broadcast %161 : vector<32x1xf32> to vector<32x32xf32>
    %163 = arith.subf %159, %162 : vector<32x32xf32>
    %164 = math.exp %163 : vector<32x32xf32>
    %cst_83 = arith.constant dense<0.000000e+00> : vector<32xf32>
    %165 = vector.multi_reduction <add>, %164, %cst_83 [1] : vector<32x32xf32> to vector<32xf32>
    %166 = vector.shape_cast %165 : vector<32xf32> to vector<32x1xf32>
    %167 = tpu.reciprocal %166 {approx = true} : vector<32x1xf32> -> vector<32x1xf32>
    %168 = vector.broadcast %167 : vector<32x1xf32> to vector<32x32xf32>
    %169 = arith.mulf %164, %168 : vector<32x32xf32>
    %170 = vector.broadcast %54 : vector<1x32xf32> to vector<32x32xf32>
    %171 = arith.mulf %90, %170 : vector<32x32xf32>
    %cst_84 = arith.constant dense<0.000000e+00> : vector<32x32xf32>
    %172 = tpu.matmul %169, %171, %cst_84 {dimension_numbers = #tpu.dot_dimension_numbers<[1], [0], [0], [1], [0, 0, 1, 1], [], []>} : vector<32x32xf32>, vector<32x32xf32>, vector<32x32xf32> -> vector<32x32xf32>
    %173 = arith.addf %153, %172 : vector<32x32xf32>
    %cst_85 = arith.constant dense<0.000000e+00> : vector<32x32xf32>
    %174 = tpu.matmul %173, %92, %cst_85 {dimension_numbers = #tpu.dot_dimension_numbers<[1], [0], [0], [1], [0, 0, 1, 1], [], []>} : vector<32x32xf32>, vector<32x32xf32>, vector<32x32xf32> -> vector<32x32xf32>
    %175 = vector.broadcast %94 : vector<1x32xf32> to vector<32x32xf32>
    %176 = arith.addf %174, %175 : vector<32x32xf32>
    %177 = arith.addf %0, %176 : vector<32x32xf32>
    %c0_86 = arith.constant 0 : index
    %c4 = arith.constant 4 : index
    %c0_87 = arith.constant 0 : index
    %178 = vector.load %arg11[%c0_86, %c4, %c0_87] : memref<2x20x64xf32, #tpu.memory_space<vmem>>, vector<1x1x32xf32>
    %179 = vector.shape_cast %178 : vector<1x1x32xf32> to vector<1x32xf32>
    %c0_88 = arith.constant 0 : index
    %c5 = arith.constant 5 : index
    %c0_89 = arith.constant 0 : index
    %180 = vector.load %arg11[%c0_88, %c5, %c0_89] : memref<2x20x64xf32, #tpu.memory_space<vmem>>, vector<1x1x32xf32>
    %181 = vector.shape_cast %180 : vector<1x1x32xf32> to vector<1x32xf32>
    %cst_90 = arith.constant dense<0.000000e+00> : vector<32xf32>
    %182 = vector.multi_reduction <add>, %177, %cst_90 [1] : vector<32x32xf32> to vector<32xf32>
    %183 = vector.shape_cast %182 : vector<32xf32> to vector<32x1xf32>
    %cst_91 = arith.constant 3.200000e+01 : f32
    %184 = vector.broadcast %cst_91 : f32 to vector<32x1xf32>
    %185 = arith.divf %183, %184 : vector<32x1xf32>
    %186 = vector.broadcast %185 : vector<32x1xf32> to vector<32x32xf32>
    %187 = arith.subf %177, %186 : vector<32x32xf32>
    %188 = arith.mulf %187, %187 : vector<32x32xf32>
    %cst_92 = arith.constant dense<0.000000e+00> : vector<32xf32>
    %189 = vector.multi_reduction <add>, %188, %cst_92 [1] : vector<32x32xf32> to vector<32xf32>
    %190 = vector.shape_cast %189 : vector<32xf32> to vector<32x1xf32>
    %cst_93 = arith.constant 3.200000e+01 : f32
    %191 = vector.broadcast %cst_93 : f32 to vector<32x1xf32>
    %192 = arith.divf %190, %191 : vector<32x1xf32>
    %193 = vector.broadcast %185 : vector<32x1xf32> to vector<32x32xf32>
    %194 = arith.subf %177, %193 : vector<32x32xf32>
    %cst_94 = arith.constant 9.99999974E-6 : f32
    %195 = vector.broadcast %cst_94 : f32 to vector<32x1xf32>
    %196 = arith.addf %192, %195 : vector<32x1xf32>
    %197 = math.rsqrt %196 : vector<32x1xf32>
    %198 = vector.broadcast %197 : vector<32x1xf32> to vector<32x32xf32>
    %199 = arith.mulf %194, %198 : vector<32x32xf32>
    %200 = vector.broadcast %179 : vector<1x32xf32> to vector<32x32xf32>
    %201 = arith.mulf %199, %200 : vector<32x32xf32>
    %202 = vector.broadcast %181 : vector<1x32xf32> to vector<32x32xf32>
    %203 = arith.addf %201, %202 : vector<32x32xf32>
    %204 = arith.addf %203, %68 : vector<32x32xf32>
    %c0_95 = arith.constant 0 : index
    %c4_96 = arith.constant 4 : index
    %c0_97 = arith.constant 0 : index
    %c0_98 = arith.constant 0 : index
    %205 = vector.load %arg8[%c0_95, %c4_96, %c0_97, %c0_98] : memref<2x12x32x32xf32, #tpu.memory_space<vmem>>, vector<1x1x32x32xf32>
    %206 = vector.shape_cast %205 : vector<1x1x32x32xf32> to vector<32x32xf32>
    %c0_99 = arith.constant 0 : index
    %c6 = arith.constant 6 : index
    %c0_100 = arith.constant 0 : index
    %207 = vector.load %arg11[%c0_99, %c6, %c0_100] : memref<2x20x64xf32, #tpu.memory_space<vmem>>, vector<1x1x32xf32>
    %208 = vector.shape_cast %207 : vector<1x1x32xf32> to vector<1x32xf32>
    %cst_101 = arith.constant dense<0.000000e+00> : vector<32x32xf32>
    %209 = tpu.matmul %204, %206, %cst_101 {dimension_numbers = #tpu.dot_dimension_numbers<[1], [0], [0], [1], [0, 0, 1, 1], [], []>} : vector<32x32xf32>, vector<32x32xf32>, vector<32x32xf32> -> vector<32x32xf32>
    %210 = vector.broadcast %208 : vector<1x32xf32> to vector<32x32xf32>
    %211 = arith.addf %209, %210 : vector<32x32xf32>
    %c0_102 = arith.constant 0 : index
    %c5_103 = arith.constant 5 : index
    %c0_104 = arith.constant 0 : index
    %c0_105 = arith.constant 0 : index
    %212 = vector.load %arg8[%c0_102, %c5_103, %c0_104, %c0_105] : memref<2x12x32x32xf32, #tpu.memory_space<vmem>>, vector<1x1x32x32xf32>
    %213 = vector.shape_cast %212 : vector<1x1x32x32xf32> to vector<32x32xf32>
    %c0_106 = arith.constant 0 : index
    %c7 = arith.constant 7 : index
    %c0_107 = arith.constant 0 : index
    %214 = vector.load %arg11[%c0_106, %c7, %c0_107] : memref<2x20x64xf32, #tpu.memory_space<vmem>>, vector<1x1x32xf32>
    %215 = vector.shape_cast %214 : vector<1x1x32xf32> to vector<1x32xf32>
    %cst_108 = arith.constant dense<0.000000e+00> : vector<42x32xf32>
    %216 = tpu.matmul %4, %213, %cst_108 {dimension_numbers = #tpu.dot_dimension_numbers<[1], [0], [0], [1], [0, 0, 1, 1], [], []>} : vector<42x32xf32>, vector<32x32xf32>, vector<42x32xf32> -> vector<42x32xf32>
    %217 = vector.broadcast %215 : vector<1x32xf32> to vector<42x32xf32>
    %218 = arith.addf %216, %217 : vector<42x32xf32>
    %c0_109 = arith.constant 0 : index
    %c6_110 = arith.constant 6 : index
    %c0_111 = arith.constant 0 : index
    %c0_112 = arith.constant 0 : index
    %219 = vector.load %arg8[%c0_109, %c6_110, %c0_111, %c0_112] : memref<2x12x32x32xf32, #tpu.memory_space<vmem>>, vector<1x1x32x32xf32>
    %220 = vector.shape_cast %219 : vector<1x1x32x32xf32> to vector<32x32xf32>
    %c0_113 = arith.constant 0 : index
    %c8 = arith.constant 8 : index
    %c0_114 = arith.constant 0 : index
    %221 = vector.load %arg11[%c0_113, %c8, %c0_114] : memref<2x20x64xf32, #tpu.memory_space<vmem>>, vector<1x1x32xf32>
    %222 = vector.shape_cast %221 : vector<1x1x32xf32> to vector<1x32xf32>
    %cst_115 = arith.constant dense<0.000000e+00> : vector<42x32xf32>
    %223 = tpu.matmul %2, %220, %cst_115 {dimension_numbers = #tpu.dot_dimension_numbers<[1], [0], [0], [1], [0, 0, 1, 1], [], []>} : vector<42x32xf32>, vector<32x32xf32>, vector<42x32xf32> -> vector<42x32xf32>
    %224 = vector.broadcast %222 : vector<1x32xf32> to vector<42x32xf32>
    %225 = arith.addf %223, %224 : vector<42x32xf32>
    %c0_116 = arith.constant 0 : index
    %c7_117 = arith.constant 7 : index
    %c0_118 = arith.constant 0 : index
    %c0_119 = arith.constant 0 : index
    %226 = vector.load %arg8[%c0_116, %c7_117, %c0_118, %c0_119] : memref<2x12x32x32xf32, #tpu.memory_space<vmem>>, vector<1x1x32x32xf32>
    %227 = vector.shape_cast %226 : vector<1x1x32x32xf32> to vector<32x32xf32>
    %c0_120 = arith.constant 0 : index
    %c9 = arith.constant 9 : index
    %c0_121 = arith.constant 0 : index
    %228 = vector.load %arg11[%c0_120, %c9, %c0_121] : memref<2x20x64xf32, #tpu.memory_space<vmem>>, vector<1x1x32xf32>
    %229 = vector.shape_cast %228 : vector<1x1x32xf32> to vector<1x32xf32>
    %cst_122 = arith.constant 0.353553385 : f32
    %230 = vector.broadcast %cst_122 : f32 to vector<1x32xf32>
    %231 = arith.mulf %33, %230 : vector<1x32xf32>
    %232 = vector.broadcast %231 : vector<1x32xf32> to vector<32x32xf32>
    %233 = arith.mulf %211, %232 : vector<32x32xf32>
    %cst_123 = arith.constant dense<0.000000e+00> : vector<32x42xf32>
    %234 = tpu.matmul %233, %218, %cst_123 {dimension_numbers = #tpu.dot_dimension_numbers<[1], [1], [0], [0], [0, 0, 1, 0], [], []>} : vector<32x32xf32>, vector<42x32xf32>, vector<32x42xf32> -> vector<32x42xf32>
    %235 = arith.addf %234, %25 : vector<32x42xf32>
    %cst_124 = arith.constant dense<0xFF800000> : vector<32xf32>
    %236 = vector.multi_reduction <maximumf>, %235, %cst_124 [1] : vector<32x42xf32> to vector<32xf32>
    %237 = vector.shape_cast %236 : vector<32xf32> to vector<32x1xf32>
    %238 = vector.broadcast %237 : vector<32x1xf32> to vector<32x42xf32>
    %239 = arith.subf %235, %238 : vector<32x42xf32>
    %240 = math.exp %239 : vector<32x42xf32>
    %cst_125 = arith.constant dense<0.000000e+00> : vector<32xf32>
    %241 = vector.multi_reduction <add>, %240, %cst_125 [1] : vector<32x42xf32> to vector<32xf32>
    %242 = vector.shape_cast %241 : vector<32xf32> to vector<32x1xf32>
    %243 = tpu.reciprocal %242 {approx = true} : vector<32x1xf32> -> vector<32x1xf32>
    %244 = vector.broadcast %243 : vector<32x1xf32> to vector<32x42xf32>
    %245 = arith.mulf %240, %244 : vector<32x42xf32>
    %246 = vector.broadcast %33 : vector<1x32xf32> to vector<42x32xf32>
    %247 = arith.mulf %225, %246 : vector<42x32xf32>
    %cst_126 = arith.constant dense<0.000000e+00> : vector<32x32xf32>
    %248 = tpu.matmul %245, %247, %cst_126 {dimension_numbers = #tpu.dot_dimension_numbers<[1], [0], [0], [1], [0, 0, 1, 1], [], []>} : vector<32x42xf32>, vector<42x32xf32>, vector<32x32xf32> -> vector<32x32xf32>
    %cst_127 = arith.constant 0.353553385 : f32
    %249 = vector.broadcast %cst_127 : f32 to vector<1x32xf32>
    %250 = arith.mulf %40, %249 : vector<1x32xf32>
    %251 = vector.broadcast %250 : vector<1x32xf32> to vector<32x32xf32>
    %252 = arith.mulf %211, %251 : vector<32x32xf32>
    %cst_128 = arith.constant dense<0.000000e+00> : vector<32x42xf32>
    %253 = tpu.matmul %252, %218, %cst_128 {dimension_numbers = #tpu.dot_dimension_numbers<[1], [1], [0], [0], [0, 0, 1, 0], [], []>} : vector<32x32xf32>, vector<42x32xf32>, vector<32x42xf32> -> vector<32x42xf32>
    %254 = arith.addf %253, %25 : vector<32x42xf32>
    %cst_129 = arith.constant dense<0xFF800000> : vector<32xf32>
    %255 = vector.multi_reduction <maximumf>, %254, %cst_129 [1] : vector<32x42xf32> to vector<32xf32>
    %256 = vector.shape_cast %255 : vector<32xf32> to vector<32x1xf32>
    %257 = vector.broadcast %256 : vector<32x1xf32> to vector<32x42xf32>
    %258 = arith.subf %254, %257 : vector<32x42xf32>
    %259 = math.exp %258 : vector<32x42xf32>
    %cst_130 = arith.constant dense<0.000000e+00> : vector<32xf32>
    %260 = vector.multi_reduction <add>, %259, %cst_130 [1] : vector<32x42xf32> to vector<32xf32>
    %261 = vector.shape_cast %260 : vector<32xf32> to vector<32x1xf32>
    %262 = tpu.reciprocal %261 {approx = true} : vector<32x1xf32> -> vector<32x1xf32>
    %263 = vector.broadcast %262 : vector<32x1xf32> to vector<32x42xf32>
    %264 = arith.mulf %259, %263 : vector<32x42xf32>
    %265 = vector.broadcast %40 : vector<1x32xf32> to vector<42x32xf32>
    %266 = arith.mulf %225, %265 : vector<42x32xf32>
    %cst_131 = arith.constant dense<0.000000e+00> : vector<32x32xf32>
    %267 = tpu.matmul %264, %266, %cst_131 {dimension_numbers = #tpu.dot_dimension_numbers<[1], [0], [0], [1], [0, 0, 1, 1], [], []>} : vector<32x42xf32>, vector<42x32xf32>, vector<32x32xf32> -> vector<32x32xf32>
    %268 = arith.addf %248, %267 : vector<32x32xf32>
    %cst_132 = arith.constant 0.353553385 : f32
    %269 = vector.broadcast %cst_132 : f32 to vector<1x32xf32>
    %270 = arith.mulf %47, %269 : vector<1x32xf32>
    %271 = vector.broadcast %270 : vector<1x32xf32> to vector<32x32xf32>
    %272 = arith.mulf %211, %271 : vector<32x32xf32>
    %cst_133 = arith.constant dense<0.000000e+00> : vector<32x42xf32>
    %273 = tpu.matmul %272, %218, %cst_133 {dimension_numbers = #tpu.dot_dimension_numbers<[1], [1], [0], [0], [0, 0, 1, 0], [], []>} : vector<32x32xf32>, vector<42x32xf32>, vector<32x42xf32> -> vector<32x42xf32>
    %274 = arith.addf %273, %25 : vector<32x42xf32>
    %cst_134 = arith.constant dense<0xFF800000> : vector<32xf32>
    %275 = vector.multi_reduction <maximumf>, %274, %cst_134 [1] : vector<32x42xf32> to vector<32xf32>
    %276 = vector.shape_cast %275 : vector<32xf32> to vector<32x1xf32>
    %277 = vector.broadcast %276 : vector<32x1xf32> to vector<32x42xf32>
    %278 = arith.subf %274, %277 : vector<32x42xf32>
    %279 = math.exp %278 : vector<32x42xf32>
    %cst_135 = arith.constant dense<0.000000e+00> : vector<32xf32>
    %280 = vector.multi_reduction <add>, %279, %cst_135 [1] : vector<32x42xf32> to vector<32xf32>
    %281 = vector.shape_cast %280 : vector<32xf32> to vector<32x1xf32>
    %282 = tpu.reciprocal %281 {approx = true} : vector<32x1xf32> -> vector<32x1xf32>
    %283 = vector.broadcast %282 : vector<32x1xf32> to vector<32x42xf32>
    %284 = arith.mulf %279, %283 : vector<32x42xf32>
    %285 = vector.broadcast %47 : vector<1x32xf32> to vector<42x32xf32>
    %286 = arith.mulf %225, %285 : vector<42x32xf32>
    %cst_136 = arith.constant dense<0.000000e+00> : vector<32x32xf32>
    %287 = tpu.matmul %284, %286, %cst_136 {dimension_numbers = #tpu.dot_dimension_numbers<[1], [0], [0], [1], [0, 0, 1, 1], [], []>} : vector<32x42xf32>, vector<42x32xf32>, vector<32x32xf32> -> vector<32x32xf32>
    %288 = arith.addf %268, %287 : vector<32x32xf32>
    %cst_137 = arith.constant 0.353553385 : f32
    %289 = vector.broadcast %cst_137 : f32 to vector<1x32xf32>
    %290 = arith.mulf %54, %289 : vector<1x32xf32>
    %291 = vector.broadcast %290 : vector<1x32xf32> to vector<32x32xf32>
    %292 = arith.mulf %211, %291 : vector<32x32xf32>
    %cst_138 = arith.constant dense<0.000000e+00> : vector<32x42xf32>
    %293 = tpu.matmul %292, %218, %cst_138 {dimension_numbers = #tpu.dot_dimension_numbers<[1], [1], [0], [0], [0, 0, 1, 0], [], []>} : vector<32x32xf32>, vector<42x32xf32>, vector<32x42xf32> -> vector<32x42xf32>
    %294 = arith.addf %293, %25 : vector<32x42xf32>
    %cst_139 = arith.constant dense<0xFF800000> : vector<32xf32>
    %295 = vector.multi_reduction <maximumf>, %294, %cst_139 [1] : vector<32x42xf32> to vector<32xf32>
    %296 = vector.shape_cast %295 : vector<32xf32> to vector<32x1xf32>
    %297 = vector.broadcast %296 : vector<32x1xf32> to vector<32x42xf32>
    %298 = arith.subf %294, %297 : vector<32x42xf32>
    %299 = math.exp %298 : vector<32x42xf32>
    %cst_140 = arith.constant dense<0.000000e+00> : vector<32xf32>
    %300 = vector.multi_reduction <add>, %299, %cst_140 [1] : vector<32x42xf32> to vector<32xf32>
    %301 = vector.shape_cast %300 : vector<32xf32> to vector<32x1xf32>
    %302 = tpu.reciprocal %301 {approx = true} : vector<32x1xf32> -> vector<32x1xf32>
    %303 = vector.broadcast %302 : vector<32x1xf32> to vector<32x42xf32>
    %304 = arith.mulf %299, %303 : vector<32x42xf32>
    %305 = vector.broadcast %54 : vector<1x32xf32> to vector<42x32xf32>
    %306 = arith.mulf %225, %305 : vector<42x32xf32>
    %cst_141 = arith.constant dense<0.000000e+00> : vector<32x32xf32>
    %307 = tpu.matmul %304, %306, %cst_141 {dimension_numbers = #tpu.dot_dimension_numbers<[1], [0], [0], [1], [0, 0, 1, 1], [], []>} : vector<32x42xf32>, vector<42x32xf32>, vector<32x32xf32> -> vector<32x32xf32>
    %308 = arith.addf %288, %307 : vector<32x32xf32>
    %cst_142 = arith.constant dense<0.000000e+00> : vector<32x32xf32>
    %309 = tpu.matmul %308, %227, %cst_142 {dimension_numbers = #tpu.dot_dimension_numbers<[1], [0], [0], [1], [0, 0, 1, 1], [], []>} : vector<32x32xf32>, vector<32x32xf32>, vector<32x32xf32> -> vector<32x32xf32>
    %310 = vector.broadcast %229 : vector<1x32xf32> to vector<32x32xf32>
    %311 = arith.addf %309, %310 : vector<32x32xf32>
    %312 = arith.addf %203, %311 : vector<32x32xf32>
    %c0_143 = arith.constant 0 : index
    %c10 = arith.constant 10 : index
    %c0_144 = arith.constant 0 : index
    %313 = vector.load %arg11[%c0_143, %c10, %c0_144] : memref<2x20x64xf32, #tpu.memory_space<vmem>>, vector<1x1x32xf32>
    %314 = vector.shape_cast %313 : vector<1x1x32xf32> to vector<1x32xf32>
    %c0_145 = arith.constant 0 : index
    %c11 = arith.constant 11 : index
    %c0_146 = arith.constant 0 : index
    %315 = vector.load %arg11[%c0_145, %c11, %c0_146] : memref<2x20x64xf32, #tpu.memory_space<vmem>>, vector<1x1x32xf32>
    %316 = vector.shape_cast %315 : vector<1x1x32xf32> to vector<1x32xf32>
    %cst_147 = arith.constant dense<0.000000e+00> : vector<32xf32>
    %317 = vector.multi_reduction <add>, %312, %cst_147 [1] : vector<32x32xf32> to vector<32xf32>
    %318 = vector.shape_cast %317 : vector<32xf32> to vector<32x1xf32>
    %cst_148 = arith.constant 3.200000e+01 : f32
    %319 = vector.broadcast %cst_148 : f32 to vector<32x1xf32>
    %320 = arith.divf %318, %319 : vector<32x1xf32>
    %321 = vector.broadcast %320 : vector<32x1xf32> to vector<32x32xf32>
    %322 = arith.subf %312, %321 : vector<32x32xf32>
    %323 = arith.mulf %322, %322 : vector<32x32xf32>
    %cst_149 = arith.constant dense<0.000000e+00> : vector<32xf32>
    %324 = vector.multi_reduction <add>, %323, %cst_149 [1] : vector<32x32xf32> to vector<32xf32>
    %325 = vector.shape_cast %324 : vector<32xf32> to vector<32x1xf32>
    %cst_150 = arith.constant 3.200000e+01 : f32
    %326 = vector.broadcast %cst_150 : f32 to vector<32x1xf32>
    %327 = arith.divf %325, %326 : vector<32x1xf32>
    %328 = vector.broadcast %320 : vector<32x1xf32> to vector<32x32xf32>
    %329 = arith.subf %312, %328 : vector<32x32xf32>
    %cst_151 = arith.constant 9.99999974E-6 : f32
    %330 = vector.broadcast %cst_151 : f32 to vector<32x1xf32>
    %331 = arith.addf %327, %330 : vector<32x1xf32>
    %332 = math.rsqrt %331 : vector<32x1xf32>
    %333 = vector.broadcast %332 : vector<32x1xf32> to vector<32x32xf32>
    %334 = arith.mulf %329, %333 : vector<32x32xf32>
    %335 = vector.broadcast %314 : vector<1x32xf32> to vector<32x32xf32>
    %336 = arith.mulf %334, %335 : vector<32x32xf32>
    %337 = vector.broadcast %316 : vector<1x32xf32> to vector<32x32xf32>
    %338 = arith.addf %336, %337 : vector<32x32xf32>
    %c0_152 = arith.constant 0 : index
    %c0_153 = arith.constant 0 : index
    %c0_154 = arith.constant 0 : index
    %339 = vector.load %arg9[%c0_152, %c0_153, %c0_154] : memref<2x32x64xf32, #tpu.memory_space<vmem>>, vector<1x32x64xf32>
    %340 = vector.shape_cast %339 : vector<1x32x64xf32> to vector<32x64xf32>
    %c0_155 = arith.constant 0 : index
    %c12 = arith.constant 12 : index
    %c0_156 = arith.constant 0 : index
    %341 = vector.load %arg11[%c0_155, %c12, %c0_156] : memref<2x20x64xf32, #tpu.memory_space<vmem>>, vector<1x1x64xf32>
    %342 = vector.shape_cast %341 : vector<1x1x64xf32> to vector<1x64xf32>
    %cst_157 = arith.constant dense<0.000000e+00> : vector<32x64xf32>
    %343 = tpu.matmul %338, %340, %cst_157 {dimension_numbers = #tpu.dot_dimension_numbers<[1], [0], [0], [1], [0, 0, 1, 1], [], []>} : vector<32x32xf32>, vector<32x64xf32>, vector<32x64xf32> -> vector<32x64xf32>
    %344 = vector.broadcast %342 : vector<1x64xf32> to vector<32x64xf32>
    %345 = arith.addf %343, %344 : vector<32x64xf32>
    %cst_158 = arith.constant 0.000000e+00 : f32
    %346 = vector.broadcast %cst_158 : f32 to vector<32x64xf32>
    %347 = arith.maximumf %345, %346 : vector<32x64xf32>
    %c0_159 = arith.constant 0 : index
    %c0_160 = arith.constant 0 : index
    %c0_161 = arith.constant 0 : index
    %348 = vector.load %arg10[%c0_159, %c0_160, %c0_161] : memref<2x64x32xf32, #tpu.memory_space<vmem>>, vector<1x64x32xf32>
    %349 = vector.shape_cast %348 : vector<1x64x32xf32> to vector<64x32xf32>
    %c0_162 = arith.constant 0 : index
    %c13 = arith.constant 13 : index
    %c0_163 = arith.constant 0 : index
    %350 = vector.load %arg11[%c0_162, %c13, %c0_163] : memref<2x20x64xf32, #tpu.memory_space<vmem>>, vector<1x1x32xf32>
    %351 = vector.shape_cast %350 : vector<1x1x32xf32> to vector<1x32xf32>
    %cst_164 = arith.constant dense<0.000000e+00> : vector<32x32xf32>
    %352 = tpu.matmul %347, %349, %cst_164 {dimension_numbers = #tpu.dot_dimension_numbers<[1], [0], [0], [1], [0, 0, 1, 1], [], []>} : vector<32x64xf32>, vector<64x32xf32>, vector<32x32xf32> -> vector<32x32xf32>
    %353 = vector.broadcast %351 : vector<1x32xf32> to vector<32x32xf32>
    %354 = arith.addf %352, %353 : vector<32x32xf32>
    %355 = arith.addf %338, %354 : vector<32x32xf32>
    %c0_165 = arith.constant 0 : index
    %c14 = arith.constant 14 : index
    %c0_166 = arith.constant 0 : index
    %356 = vector.load %arg11[%c0_165, %c14, %c0_166] : memref<2x20x64xf32, #tpu.memory_space<vmem>>, vector<1x1x32xf32>
    %357 = vector.shape_cast %356 : vector<1x1x32xf32> to vector<1x32xf32>
    %c0_167 = arith.constant 0 : index
    %c15 = arith.constant 15 : index
    %c0_168 = arith.constant 0 : index
    %358 = vector.load %arg11[%c0_167, %c15, %c0_168] : memref<2x20x64xf32, #tpu.memory_space<vmem>>, vector<1x1x32xf32>
    %359 = vector.shape_cast %358 : vector<1x1x32xf32> to vector<1x32xf32>
    %cst_169 = arith.constant dense<0.000000e+00> : vector<32xf32>
    %360 = vector.multi_reduction <add>, %355, %cst_169 [1] : vector<32x32xf32> to vector<32xf32>
    %361 = vector.shape_cast %360 : vector<32xf32> to vector<32x1xf32>
    %cst_170 = arith.constant 3.200000e+01 : f32
    %362 = vector.broadcast %cst_170 : f32 to vector<32x1xf32>
    %363 = arith.divf %361, %362 : vector<32x1xf32>
    %364 = vector.broadcast %363 : vector<32x1xf32> to vector<32x32xf32>
    %365 = arith.subf %355, %364 : vector<32x32xf32>
    %366 = arith.mulf %365, %365 : vector<32x32xf32>
    %cst_171 = arith.constant dense<0.000000e+00> : vector<32xf32>
    %367 = vector.multi_reduction <add>, %366, %cst_171 [1] : vector<32x32xf32> to vector<32xf32>
    %368 = vector.shape_cast %367 : vector<32xf32> to vector<32x1xf32>
    %cst_172 = arith.constant 3.200000e+01 : f32
    %369 = vector.broadcast %cst_172 : f32 to vector<32x1xf32>
    %370 = arith.divf %368, %369 : vector<32x1xf32>
    %371 = vector.broadcast %363 : vector<32x1xf32> to vector<32x32xf32>
    %372 = arith.subf %355, %371 : vector<32x32xf32>
    %cst_173 = arith.constant 9.99999974E-6 : f32
    %373 = vector.broadcast %cst_173 : f32 to vector<32x1xf32>
    %374 = arith.addf %370, %373 : vector<32x1xf32>
    %375 = math.rsqrt %374 : vector<32x1xf32>
    %376 = vector.broadcast %375 : vector<32x1xf32> to vector<32x32xf32>
    %377 = arith.mulf %372, %376 : vector<32x32xf32>
    %378 = vector.broadcast %357 : vector<1x32xf32> to vector<32x32xf32>
    %379 = arith.mulf %377, %378 : vector<32x32xf32>
    %380 = vector.broadcast %359 : vector<1x32xf32> to vector<32x32xf32>
    %381 = arith.addf %379, %380 : vector<32x32xf32>
    %c0_174 = arith.constant 0 : index
    %c8_175 = arith.constant 8 : index
    %c0_176 = arith.constant 0 : index
    %c0_177 = arith.constant 0 : index
    %382 = vector.load %arg8[%c0_174, %c8_175, %c0_176, %c0_177] : memref<2x12x32x32xf32, #tpu.memory_space<vmem>>, vector<1x1x32x32xf32>
    %383 = vector.shape_cast %382 : vector<1x1x32x32xf32> to vector<32x32xf32>
    %c0_178 = arith.constant 0 : index
    %c16 = arith.constant 16 : index
    %c0_179 = arith.constant 0 : index
    %384 = vector.load %arg11[%c0_178, %c16, %c0_179] : memref<2x20x64xf32, #tpu.memory_space<vmem>>, vector<1x1x32xf32>
    %385 = vector.shape_cast %384 : vector<1x1x32xf32> to vector<1x32xf32>
    %cst_180 = arith.constant dense<0.000000e+00> : vector<32x32xf32>
    %386 = tpu.matmul %381, %383, %cst_180 {dimension_numbers = #tpu.dot_dimension_numbers<[1], [0], [0], [1], [0, 0, 1, 1], [], []>} : vector<32x32xf32>, vector<32x32xf32>, vector<32x32xf32> -> vector<32x32xf32>
    %387 = vector.broadcast %385 : vector<1x32xf32> to vector<32x32xf32>
    %388 = arith.addf %386, %387 : vector<32x32xf32>
    %cst_181 = arith.constant 0.000000e+00 : f32
    %389 = vector.broadcast %cst_181 : f32 to vector<32x32xf32>
    %390 = arith.maximumf %388, %389 : vector<32x32xf32>
    %c0_182 = arith.constant 0 : index
    %c9_183 = arith.constant 9 : index
    %c0_184 = arith.constant 0 : index
    %c0_185 = arith.constant 0 : index
    %391 = vector.load %arg8[%c0_182, %c9_183, %c0_184, %c0_185] : memref<2x12x32x32xf32, #tpu.memory_space<vmem>>, vector<1x1x32x32xf32>
    %392 = vector.shape_cast %391 : vector<1x1x32x32xf32> to vector<32x32xf32>
    %c0_186 = arith.constant 0 : index
    %c17 = arith.constant 17 : index
    %c0_187 = arith.constant 0 : index
    %393 = vector.load %arg11[%c0_186, %c17, %c0_187] : memref<2x20x64xf32, #tpu.memory_space<vmem>>, vector<1x1x32xf32>
    %394 = vector.shape_cast %393 : vector<1x1x32xf32> to vector<1x32xf32>
    %cst_188 = arith.constant dense<0.000000e+00> : vector<32x32xf32>
    %395 = tpu.matmul %390, %392, %cst_188 {dimension_numbers = #tpu.dot_dimension_numbers<[1], [0], [0], [1], [0, 0, 1, 1], [], []>} : vector<32x32xf32>, vector<32x32xf32>, vector<32x32xf32> -> vector<32x32xf32>
    %396 = vector.broadcast %394 : vector<1x32xf32> to vector<32x32xf32>
    %397 = arith.addf %395, %396 : vector<32x32xf32>
    %cst_189 = arith.constant 0.000000e+00 : f32
    %398 = vector.broadcast %cst_189 : f32 to vector<32x32xf32>
    %399 = arith.maximumf %397, %398 : vector<32x32xf32>
    %c0_190 = arith.constant 0 : index
    %c10_191 = arith.constant 10 : index
    %c0_192 = arith.constant 0 : index
    %c0_193 = arith.constant 0 : index
    %400 = vector.load %arg8[%c0_190, %c10_191, %c0_192, %c0_193] : memref<2x12x32x32xf32, #tpu.memory_space<vmem>>, vector<1x1x32x32xf32>
    %401 = vector.shape_cast %400 : vector<1x1x32x32xf32> to vector<32x32xf32>
    %c0_194 = arith.constant 0 : index
    %c18 = arith.constant 18 : index
    %c0_195 = arith.constant 0 : index
    %402 = vector.load %arg11[%c0_194, %c18, %c0_195] : memref<2x20x64xf32, #tpu.memory_space<vmem>>, vector<1x1x32xf32>
    %403 = vector.shape_cast %402 : vector<1x1x32xf32> to vector<1x32xf32>
    %cst_196 = arith.constant dense<0.000000e+00> : vector<32x32xf32>
    %404 = tpu.matmul %399, %401, %cst_196 {dimension_numbers = #tpu.dot_dimension_numbers<[1], [0], [0], [1], [0, 0, 1, 1], [], []>} : vector<32x32xf32>, vector<32x32xf32>, vector<32x32xf32> -> vector<32x32xf32>
    %405 = vector.broadcast %403 : vector<1x32xf32> to vector<32x32xf32>
    %406 = arith.addf %404, %405 : vector<32x32xf32>
    %c0_197 = arith.constant 0 : index
    %c11_198 = arith.constant 11 : index
    %c0_199 = arith.constant 0 : index
    %c0_200 = arith.constant 0 : index
    %407 = vector.load %arg8[%c0_197, %c11_198, %c0_199, %c0_200] : memref<2x12x32x32xf32, #tpu.memory_space<vmem>>, vector<1x1x32x32xf32>
    %408 = vector.shape_cast %407 : vector<1x1x32x32xf32> to vector<32x32xf32>
    %c0_201 = arith.constant 0 : index
    %c19 = arith.constant 19 : index
    %c0_202 = arith.constant 0 : index
    %409 = vector.load %arg11[%c0_201, %c19, %c0_202] : memref<2x20x64xf32, #tpu.memory_space<vmem>>, vector<1x1x32xf32>
    %410 = vector.shape_cast %409 : vector<1x1x32xf32> to vector<1x32xf32>
    %cst_203 = arith.constant dense<0.000000e+00> : vector<32x32xf32>
    %411 = tpu.matmul %381, %408, %cst_203 {dimension_numbers = #tpu.dot_dimension_numbers<[1], [0], [0], [1], [0, 0, 1, 1], [], []>} : vector<32x32xf32>, vector<32x32xf32>, vector<32x32xf32> -> vector<32x32xf32>
    %412 = vector.broadcast %410 : vector<1x32xf32> to vector<32x32xf32>
    %413 = arith.addf %411, %412 : vector<32x32xf32>
    %cst_204 = arith.constant 0.000000e+00 : f32
    %cst_205 = arith.constant 1.000000e+00 : f32
    %414 = vector.broadcast %cst_204 : f32 to vector<32x32xf32>
    %415 = arith.maximumf %414, %1 : vector<32x32xf32>
    %416 = vector.broadcast %cst_205 : f32 to vector<32x32xf32>
    %417 = arith.minimumf %416, %415 : vector<32x32xf32>
    %cst_206 = arith.constant 9.99999974E-5 : f32
    %418 = vector.broadcast %cst_206 : f32 to vector<32x32xf32>
    %419 = arith.maximumf %417, %418 : vector<32x32xf32>
    %cst_207 = arith.constant 1.000000e+00 : f32
    %420 = vector.broadcast %cst_207 : f32 to vector<32x32xf32>
    %421 = arith.subf %420, %417 : vector<32x32xf32>
    %cst_208 = arith.constant 9.99999974E-5 : f32
    %422 = vector.broadcast %cst_208 : f32 to vector<32x32xf32>
    %423 = arith.maximumf %421, %422 : vector<32x32xf32>
    %424 = arith.divf %419, %423 : vector<32x32xf32>
    %425 = math.log %424 : vector<32x32xf32>
    %426 = arith.addf %406, %425 : vector<32x32xf32>
    %cst_209 = arith.constant 0.000000e+00 : f32
    %427 = vector.broadcast %cst_209 : f32 to vector<32x32xf32>
    %428 = arith.subf %427, %426 : vector<32x32xf32>
    %429 = math.exp %428 : vector<32x32xf32>
    %cst_210 = arith.constant 1.000000e+00 : f32
    %430 = vector.broadcast %cst_210 : f32 to vector<32x32xf32>
    %431 = arith.addf %430, %429 : vector<32x32xf32>
    %cst_211 = arith.constant 1.000000e+00 : f32
    %432 = vector.broadcast %cst_211 : f32 to vector<32x32xf32>
    %433 = arith.divf %432, %431 : vector<32x32xf32>
    %c0_212 = arith.constant 0 : index
    %c0_213 = arith.constant 0 : index
    %c0_214 = arith.constant 0 : index
    %c0_215 = arith.constant 0 : index
    %434 = vector.load %arg14[%c0_212, %c0_213, %c0_214, %c0_215] : memref<2x2x32x32xf32, #tpu.memory_space<vmem>>, vector<1x1x32x32xf32>
    %435 = vector.shape_cast %434 : vector<1x1x32x32xf32> to vector<32x32xf32>
    %436 = vector.shape_cast %433 : vector<32x32xf32> to vector<1x1x32x32xf32>
    tpu.vector_store %arg14[%c0_212, %c0_213, %c0_214, %c0_215], %436 {strides = array<i32>} : memref<2x2x32x32xf32, #tpu.memory_space<vmem>>, vector<1x1x32x32xf32>,
    %c0_216 = arith.constant 0 : index
    %c1_217 = arith.constant 1 : index
    %c0_218 = arith.constant 0 : index
    %c0_219 = arith.constant 0 : index
    %437 = vector.load %arg14[%c0_216, %c1_217, %c0_218, %c0_219] : memref<2x2x32x32xf32, #tpu.memory_space<vmem>>, vector<1x1x32x32xf32>
    %438 = vector.shape_cast %437 : vector<1x1x32x32xf32> to vector<32x32xf32>
    %439 = vector.shape_cast %413 : vector<32x32xf32> to vector<1x1x32x32xf32>
    tpu.vector_store %arg14[%c0_216, %c1_217, %c0_218, %c0_219], %439 {strides = array<i32>} : memref<2x2x32x32xf32, #tpu.memory_space<vmem>>, vector<1x1x32x32xf32>,
    %c0_220 = arith.constant 0 : index
    %c0_221 = arith.constant 0 : index
    %c0_222 = arith.constant 0 : index
    %440 = vector.load %arg12[%c0_220, %c0_221, %c0_222] : memref<2x32x32xf32, #tpu.memory_space<vmem>>, vector<1x32x32xf32>
    %441 = vector.shape_cast %440 : vector<1x32x32xf32> to vector<32x32xf32>
    %c0_223 = arith.constant 0 : index
    %c0_224 = arith.constant 0 : index
    %442 = vector.load %arg13[%c0_223, %c0_224] : memref<2x32xf32, #tpu.memory_space<vmem>>, vector<1x32xf32>
    %cst_225 = arith.constant dense<0.000000e+00> : vector<32x32xf32>
    %443 = tpu.matmul %433, %441, %cst_225 {dimension_numbers = #tpu.dot_dimension_numbers<[1], [0], [0], [1], [0, 0, 1, 1], [], []>} : vector<32x32xf32>, vector<32x32xf32>, vector<32x32xf32> -> vector<32x32xf32>
    %444 = vector.broadcast %442 : vector<1x32xf32> to vector<32x32xf32>
    %445 = arith.addf %443, %444 : vector<32x32xf32>
    %cst_226 = arith.constant 0.000000e+00 : f32
    %446 = vector.broadcast %cst_226 : f32 to vector<32x32xf32>
    %447 = arith.maximumf %445, %446 : vector<32x32xf32>
    %c1_227 = arith.constant 1 : index
    %c0_228 = arith.constant 0 : index
    %c0_229 = arith.constant 0 : index
    %448 = vector.load %arg12[%c1_227, %c0_228, %c0_229] : memref<2x32x32xf32, #tpu.memory_space<vmem>>, vector<1x32x32xf32>
    %449 = vector.shape_cast %448 : vector<1x32x32xf32> to vector<32x32xf32>
    %c1_230 = arith.constant 1 : index
    %c0_231 = arith.constant 0 : index
    %450 = vector.load %arg13[%c1_230, %c0_231] : memref<2x32xf32, #tpu.memory_space<vmem>>, vector<1x32xf32>
    %cst_232 = arith.constant dense<0.000000e+00> : vector<32x32xf32>
    %451 = tpu.matmul %447, %449, %cst_232 {dimension_numbers = #tpu.dot_dimension_numbers<[1], [0], [0], [1], [0, 0, 1, 1], [], []>} : vector<32x32xf32>, vector<32x32xf32>, vector<32x32xf32> -> vector<32x32xf32>
    %452 = vector.broadcast %450 : vector<1x32xf32> to vector<32x32xf32>
    %453 = arith.addf %451, %452 : vector<32x32xf32>
    %454 = arith.addf %381, %453 : vector<32x32xf32>
    %c1_233 = arith.constant 1 : index
    %c0_234 = arith.constant 0 : index
    %c0_235 = arith.constant 0 : index
    %c0_236 = arith.constant 0 : index
    %455 = vector.load %arg8[%c1_233, %c0_234, %c0_235, %c0_236] : memref<2x12x32x32xf32, #tpu.memory_space<vmem>>, vector<1x1x32x32xf32>
    %456 = vector.shape_cast %455 : vector<1x1x32x32xf32> to vector<32x32xf32>
    %c1_237 = arith.constant 1 : index
    %c0_238 = arith.constant 0 : index
    %c0_239 = arith.constant 0 : index
    %457 = vector.load %arg11[%c1_237, %c0_238, %c0_239] : memref<2x20x64xf32, #tpu.memory_space<vmem>>, vector<1x1x32xf32>
    %458 = vector.shape_cast %457 : vector<1x1x32xf32> to vector<1x32xf32>
    %cst_240 = arith.constant dense<0.000000e+00> : vector<32x32xf32>
    %459 = tpu.matmul %454, %456, %cst_240 {dimension_numbers = #tpu.dot_dimension_numbers<[1], [0], [0], [1], [0, 0, 1, 1], [], []>} : vector<32x32xf32>, vector<32x32xf32>, vector<32x32xf32> -> vector<32x32xf32>
    %460 = vector.broadcast %458 : vector<1x32xf32> to vector<32x32xf32>
    %461 = arith.addf %459, %460 : vector<32x32xf32>
    %c1_241 = arith.constant 1 : index
    %c1_242 = arith.constant 1 : index
    %c0_243 = arith.constant 0 : index
    %c0_244 = arith.constant 0 : index
    %462 = vector.load %arg8[%c1_241, %c1_242, %c0_243, %c0_244] : memref<2x12x32x32xf32, #tpu.memory_space<vmem>>, vector<1x1x32x32xf32>
    %463 = vector.shape_cast %462 : vector<1x1x32x32xf32> to vector<32x32xf32>
    %c1_245 = arith.constant 1 : index
    %c1_246 = arith.constant 1 : index
    %c0_247 = arith.constant 0 : index
    %464 = vector.load %arg11[%c1_245, %c1_246, %c0_247] : memref<2x20x64xf32, #tpu.memory_space<vmem>>, vector<1x1x32xf32>
    %465 = vector.shape_cast %464 : vector<1x1x32xf32> to vector<1x32xf32>
    %cst_248 = arith.constant dense<0.000000e+00> : vector<32x32xf32>
    %466 = tpu.matmul %454, %463, %cst_248 {dimension_numbers = #tpu.dot_dimension_numbers<[1], [0], [0], [1], [0, 0, 1, 1], [], []>} : vector<32x32xf32>, vector<32x32xf32>, vector<32x32xf32> -> vector<32x32xf32>
    %467 = vector.broadcast %465 : vector<1x32xf32> to vector<32x32xf32>
    %468 = arith.addf %466, %467 : vector<32x32xf32>
    %c1_249 = arith.constant 1 : index
    %c2_250 = arith.constant 2 : index
    %c0_251 = arith.constant 0 : index
    %c0_252 = arith.constant 0 : index
    %469 = vector.load %arg8[%c1_249, %c2_250, %c0_251, %c0_252] : memref<2x12x32x32xf32, #tpu.memory_space<vmem>>, vector<1x1x32x32xf32>
    %470 = vector.shape_cast %469 : vector<1x1x32x32xf32> to vector<32x32xf32>
    %c1_253 = arith.constant 1 : index
    %c2_254 = arith.constant 2 : index
    %c0_255 = arith.constant 0 : index
    %471 = vector.load %arg11[%c1_253, %c2_254, %c0_255] : memref<2x20x64xf32, #tpu.memory_space<vmem>>, vector<1x1x32xf32>
    %472 = vector.shape_cast %471 : vector<1x1x32xf32> to vector<1x32xf32>
    %cst_256 = arith.constant dense<0.000000e+00> : vector<32x32xf32>
    %473 = tpu.matmul %381, %470, %cst_256 {dimension_numbers = #tpu.dot_dimension_numbers<[1], [0], [0], [1], [0, 0, 1, 1], [], []>} : vector<32x32xf32>, vector<32x32xf32>, vector<32x32xf32> -> vector<32x32xf32>
    %474 = vector.broadcast %472 : vector<1x32xf32> to vector<32x32xf32>
    %475 = arith.addf %473, %474 : vector<32x32xf32>
    %c1_257 = arith.constant 1 : index
    %c3_258 = arith.constant 3 : index
    %c0_259 = arith.constant 0 : index
    %c0_260 = arith.constant 0 : index
    %476 = vector.load %arg8[%c1_257, %c3_258, %c0_259, %c0_260] : memref<2x12x32x32xf32, #tpu.memory_space<vmem>>, vector<1x1x32x32xf32>
    %477 = vector.shape_cast %476 : vector<1x1x32x32xf32> to vector<32x32xf32>
    %c1_261 = arith.constant 1 : index
    %c3_262 = arith.constant 3 : index
    %c0_263 = arith.constant 0 : index
    %478 = vector.load %arg11[%c1_261, %c3_262, %c0_263] : memref<2x20x64xf32, #tpu.memory_space<vmem>>, vector<1x1x32xf32>
    %479 = vector.shape_cast %478 : vector<1x1x32xf32> to vector<1x32xf32>
    %cst_264 = arith.constant 0.353553385 : f32
    %480 = vector.broadcast %cst_264 : f32 to vector<1x32xf32>
    %481 = arith.mulf %33, %480 : vector<1x32xf32>
    %482 = vector.broadcast %481 : vector<1x32xf32> to vector<32x32xf32>
    %483 = arith.mulf %461, %482 : vector<32x32xf32>
    %cst_265 = arith.constant dense<0.000000e+00> : vector<32x32xf32>
    %484 = tpu.matmul %483, %468, %cst_265 {dimension_numbers = #tpu.dot_dimension_numbers<[1], [1], [0], [0], [0, 0, 1, 0], [], []>} : vector<32x32xf32>, vector<32x32xf32>, vector<32x32xf32> -> vector<32x32xf32>
    %485 = arith.addf %484, %12 : vector<32x32xf32>
    %cst_266 = arith.constant dense<0xFF800000> : vector<32xf32>
    %486 = vector.multi_reduction <maximumf>, %485, %cst_266 [1] : vector<32x32xf32> to vector<32xf32>
    %487 = vector.shape_cast %486 : vector<32xf32> to vector<32x1xf32>
    %488 = vector.broadcast %487 : vector<32x1xf32> to vector<32x32xf32>
    %489 = arith.subf %485, %488 : vector<32x32xf32>
    %490 = math.exp %489 : vector<32x32xf32>
    %cst_267 = arith.constant dense<0.000000e+00> : vector<32xf32>
    %491 = vector.multi_reduction <add>, %490, %cst_267 [1] : vector<32x32xf32> to vector<32xf32>
    %492 = vector.shape_cast %491 : vector<32xf32> to vector<32x1xf32>
    %493 = tpu.reciprocal %492 {approx = true} : vector<32x1xf32> -> vector<32x1xf32>
    %494 = vector.broadcast %493 : vector<32x1xf32> to vector<32x32xf32>
    %495 = arith.mulf %490, %494 : vector<32x32xf32>
    %496 = vector.broadcast %33 : vector<1x32xf32> to vector<32x32xf32>
    %497 = arith.mulf %475, %496 : vector<32x32xf32>
    %cst_268 = arith.constant dense<0.000000e+00> : vector<32x32xf32>
    %498 = tpu.matmul %495, %497, %cst_268 {dimension_numbers = #tpu.dot_dimension_numbers<[1], [0], [0], [1], [0, 0, 1, 1], [], []>} : vector<32x32xf32>, vector<32x32xf32>, vector<32x32xf32> -> vector<32x32xf32>
    %cst_269 = arith.constant 0.353553385 : f32
    %499 = vector.broadcast %cst_269 : f32 to vector<1x32xf32>
    %500 = arith.mulf %40, %499 : vector<1x32xf32>
    %501 = vector.broadcast %500 : vector<1x32xf32> to vector<32x32xf32>
    %502 = arith.mulf %461, %501 : vector<32x32xf32>
    %cst_270 = arith.constant dense<0.000000e+00> : vector<32x32xf32>
    %503 = tpu.matmul %502, %468, %cst_270 {dimension_numbers = #tpu.dot_dimension_numbers<[1], [1], [0], [0], [0, 0, 1, 0], [], []>} : vector<32x32xf32>, vector<32x32xf32>, vector<32x32xf32> -> vector<32x32xf32>
    %504 = arith.addf %503, %12 : vector<32x32xf32>
    %cst_271 = arith.constant dense<0xFF800000> : vector<32xf32>
    %505 = vector.multi_reduction <maximumf>, %504, %cst_271 [1] : vector<32x32xf32> to vector<32xf32>
    %506 = vector.shape_cast %505 : vector<32xf32> to vector<32x1xf32>
    %507 = vector.broadcast %506 : vector<32x1xf32> to vector<32x32xf32>
    %508 = arith.subf %504, %507 : vector<32x32xf32>
    %509 = math.exp %508 : vector<32x32xf32>
    %cst_272 = arith.constant dense<0.000000e+00> : vector<32xf32>
    %510 = vector.multi_reduction <add>, %509, %cst_272 [1] : vector<32x32xf32> to vector<32xf32>
    %511 = vector.shape_cast %510 : vector<32xf32> to vector<32x1xf32>
    %512 = tpu.reciprocal %511 {approx = true} : vector<32x1xf32> -> vector<32x1xf32>
    %513 = vector.broadcast %512 : vector<32x1xf32> to vector<32x32xf32>
    %514 = arith.mulf %509, %513 : vector<32x32xf32>
    %515 = vector.broadcast %40 : vector<1x32xf32> to vector<32x32xf32>
    %516 = arith.mulf %475, %515 : vector<32x32xf32>
    %cst_273 = arith.constant dense<0.000000e+00> : vector<32x32xf32>
    %517 = tpu.matmul %514, %516, %cst_273 {dimension_numbers = #tpu.dot_dimension_numbers<[1], [0], [0], [1], [0, 0, 1, 1], [], []>} : vector<32x32xf32>, vector<32x32xf32>, vector<32x32xf32> -> vector<32x32xf32>
    %518 = arith.addf %498, %517 : vector<32x32xf32>
    %cst_274 = arith.constant 0.353553385 : f32
    %519 = vector.broadcast %cst_274 : f32 to vector<1x32xf32>
    %520 = arith.mulf %47, %519 : vector<1x32xf32>
    %521 = vector.broadcast %520 : vector<1x32xf32> to vector<32x32xf32>
    %522 = arith.mulf %461, %521 : vector<32x32xf32>
    %cst_275 = arith.constant dense<0.000000e+00> : vector<32x32xf32>
    %523 = tpu.matmul %522, %468, %cst_275 {dimension_numbers = #tpu.dot_dimension_numbers<[1], [1], [0], [0], [0, 0, 1, 0], [], []>} : vector<32x32xf32>, vector<32x32xf32>, vector<32x32xf32> -> vector<32x32xf32>
    %524 = arith.addf %523, %12 : vector<32x32xf32>
    %cst_276 = arith.constant dense<0xFF800000> : vector<32xf32>
    %525 = vector.multi_reduction <maximumf>, %524, %cst_276 [1] : vector<32x32xf32> to vector<32xf32>
    %526 = vector.shape_cast %525 : vector<32xf32> to vector<32x1xf32>
    %527 = vector.broadcast %526 : vector<32x1xf32> to vector<32x32xf32>
    %528 = arith.subf %524, %527 : vector<32x32xf32>
    %529 = math.exp %528 : vector<32x32xf32>
    %cst_277 = arith.constant dense<0.000000e+00> : vector<32xf32>
    %530 = vector.multi_reduction <add>, %529, %cst_277 [1] : vector<32x32xf32> to vector<32xf32>
    %531 = vector.shape_cast %530 : vector<32xf32> to vector<32x1xf32>
    %532 = tpu.reciprocal %531 {approx = true} : vector<32x1xf32> -> vector<32x1xf32>
    %533 = vector.broadcast %532 : vector<32x1xf32> to vector<32x32xf32>
    %534 = arith.mulf %529, %533 : vector<32x32xf32>
    %535 = vector.broadcast %47 : vector<1x32xf32> to vector<32x32xf32>
    %536 = arith.mulf %475, %535 : vector<32x32xf32>
    %cst_278 = arith.constant dense<0.000000e+00> : vector<32x32xf32>
    %537 = tpu.matmul %534, %536, %cst_278 {dimension_numbers = #tpu.dot_dimension_numbers<[1], [0], [0], [1], [0, 0, 1, 1], [], []>} : vector<32x32xf32>, vector<32x32xf32>, vector<32x32xf32> -> vector<32x32xf32>
    %538 = arith.addf %518, %537 : vector<32x32xf32>
    %cst_279 = arith.constant 0.353553385 : f32
    %539 = vector.broadcast %cst_279 : f32 to vector<1x32xf32>
    %540 = arith.mulf %54, %539 : vector<1x32xf32>
    %541 = vector.broadcast %540 : vector<1x32xf32> to vector<32x32xf32>
    %542 = arith.mulf %461, %541 : vector<32x32xf32>
    %cst_280 = arith.constant dense<0.000000e+00> : vector<32x32xf32>
    %543 = tpu.matmul %542, %468, %cst_280 {dimension_numbers = #tpu.dot_dimension_numbers<[1], [1], [0], [0], [0, 0, 1, 0], [], []>} : vector<32x32xf32>, vector<32x32xf32>, vector<32x32xf32> -> vector<32x32xf32>
    %544 = arith.addf %543, %12 : vector<32x32xf32>
    %cst_281 = arith.constant dense<0xFF800000> : vector<32xf32>
    %545 = vector.multi_reduction <maximumf>, %544, %cst_281 [1] : vector<32x32xf32> to vector<32xf32>
    %546 = vector.shape_cast %545 : vector<32xf32> to vector<32x1xf32>
    %547 = vector.broadcast %546 : vector<32x1xf32> to vector<32x32xf32>
    %548 = arith.subf %544, %547 : vector<32x32xf32>
    %549 = math.exp %548 : vector<32x32xf32>
    %cst_282 = arith.constant dense<0.000000e+00> : vector<32xf32>
    %550 = vector.multi_reduction <add>, %549, %cst_282 [1] : vector<32x32xf32> to vector<32xf32>
    %551 = vector.shape_cast %550 : vector<32xf32> to vector<32x1xf32>
    %552 = tpu.reciprocal %551 {approx = true} : vector<32x1xf32> -> vector<32x1xf32>
    %553 = vector.broadcast %552 : vector<32x1xf32> to vector<32x32xf32>
    %554 = arith.mulf %549, %553 : vector<32x32xf32>
    %555 = vector.broadcast %54 : vector<1x32xf32> to vector<32x32xf32>
    %556 = arith.mulf %475, %555 : vector<32x32xf32>
    %cst_283 = arith.constant dense<0.000000e+00> : vector<32x32xf32>
    %557 = tpu.matmul %554, %556, %cst_283 {dimension_numbers = #tpu.dot_dimension_numbers<[1], [0], [0], [1], [0, 0, 1, 1], [], []>} : vector<32x32xf32>, vector<32x32xf32>, vector<32x32xf32> -> vector<32x32xf32>
    %558 = arith.addf %538, %557 : vector<32x32xf32>
    %cst_284 = arith.constant dense<0.000000e+00> : vector<32x32xf32>
    %559 = tpu.matmul %558, %477, %cst_284 {dimension_numbers = #tpu.dot_dimension_numbers<[1], [0], [0], [1], [0, 0, 1, 1], [], []>} : vector<32x32xf32>, vector<32x32xf32>, vector<32x32xf32> -> vector<32x32xf32>
    %560 = vector.broadcast %479 : vector<1x32xf32> to vector<32x32xf32>
    %561 = arith.addf %559, %560 : vector<32x32xf32>
    %562 = arith.addf %381, %561 : vector<32x32xf32>
    %c1_285 = arith.constant 1 : index
    %c4_286 = arith.constant 4 : index
    %c0_287 = arith.constant 0 : index
    %563 = vector.load %arg11[%c1_285, %c4_286, %c0_287] : memref<2x20x64xf32, #tpu.memory_space<vmem>>, vector<1x1x32xf32>
    %564 = vector.shape_cast %563 : vector<1x1x32xf32> to vector<1x32xf32>
    %c1_288 = arith.constant 1 : index
    %c5_289 = arith.constant 5 : index
    %c0_290 = arith.constant 0 : index
    %565 = vector.load %arg11[%c1_288, %c5_289, %c0_290] : memref<2x20x64xf32, #tpu.memory_space<vmem>>, vector<1x1x32xf32>
    %566 = vector.shape_cast %565 : vector<1x1x32xf32> to vector<1x32xf32>
    %cst_291 = arith.constant dense<0.000000e+00> : vector<32xf32>
    %567 = vector.multi_reduction <add>, %562, %cst_291 [1] : vector<32x32xf32> to vector<32xf32>
    %568 = vector.shape_cast %567 : vector<32xf32> to vector<32x1xf32>
    %cst_292 = arith.constant 3.200000e+01 : f32
    %569 = vector.broadcast %cst_292 : f32 to vector<32x1xf32>
    %570 = arith.divf %568, %569 : vector<32x1xf32>
    %571 = vector.broadcast %570 : vector<32x1xf32> to vector<32x32xf32>
    %572 = arith.subf %562, %571 : vector<32x32xf32>
    %573 = arith.mulf %572, %572 : vector<32x32xf32>
    %cst_293 = arith.constant dense<0.000000e+00> : vector<32xf32>
    %574 = vector.multi_reduction <add>, %573, %cst_293 [1] : vector<32x32xf32> to vector<32xf32>
    %575 = vector.shape_cast %574 : vector<32xf32> to vector<32x1xf32>
    %cst_294 = arith.constant 3.200000e+01 : f32
    %576 = vector.broadcast %cst_294 : f32 to vector<32x1xf32>
    %577 = arith.divf %575, %576 : vector<32x1xf32>
    %578 = vector.broadcast %570 : vector<32x1xf32> to vector<32x32xf32>
    %579 = arith.subf %562, %578 : vector<32x32xf32>
    %cst_295 = arith.constant 9.99999974E-6 : f32
    %580 = vector.broadcast %cst_295 : f32 to vector<32x1xf32>
    %581 = arith.addf %577, %580 : vector<32x1xf32>
    %582 = math.rsqrt %581 : vector<32x1xf32>
    %583 = vector.broadcast %582 : vector<32x1xf32> to vector<32x32xf32>
    %584 = arith.mulf %579, %583 : vector<32x32xf32>
    %585 = vector.broadcast %564 : vector<1x32xf32> to vector<32x32xf32>
    %586 = arith.mulf %584, %585 : vector<32x32xf32>
    %587 = vector.broadcast %566 : vector<1x32xf32> to vector<32x32xf32>
    %588 = arith.addf %586, %587 : vector<32x32xf32>
    %589 = arith.addf %588, %453 : vector<32x32xf32>
    %c1_296 = arith.constant 1 : index
    %c4_297 = arith.constant 4 : index
    %c0_298 = arith.constant 0 : index
    %c0_299 = arith.constant 0 : index
    %590 = vector.load %arg8[%c1_296, %c4_297, %c0_298, %c0_299] : memref<2x12x32x32xf32, #tpu.memory_space<vmem>>, vector<1x1x32x32xf32>
    %591 = vector.shape_cast %590 : vector<1x1x32x32xf32> to vector<32x32xf32>
    %c1_300 = arith.constant 1 : index
    %c6_301 = arith.constant 6 : index
    %c0_302 = arith.constant 0 : index
    %592 = vector.load %arg11[%c1_300, %c6_301, %c0_302] : memref<2x20x64xf32, #tpu.memory_space<vmem>>, vector<1x1x32xf32>
    %593 = vector.shape_cast %592 : vector<1x1x32xf32> to vector<1x32xf32>
    %cst_303 = arith.constant dense<0.000000e+00> : vector<32x32xf32>
    %594 = tpu.matmul %589, %591, %cst_303 {dimension_numbers = #tpu.dot_dimension_numbers<[1], [0], [0], [1], [0, 0, 1, 1], [], []>} : vector<32x32xf32>, vector<32x32xf32>, vector<32x32xf32> -> vector<32x32xf32>
    %595 = vector.broadcast %593 : vector<1x32xf32> to vector<32x32xf32>
    %596 = arith.addf %594, %595 : vector<32x32xf32>
    %c1_304 = arith.constant 1 : index
    %c5_305 = arith.constant 5 : index
    %c0_306 = arith.constant 0 : index
    %c0_307 = arith.constant 0 : index
    %597 = vector.load %arg8[%c1_304, %c5_305, %c0_306, %c0_307] : memref<2x12x32x32xf32, #tpu.memory_space<vmem>>, vector<1x1x32x32xf32>
    %598 = vector.shape_cast %597 : vector<1x1x32x32xf32> to vector<32x32xf32>
    %c1_308 = arith.constant 1 : index
    %c7_309 = arith.constant 7 : index
    %c0_310 = arith.constant 0 : index
    %599 = vector.load %arg11[%c1_308, %c7_309, %c0_310] : memref<2x20x64xf32, #tpu.memory_space<vmem>>, vector<1x1x32xf32>
    %600 = vector.shape_cast %599 : vector<1x1x32xf32> to vector<1x32xf32>
    %cst_311 = arith.constant dense<0.000000e+00> : vector<42x32xf32>
    %601 = tpu.matmul %4, %598, %cst_311 {dimension_numbers = #tpu.dot_dimension_numbers<[1], [0], [0], [1], [0, 0, 1, 1], [], []>} : vector<42x32xf32>, vector<32x32xf32>, vector<42x32xf32> -> vector<42x32xf32>
    %602 = vector.broadcast %600 : vector<1x32xf32> to vector<42x32xf32>
    %603 = arith.addf %601, %602 : vector<42x32xf32>
    %c1_312 = arith.constant 1 : index
    %c6_313 = arith.constant 6 : index
    %c0_314 = arith.constant 0 : index
    %c0_315 = arith.constant 0 : index
    %604 = vector.load %arg8[%c1_312, %c6_313, %c0_314, %c0_315] : memref<2x12x32x32xf32, #tpu.memory_space<vmem>>, vector<1x1x32x32xf32>
    %605 = vector.shape_cast %604 : vector<1x1x32x32xf32> to vector<32x32xf32>
    %c1_316 = arith.constant 1 : index
    %c8_317 = arith.constant 8 : index
    %c0_318 = arith.constant 0 : index
    %606 = vector.load %arg11[%c1_316, %c8_317, %c0_318] : memref<2x20x64xf32, #tpu.memory_space<vmem>>, vector<1x1x32xf32>
    %607 = vector.shape_cast %606 : vector<1x1x32xf32> to vector<1x32xf32>
    %cst_319 = arith.constant dense<0.000000e+00> : vector<42x32xf32>
    %608 = tpu.matmul %2, %605, %cst_319 {dimension_numbers = #tpu.dot_dimension_numbers<[1], [0], [0], [1], [0, 0, 1, 1], [], []>} : vector<42x32xf32>, vector<32x32xf32>, vector<42x32xf32> -> vector<42x32xf32>
    %609 = vector.broadcast %607 : vector<1x32xf32> to vector<42x32xf32>
    %610 = arith.addf %608, %609 : vector<42x32xf32>
    %c1_320 = arith.constant 1 : index
    %c7_321 = arith.constant 7 : index
    %c0_322 = arith.constant 0 : index
    %c0_323 = arith.constant 0 : index
    %611 = vector.load %arg8[%c1_320, %c7_321, %c0_322, %c0_323] : memref<2x12x32x32xf32, #tpu.memory_space<vmem>>, vector<1x1x32x32xf32>
    %612 = vector.shape_cast %611 : vector<1x1x32x32xf32> to vector<32x32xf32>
    %c1_324 = arith.constant 1 : index
    %c9_325 = arith.constant 9 : index
    %c0_326 = arith.constant 0 : index
    %613 = vector.load %arg11[%c1_324, %c9_325, %c0_326] : memref<2x20x64xf32, #tpu.memory_space<vmem>>, vector<1x1x32xf32>
    %614 = vector.shape_cast %613 : vector<1x1x32xf32> to vector<1x32xf32>
    %cst_327 = arith.constant 0.353553385 : f32
    %615 = vector.broadcast %cst_327 : f32 to vector<1x32xf32>
    %616 = arith.mulf %33, %615 : vector<1x32xf32>
    %617 = vector.broadcast %616 : vector<1x32xf32> to vector<32x32xf32>
    %618 = arith.mulf %596, %617 : vector<32x32xf32>
    %cst_328 = arith.constant dense<0.000000e+00> : vector<32x42xf32>
    %619 = tpu.matmul %618, %603, %cst_328 {dimension_numbers = #tpu.dot_dimension_numbers<[1], [1], [0], [0], [0, 0, 1, 0], [], []>} : vector<32x32xf32>, vector<42x32xf32>, vector<32x42xf32> -> vector<32x42xf32>
    %620 = arith.addf %619, %25 : vector<32x42xf32>
    %cst_329 = arith.constant dense<0xFF800000> : vector<32xf32>
    %621 = vector.multi_reduction <maximumf>, %620, %cst_329 [1] : vector<32x42xf32> to vector<32xf32>
    %622 = vector.shape_cast %621 : vector<32xf32> to vector<32x1xf32>
    %623 = vector.broadcast %622 : vector<32x1xf32> to vector<32x42xf32>
    %624 = arith.subf %620, %623 : vector<32x42xf32>
    %625 = math.exp %624 : vector<32x42xf32>
    %cst_330 = arith.constant dense<0.000000e+00> : vector<32xf32>
    %626 = vector.multi_reduction <add>, %625, %cst_330 [1] : vector<32x42xf32> to vector<32xf32>
    %627 = vector.shape_cast %626 : vector<32xf32> to vector<32x1xf32>
    %628 = tpu.reciprocal %627 {approx = true} : vector<32x1xf32> -> vector<32x1xf32>
    %629 = vector.broadcast %628 : vector<32x1xf32> to vector<32x42xf32>
    %630 = arith.mulf %625, %629 : vector<32x42xf32>
    %631 = vector.broadcast %33 : vector<1x32xf32> to vector<42x32xf32>
    %632 = arith.mulf %610, %631 : vector<42x32xf32>
    %cst_331 = arith.constant dense<0.000000e+00> : vector<32x32xf32>
    %633 = tpu.matmul %630, %632, %cst_331 {dimension_numbers = #tpu.dot_dimension_numbers<[1], [0], [0], [1], [0, 0, 1, 1], [], []>} : vector<32x42xf32>, vector<42x32xf32>, vector<32x32xf32> -> vector<32x32xf32>
    %cst_332 = arith.constant 0.353553385 : f32
    %634 = vector.broadcast %cst_332 : f32 to vector<1x32xf32>
    %635 = arith.mulf %40, %634 : vector<1x32xf32>
    %636 = vector.broadcast %635 : vector<1x32xf32> to vector<32x32xf32>
    %637 = arith.mulf %596, %636 : vector<32x32xf32>
    %cst_333 = arith.constant dense<0.000000e+00> : vector<32x42xf32>
    %638 = tpu.matmul %637, %603, %cst_333 {dimension_numbers = #tpu.dot_dimension_numbers<[1], [1], [0], [0], [0, 0, 1, 0], [], []>} : vector<32x32xf32>, vector<42x32xf32>, vector<32x42xf32> -> vector<32x42xf32>
    %639 = arith.addf %638, %25 : vector<32x42xf32>
    %cst_334 = arith.constant dense<0xFF800000> : vector<32xf32>
    %640 = vector.multi_reduction <maximumf>, %639, %cst_334 [1] : vector<32x42xf32> to vector<32xf32>
    %641 = vector.shape_cast %640 : vector<32xf32> to vector<32x1xf32>
    %642 = vector.broadcast %641 : vector<32x1xf32> to vector<32x42xf32>
    %643 = arith.subf %639, %642 : vector<32x42xf32>
    %644 = math.exp %643 : vector<32x42xf32>
    %cst_335 = arith.constant dense<0.000000e+00> : vector<32xf32>
    %645 = vector.multi_reduction <add>, %644, %cst_335 [1] : vector<32x42xf32> to vector<32xf32>
    %646 = vector.shape_cast %645 : vector<32xf32> to vector<32x1xf32>
    %647 = tpu.reciprocal %646 {approx = true} : vector<32x1xf32> -> vector<32x1xf32>
    %648 = vector.broadcast %647 : vector<32x1xf32> to vector<32x42xf32>
    %649 = arith.mulf %644, %648 : vector<32x42xf32>
    %650 = vector.broadcast %40 : vector<1x32xf32> to vector<42x32xf32>
    %651 = arith.mulf %610, %650 : vector<42x32xf32>
    %cst_336 = arith.constant dense<0.000000e+00> : vector<32x32xf32>
    %652 = tpu.matmul %649, %651, %cst_336 {dimension_numbers = #tpu.dot_dimension_numbers<[1], [0], [0], [1], [0, 0, 1, 1], [], []>} : vector<32x42xf32>, vector<42x32xf32>, vector<32x32xf32> -> vector<32x32xf32>
    %653 = arith.addf %633, %652 : vector<32x32xf32>
    %cst_337 = arith.constant 0.353553385 : f32
    %654 = vector.broadcast %cst_337 : f32 to vector<1x32xf32>
    %655 = arith.mulf %47, %654 : vector<1x32xf32>
    %656 = vector.broadcast %655 : vector<1x32xf32> to vector<32x32xf32>
    %657 = arith.mulf %596, %656 : vector<32x32xf32>
    %cst_338 = arith.constant dense<0.000000e+00> : vector<32x42xf32>
    %658 = tpu.matmul %657, %603, %cst_338 {dimension_numbers = #tpu.dot_dimension_numbers<[1], [1], [0], [0], [0, 0, 1, 0], [], []>} : vector<32x32xf32>, vector<42x32xf32>, vector<32x42xf32> -> vector<32x42xf32>
    %659 = arith.addf %658, %25 : vector<32x42xf32>
    %cst_339 = arith.constant dense<0xFF800000> : vector<32xf32>
    %660 = vector.multi_reduction <maximumf>, %659, %cst_339 [1] : vector<32x42xf32> to vector<32xf32>
    %661 = vector.shape_cast %660 : vector<32xf32> to vector<32x1xf32>
    %662 = vector.broadcast %661 : vector<32x1xf32> to vector<32x42xf32>
    %663 = arith.subf %659, %662 : vector<32x42xf32>
    %664 = math.exp %663 : vector<32x42xf32>
    %cst_340 = arith.constant dense<0.000000e+00> : vector<32xf32>
    %665 = vector.multi_reduction <add>, %664, %cst_340 [1] : vector<32x42xf32> to vector<32xf32>
    %666 = vector.shape_cast %665 : vector<32xf32> to vector<32x1xf32>
    %667 = tpu.reciprocal %666 {approx = true} : vector<32x1xf32> -> vector<32x1xf32>
    %668 = vector.broadcast %667 : vector<32x1xf32> to vector<32x42xf32>
    %669 = arith.mulf %664, %668 : vector<32x42xf32>
    %670 = vector.broadcast %47 : vector<1x32xf32> to vector<42x32xf32>
    %671 = arith.mulf %610, %670 : vector<42x32xf32>
    %cst_341 = arith.constant dense<0.000000e+00> : vector<32x32xf32>
    %672 = tpu.matmul %669, %671, %cst_341 {dimension_numbers = #tpu.dot_dimension_numbers<[1], [0], [0], [1], [0, 0, 1, 1], [], []>} : vector<32x42xf32>, vector<42x32xf32>, vector<32x32xf32> -> vector<32x32xf32>
    %673 = arith.addf %653, %672 : vector<32x32xf32>
    %cst_342 = arith.constant 0.353553385 : f32
    %674 = vector.broadcast %cst_342 : f32 to vector<1x32xf32>
    %675 = arith.mulf %54, %674 : vector<1x32xf32>
    %676 = vector.broadcast %675 : vector<1x32xf32> to vector<32x32xf32>
    %677 = arith.mulf %596, %676 : vector<32x32xf32>
    %cst_343 = arith.constant dense<0.000000e+00> : vector<32x42xf32>
    %678 = tpu.matmul %677, %603, %cst_343 {dimension_numbers = #tpu.dot_dimension_numbers<[1], [1], [0], [0], [0, 0, 1, 0], [], []>} : vector<32x32xf32>, vector<42x32xf32>, vector<32x42xf32> -> vector<32x42xf32>
    %679 = arith.addf %678, %25 : vector<32x42xf32>
    %cst_344 = arith.constant dense<0xFF800000> : vector<32xf32>
    %680 = vector.multi_reduction <maximumf>, %679, %cst_344 [1] : vector<32x42xf32> to vector<32xf32>
    %681 = vector.shape_cast %680 : vector<32xf32> to vector<32x1xf32>
    %682 = vector.broadcast %681 : vector<32x1xf32> to vector<32x42xf32>
    %683 = arith.subf %679, %682 : vector<32x42xf32>
    %684 = math.exp %683 : vector<32x42xf32>
    %cst_345 = arith.constant dense<0.000000e+00> : vector<32xf32>
    %685 = vector.multi_reduction <add>, %684, %cst_345 [1] : vector<32x42xf32> to vector<32xf32>
    %686 = vector.shape_cast %685 : vector<32xf32> to vector<32x1xf32>
    %687 = tpu.reciprocal %686 {approx = true} : vector<32x1xf32> -> vector<32x1xf32>
    %688 = vector.broadcast %687 : vector<32x1xf32> to vector<32x42xf32>
    %689 = arith.mulf %684, %688 : vector<32x42xf32>
    %690 = vector.broadcast %54 : vector<1x32xf32> to vector<42x32xf32>
    %691 = arith.mulf %610, %690 : vector<42x32xf32>
    %cst_346 = arith.constant dense<0.000000e+00> : vector<32x32xf32>
    %692 = tpu.matmul %689, %691, %cst_346 {dimension_numbers = #tpu.dot_dimension_numbers<[1], [0], [0], [1], [0, 0, 1, 1], [], []>} : vector<32x42xf32>, vector<42x32xf32>, vector<32x32xf32> -> vector<32x32xf32>
    %693 = arith.addf %673, %692 : vector<32x32xf32>
    %cst_347 = arith.constant dense<0.000000e+00> : vector<32x32xf32>
    %694 = tpu.matmul %693, %612, %cst_347 {dimension_numbers = #tpu.dot_dimension_numbers<[1], [0], [0], [1], [0, 0, 1, 1], [], []>} : vector<32x32xf32>, vector<32x32xf32>, vector<32x32xf32> -> vector<32x32xf32>
    %695 = vector.broadcast %614 : vector<1x32xf32> to vector<32x32xf32>
    %696 = arith.addf %694, %695 : vector<32x32xf32>
    %697 = arith.addf %588, %696 : vector<32x32xf32>
    %c1_348 = arith.constant 1 : index
    %c10_349 = arith.constant 10 : index
    %c0_350 = arith.constant 0 : index
    %698 = vector.load %arg11[%c1_348, %c10_349, %c0_350] : memref<2x20x64xf32, #tpu.memory_space<vmem>>, vector<1x1x32xf32>
    %699 = vector.shape_cast %698 : vector<1x1x32xf32> to vector<1x32xf32>
    %c1_351 = arith.constant 1 : index
    %c11_352 = arith.constant 11 : index
    %c0_353 = arith.constant 0 : index
    %700 = vector.load %arg11[%c1_351, %c11_352, %c0_353] : memref<2x20x64xf32, #tpu.memory_space<vmem>>, vector<1x1x32xf32>
    %701 = vector.shape_cast %700 : vector<1x1x32xf32> to vector<1x32xf32>
    %cst_354 = arith.constant dense<0.000000e+00> : vector<32xf32>
    %702 = vector.multi_reduction <add>, %697, %cst_354 [1] : vector<32x32xf32> to vector<32xf32>
    %703 = vector.shape_cast %702 : vector<32xf32> to vector<32x1xf32>
    %cst_355 = arith.constant 3.200000e+01 : f32
    %704 = vector.broadcast %cst_355 : f32 to vector<32x1xf32>
    %705 = arith.divf %703, %704 : vector<32x1xf32>
    %706 = vector.broadcast %705 : vector<32x1xf32> to vector<32x32xf32>
    %707 = arith.subf %697, %706 : vector<32x32xf32>
    %708 = arith.mulf %707, %707 : vector<32x32xf32>
    %cst_356 = arith.constant dense<0.000000e+00> : vector<32xf32>
    %709 = vector.multi_reduction <add>, %708, %cst_356 [1] : vector<32x32xf32> to vector<32xf32>
    %710 = vector.shape_cast %709 : vector<32xf32> to vector<32x1xf32>
    %cst_357 = arith.constant 3.200000e+01 : f32
    %711 = vector.broadcast %cst_357 : f32 to vector<32x1xf32>
    %712 = arith.divf %710, %711 : vector<32x1xf32>
    %713 = vector.broadcast %705 : vector<32x1xf32> to vector<32x32xf32>
    %714 = arith.subf %697, %713 : vector<32x32xf32>
    %cst_358 = arith.constant 9.99999974E-6 : f32
    %715 = vector.broadcast %cst_358 : f32 to vector<32x1xf32>
    %716 = arith.addf %712, %715 : vector<32x1xf32>
    %717 = math.rsqrt %716 : vector<32x1xf32>
    %718 = vector.broadcast %717 : vector<32x1xf32> to vector<32x32xf32>
    %719 = arith.mulf %714, %718 : vector<32x32xf32>
    %720 = vector.broadcast %699 : vector<1x32xf32> to vector<32x32xf32>
    %721 = arith.mulf %719, %720 : vector<32x32xf32>
    %722 = vector.broadcast %701 : vector<1x32xf32> to vector<32x32xf32>
    %723 = arith.addf %721, %722 : vector<32x32xf32>
    %c1_359 = arith.constant 1 : index
    %c0_360 = arith.constant 0 : index
    %c0_361 = arith.constant 0 : index
    %724 = vector.load %arg9[%c1_359, %c0_360, %c0_361] : memref<2x32x64xf32, #tpu.memory_space<vmem>>, vector<1x32x64xf32>
    %725 = vector.shape_cast %724 : vector<1x32x64xf32> to vector<32x64xf32>
    %c1_362 = arith.constant 1 : index
    %c12_363 = arith.constant 12 : index
    %c0_364 = arith.constant 0 : index
    %726 = vector.load %arg11[%c1_362, %c12_363, %c0_364] : memref<2x20x64xf32, #tpu.memory_space<vmem>>, vector<1x1x64xf32>
    %727 = vector.shape_cast %726 : vector<1x1x64xf32> to vector<1x64xf32>
    %cst_365 = arith.constant dense<0.000000e+00> : vector<32x64xf32>
    %728 = tpu.matmul %723, %725, %cst_365 {dimension_numbers = #tpu.dot_dimension_numbers<[1], [0], [0], [1], [0, 0, 1, 1], [], []>} : vector<32x32xf32>, vector<32x64xf32>, vector<32x64xf32> -> vector<32x64xf32>
    %729 = vector.broadcast %727 : vector<1x64xf32> to vector<32x64xf32>
    %730 = arith.addf %728, %729 : vector<32x64xf32>
    %cst_366 = arith.constant 0.000000e+00 : f32
    %731 = vector.broadcast %cst_366 : f32 to vector<32x64xf32>
    %732 = arith.maximumf %730, %731 : vector<32x64xf32>
    %c1_367 = arith.constant 1 : index
    %c0_368 = arith.constant 0 : index
    %c0_369 = arith.constant 0 : index
    %733 = vector.load %arg10[%c1_367, %c0_368, %c0_369] : memref<2x64x32xf32, #tpu.memory_space<vmem>>, vector<1x64x32xf32>
    %734 = vector.shape_cast %733 : vector<1x64x32xf32> to vector<64x32xf32>
    %c1_370 = arith.constant 1 : index
    %c13_371 = arith.constant 13 : index
    %c0_372 = arith.constant 0 : index
    %735 = vector.load %arg11[%c1_370, %c13_371, %c0_372] : memref<2x20x64xf32, #tpu.memory_space<vmem>>, vector<1x1x32xf32>
    %736 = vector.shape_cast %735 : vector<1x1x32xf32> to vector<1x32xf32>
    %cst_373 = arith.constant dense<0.000000e+00> : vector<32x32xf32>
    %737 = tpu.matmul %732, %734, %cst_373 {dimension_numbers = #tpu.dot_dimension_numbers<[1], [0], [0], [1], [0, 0, 1, 1], [], []>} : vector<32x64xf32>, vector<64x32xf32>, vector<32x32xf32> -> vector<32x32xf32>
    %738 = vector.broadcast %736 : vector<1x32xf32> to vector<32x32xf32>
    %739 = arith.addf %737, %738 : vector<32x32xf32>
    %740 = arith.addf %723, %739 : vector<32x32xf32>
    %c1_374 = arith.constant 1 : index
    %c14_375 = arith.constant 14 : index
    %c0_376 = arith.constant 0 : index
    %741 = vector.load %arg11[%c1_374, %c14_375, %c0_376] : memref<2x20x64xf32, #tpu.memory_space<vmem>>, vector<1x1x32xf32>
    %742 = vector.shape_cast %741 : vector<1x1x32xf32> to vector<1x32xf32>
    %c1_377 = arith.constant 1 : index
    %c15_378 = arith.constant 15 : index
    %c0_379 = arith.constant 0 : index
    %743 = vector.load %arg11[%c1_377, %c15_378, %c0_379] : memref<2x20x64xf32, #tpu.memory_space<vmem>>, vector<1x1x32xf32>
    %744 = vector.shape_cast %743 : vector<1x1x32xf32> to vector<1x32xf32>
    %cst_380 = arith.constant dense<0.000000e+00> : vector<32xf32>
    %745 = vector.multi_reduction <add>, %740, %cst_380 [1] : vector<32x32xf32> to vector<32xf32>
    %746 = vector.shape_cast %745 : vector<32xf32> to vector<32x1xf32>
    %cst_381 = arith.constant 3.200000e+01 : f32
    %747 = vector.broadcast %cst_381 : f32 to vector<32x1xf32>
    %748 = arith.divf %746, %747 : vector<32x1xf32>
    %749 = vector.broadcast %748 : vector<32x1xf32> to vector<32x32xf32>
    %750 = arith.subf %740, %749 : vector<32x32xf32>
    %751 = arith.mulf %750, %750 : vector<32x32xf32>
    %cst_382 = arith.constant dense<0.000000e+00> : vector<32xf32>
    %752 = vector.multi_reduction <add>, %751, %cst_382 [1] : vector<32x32xf32> to vector<32xf32>
    %753 = vector.shape_cast %752 : vector<32xf32> to vector<32x1xf32>
    %cst_383 = arith.constant 3.200000e+01 : f32
    %754 = vector.broadcast %cst_383 : f32 to vector<32x1xf32>
    %755 = arith.divf %753, %754 : vector<32x1xf32>
    %756 = vector.broadcast %748 : vector<32x1xf32> to vector<32x32xf32>
    %757 = arith.subf %740, %756 : vector<32x32xf32>
    %cst_384 = arith.constant 9.99999974E-6 : f32
    %758 = vector.broadcast %cst_384 : f32 to vector<32x1xf32>
    %759 = arith.addf %755, %758 : vector<32x1xf32>
    %760 = math.rsqrt %759 : vector<32x1xf32>
    %761 = vector.broadcast %760 : vector<32x1xf32> to vector<32x32xf32>
    %762 = arith.mulf %757, %761 : vector<32x32xf32>
    %763 = vector.broadcast %742 : vector<1x32xf32> to vector<32x32xf32>
    %764 = arith.mulf %762, %763 : vector<32x32xf32>
    %765 = vector.broadcast %744 : vector<1x32xf32> to vector<32x32xf32>
    %766 = arith.addf %764, %765 : vector<32x32xf32>
    %c1_385 = arith.constant 1 : index
    %c8_386 = arith.constant 8 : index
    %c0_387 = arith.constant 0 : index
    %c0_388 = arith.constant 0 : index
    %767 = vector.load %arg8[%c1_385, %c8_386, %c0_387, %c0_388] : memref<2x12x32x32xf32, #tpu.memory_space<vmem>>, vector<1x1x32x32xf32>
    %768 = vector.shape_cast %767 : vector<1x1x32x32xf32> to vector<32x32xf32>
    %c1_389 = arith.constant 1 : index
    %c16_390 = arith.constant 16 : index
    %c0_391 = arith.constant 0 : index
    %769 = vector.load %arg11[%c1_389, %c16_390, %c0_391] : memref<2x20x64xf32, #tpu.memory_space<vmem>>, vector<1x1x32xf32>
    %770 = vector.shape_cast %769 : vector<1x1x32xf32> to vector<1x32xf32>
    %cst_392 = arith.constant dense<0.000000e+00> : vector<32x32xf32>
    %771 = tpu.matmul %766, %768, %cst_392 {dimension_numbers = #tpu.dot_dimension_numbers<[1], [0], [0], [1], [0, 0, 1, 1], [], []>} : vector<32x32xf32>, vector<32x32xf32>, vector<32x32xf32> -> vector<32x32xf32>
    %772 = vector.broadcast %770 : vector<1x32xf32> to vector<32x32xf32>
    %773 = arith.addf %771, %772 : vector<32x32xf32>
    %cst_393 = arith.constant 0.000000e+00 : f32
    %774 = vector.broadcast %cst_393 : f32 to vector<32x32xf32>
    %775 = arith.maximumf %773, %774 : vector<32x32xf32>
    %c1_394 = arith.constant 1 : index
    %c9_395 = arith.constant 9 : index
    %c0_396 = arith.constant 0 : index
    %c0_397 = arith.constant 0 : index
    %776 = vector.load %arg8[%c1_394, %c9_395, %c0_396, %c0_397] : memref<2x12x32x32xf32, #tpu.memory_space<vmem>>, vector<1x1x32x32xf32>
    %777 = vector.shape_cast %776 : vector<1x1x32x32xf32> to vector<32x32xf32>
    %c1_398 = arith.constant 1 : index
    %c17_399 = arith.constant 17 : index
    %c0_400 = arith.constant 0 : index
    %778 = vector.load %arg11[%c1_398, %c17_399, %c0_400] : memref<2x20x64xf32, #tpu.memory_space<vmem>>, vector<1x1x32xf32>
    %779 = vector.shape_cast %778 : vector<1x1x32xf32> to vector<1x32xf32>
    %cst_401 = arith.constant dense<0.000000e+00> : vector<32x32xf32>
    %780 = tpu.matmul %775, %777, %cst_401 {dimension_numbers = #tpu.dot_dimension_numbers<[1], [0], [0], [1], [0, 0, 1, 1], [], []>} : vector<32x32xf32>, vector<32x32xf32>, vector<32x32xf32> -> vector<32x32xf32>
    %781 = vector.broadcast %779 : vector<1x32xf32> to vector<32x32xf32>
    %782 = arith.addf %780, %781 : vector<32x32xf32>
    %cst_402 = arith.constant 0.000000e+00 : f32
    %783 = vector.broadcast %cst_402 : f32 to vector<32x32xf32>
    %784 = arith.maximumf %782, %783 : vector<32x32xf32>
    %c1_403 = arith.constant 1 : index
    %c10_404 = arith.constant 10 : index
    %c0_405 = arith.constant 0 : index
    %c0_406 = arith.constant 0 : index
    %785 = vector.load %arg8[%c1_403, %c10_404, %c0_405, %c0_406] : memref<2x12x32x32xf32, #tpu.memory_space<vmem>>, vector<1x1x32x32xf32>
    %786 = vector.shape_cast %785 : vector<1x1x32x32xf32> to vector<32x32xf32>
    %c1_407 = arith.constant 1 : index
    %c18_408 = arith.constant 18 : index
    %c0_409 = arith.constant 0 : index
    %787 = vector.load %arg11[%c1_407, %c18_408, %c0_409] : memref<2x20x64xf32, #tpu.memory_space<vmem>>, vector<1x1x32xf32>
    %788 = vector.shape_cast %787 : vector<1x1x32xf32> to vector<1x32xf32>
    %cst_410 = arith.constant dense<0.000000e+00> : vector<32x32xf32>
    %789 = tpu.matmul %784, %786, %cst_410 {dimension_numbers = #tpu.dot_dimension_numbers<[1], [0], [0], [1], [0, 0, 1, 1], [], []>} : vector<32x32xf32>, vector<32x32xf32>, vector<32x32xf32> -> vector<32x32xf32>
    %790 = vector.broadcast %788 : vector<1x32xf32> to vector<32x32xf32>
    %791 = arith.addf %789, %790 : vector<32x32xf32>
    %c1_411 = arith.constant 1 : index
    %c11_412 = arith.constant 11 : index
    %c0_413 = arith.constant 0 : index
    %c0_414 = arith.constant 0 : index
    %792 = vector.load %arg8[%c1_411, %c11_412, %c0_413, %c0_414] : memref<2x12x32x32xf32, #tpu.memory_space<vmem>>, vector<1x1x32x32xf32>
    %793 = vector.shape_cast %792 : vector<1x1x32x32xf32> to vector<32x32xf32>
    %c1_415 = arith.constant 1 : index
    %c19_416 = arith.constant 19 : index
    %c0_417 = arith.constant 0 : index
    %794 = vector.load %arg11[%c1_415, %c19_416, %c0_417] : memref<2x20x64xf32, #tpu.memory_space<vmem>>, vector<1x1x32xf32>
    %795 = vector.shape_cast %794 : vector<1x1x32xf32> to vector<1x32xf32>
    %cst_418 = arith.constant dense<0.000000e+00> : vector<32x32xf32>
    %796 = tpu.matmul %766, %793, %cst_418 {dimension_numbers = #tpu.dot_dimension_numbers<[1], [0], [0], [1], [0, 0, 1, 1], [], []>} : vector<32x32xf32>, vector<32x32xf32>, vector<32x32xf32> -> vector<32x32xf32>
    %797 = vector.broadcast %795 : vector<1x32xf32> to vector<32x32xf32>
    %798 = arith.addf %796, %797 : vector<32x32xf32>
    %cst_419 = arith.constant 0.000000e+00 : f32
    %cst_420 = arith.constant 1.000000e+00 : f32
    %799 = vector.broadcast %cst_419 : f32 to vector<32x32xf32>
    %800 = arith.maximumf %799, %433 : vector<32x32xf32>
    %801 = vector.broadcast %cst_420 : f32 to vector<32x32xf32>
    %802 = arith.minimumf %801, %800 : vector<32x32xf32>
    %cst_421 = arith.constant 9.99999974E-5 : f32
    %803 = vector.broadcast %cst_421 : f32 to vector<32x32xf32>
    %804 = arith.maximumf %802, %803 : vector<32x32xf32>
    %cst_422 = arith.constant 1.000000e+00 : f32
    %805 = vector.broadcast %cst_422 : f32 to vector<32x32xf32>
    %806 = arith.subf %805, %802 : vector<32x32xf32>
    %cst_423 = arith.constant 9.99999974E-5 : f32
    %807 = vector.broadcast %cst_423 : f32 to vector<32x32xf32>
    %808 = arith.maximumf %806, %807 : vector<32x32xf32>
    %809 = arith.divf %804, %808 : vector<32x32xf32>
    %810 = math.log %809 : vector<32x32xf32>
    %811 = arith.addf %791, %810 : vector<32x32xf32>
    %cst_424 = arith.constant 0.000000e+00 : f32
    %812 = vector.broadcast %cst_424 : f32 to vector<32x32xf32>
    %813 = arith.subf %812, %811 : vector<32x32xf32>
    %814 = math.exp %813 : vector<32x32xf32>
    %cst_425 = arith.constant 1.000000e+00 : f32
    %815 = vector.broadcast %cst_425 : f32 to vector<32x32xf32>
    %816 = arith.addf %815, %814 : vector<32x32xf32>
    %cst_426 = arith.constant 1.000000e+00 : f32
    %817 = vector.broadcast %cst_426 : f32 to vector<32x32xf32>
    %818 = arith.divf %817, %816 : vector<32x32xf32>
    %c1_427 = arith.constant 1 : index
    %c0_428 = arith.constant 0 : index
    %c0_429 = arith.constant 0 : index
    %c0_430 = arith.constant 0 : index
    %819 = vector.load %arg14[%c1_427, %c0_428, %c0_429, %c0_430] : memref<2x2x32x32xf32, #tpu.memory_space<vmem>>, vector<1x1x32x32xf32>
    %820 = vector.shape_cast %819 : vector<1x1x32x32xf32> to vector<32x32xf32>
    %821 = vector.shape_cast %818 : vector<32x32xf32> to vector<1x1x32x32xf32>
    tpu.vector_store %arg14[%c1_427, %c0_428, %c0_429, %c0_430], %821 {strides = array<i32>} : memref<2x2x32x32xf32, #tpu.memory_space<vmem>>, vector<1x1x32x32xf32>,
    %c1_431 = arith.constant 1 : index
    %c1_432 = arith.constant 1 : index
    %c0_433 = arith.constant 0 : index
    %c0_434 = arith.constant 0 : index
    %822 = vector.load %arg14[%c1_431, %c1_432, %c0_433, %c0_434] : memref<2x2x32x32xf32, #tpu.memory_space<vmem>>, vector<1x1x32x32xf32>
    %823 = vector.shape_cast %822 : vector<1x1x32x32xf32> to vector<32x32xf32>
    %824 = vector.shape_cast %798 : vector<32x32xf32> to vector<1x1x32x32xf32>
    tpu.vector_store %arg14[%c1_431, %c1_432, %c0_433, %c0_434], %824 {strides = array<i32>} : memref<2x2x32x32xf32, #tpu.memory_space<vmem>>, vector<1x1x32x32xf32>,
    return
  }
}

</mosaic_0001>

<llo_original>
// kernel: dinodetr_forward.6
$region0: #{dinodetr_forward.6}
  #allocation0 [shape = 'u32[]', space=smem, size = 0x4, offset = 0x4, fixed_abs, tag = 'smem constant byte address 0x4 - core index']
  #allocation1 [shape = 'u32[72,128]{1,0:T(1,128)}', space=vmem, size = 0x9000, scoped, tag = 'internal scratch']
  %s0 = inlined_call_operand.vmem [shape: f32[8,16], index: 0, kind: input, shape index: {}]
  %s1 = inlined_call_operand.vmem [shape: f32[16,32], index: 1, kind: input, shape index: {}]
  %s2 = inlined_call_operand.vmem [shape: f32[8,2], index: 2, kind: input, shape index: {}]
  %s3 = inlined_call_operand.vmem [shape: f32[2,8], index: 3, kind: input, shape index: {}]
  %s4 = inlined_call_operand.vmem [shape: f32[3,32], index: 4, kind: input, shape index: {}]
  %s5 = inlined_call_operand.vmem [shape: f32[8,32], index: 5, kind: output, shape index: {}]
  %s6 = sld [smem:[#allocation0]]
  $region30: #{dinodetr_forward.6} parent=0
    _
  %s8 = ssub.s32 1, %s6
  %s9 = scalar_select 0, %s8, %s6
  // Predicated region
  $region2: #{dinodetr_forward.6} parent=0 // pred_check
    _
  $region3: #{dinodetr_forward.6} parent=0 // pred_check_branch
    %11 = sbr.rel (0) target = $region5
  $region4: #{dinodetr_forward.6} parent=0 // pred_region
    _
  $region5: #{dinodetr_forward.6} parent=0 // pred_fallthru
    _
  // Predicated region
  $region6: #{dinodetr_forward.6} parent=0 // pred_check
    _
  $region7: #{dinodetr_forward.6} parent=0 // pred_check_branch
    %13 = sbr.rel (0) target = $region9
  $region8: #{dinodetr_forward.6} parent=0 // pred_region
    _
  $region9: #{dinodetr_forward.6} parent=0 // pred_fallthru
    _
  // Predicated region
  $region10: #{dinodetr_forward.6} parent=0 // pred_check
    _
  $region11: #{dinodetr_forward.6} parent=0 // pred_check_branch
    %15 = sbr.rel (0) target = $region13
  $region12: #{dinodetr_forward.6} parent=0 // pred_region
    _
  $region13: #{dinodetr_forward.6} parent=0 // pred_fallthru
    _
  // Predicated region
  $region14: #{dinodetr_forward.6} parent=0 // pred_check
    _
  $region15: #{dinodetr_forward.6} parent=0 // pred_check_branch
    %17 = sbr.rel (0) target = $region17
  $region16: #{dinodetr_forward.6} parent=0 // pred_region
    _
  $region17: #{dinodetr_forward.6} parent=0 // pred_fallthru
    _
  // Predicated region
  $region18: #{dinodetr_forward.6} parent=0 // pred_check
    _
  $region19: #{dinodetr_forward.6} parent=0 // pred_check_branch
    %19 = sbr.rel (0) target = $region21
  $region20: #{dinodetr_forward.6} parent=0 // pred_region
    _
  $region21: #{dinodetr_forward.6} parent=0 // pred_fallthru
    _
  %v20 = vld [vmem:[%s0] sm:$0xff]
  %v21 = vld [vmem:[%s1] sm:$0xff]
  %v22 = vld [vmem:[%s1 + $0x8] sm:$0xff]
  %v23 = vld [vmem:[%s4] sm:$0x1]
  %v24 = vperm.slane %v23, 0
  %vm25 = vcmask 130048
  %v27 = vsel %vm25, %v20, 0
  %29 = vmatpush.msra.mxu0 0.0
  %30 = vmatpush.msra.mxu0 0.0
  %31 = vmatpush.msra.mxu0 0.0
  %32 = vmatpush.msra.mxu0 0.0
  %33 = vmatpush.msra.mxu0 0.0
  %34 = vmatpush.msra.mxu0 0.0
  %35 = vmatpush.msra.mxu0 0.0
  %36 = vmatpush.msra.mxu0 0.0
  %37 = vmatpush.msra.mxu0 0.0
  %38 = vmatpush.msra.mxu0 0.0
  %39 = vmatpush.msra.mxu0 0.0
  %40 = vmatpush.msra.mxu0 0.0
  %41 = vmatpush.msra.mxu0 0.0
  %42 = vmatpush.msra.mxu0 0.0
  %43 = vmatpush.msra.mxu0 %v22
  %44 = vmatpush.msra.mxu0 %v21
  %45 = vmatmul.f32.gmra.mxu0 %v27
  %v46 = vpop.f32.mrf.mxu0
  %v47 = vadd.f32 %v24, %v46
  %48 = vdwg.mxu0
  %v49 = vld [vmem:[%s3] sm:$0x3]
  %vm50 = vcmask 64512
  %v52 = vsel %vm50, %v49, 0
  %54 = vmatpush.msra.mxu0 0.0
  %55 = vmatpush.msra.mxu0 0.0
  %56 = vmatpush.msra.mxu0 0.0
  %57 = vmatpush.msra.mxu0 0.0
  %58 = vmatpush.msra.mxu0 0.0
  %59 = vmatpush.msra.mxu0 0.0
  %60 = vmatpush.msra.mxu0 0.0
  %61 = vmatpush.msra.mxu0 0.0
  %62 = vmatpush.msra.mxu0 0.0
  %63 = vmatpush.msra.mxu0 0.0
  %64 = vmatpush.msra.mxu0 0.0
  %65 = vmatpush.msra.mxu0 0.0
  %66 = vmatpush.msra.mxu0 0.0
  %67 = vmatpush.msra.mxu0 0.0
  %68 = vmatpush.msra.mxu0 0.0
  %69 = vmatpush.msra.mxu0 %v47
  %70 = vmatmul.f32.gmra.mxu0 %v52
  %v71 = vpop.f32.mrf.mxu0
  %v72 = vadd.f32 0.0, %v71
  %73 = vdwg.mxu0
  %v74 = vmul.f32 %v72, 0.25
  %v75 = vld [vmem:[%s2] sm:$0xff]
  %vm76 = vcmask 15360
  %v78 = vsel %vm76, %v75, 0
  %vm80 = vcmask 1041408
  %v82 = vsel %vm80, %v74, 0
  %84 = vmatpush.msra.mxu0 0.0
  %85 = vmatpush.msra.mxu0 0.0
  %86 = vmatpush.msra.mxu0 0.0
  %87 = vmatpush.msra.mxu0 0.0
  %88 = vmatpush.msra.mxu0 0.0
  %89 = vmatpush.msra.mxu0 0.0
  %90 = vmatpush.msra.mxu0 0.0
  %91 = vmatpush.msra.mxu0 0.0
  %92 = vmatpush.msra.mxu0 0.0
  %93 = vmatpush.msra.mxu0 0.0
  %94 = vmatpush.msra.mxu0 0.0
  %95 = vmatpush.msra.mxu0 0.0
  %96 = vmatpush.msra.mxu0 0.0
  %97 = vmatpush.msra.mxu0 0.0
  %98 = vmatpush.msra.mxu0 0.0
  %99 = vmatpush.msra.mxu0 %v82
  %100 = vmatmul.f32.gmra.mxu0 %v78
  %v101 = vpop.f32.mrf.mxu0
  %v102 = vadd.f32 0.0, %v101
  %103 = vdwg.mxu0
  %v104 = vsub.f32 %v47, %v102
  %v105 = vmul.f32 %v104, %v104
  %106 = vmatpush.msra.mxu0 0.0
  %107 = vmatpush.msra.mxu0 0.0
  %108 = vmatpush.msra.mxu0 0.0
  %109 = vmatpush.msra.mxu0 0.0
  %110 = vmatpush.msra.mxu0 0.0
  %111 = vmatpush.msra.mxu0 0.0
  %112 = vmatpush.msra.mxu0 0.0
  %113 = vmatpush.msra.mxu0 0.0
  %114 = vmatpush.msra.mxu0 0.0
  %115 = vmatpush.msra.mxu0 0.0
  %116 = vmatpush.msra.mxu0 0.0
  %117 = vmatpush.msra.mxu0 0.0
  %118 = vmatpush.msra.mxu0 0.0
  %119 = vmatpush.msra.mxu0 0.0
  %120 = vmatpush.msra.mxu0 0.0
  %121 = vmatpush.msra.mxu0 %v105
  %122 = vmatmul.f32.gmra.mxu0 %v52
  %v123 = vpop.f32.mrf.mxu0
  %v124 = vadd.f32 0.0, %v123
  %125 = vdwg.mxu0
  %v126 = vmul.f32 %v124, 0.25
  %v128 = vsel %vm80, %v126, 0
  %130 = vmatpush.msra.mxu0 0.0
  %131 = vmatpush.msra.mxu0 0.0
  %132 = vmatpush.msra.mxu0 0.0
  %133 = vmatpush.msra.mxu0 0.0
  %134 = vmatpush.msra.mxu0 0.0
  %135 = vmatpush.msra.mxu0 0.0
  %136 = vmatpush.msra.mxu0 0.0
  %137 = vmatpush.msra.mxu0 0.0
  %138 = vmatpush.msra.mxu0 0.0
  %139 = vmatpush.msra.mxu0 0.0
  %140 = vmatpush.msra.mxu0 0.0
  %141 = vmatpush.msra.mxu0 0.0
  %142 = vmatpush.msra.mxu0 0.0
  %143 = vmatpush.msra.mxu0 0.0
  %144 = vmatpush.msra.mxu0 0.0
  %145 = vmatpush.msra.mxu0 %v128
  %146 = vmatmul.f32.gmra.mxu0 %v78
  %v147 = vpop.f32.mrf.mxu0
  %v148 = vadd.f32 1e-05, %v147
  %149 = vdwg.mxu0
  %v150 = vrsqrt.pop %v148
  %v151 = vmul.f32 %v150, %v148
  %v152 = vmul.f32 %v151, %v150
  %v153 = vmul.f32 0.5, %v152
  %v154 = vsub.f32 1.5, %v153
  %v155 = vmul.f32 %v150, %v154
  %vm156 = vweird.f32 %v148
  %vm157 = vweird.f32 %v150
  %vm158 = vmor %vm156, %vm157
  %v159 = vsel %vm158, %v150, %v155
  %v160 = vmul.f32 %v104, %v159
  %v161 = vld [vmem:[%s4 + $0x1] sm:$0x1]
  %v162 = vperm.slane %v161, 0
  %v163 = vmul.f32 %v160, %v162
  %v164 = vld [vmem:[%s4 + $0x2] sm:$0x1]
  %v165 = vperm.slane %v164, 0
  %v166 = vadd.f32 %v163, %v165
  %vm167 = vcmask 261120
  %168 = vst.msk [vmem:[%s5] sm:$0xff] %vm167, %v166
  // Predicated region
  $region22: #{dinodetr_forward.6} parent=0 // pred_check
    _
  $region23: #{dinodetr_forward.6} parent=0 // pred_check_branch
    %170 = sbr.rel (0) target = $region25
  $region24: #{dinodetr_forward.6} parent=0 // pred_region
    _
  $region25: #{dinodetr_forward.6} parent=0 // pred_fallthru
    _
  // Predicated region
  $region26: #{dinodetr_forward.6} parent=0 // pred_check
    _
  $region27: #{dinodetr_forward.6} parent=0 // pred_check_branch
    %172 = sbr.rel (0) target = $region29
  $region28: #{dinodetr_forward.6} parent=0 // pred_region
    _
  $region29: #{dinodetr_forward.6} parent=0 // pred_fallthru
    _

// kernel: dinodetr_forward.7
$region0: #{dinodetr_forward.7}
  #allocation0 [shape = 'u32[]', space=smem, size = 0x4, offset = 0x4, fixed_abs, tag = 'smem constant byte address 0x4 - core index']
  #allocation1 [shape = 'u32[72,128]{1,0:T(1,128)}', space=vmem, size = 0x9000, scoped, tag = 'internal scratch']
  %s0 = inlined_call_operand.vmem [shape: f32[2,144], index: 0, kind: input, shape index: {}]
  %s1 = inlined_call_operand.vmem [shape: f32[144,32], index: 1, kind: input, shape index: {}]
  %s2 = inlined_call_operand.vmem [shape: f32[2,2], index: 2, kind: input, shape index: {}]
  %s3 = inlined_call_operand.vmem [shape: f32[2,2], index: 3, kind: input, shape index: {}]
  %s4 = inlined_call_operand.vmem [shape: f32[3,32], index: 4, kind: input, shape index: {}]
  %s5 = inlined_call_operand.vmem [shape: f32[2,32], index: 5, kind: output, shape index: {}]
  %s6 = sld [smem:[#allocation0]]
  $region30: #{dinodetr_forward.7} parent=0
    _
  %s8 = ssub.s32 1, %s6
  %s9 = scalar_select 0, %s8, %s6
  // Predicated region
  $region2: #{dinodetr_forward.7} parent=0 // pred_check
    _
  $region3: #{dinodetr_forward.7} parent=0 // pred_check_branch
    %11 = sbr.rel (0) target = $region5
  $region4: #{dinodetr_forward.7} parent=0 // pred_region
    _
  $region5: #{dinodetr_forward.7} parent=0 // pred_fallthru
    _
  // Predicated region
  $region6: #{dinodetr_forward.7} parent=0 // pred_check
    _
  $region7: #{dinodetr_forward.7} parent=0 // pred_check_branch
    %13 = sbr.rel (0) target = $region9
  $region8: #{dinodetr_forward.7} parent=0 // pred_region
    _
  $region9: #{dinodetr_forward.7} parent=0 // pred_fallthru
    _
  // Predicated region
  $region10: #{dinodetr_forward.7} parent=0 // pred_check
    _
  $region11: #{dinodetr_forward.7} parent=0 // pred_check_branch
    %15 = sbr.rel (0) target = $region13
  $region12: #{dinodetr_forward.7} parent=0 // pred_region
    _
  $region13: #{dinodetr_forward.7} parent=0 // pred_fallthru
    _
  // Predicated region
  $region14: #{dinodetr_forward.7} parent=0 // pred_check
    _
  $region15: #{dinodetr_forward.7} parent=0 // pred_check_branch
    %17 = sbr.rel (0) target = $region17
  $region16: #{dinodetr_forward.7} parent=0 // pred_region
    _
  $region17: #{dinodetr_forward.7} parent=0 // pred_fallthru
    _
  // Predicated region
  $region18: #{dinodetr_forward.7} parent=0 // pred_check
    _
  $region19: #{dinodetr_forward.7} parent=0 // pred_check_branch
    %19 = sbr.rel (0) target = $region21
  $region20: #{dinodetr_forward.7} parent=0 // pred_region
    _
  $region21: #{dinodetr_forward.7} parent=0 // pred_fallthru
    _
  %v20 = vld [vmem:[%s0] sm:$0xf]
  %v21 = vld [vmem:[%s1] sm:$0xff]
  %v22 = vld [vmem:[%s1 + $0x8] sm:$0xff]
  %v23 = vld [vmem:[%s1 + $0x10] sm:$0xff]
  %v24 = vld [vmem:[%s1 + $0x18] sm:$0xff]
  %v25 = vld [vmem:[%s1 + $0x20] sm:$0xff]
  %v26 = vld [vmem:[%s1 + $0x28] sm:$0xff]
  %v27 = vld [vmem:[%s1 + $0x30] sm:$0xff]
  %v28 = vld [vmem:[%s1 + $0x38] sm:$0xff]
  %v29 = vld [vmem:[%s1 + $0x40] sm:$0xff]
  %v30 = vld [vmem:[%s1 + $0x48] sm:$0xff]
  %v31 = vld [vmem:[%s1 + $0x50] sm:$0xff]
  %v32 = vld [vmem:[%s1 + $0x58] sm:$0xff]
  %v33 = vld [vmem:[%s1 + $0x60] sm:$0xff]
  %v34 = vld [vmem:[%s1 + $0x68] sm:$0xff]
  %v35 = vld [vmem:[%s1 + $0x70] sm:$0xff]
  %v36 = vld [vmem:[%s1 + $0x78] sm:$0xff]
  %v37 = vld [vmem:[%s1 + $0x80] sm:$0xff]
  %v38 = vld [vmem:[%s1 + $0x88] sm:$0xff]
  %v39 = vld [vmem:[%s4] sm:$0x1]
  %v40 = vperm.slane %v39, 0
  %42 = vst [vmem:[#allocation1] ss:$4 sm:$0xff] %v20
  %v43 = vld.sshfl [vmem:[#allocation1] sm:$0xff pattern:$0x73625140]
  %v44 = vld.sshfl [vmem:[#allocation1 + $0x8] sm:$0xff pattern:$0x73625140]
  %vm46 = vcmask 130048
  %v47 = vsel %vm46, %v44, 0
  %49 = vmatpush.msra.mxu0 %v36
  %50 = vmatpush.msra.mxu0 %v35
  %51 = vmatpush.msra.mxu0 %v34
  %52 = vmatpush.msra.mxu0 %v33
  %53 = vmatpush.msra.mxu0 %v32
  %54 = vmatpush.msra.mxu0 %v31
  %55 = vmatpush.msra.mxu0 %v30
  %56 = vmatpush.msra.mxu0 %v29
  %57 = vmatpush.msra.mxu0 %v28
  %58 = vmatpush.msra.mxu0 %v27
  %59 = vmatpush.msra.mxu0 %v26
  %60 = vmatpush.msra.mxu0 %v25
  %61 = vmatpush.msra.mxu0 %v24
  %62 = vmatpush.msra.mxu0 %v23
  %63 = vmatpush.msra.mxu0 %v22
  %64 = vmatpush.msra.mxu0 %v21
  %65 = vmatmul.f32.gmra.mxu0 %v43
  %v66 = vpop.f32.mrf.mxu0
  %v67 = vadd.f32 %v40, %v66
  %68 = vdwg.mxu0
  %69 = vmatpush.msra.mxu0 0.0
  %70 = vmatpush.msra.mxu0 0.0
  %71 = vmatpush.msra.mxu0 0.0
  %72 = vmatpush.msra.mxu0 0.0
  %73 = vmatpush.msra.mxu0 0.0
  %74 = vmatpush.msra.mxu0 0.0
  %75 = vmatpush.msra.mxu0 0.0
  %76 = vmatpush.msra.mxu0 0.0
  %77 = vmatpush.msra.mxu0 0.0
  %78 = vmatpush.msra.mxu0 0.0
  %79 = vmatpush.msra.mxu0 0.0
  %80 = vmatpush.msra.mxu0 0.0
  %81 = vmatpush.msra.mxu0 0.0
  %82 = vmatpush.msra.mxu0 0.0
  %83 = vmatpush.msra.mxu0 %v38
  %84 = vmatpush.msra.mxu0 %v37
  %85 = vmatmul.f32.gmra.mxu0 %v47
  %v86 = vpop.f32.mrf.mxu0
  %v87 = vadd.f32 %v67, %v86
  %88 = vdwg.mxu0
  %v89 = vld [vmem:[%s3] sm:$0x3]
  %vm90 = vcmask 15360
  %v92 = vsel %vm90, %v89, 0
  %vm94 = vcmask 1041408
  %v96 = vsel %vm94, %v87, 0
  %98 = vmatpush.msra.mxu0 0.0
  %99 = vmatpush.msra.mxu0 0.0
  %100 = vmatpush.msra.mxu0 0.0
  %101 = vmatpush.msra.mxu0 0.0
  %102 = vmatpush.msra.mxu0 0.0
  %103 = vmatpush.msra.mxu0 0.0
  %104 = vmatpush.msra.mxu0 0.0
  %105 = vmatpush.msra.mxu0 0.0
  %106 = vmatpush.msra.mxu0 0.0
  %107 = vmatpush.msra.mxu0 0.0
  %108 = vmatpush.msra.mxu0 0.0
  %109 = vmatpush.msra.mxu0 0.0
  %110 = vmatpush.msra.mxu0 0.0
  %111 = vmatpush.msra.mxu0 0.0
  %112 = vmatpush.msra.mxu0 0.0
  %113 = vmatpush.msra.mxu0 %v96
  %114 = vmatmul.f32.gmra.mxu0 %v92
  %v115 = vpop.f32.mrf.mxu0
  %v116 = vadd.f32 0.0, %v115
  %117 = vdwg.mxu0
  %v118 = vld [vmem:[%s2] sm:$0x3]
  %v120 = vsel %vm90, %v118, 0
  %v123 = vsel %vm94, %v116, 0
  %125 = vmatpush.msra.mxu0 0.0
  %126 = vmatpush.msra.mxu0 0.0
  %127 = vmatpush.msra.mxu0 0.0
  %128 = vmatpush.msra.mxu0 0.0
  %129 = vmatpush.msra.mxu0 0.0
  %130 = vmatpush.msra.mxu0 0.0
  %131 = vmatpush.msra.mxu0 0.0
  %132 = vmatpush.msra.mxu0 0.0
  %133 = vmatpush.msra.mxu0 0.0
  %134 = vmatpush.msra.mxu0 0.0
  %135 = vmatpush.msra.mxu0 0.0
  %136 = vmatpush.msra.mxu0 0.0
  %137 = vmatpush.msra.mxu0 0.0
  %138 = vmatpush.msra.mxu0 0.0
  %139 = vmatpush.msra.mxu0 0.0
  %140 = vmatpush.msra.mxu0 %v123
  %141 = vmatmul.f32.gmra.mxu0 %v120
  %v142 = vpop.f32.mrf.mxu0
  %v143 = vadd.f32 0.0, %v142
  %144 = vdwg.mxu0
  %v145 = vsub.f32 %v87, %v143
  %v146 = vmul.f32 %v145, %v145
  %v148 = vsel %vm94, %v146, 0
  %150 = vmatpush.msra.mxu0 0.0
  %151 = vmatpush.msra.mxu0 0.0
  %152 = vmatpush.msra.mxu0 0.0
  %153 = vmatpush.msra.mxu0 0.0
  %154 = vmatpush.msra.mxu0 0.0
  %155 = vmatpush.msra.mxu0 0.0
  %156 = vmatpush.msra.mxu0 0.0
  %157 = vmatpush.msra.mxu0 0.0
  %158 = vmatpush.msra.mxu0 0.0
  %159 = vmatpush.msra.mxu0 0.0
  %160 = vmatpush.msra.mxu0 0.0
  %161 = vmatpush.msra.mxu0 0.0
  %162 = vmatpush.msra.mxu0 0.0
  %163 = vmatpush.msra.mxu0 0.0
  %164 = vmatpush.msra.mxu0 0.0
  %165 = vmatpush.msra.mxu0 %v148
  %166 = vmatmul.f32.gmra.mxu0 %v92
  %v167 = vpop.f32.mrf.mxu0
  %v168 = vadd.f32 0.0, %v167
  %169 = vdwg.mxu0
  %v171 = vsel %vm94, %v168, 0
  %173 = vmatpush.msra.mxu0 0.0
  %174 = vmatpush.msra.mxu0 0.0
  %175 = vmatpush.msra.mxu0 0.0
  %176 = vmatpush.msra.mxu0 0.0
  %177 = vmatpush.msra.mxu0 0.0
  %178 = vmatpush.msra.mxu0 0.0
  %179 = vmatpush.msra.mxu0 0.0
  %180 = vmatpush.msra.mxu0 0.0
  %181 = vmatpush.msra.mxu0 0.0
  %182 = vmatpush.msra.mxu0 0.0
  %183 = vmatpush.msra.mxu0 0.0
  %184 = vmatpush.msra.mxu0 0.0
  %185 = vmatpush.msra.mxu0 0.0
  %186 = vmatpush.msra.mxu0 0.0
  %187 = vmatpush.msra.mxu0 0.0
  %188 = vmatpush.msra.mxu0 %v171
  %189 = vmatmul.f32.gmra.mxu0 %v120
  %v190 = vpop.f32.mrf.mxu0
  %v191 = vadd.f32 1e-05, %v190
  %192 = vdwg.mxu0
  %v193 = vrsqrt.pop %v191
  %v194 = vmul.f32 %v193, %v191
  %v195 = vmul.f32 %v194, %v193
  %v196 = vmul.f32 0.5, %v195
  %v197 = vsub.f32 1.5, %v196
  %v198 = vmul.f32 %v193, %v197
  %vm199 = vweird.f32 %v191
  %vm200 = vweird.f32 %v193
  %vm201 = vmor %vm199, %vm200
  %v202 = vsel %vm201, %v193, %v198
  %v203 = vmul.f32 %v145, %v202
  %v204 = vld [vmem:[%s4 + $0x1] sm:$0x1]
  %v205 = vperm.slane %v204, 0
  %v206 = vmul.f32 %v203, %v205
  %v207 = vld [vmem:[%s4 + $0x2] sm:$0x1]
  %v208 = vperm.slane %v207, 0
  %v209 = vadd.f32 %v206, %v208
  %vm210 = vcmask 254976
  %211 = vst.msk [vmem:[%s5] sm:$0x3] %vm210, %v209
  // Predicated region
  $region22: #{dinodetr_forward.7} parent=0 // pred_check
    _
  $region23: #{dinodetr_forward.7} parent=0 // pred_check_branch
    %213 = sbr.rel (0) target = $region25
  $region24: #{dinodetr_forward.7} parent=0 // pred_region
    _
  $region25: #{dinodetr_forward.7} parent=0 // pred_fallthru
    _
  // Predicated region
  $region26: #{dinodetr_forward.7} parent=0 // pred_check
    _
  $region27: #{dinodetr_forward.7} parent=0 // pred_check_branch
    %215 = sbr.rel (0) target = $region29
  $region28: #{dinodetr_forward.7} parent=0 // pred_region
    _
  $region29: #{dinodetr_forward.7} parent=0 // pred_fallthru
    _

// kernel: dinodetr_forward.5
$region0: #{dinodetr_forward.5}
  #allocation0 [shape = 'u32[]', space=smem, size = 0x4, offset = 0x4, fixed_abs, tag = 'smem constant byte address 0x4 - core index']
  #allocation1 [shape = 'u32[72,128]{1,0:T(1,128)}', space=vmem, size = 0x9000, scoped, tag = 'internal scratch']
  %s0 = inlined_call_operand.vmem [shape: f32[32,8], index: 0, kind: input, shape index: {}]
  %s1 = inlined_call_operand.vmem [shape: f32[8,32], index: 1, kind: input, shape index: {}]
  %s2 = inlined_call_operand.vmem [shape: f32[32,2], index: 2, kind: input, shape index: {}]
  %s3 = inlined_call_operand.vmem [shape: f32[2,32], index: 3, kind: input, shape index: {}]
  %s4 = inlined_call_operand.vmem [shape: f32[3,32], index: 4, kind: input, shape index: {}]
  %s5 = inlined_call_operand.vmem [shape: f32[32,32], index: 5, kind: output, shape index: {}]
  %s6 = sld [smem:[#allocation0]]
  $region30: #{dinodetr_forward.5} parent=0
    _
  %s8 = ssub.s32 1, %s6
  %s9 = scalar_select 0, %s8, %s6
  // Predicated region
  $region2: #{dinodetr_forward.5} parent=0 // pred_check
    _
  $region3: #{dinodetr_forward.5} parent=0 // pred_check_branch
    %11 = sbr.rel (0) target = $region5
  $region4: #{dinodetr_forward.5} parent=0 // pred_region
    _
  $region5: #{dinodetr_forward.5} parent=0 // pred_fallthru
    _
  // Predicated region
  $region6: #{dinodetr_forward.5} parent=0 // pred_check
    _
  $region7: #{dinodetr_forward.5} parent=0 // pred_check_branch
    %13 = sbr.rel (0) target = $region9
  $region8: #{dinodetr_forward.5} parent=0 // pred_region
    _
  $region9: #{dinodetr_forward.5} parent=0 // pred_fallthru
    _
  // Predicated region
  $region10: #{dinodetr_forward.5} parent=0 // pred_check
    _
  $region11: #{dinodetr_forward.5} parent=0 // pred_check_branch
    %15 = sbr.rel (0) target = $region13
  $region12: #{dinodetr_forward.5} parent=0 // pred_region
    _
  $region13: #{dinodetr_forward.5} parent=0 // pred_fallthru
    _
  // Predicated region
  $region14: #{dinodetr_forward.5} parent=0 // pred_check
    _
  $region15: #{dinodetr_forward.5} parent=0 // pred_check_branch
    %17 = sbr.rel (0) target = $region17
  $region16: #{dinodetr_forward.5} parent=0 // pred_region
    _
  $region17: #{dinodetr_forward.5} parent=0 // pred_fallthru
    _
  // Predicated region
  $region18: #{dinodetr_forward.5} parent=0 // pred_check
    _
  $region19: #{dinodetr_forward.5} parent=0 // pred_check_branch
    %19 = sbr.rel (0) target = $region21
  $region20: #{dinodetr_forward.5} parent=0 // pred_region
    _
  $region21: #{dinodetr_forward.5} parent=0 // pred_fallthru
    _
  %v20 = vld [vmem:[%s0] sm:$0xff]
  %v21 = vld [vmem:[%s0 + $0x8] sm:$0xff]
  %v22 = vld [vmem:[%s0 + $0x10] sm:$0xff]
  %v23 = vld [vmem:[%s0 + $0x18] sm:$0xff]
  %v24 = vld [vmem:[%s1] sm:$0xff]
  %v25 = vld [vmem:[%s4] sm:$0x1]
  %v26 = vperm.slane %v25, 0
  %vm27 = vcmask 64512
  %v29 = vsel %vm27, %v20, 0
  %v32 = vsel %vm27, %v21, 0
  %v35 = vsel %vm27, %v22, 0
  %v38 = vsel %vm27, %v23, 0
  %40 = vmatpush.msra.mxu0 0.0
  %41 = vmatpush.msra.mxu0 0.0
  %42 = vmatpush.msra.mxu0 0.0
  %43 = vmatpush.msra.mxu0 0.0
  %44 = vmatpush.msra.mxu0 0.0
  %45 = vmatpush.msra.mxu0 0.0
  %46 = vmatpush.msra.mxu0 0.0
  %47 = vmatpush.msra.mxu0 0.0
  %48 = vmatpush.msra.mxu0 0.0
  %49 = vmatpush.msra.mxu0 0.0
  %50 = vmatpush.msra.mxu0 0.0
  %51 = vmatpush.msra.mxu0 0.0
  %52 = vmatpush.msra.mxu0 0.0
  %53 = vmatpush.msra.mxu0 0.0
  %54 = vmatpush.msra.mxu0 0.0
  %55 = vmatpush.msra.mxu0 %v24
  %56 = vmatmul.f32.gmra.mxu0 %v29
  %v57 = vpop.f32.mrf.mxu0
  %v58 = vadd.f32 %v26, %v57
  %59 = vmatmul.f32.gmra.mxu0 %v32
  %v60 = vpop.f32.mrf.mxu0
  %v61 = vadd.f32 %v26, %v60
  %62 = vmatmul.f32.gmra.mxu0 %v35
  %v63 = vpop.f32.mrf.mxu0
  %v64 = vadd.f32 %v26, %v63
  %65 = vmatmul.f32.gmra.mxu0 %v38
  %v66 = vpop.f32.mrf.mxu0
  %v67 = vadd.f32 %v26, %v66
  %68 = vdwg.mxu0
  %v69 = vld [vmem:[%s3] sm:$0x3]
  %vm70 = vcmask 261120
  %v72 = vsel %vm70, %v69, 0
  %74 = vmatpush.msra.mxu0 0.0
  %75 = vmatpush.msra.mxu0 0.0
  %76 = vmatpush.msra.mxu0 0.0
  %77 = vmatpush.msra.mxu0 0.0
  %78 = vmatpush.msra.mxu0 0.0
  %79 = vmatpush.msra.mxu0 0.0
  %80 = vmatpush.msra.mxu0 0.0
  %81 = vmatpush.msra.mxu0 0.0
  %82 = vmatpush.msra.mxu0 0.0
  %83 = vmatpush.msra.mxu0 0.0
  %84 = vmatpush.msra.mxu0 0.0
  %85 = vmatpush.msra.mxu0 0.0
  %86 = vmatpush.msra.mxu0 %v67
  %87 = vmatpush.msra.mxu0 %v64
  %88 = vmatpush.msra.mxu0 %v61
  %89 = vmatpush.msra.mxu0 %v58
  %90 = vmatmul.f32.gmra.mxu0 %v72
  %v91 = vpop.f32.mrf.mxu0
  %v92 = vadd.f32 0.0, %v91
  %93 = vdwg.mxu0
  %v94 = vmul.f32 %v92, 0.0625
  %v95 = vld [vmem:[%s2] sm:$0xff]
  %v96 = vld [vmem:[%s2 + $0x8] sm:$0xff]
  %v97 = vld [vmem:[%s2 + $0x10] sm:$0xff]
  %v98 = vld [vmem:[%s2 + $0x18] sm:$0xff]
  %vm99 = vcmask 15360
  %v101 = vsel %vm99, %v95, 0
  %v104 = vsel %vm99, %v96, 0
  %v107 = vsel %vm99, %v97, 0
  %v110 = vsel %vm99, %v98, 0
  %vm112 = vcmask 1041408
  %v114 = vsel %vm112, %v94, 0
  %116 = vmatpush.msra.mxu0 0.0
  %117 = vmatpush.msra.mxu0 0.0
  %118 = vmatpush.msra.mxu0 0.0
  %119 = vmatpush.msra.mxu0 0.0
  %120 = vmatpush.msra.mxu0 0.0
  %121 = vmatpush.msra.mxu0 0.0
  %122 = vmatpush.msra.mxu0 0.0
  %123 = vmatpush.msra.mxu0 0.0
  %124 = vmatpush.msra.mxu0 0.0
  %125 = vmatpush.msra.mxu0 0.0
  %126 = vmatpush.msra.mxu0 0.0
  %127 = vmatpush.msra.mxu0 0.0
  %128 = vmatpush.msra.mxu0 0.0
  %129 = vmatpush.msra.mxu0 0.0
  %130 = vmatpush.msra.mxu0 0.0
  %131 = vmatpush.msra.mxu0 %v114
  %132 = vmatmul.f32.gmra.mxu0 %v101
  %v133 = vpop.f32.mrf.mxu0
  %v134 = vadd.f32 0.0, %v133
  %135 = vmatmul.f32.gmra.mxu0 %v104
  %v136 = vpop.f32.mrf.mxu0
  %v137 = vadd.f32 0.0, %v136
  %138 = vmatmul.f32.gmra.mxu0 %v107
  %v139 = vpop.f32.mrf.mxu0
  %v140 = vadd.f32 0.0, %v139
  %141 = vmatmul.f32.gmra.mxu0 %v110
  %v142 = vpop.f32.mrf.mxu0
  %v143 = vadd.f32 0.0, %v142
  %144 = vdwg.mxu0
  %v145 = vsub.f32 %v58, %v134
  %v146 = vsub.f32 %v61, %v137
  %v147 = vsub.f32 %v64, %v140
  %v148 = vsub.f32 %v67, %v143
  %v149 = vmul.f32 %v145, %v145
  %v150 = vmul.f32 %v146, %v146
  %v151 = vmul.f32 %v147, %v147
  %v152 = vmul.f32 %v148, %v148
  %153 = vmatpush.msra.mxu0 0.0
  %154 = vmatpush.msra.mxu0 0.0
  %155 = vmatpush.msra.mxu0 0.0
  %156 = vmatpush.msra.mxu0 0.0
  %157 = vmatpush.msra.mxu0 0.0
  %158 = vmatpush.msra.mxu0 0.0
  %159 = vmatpush.msra.mxu0 0.0
  %160 = vmatpush.msra.mxu0 0.0
  %161 = vmatpush.msra.mxu0 0.0
  %162 = vmatpush.msra.mxu0 0.0
  %163 = vmatpush.msra.mxu0 0.0
  %164 = vmatpush.msra.mxu0 0.0
  %165 = vmatpush.msra.mxu0 %v152
  %166 = vmatpush.msra.mxu0 %v151
  %167 = vmatpush.msra.mxu0 %v150
  %168 = vmatpush.msra.mxu0 %v149
  %169 = vmatmul.f32.gmra.mxu0 %v72
  %v170 = vpop.f32.mrf.mxu0
  %v171 = vadd.f32 0.0, %v170
  %172 = vdwg.mxu0
  %v173 = vmul.f32 %v171, 0.0625
  %v175 = vsel %vm112, %v173, 0
  %177 = vmatpush.msra.mxu0 0.0
  %178 = vmatpush.msra.mxu0 0.0
  %179 = vmatpush.msra.mxu0 0.0
  %180 = vmatpush.msra.mxu0 0.0
  %181 = vmatpush.msra.mxu0 0.0
  %182 = vmatpush.msra.mxu0 0.0
  %183 = vmatpush.msra.mxu0 0.0
  %184 = vmatpush.msra.mxu0 0.0
  %185 = vmatpush.msra.mxu0 0.0
  %186 = vmatpush.msra.mxu0 0.0
  %187 = vmatpush.msra.mxu0 0.0
  %188 = vmatpush.msra.mxu0 0.0
  %189 = vmatpush.msra.mxu0 0.0
  %190 = vmatpush.msra.mxu0 0.0
  %191 = vmatpush.msra.mxu0 0.0
  %192 = vmatpush.msra.mxu0 %v175
  %193 = vmatmul.f32.gmra.mxu0 %v101
  %v194 = vpop.f32.mrf.mxu0
  %v195 = vadd.f32 1e-05, %v194
  %196 = vmatmul.f32.gmra.mxu0 %v104
  %v197 = vpop.f32.mrf.mxu0
  %v198 = vadd.f32 1e-05, %v197
  %199 = vmatmul.f32.gmra.mxu0 %v107
  %v200 = vpop.f32.mrf.mxu0
  %v201 = vadd.f32 1e-05, %v200
  %202 = vmatmul.f32.gmra.mxu0 %v110
  %v203 = vpop.f32.mrf.mxu0
  %v204 = vadd.f32 1e-05, %v203
  %205 = vdwg.mxu0
  %v206 = vrsqrt.pop %v195
  %v207 = vmul.f32 %v206, %v195
  %v208 = vmul.f32 %v207, %v206
  %v209 = vmul.f32 0.5, %v208
  %v210 = vsub.f32 1.5, %v209
  %v211 = vmul.f32 %v206, %v210
  %vm212 = vweird.f32 %v195
  %vm213 = vweird.f32 %v206
  %vm214 = vmor %vm212, %vm213
  %v215 = vsel %vm214, %v206, %v211
  %v216 = vrsqrt.pop %v198
  %v217 = vmul.f32 %v216, %v198
  %v218 = vmul.f32 %v217, %v216
  %v219 = vmul.f32 0.5, %v218
  %v220 = vsub.f32 1.5, %v219
  %v221 = vmul.f32 %v216, %v220
  %vm222 = vweird.f32 %v198
  %vm223 = vweird.f32 %v216
  %vm224 = vmor %vm222, %vm223
  %v225 = vsel %vm224, %v216, %v221
  %v226 = vrsqrt.pop %v201
  %v227 = vmul.f32 %v226, %v201
  %v228 = vmul.f32 %v227, %v226
  %v229 = vmul.f32 0.5, %v228
  %v230 = vsub.f32 1.5, %v229
  %v231 = vmul.f32 %v226, %v230
  %vm232 = vweird.f32 %v201
  %vm233 = vweird.f32 %v226
  %vm234 = vmor %vm232, %vm233
  %v235 = vsel %vm234, %v226, %v231
  %v236 = vrsqrt.pop %v204
  %v237 = vmul.f32 %v236, %v204
  %v238 = vmul.f32 %v237, %v236
  %v239 = vmul.f32 0.5, %v238
  %v240 = vsub.f32 1.5, %v239
  %v241 = vmul.f32 %v236, %v240
  %vm242 = vweird.f32 %v204
  %vm243 = vweird.f32 %v236
  %vm244 = vmor %vm242, %vm243
  %v245 = vsel %vm244, %v236, %v241
  %v246 = vmul.f32 %v145, %v215
  %v247 = vmul.f32 %v146, %v225
  %v248 = vmul.f32 %v147, %v235
  %v249 = vmul.f32 %v148, %v245
  %v250 = vld [vmem:[%s4 + $0x1] sm:$0x1]
  %v251 = vperm.slane %v250, 0
  %v252 = vmul.f32 %v246, %v251
  %v253 = vmul.f32 %v247, %v251
  %v254 = vmul.f32 %v248, %v251
  %v255 = vmul.f32 %v249, %v251
  %v256 = vld [vmem:[%s4 + $0x2] sm:$0x1]
  %v257 = vperm.slane %v256, 0
  %v258 = vadd.f32 %v252, %v257
  %v259 = vadd.f32 %v253, %v257
  %v260 = vadd.f32 %v254, %v257
  %v261 = vadd.f32 %v255, %v257
  %262 = vst.msk [vmem:[%s5] sm:$0xff] %vm70, %v258
  %263 = vst.msk [vmem:[%s5 + $0x8] sm:$0xff] %vm70, %v259
  %264 = vst.msk [vmem:[%s5 + $0x10] sm:$0xff] %vm70, %v260
  %265 = vst.msk [vmem:[%s5 + $0x18] sm:$0xff] %vm70, %v261
  // Predicated region
  $region22: #{dinodetr_forward.5} parent=0 // pred_check
    _
  $region23: #{dinodetr_forward.5} parent=0 // pred_check_branch
    %267 = sbr.rel (0) target = $region25
  $region24: #{dinodetr_forward.5} parent=0 // pred_region
    _
  $region25: #{dinodetr_forward.5} parent=0 // pred_fallthru
    _
  // Predicated region
  $region26: #{dinodetr_forward.5} parent=0 // pred_check
    _
  $region27: #{dinodetr_forward.5} parent=0 // pred_check_branch
    %269 = sbr.rel (0) target = $region29
  $region28: #{dinodetr_forward.5} parent=0 // pred_region
    _
  $region29: #{dinodetr_forward.5} parent=0 // pred_fallthru
    _

// kernel: squeeze.25
$region0: #{squeeze.25}
  %s0 = inlined_call_operand.vmem [shape: f32[1,42,4], index: 0, kind: input, shape index: {}]
  %s1 = inlined_call_operand.vmem [shape: f32[2,21,4], index: 1, kind: output, shape index: {}]
  $region1: #{squeeze.25} parent=0
    #allocation0 [shape = 'u8[16384]{0}', space=vmem, size = 0x4000, scoped, tag = 'scoped mem for output reshape']
    #allocation1 [shape = 'u8[4096]{0}', space=vmem, size = 0x1000, scoped, tag = 'scoped mem for input reshape']
    %s3 = ssub.s32 16, 1
    %v4 = vld [vmem:[%s0] sm:%s3]
    %5 = vst [vmem:[#allocation1] sm:%s3] %v4
    %v6 = vld [vmem:[#allocation1] sm:$0xf]
    %vm7 = vcmask 171008
    %8 = vst.msk [vmem:[#allocation0] ss:$8 sm:$0xf] %vm7, %v6
    %v9 = vld [vmem:[#allocation1] sm:$0xf]
    %10 = vrot.lane.b32.xlu0 %v9, 107
    %v11 = vpop.permute.xlu0 %10
    %vm12 = vcmask 171008
    %s13 = scalar_lea.vmem [#allocation0], 1
    %14 = vst.msk [vmem:[%s13] ss:$8 sm:$0xf] %vm12, %v11
    %s16 = ssub.s32 4, 1
    %v17 = vld [vmem:[#allocation0] sm:%s16]
    %s19 = ssub.s32 4, 1
    %20 = vst [vmem:[%s1] sm:%s19] %v17
    %s21 = scalar_lea.vmem [#allocation0], 8
    %v22 = vld [vmem:[%s21] sm:%s16]
    %s24 = ssub.s32 4, 1
    %s25 = scalar_lea.vmem %s1, 2
    %26 = vst [vmem:[%s25] sm:%s24] %v22
    %s27 = scalar_lea.vmem [#allocation0], 16
    %v28 = vld [vmem:[%s27] sm:%s16]
    %s30 = ssub.s32 4, 1
    %s31 = scalar_lea.vmem %s1, 4
    %32 = vst [vmem:[%s31] sm:%s30] %v28
    %s33 = scalar_lea.vmem [#allocation0], 24
    %v34 = vld [vmem:[%s33] sm:%s16]
    %s36 = ssub.s32 4, 1
    %s37 = scalar_lea.vmem %s1, 6
    %38 = vst [vmem:[%s37] sm:%s36] %v34

// kernel: dinodetr_forward.8
$region0: #{dinodetr_forward.8}
  #allocation0 [shape = 'u32[]', space=smem, size = 0x4, offset = 0x4, fixed_abs, tag = 'smem constant byte address 0x4 - core index']
  #allocation1 [shape = 'u32[72,128]{1,0:T(1,128)}', space=vmem, size = 0x9000, scoped, tag = 'internal scratch']
  %s0 = inlined_call_operand.vmem [shape: f32[42,32], index: 0, kind: input, shape index: {}]
  %s1 = inlined_call_operand.vmem [shape: f32[42,32], index: 1, kind: input, shape index: {}]
  %s2 = inlined_call_operand.vmem [shape: f32[42,1], index: 2, kind: input, shape index: {}]
  %s3 = inlined_call_operand.vmem [shape: f32[1,42], index: 3, kind: input, shape index: {}]
  %s4 = inlined_call_operand.vmem [shape: f32[1,42], index: 4, kind: input, shape index: {}]
  %s5 = inlined_call_operand.vmem [shape: f32[42,1], index: 5, kind: input, shape index: {}]
  %s6 = inlined_call_operand.vmem [shape: f32[2,4,32,32], index: 6, kind: input, shape index: {}]
  %s7 = inlined_call_operand.vmem [shape: f32[2,32,64], index: 7, kind: input, shape index: {}]
  %s8 = inlined_call_operand.vmem [shape: f32[2,64,32], index: 8, kind: input, shape index: {}]
  %s9 = inlined_call_operand.vmem [shape: f32[2,10,64], index: 9, kind: input, shape index: {}]
  %s10 = inlined_call_operand.vmem [shape: f32[5,32,32], index: 10, kind: input, shape index: {}]
  %s11 = inlined_call_operand.vmem [shape: f32[7,64], index: 11, kind: input, shape index: {}]
  %s12 = inlined_call_operand.vmem [shape: f32[3,42,32], index: 12, kind: output, shape index: {}]
  %s13 = sld [smem:[#allocation0]]
  $region58: #{dinodetr_forward.8} parent=0
    _
  %s15 = ssub.s32 1, %s13
  %s16 = scalar_select 0, %s15, %s13
  // Predicated region
  $region2: #{dinodetr_forward.8} parent=0 // pred_check
    _
  $region3: #{dinodetr_forward.8} parent=0 // pred_check_branch
    %18 = sbr.rel (0) target = $region5
  $region4: #{dinodetr_forward.8} parent=0 // pred_region
    _
  $region5: #{dinodetr_forward.8} parent=0 // pred_fallthru
    _
  // Predicated region
  $region6: #{dinodetr_forward.8} parent=0 // pred_check
    _
  $region7: #{dinodetr_forward.8} parent=0 // pred_check_branch
    %20 = sbr.rel (0) target = $region9
  $region8: #{dinodetr_forward.8} parent=0 // pred_region
    _
  $region9: #{dinodetr_forward.8} parent=0 // pred_fallthru
    _
  // Predicated region
  $region10: #{dinodetr_forward.8} parent=0 // pred_check
    _
  $region11: #{dinodetr_forward.8} parent=0 // pred_check_branch
    %22 = sbr.rel (0) target = $region13
  $region12: #{dinodetr_forward.8} parent=0 // pred_region
    _
  $region13: #{dinodetr_forward.8} parent=0 // pred_fallthru
    _
  // Predicated region
  $region14: #{dinodetr_forward.8} parent=0 // pred_check
    _
  $region15: #{dinodetr_forward.8} parent=0 // pred_check_branch
    %24 = sbr.rel (0) target = $region17
  $region16: #{dinodetr_forward.8} parent=0 // pred_region
    _
  $region17: #{dinodetr_forward.8} parent=0 // pred_fallthru
    _
  // Predicated region
  $region18: #{dinodetr_forward.8} parent=0 // pred_check
    _
  $region19: #{dinodetr_forward.8} parent=0 // pred_check_branch
    %26 = sbr.rel (0) target = $region21
  $region20: #{dinodetr_forward.8} parent=0 // pred_region
    _
  $region21: #{dinodetr_forward.8} parent=0 // pred_fallthru
    _
  // Predicated region
  $region22: #{dinodetr_forward.8} parent=0 // pred_check
    _
  $region23: #{dinodetr_forward.8} parent=0 // pred_check_branch
    %28 = sbr.rel (0) target = $region25
  $region24: #{dinodetr_forward.8} parent=0 // pred_region
    _
  $region25: #{dinodetr_forward.8} parent=0 // pred_fallthru
    _
  // Predicated region
  $region26: #{dinodetr_forward.8} parent=0 // pred_check
    _
  $region27: #{dinodetr_forward.8} parent=0 // pred_check_branch
    %30 = sbr.rel (0) target = $region29
  $region28: #{dinodetr_forward.8} parent=0 // pred_region
    _
  $region29: #{dinodetr_forward.8} parent=0 // pred_fallthru
    _
  // Predicated region
  $region30: #{dinodetr_forward.8} parent=0 // pred_check
    _
  $region31: #{dinodetr_forward.8} parent=0 // pred_check_branch
    %32 = sbr.rel (0) target = $region33
  $region32: #{dinodetr_forward.8} parent=0 // pred_region
    _
  $region33: #{dinodetr_forward.8} parent=0 // pred_fallthru
    _
  // Predicated region
  $region34: #{dinodetr_forward.8} parent=0 // pred_check
    _
  $region35: #{dinodetr_forward.8} parent=0 // pred_check_branch
    %34 = sbr.rel (0) target = $region37
  $region36: #{dinodetr_forward.8} parent=0 // pred_region
    _
  $region37: #{dinodetr_forward.8} parent=0 // pred_fallthru
    _
  // Predicated region
  $region38: #{dinodetr_forward.8} parent=0 // pred_check
    _
  $region39: #{dinodetr_forward.8} parent=0 // pred_check_branch
    %36 = sbr.rel (0) target = $region41
  $region40: #{dinodetr_forward.8} parent=0 // pred_region
    _
  $region41: #{dinodetr_forward.8} parent=0 // pred_fallthru
    _
  // Predicated region
  $region42: #{dinodetr_forward.8} parent=0 // pred_check
    _
  $region43: #{dinodetr_forward.8} parent=0 // pred_check_branch
    %38 = sbr.rel (0) target = $region45
  $region44: #{dinodetr_forward.8} parent=0 // pred_region
    _
  $region45: #{dinodetr_forward.8} parent=0 // pred_fallthru
    _
  // Predicated region
  $region46: #{dinodetr_forward.8} parent=0 // pred_check
    _
  $region47: #{dinodetr_forward.8} parent=0 // pred_check_branch
    %40 = sbr.rel (0) target = $region49
  $region48: #{dinodetr_forward.8} parent=0 // pred_region
    _
  $region49: #{dinodetr_forward.8} parent=0 // pred_fallthru
    _
  %v41 = vld [vmem:[%s0] sm:$0xff]
  %v42 = vld [vmem:[%s0 + $0x8] sm:$0xff]
  %v43 = vld [vmem:[%s0 + $0x10] sm:$0xff]
  %v44 = vld [vmem:[%s0 + $0x18] sm:$0xff]
  %v45 = vld [vmem:[%s0 + $0x20] sm:$0xff]
  %v46 = vld [vmem:[%s0 + $0x28] sm:$0x3]
  %v47 = vld [vmem:[%s1] sm:$0xff]
  %v48 = vld [vmem:[%s1 + $0x8] sm:$0xff]
  %v49 = vld [vmem:[%s1 + $0x10] sm:$0xff]
  %v50 = vld [vmem:[%s1 + $0x18] sm:$0xff]
  %v51 = vld [vmem:[%s1 + $0x20] sm:$0xff]
  %v52 = vld [vmem:[%s1 + $0x28] sm:$0x3]
  %v53 = vld [vmem:[%s2] sm:$0xff]
  %v54 = vld [vmem:[%s2 + $0x8] sm:$0xff]
  %v55 = vld [vmem:[%s2 + $0x10] sm:$0xff]
  %v56 = vld [vmem:[%s2 + $0x18] sm:$0xff]
  %v57 = vld [vmem:[%s2 + $0x20] sm:$0xff]
  %v58 = vld [vmem:[%s2 + $0x28] sm:$0x3]
  %v59 = vld [vmem:[%s3] sm:$0x1]
  %61 = vset.pattern.permute.xlu0 0
  %62 = vperm.xlu0 %61, %v53
  %v63 = vpop.permute.xlu0 %62
  %66 = vset.pattern.permute.xlu0 0
  %67 = vperm.xlu0 %66, %v54
  %v68 = vpop.permute.xlu0 %67
  %71 = vset.pattern.permute.xlu0 0
  %72 = vperm.xlu0 %71, %v55
  %v73 = vpop.permute.xlu0 %72
  %76 = vset.pattern.permute.xlu0 0
  %77 = vperm.xlu0 %76, %v56
  %v78 = vpop.permute.xlu0 %77
  %81 = vset.pattern.permute.xlu0 0
  %82 = vperm.xlu0 %81, %v57
  %v83 = vpop.permute.xlu0 %82
  %86 = vset.pattern.permute.xlu0 0
  %87 = vperm.xlu0 %86, %v58
  %v88 = vpop.permute.xlu0 %87
  %v91 = vperm.slane %v59, 0
  %vm93 = vcmp.eq.f32.partialorder %v63, %v91
  %vm94 = vcmp.eq.f32.partialorder %v68, %v91
  %vm95 = vcmp.eq.f32.partialorder %v73, %v91
  %vm96 = vcmp.eq.f32.partialorder %v78, %v91
  %vm97 = vcmp.eq.f32.partialorder %v83, %v91
  %vm98 = vcmp.eq.f32.partialorder %v88, %v91
  %v99 = vld [vmem:[%s4] sm:$0x1]
  %vm100 = vcmp.eq.f32.partialorder %v99, 0.0
  %v101 = vsel %vm100, 1, 0
  %v102 = vperm.slane %v101, 0
  %vm103 = vcmp.eq.s32.totalorder %v102, 1
  %vm104 = vmand %vm93, %vm103
  %vm105 = vmand %vm94, %vm103
  %vm106 = vmand %vm95, %vm103
  %vm107 = vmand %vm96, %vm103
  %vm108 = vmand %vm97, %vm103
  %vm109 = vmand %vm98, %vm103
  %v110 = vsel %vm104, 0.0, -1e+09
  %v111 = vsel %vm105, 0.0, -1e+09
  %v112 = vsel %vm106, 0.0, -1e+09
  %v113 = vsel %vm107, 0.0, -1e+09
  %v114 = vsel %vm108, 0.0, -1e+09
  %v115 = vsel %vm109, 0.0, -1e+09
  %v116 = vlaneseq
  %v117 = vand.u32 %v116, 127
  %vm118 = vcmp.ge.s32.totalorder %v117, 0
  %vm119 = vcmp.lt.s32.totalorder %v117, 8
  %vm120 = vmand %vm118, %vm119
  %v121 = vsel %vm120, 1, 0
  %v122 = vcvt.s32.f32 %v121
  %vm123 = vcmp.ge.s32.totalorder %v117, 8
  %vm124 = vcmp.lt.s32.totalorder %v117, 16
  %vm125 = vmand %vm123, %vm124
  %v126 = vsel %vm125, 1, 0
  %v127 = vcvt.s32.f32 %v126
  %vm128 = vcmp.ge.s32.totalorder %v117, 16
  %vm129 = vcmp.lt.s32.totalorder %v117, 24
  %vm130 = vmand %vm128, %vm129
  %v131 = vsel %vm130, 1, 0
  %v132 = vcvt.s32.f32 %v131
  %vm133 = vcmp.ge.s32.totalorder %v117, 24
  %vm134 = vcmp.lt.s32.totalorder %v117, 32
  %vm135 = vmand %vm133, %vm134
  %v136 = vsel %vm135, 1, 0
  %v137 = vcvt.s32.f32 %v136
  %v138 = vadd.f32 %v41, %v47
  %v139 = vadd.f32 %v42, %v48
  %v140 = vadd.f32 %v43, %v49
  %v141 = vadd.f32 %v44, %v50
  %v142 = vadd.f32 %v45, %v51
  %v143 = vadd.f32 %v46, %v52
  %v144 = vld [vmem:[%s6] sm:$0xff]
  %v145 = vld [vmem:[%s6 + $0x8] sm:$0xff]
  %v146 = vld [vmem:[%s6 + $0x10] sm:$0xff]
  %v147 = vld [vmem:[%s6 + $0x18] sm:$0xff]
  %v148 = vld [vmem:[%s9] sm:$0x1]
  %v149 = vperm.slane %v148, 0
  %vm150 = vcmask 261120
  %v152 = vsel %vm150, %v138, 0
  %v155 = vsel %vm150, %v139, 0
  %v158 = vsel %vm150, %v140, 0
  %v161 = vsel %vm150, %v141, 0
  %v164 = vsel %vm150, %v142, 0
  %v167 = vsel %vm150, %v143, 0
  %169 = vmatpush.msra.mxu0 0.0
  %170 = vmatpush.msra.mxu0 0.0
  %171 = vmatpush.msra.mxu0 0.0
  %172 = vmatpush.msra.mxu0 0.0
  %173 = vmatpush.msra.mxu0 0.0
  %174 = vmatpush.msra.mxu0 0.0
  %175 = vmatpush.msra.mxu0 0.0
  %176 = vmatpush.msra.mxu0 0.0
  %177 = vmatpush.msra.mxu0 0.0
  %178 = vmatpush.msra.mxu0 0.0
  %179 = vmatpush.msra.mxu0 0.0
  %180 = vmatpush.msra.mxu0 0.0
  %181 = vmatpush.msra.mxu0 %v147
  %182 = vmatpush.msra.mxu0 %v146
  %183 = vmatpush.msra.mxu0 %v145
  %184 = vmatpush.msra.mxu0 %v144
  %185 = vmatmul.f32.gmra.mxu0 %v152
  %v186 = vpop.f32.mrf.mxu0
  %v187 = vadd.f32 %v149, %v186
  %188 = vmatmul.f32.gmra.mxu0 %v155
  %v189 = vpop.f32.mrf.mxu0
  %v190 = vadd.f32 %v149, %v189
  %191 = vmatmul.f32.gmra.mxu0 %v158
  %v192 = vpop.f32.mrf.mxu0
  %v193 = vadd.f32 %v149, %v192
  %194 = vmatmul.f32.gmra.mxu0 %v161
  %v195 = vpop.f32.mrf.mxu0
  %v196 = vadd.f32 %v149, %v195
  %197 = vmatmul.f32.gmra.mxu0 %v164
  %v198 = vpop.f32.mrf.mxu0
  %v199 = vadd.f32 %v149, %v198
  %200 = vmatmul.f32.gmra.mxu0 %v167
  %v201 = vpop.f32.mrf.mxu0
  %v202 = vadd.f32 %v149, %v201
  %203 = vdwg.mxu0
  %s204 = scalar_lea.vmem %s6, 32
  %v205 = vld [vmem:[%s204] sm:$0xff]
  %v206 = vld [vmem:[%s204 + $0x8] sm:$0xff]
  %v207 = vld [vmem:[%s204 + $0x10] sm:$0xff]
  %v208 = vld [vmem:[%s204 + $0x18] sm:$0xff]
  %v209 = vld [vmem:[%s9 + $0x1] sm:$0x1]
  %v210 = vperm.slane %v209, 0
  %211 = vmatpush.msra.mxu0 0.0
  %212 = vmatpush.msra.mxu0 0.0
  %213 = vmatpush.msra.mxu0 0.0
  %214 = vmatpush.msra.mxu0 0.0
  %215 = vmatpush.msra.mxu0 0.0
  %216 = vmatpush.msra.mxu0 0.0
  %217 = vmatpush.msra.mxu0 0.0
  %218 = vmatpush.msra.mxu0 0.0
  %219 = vmatpush.msra.mxu0 0.0
  %220 = vmatpush.msra.mxu0 0.0
  %221 = vmatpush.msra.mxu0 0.0
  %222 = vmatpush.msra.mxu0 0.0
  %223 = vmatpush.msra.mxu0 %v208
  %224 = vmatpush.msra.mxu0 %v207
  %225 = vmatpush.msra.mxu0 %v206
  %226 = vmatpush.msra.mxu0 %v205
  %227 = vmatmul.f32.gmra.mxu0 %v152
  %v228 = vpop.f32.mrf.mxu0
  %v229 = vadd.f32 %v210, %v228
  %230 = vmatmul.f32.gmra.mxu0 %v155
  %v231 = vpop.f32.mrf.mxu0
  %v232 = vadd.f32 %v210, %v231
  %233 = vmatmul.f32.gmra.mxu0 %v158
  %v234 = vpop.f32.mrf.mxu0
  %v235 = vadd.f32 %v210, %v234
  %236 = vmatmul.f32.gmra.mxu0 %v161
  %v237 = vpop.f32.mrf.mxu0
  %v238 = vadd.f32 %v210, %v237
  %239 = vmatmul.f32.gmra.mxu0 %v164
  %v240 = vpop.f32.mrf.mxu0
  %v241 = vadd.f32 %v210, %v240
  %242 = vmatmul.f32.gmra.mxu0 %v167
  %v243 = vpop.f32.mrf.mxu0
  %v244 = vadd.f32 %v210, %v243
  %245 = vdwg.mxu0
  %s246 = scalar_lea.vmem %s6, 64
  %v247 = vld [vmem:[%s246] sm:$0xff]
  %v248 = vld [vmem:[%s246 + $0x8] sm:$0xff]
  %v249 = vld [vmem:[%s246 + $0x10] sm:$0xff]
  %v250 = vld [vmem:[%s246 + $0x18] sm:$0xff]
  %v251 = vld [vmem:[%s9 + $0x2] sm:$0x1]
  %v252 = vperm.slane %v251, 0
  %v254 = vsel %vm150, %v41, 0
  %v257 = vsel %vm150, %v42, 0
  %v260 = vsel %vm150, %v43, 0
  %v263 = vsel %vm150, %v44, 0
  %v266 = vsel %vm150, %v45, 0
  %v269 = vsel %vm150, %v46, 0
  %271 = vmatpush.msra.mxu0 0.0
  %272 = vmatpush.msra.mxu0 0.0
  %273 = vmatpush.msra.mxu0 0.0
  %274 = vmatpush.msra.mxu0 0.0
  %275 = vmatpush.msra.mxu0 0.0
  %276 = vmatpush.msra.mxu0 0.0
  %277 = vmatpush.msra.mxu0 0.0
  %278 = vmatpush.msra.mxu0 0.0
  %279 = vmatpush.msra.mxu0 0.0
  %280 = vmatpush.msra.mxu0 0.0
  %281 = vmatpush.msra.mxu0 0.0
  %282 = vmatpush.msra.mxu0 0.0
  %283 = vmatpush.msra.mxu0 %v250
  %284 = vmatpush.msra.mxu0 %v249
  %285 = vmatpush.msra.mxu0 %v248
  %286 = vmatpush.msra.mxu0 %v247
  %287 = vmatmul.f32.gmra.mxu0 %v254
  %v288 = vpop.f32.mrf.mxu0
  %v289 = vadd.f32 %v252, %v288
  %290 = vmatmul.f32.gmra.mxu0 %v257
  %v291 = vpop.f32.mrf.mxu0
  %v292 = vadd.f32 %v252, %v291
  %293 = vmatmul.f32.gmra.mxu0 %v260
  %v294 = vpop.f32.mrf.mxu0
  %v295 = vadd.f32 %v252, %v294
  %296 = vmatmul.f32.gmra.mxu0 %v263
  %v297 = vpop.f32.mrf.mxu0
  %v298 = vadd.f32 %v252, %v297
  %299 = vmatmul.f32.gmra.mxu0 %v266
  %v300 = vpop.f32.mrf.mxu0
  %v301 = vadd.f32 %v252, %v300
  %302 = vmatmul.f32.gmra.mxu0 %v269
  %v303 = vpop.f32.mrf.mxu0
  %v304 = vadd.f32 %v252, %v303
  %305 = vdwg.mxu0
  %s306 = scalar_lea.vmem %s6, 96
  %v307 = vld [vmem:[%s306] sm:$0xff]
  %v308 = vld [vmem:[%s306 + $0x8] sm:$0xff]
  %v309 = vld [vmem:[%s306 + $0x10] sm:$0xff]
  %v310 = vld [vmem:[%s306 + $0x18] sm:$0xff]
  %v311 = vld [vmem:[%s9 + $0x3] sm:$0x1]
  %v312 = vmul.f32 %v122, 0.35355338
  %v313 = vmul.f32 %v187, %v312
  %v314 = vmul.f32 %v190, %v312
  %v315 = vmul.f32 %v193, %v312
  %v316 = vmul.f32 %v196, %v312
  %v317 = vmul.f32 %v199, %v312
  %v318 = vmul.f32 %v202, %v312
  %v320 = vsel %vm150, %v313, 0
  %v323 = vsel %vm150, %v314, 0
  %v326 = vsel %vm150, %v315, 0
  %v329 = vsel %vm150, %v316, 0
  %v332 = vsel %vm150, %v317, 0
  %v335 = vsel %vm150, %v318, 0
  %v338 = vsel %vm150, %v229, 0
  %v341 = vsel %vm150, %v232, 0
  %v344 = vsel %vm150, %v235, 0
  %v347 = vsel %vm150, %v238, 0
  %v350 = vsel %vm150, %v241, 0
  %v353 = vsel %vm150, %v244, 0
  %355 = vmatpush.xpose.msra.mxu0 0.0
  %356 = vmatpush.xpose.msra.mxu0 0.0
  %357 = vmatpush.xpose.msra.mxu0 0.0
  %358 = vmatpush.xpose.msra.mxu0 0.0
  %359 = vmatpush.xpose.msra.mxu0 0.0
  %360 = vmatpush.xpose.msra.mxu0 0.0
  %361 = vmatpush.xpose.msra.mxu0 0.0
  %362 = vmatpush.xpose.msra.mxu0 0.0
  %363 = vmatpush.xpose.msra.mxu0 0.0
  %364 = vmatpush.xpose.msra.mxu0 0.0
  %365 = vmatpush.xpose.msra.mxu0 %v353
  %366 = vmatpush.xpose.msra.mxu0 %v350
  %367 = vmatpush.xpose.msra.mxu0 %v347
  %368 = vmatpush.xpose.msra.mxu0 %v344
  %369 = vmatpush.xpose.msra.mxu0 %v341
  %370 = vmatpush.xpose.msra.mxu0 %v338
  %371 = vmatmul.f32.gmra.mxu0 %v320
  %v372 = vpop.f32.mrf.mxu0
  %v373 = vadd.f32 %v110, %v372
  %374 = vmatmul.f32.gmra.mxu0 %v323
  %v375 = vpop.f32.mrf.mxu0
  %v376 = vadd.f32 %v111, %v375
  %377 = vmatmul.f32.gmra.mxu0 %v326
  %v378 = vpop.f32.mrf.mxu0
  %v379 = vadd.f32 %v112, %v378
  %380 = vmatmul.f32.gmra.mxu0 %v329
  %v381 = vpop.f32.mrf.mxu0
  %v382 = vadd.f32 %v113, %v381
  %383 = vmatmul.f32.gmra.mxu0 %v332
  %v384 = vpop.f32.mrf.mxu0
  %v385 = vadd.f32 %v114, %v384
  %386 = vmatmul.f32.gmra.mxu0 %v335
  %v387 = vpop.f32.mrf.mxu0
  %v388 = vadd.f32 %v115, %v387
  %389 = vdwg.mxu0
  %vm390 = vcmask 343040
  %v391 = vsel %vm390, %v373, -inf
  %392 = vmax.xlane.f32.xlu0 %v391
  %v393 = vpop.xlane.xlu0 %392
  %v394 = vsel %vm390, %v376, -inf
  %395 = vmax.xlane.f32.xlu0 %v394
  %v396 = vpop.xlane.xlu0 %395
  %v397 = vsel %vm390, %v379, -inf
  %398 = vmax.xlane.f32.xlu0 %v397
  %v399 = vpop.xlane.xlu0 %398
  %v400 = vsel %vm390, %v382, -inf
  %401 = vmax.xlane.f32.xlu0 %v400
  %v402 = vpop.xlane.xlu0 %401
  %v403 = vsel %vm390, %v385, -inf
  %404 = vmax.xlane.f32.xlu0 %v403
  %v405 = vpop.xlane.xlu0 %404
  %vm406 = vcmask 336896
  %v407 = vsel %vm406, %v388, -inf
  %408 = vmax.xlane.f32.xlu0 %v407
  %v409 = vpop.xlane.xlu0 %408
  %v410 = vsub.f32 %v373, %v393
  %v411 = vsub.f32 %v376, %v396
  %v412 = vsub.f32 %v379, %v399
  %v413 = vsub.f32 %v382, %v402
  %v414 = vsub.f32 %v385, %v405
  %v415 = vsub.f32 %v388, %v409
  %v416 = vmul.f32 %v410, 1.442695
  %v417 = vpow.pop %v416
  %v418 = vmul.f32 %v411, 1.442695
  %v419 = vpow.pop %v418
  %v420 = vmul.f32 %v412, 1.442695
  %v421 = vpow.pop %v420
  %v422 = vmul.f32 %v413, 1.442695
  %v423 = vpow.pop %v422
  %v424 = vmul.f32 %v414, 1.442695
  %v425 = vpow.pop %v424
  %v426 = vmul.f32 %v415, 1.442695
  %v427 = vpow.pop %v426
  %v428 = vsel %vm390, %v417, 0.0
  %429 = vadd.xlane.f32.xlu0 %v428
  %v430 = vpop.xlane.xlu0 %429
  %v431 = vsel %vm390, %v419, 0.0
  %432 = vadd.xlane.f32.xlu0 %v431
  %v433 = vpop.xlane.xlu0 %432
  %v434 = vsel %vm390, %v421, 0.0
  %435 = vadd.xlane.f32.xlu0 %v434
  %v436 = vpop.xlane.xlu0 %435
  %v437 = vsel %vm390, %v423, 0.0
  %438 = vadd.xlane.f32.xlu0 %v437
  %v439 = vpop.xlane.xlu0 %438
  %v440 = vsel %vm390, %v425, 0.0
  %441 = vadd.xlane.f32.xlu0 %v440
  %v442 = vpop.xlane.xlu0 %441
  %v443 = vsel %vm406, %v427, 0.0
  %444 = vadd.xlane.f32.xlu0 %v443
  %v445 = vpop.xlane.xlu0 %444
  %v446 = vrcp.pop %v430
  %v447 = vrcp.pop %v433
  %v448 = vrcp.pop %v436
  %v449 = vrcp.pop %v439
  %v450 = vrcp.pop %v442
  %v451 = vrcp.pop %v445
  %v452 = vmul.f32 %v417, %v446
  %v453 = vmul.f32 %v419, %v447
  %v454 = vmul.f32 %v421, %v448
  %v455 = vmul.f32 %v423, %v449
  %v456 = vmul.f32 %v425, %v450
  %v457 = vmul.f32 %v427, %v451
  %v458 = vmul.f32 %v289, %v122
  %v459 = vmul.f32 %v292, %v122
  %v460 = vmul.f32 %v295, %v122
  %v461 = vmul.f32 %v298, %v122
  %v462 = vmul.f32 %v301, %v122
  %v463 = vmul.f32 %v304, %v122
  %v464 = vmul.f32 %v127, 0.35355338
  %v465 = vmul.f32 %v187, %v464
  %v466 = vmul.f32 %v190, %v464
  %v467 = vmul.f32 %v193, %v464
  %v468 = vmul.f32 %v196, %v464
  %v469 = vmul.f32 %v199, %v464
  %v470 = vmul.f32 %v202, %v464
  %v472 = vsel %vm150, %v465, 0
  %v475 = vsel %vm150, %v466, 0
  %v478 = vsel %vm150, %v467, 0
  %v481 = vsel %vm150, %v468, 0
  %v484 = vsel %vm150, %v469, 0
  %v487 = vsel %vm150, %v470, 0
  %489 = vmatpush.xpose.msra.mxu0 0.0
  %490 = vmatpush.xpose.msra.mxu0 0.0
  %491 = vmatpush.xpose.msra.mxu0 0.0
  %492 = vmatpush.xpose.msra.mxu0 0.0
  %493 = vmatpush.xpose.msra.mxu0 0.0
  %494 = vmatpush.xpose.msra.mxu0 0.0
  %495 = vmatpush.xpose.msra.mxu0 0.0
  %496 = vmatpush.xpose.msra.mxu0 0.0
  %497 = vmatpush.xpose.msra.mxu0 0.0
  %498 = vmatpush.xpose.msra.mxu0 0.0
  %499 = vmatpush.xpose.msra.mxu0 %v353
  %500 = vmatpush.xpose.msra.mxu0 %v350
  %501 = vmatpush.xpose.msra.mxu0 %v347
  %502 = vmatpush.xpose.msra.mxu0 %v344
  %503 = vmatpush.xpose.msra.mxu0 %v341
  %504 = vmatpush.xpose.msra.mxu0 %v338
  %505 = vmatmul.f32.gmra.mxu0 %v472
  %v506 = vpop.f32.mrf.mxu0
  %v507 = vadd.f32 %v110, %v506
  %508 = vmatmul.f32.gmra.mxu0 %v475
  %v509 = vpop.f32.mrf.mxu0
  %v510 = vadd.f32 %v111, %v509
  %511 = vmatmul.f32.gmra.mxu0 %v478
  %v512 = vpop.f32.mrf.mxu0
  %v513 = vadd.f32 %v112, %v512
  %514 = vmatmul.f32.gmra.mxu0 %v481
  %v515 = vpop.f32.mrf.mxu0
  %v516 = vadd.f32 %v113, %v515
  %517 = vmatmul.f32.gmra.mxu0 %v484
  %v518 = vpop.f32.mrf.mxu0
  %v519 = vadd.f32 %v114, %v518
  %520 = vmatmul.f32.gmra.mxu0 %v487
  %v521 = vpop.f32.mrf.mxu0
  %v522 = vadd.f32 %v115, %v521
  %523 = vdwg.mxu0
  %v524 = vsel %vm390, %v507, -inf
  %525 = vmax.xlane.f32.xlu0 %v524
  %v526 = vpop.xlane.xlu0 %525
  %v527 = vsel %vm390, %v510, -inf
  %528 = vmax.xlane.f32.xlu0 %v527
  %v529 = vpop.xlane.xlu0 %528
  %v530 = vsel %vm390, %v513, -inf
  %531 = vmax.xlane.f32.xlu0 %v530
  %v532 = vpop.xlane.xlu0 %531
  %v533 = vsel %vm390, %v516, -inf
  %534 = vmax.xlane.f32.xlu0 %v533
  %v535 = vpop.xlane.xlu0 %534
  %v536 = vsel %vm390, %v519, -inf
  %537 = vmax.xlane.f32.xlu0 %v536
  %v538 = vpop.xlane.xlu0 %537
  %v539 = vsel %vm406, %v522, -inf
  %540 = vmax.xlane.f32.xlu0 %v539
  %v541 = vpop.xlane.xlu0 %540
  %v542 = vsub.f32 %v507, %v526
  %v543 = vsub.f32 %v510, %v529
  %v544 = vsub.f32 %v513, %v532
  %v545 = vsub.f32 %v516, %v535
  %v546 = vsub.f32 %v519, %v538
  %v547 = vsub.f32 %v522, %v541
  %v548 = vmul.f32 %v542, 1.442695
  %v549 = vpow.pop %v548
  %v550 = vmul.f32 %v543, 1.442695
  %v551 = vpow.pop %v550
  %v552 = vmul.f32 %v544, 1.442695
  %v553 = vpow.pop %v552
  %v554 = vmul.f32 %v545, 1.442695
  %v555 = vpow.pop %v554
  %v556 = vmul.f32 %v546, 1.442695
  %v557 = vpow.pop %v556
  %v558 = vmul.f32 %v547, 1.442695
  %v559 = vpow.pop %v558
  %v560 = vsel %vm390, %v549, 0.0
  %561 = vadd.xlane.f32.xlu0 %v560
  %v562 = vpop.xlane.xlu0 %561
  %v563 = vsel %vm390, %v551, 0.0
  %564 = vadd.xlane.f32.xlu0 %v563
  %v565 = vpop.xlane.xlu0 %564
  %v566 = vsel %vm390, %v553, 0.0
  %567 = vadd.xlane.f32.xlu0 %v566
  %v568 = vpop.xlane.xlu0 %567
  %v569 = vsel %vm390, %v555, 0.0
  %570 = vadd.xlane.f32.xlu0 %v569
  %v571 = vpop.xlane.xlu0 %570
  %v572 = vsel %vm390, %v557, 0.0
  %573 = vadd.xlane.f32.xlu0 %v572
  %v574 = vpop.xlane.xlu0 %573
  %v575 = vsel %vm406, %v559, 0.0
  %576 = vadd.xlane.f32.xlu0 %v575
  %v577 = vpop.xlane.xlu0 %576
  %v578 = vrcp.pop %v562
  %v579 = vrcp.pop %v565
  %v580 = vrcp.pop %v568
  %v581 = vrcp.pop %v571
  %v582 = vrcp.pop %v574
  %v583 = vrcp.pop %v577
  %v584 = vmul.f32 %v549, %v578
  %v585 = vmul.f32 %v551, %v579
  %v586 = vmul.f32 %v553, %v580
  %v587 = vmul.f32 %v555, %v581
  %v588 = vmul.f32 %v557, %v582
  %v589 = vmul.f32 %v559, %v583
  %v590 = vmul.f32 %v289, %v127
  %v591 = vmul.f32 %v292, %v127
  %v592 = vmul.f32 %v295, %v127
  %v593 = vmul.f32 %v298, %v127
  %v594 = vmul.f32 %v301, %v127
  %v595 = vmul.f32 %v304, %v127
  %v597 = vsel %vm390, %v584, 0
  %v600 = vsel %vm390, %v585, 0
  %v603 = vsel %vm390, %v586, 0
  %v606 = vsel %vm390, %v587, 0
  %v609 = vsel %vm390, %v588, 0
  %v612 = vsel %vm390, %v589, 0
  %vm614 = vcmask 1041408
  %v616 = vsel %vm614, %v595, 0
  %618 = vmatpush.msra.mxu0 0.0
  %619 = vmatpush.msra.mxu0 0.0
  %620 = vmatpush.msra.mxu0 0.0
  %621 = vmatpush.msra.mxu0 0.0
  %622 = vmatpush.msra.mxu0 0.0
  %623 = vmatpush.msra.mxu0 0.0
  %624 = vmatpush.msra.mxu0 0.0
  %625 = vmatpush.msra.mxu0 0.0
  %626 = vmatpush.msra.mxu0 0.0
  %627 = vmatpush.msra.mxu0 0.0
  %628 = vmatpush.msra.mxu0 %v616
  %629 = vmatpush.msra.mxu0 %v594
  %630 = vmatpush.msra.mxu0 %v593
  %631 = vmatpush.msra.mxu0 %v592
  %632 = vmatpush.msra.mxu0 %v591
  %633 = vmatpush.msra.mxu0 %v590
  %634 = vmatmul.f32.gmra.mxu0 %v597
  %v635 = vpop.f32.mrf.mxu0
  %v636 = vadd.f32 0.0, %v635
  %637 = vmatmul.f32.gmra.mxu0 %v600
  %v638 = vpop.f32.mrf.mxu0
  %v639 = vadd.f32 0.0, %v638
  %640 = vmatmul.f32.gmra.mxu0 %v603
  %v641 = vpop.f32.mrf.mxu0
  %v642 = vadd.f32 0.0, %v641
  %643 = vmatmul.f32.gmra.mxu0 %v606
  %v644 = vpop.f32.mrf.mxu0
  %v645 = vadd.f32 0.0, %v644
  %646 = vmatmul.f32.gmra.mxu0 %v609
  %v647 = vpop.f32.mrf.mxu0
  %v648 = vadd.f32 0.0, %v647
  %649 = vmatmul.f32.gmra.mxu0 %v612
  %v650 = vpop.f32.mrf.mxu0
  %v651 = vadd.f32 0.0, %v650
  %652 = vdwg.mxu0
  %v654 = vsel %vm390, %v452, 0
  %v657 = vsel %vm390, %v453, 0
  %v660 = vsel %vm390, %v454, 0
  %v663 = vsel %vm390, %v455, 0
  %v666 = vsel %vm390, %v456, 0
  %v669 = vsel %vm390, %v457, 0
  %v672 = vsel %vm614, %v463, 0
  %674 = vmatpush.msra.mxu0 0.0
  %675 = vmatpush.msra.mxu0 0.0
  %676 = vmatpush.msra.mxu0 0.0
  %677 = vmatpush.msra.mxu0 0.0
  %678 = vmatpush.msra.mxu0 0.0
  %679 = vmatpush.msra.mxu0 0.0
  %680 = vmatpush.msra.mxu0 0.0
  %681 = vmatpush.msra.mxu0 0.0
  %682 = vmatpush.msra.mxu0 0.0
  %683 = vmatpush.msra.mxu0 0.0
  %684 = vmatpush.msra.mxu0 %v672
  %685 = vmatpush.msra.mxu0 %v462
  %686 = vmatpush.msra.mxu0 %v461
  %687 = vmatpush.msra.mxu0 %v460
  %688 = vmatpush.msra.mxu0 %v459
  %689 = vmatpush.msra.mxu0 %v458
  %690 = vmatmul.f32.gmra.mxu0 %v654
  %v691 = vpop.f32.mrf.mxu0
  %v692 = vadd.f32 %v636, %v691
  %693 = vmatmul.f32.gmra.mxu0 %v657
  %v694 = vpop.f32.mrf.mxu0
  %v695 = vadd.f32 %v639, %v694
  %696 = vmatmul.f32.gmra.mxu0 %v660
  %v697 = vpop.f32.mrf.mxu0
  %v698 = vadd.f32 %v642, %v697
  %699 = vmatmul.f32.gmra.mxu0 %v663
  %v700 = vpop.f32.mrf.mxu0
  %v701 = vadd.f32 %v645, %v700
  %702 = vmatmul.f32.gmra.mxu0 %v666
  %v703 = vpop.f32.mrf.mxu0
  %v704 = vadd.f32 %v648, %v703
  %705 = vmatmul.f32.gmra.mxu0 %v669
  %v706 = vpop.f32.mrf.mxu0
  %v707 = vadd.f32 %v651, %v706
  %708 = vdwg.mxu0
  %v709 = vmul.f32 %v132, 0.35355338
  %v710 = vmul.f32 %v187, %v709
  %v711 = vmul.f32 %v190, %v709
  %v712 = vmul.f32 %v193, %v709
  %v713 = vmul.f32 %v196, %v709
  %v714 = vmul.f32 %v199, %v709
  %v715 = vmul.f32 %v202, %v709
  %v717 = vsel %vm150, %v710, 0
  %v720 = vsel %vm150, %v711, 0
  %v723 = vsel %vm150, %v712, 0
  %v726 = vsel %vm150, %v713, 0
  %v729 = vsel %vm150, %v714, 0
  %v732 = vsel %vm150, %v715, 0
  %734 = vmatpush.xpose.msra.mxu0 0.0
  %735 = vmatpush.xpose.msra.mxu0 0.0
  %736 = vmatpush.xpose.msra.mxu0 0.0
  %737 = vmatpush.xpose.msra.mxu0 0.0
  %738 = vmatpush.xpose.msra.mxu0 0.0
  %739 = vmatpush.xpose.msra.mxu0 0.0
  %740 = vmatpush.xpose.msra.mxu0 0.0
  %741 = vmatpush.xpose.msra.mxu0 0.0
  %742 = vmatpush.xpose.msra.mxu0 0.0
  %743 = vmatpush.xpose.msra.mxu0 0.0
  %744 = vmatpush.xpose.msra.mxu0 %v353
  %745 = vmatpush.xpose.msra.mxu0 %v350
  %746 = vmatpush.xpose.msra.mxu0 %v347
  %747 = vmatpush.xpose.msra.mxu0 %v344
  %748 = vmatpush.xpose.msra.mxu0 %v341
  %749 = vmatpush.xpose.msra.mxu0 %v338
  %750 = vmatmul.f32.gmra.mxu0 %v717
  %v751 = vpop.f32.mrf.mxu0
  %v752 = vadd.f32 %v110, %v751
  %753 = vmatmul.f32.gmra.mxu0 %v720
  %v754 = vpop.f32.mrf.mxu0
  %v755 = vadd.f32 %v111, %v754
  %756 = vmatmul.f32.gmra.mxu0 %v723
  %v757 = vpop.f32.mrf.mxu0
  %v758 = vadd.f32 %v112, %v757
  %759 = vmatmul.f32.gmra.mxu0 %v726
  %v760 = vpop.f32.mrf.mxu0
  %v761 = vadd.f32 %v113, %v760
  %762 = vmatmul.f32.gmra.mxu0 %v729
  %v763 = vpop.f32.mrf.mxu0
  %v764 = vadd.f32 %v114, %v763
  %765 = vmatmul.f32.gmra.mxu0 %v732
  %v766 = vpop.f32.mrf.mxu0
  %v767 = vadd.f32 %v115, %v766
  %768 = vdwg.mxu0
  %v769 = vsel %vm390, %v752, -inf
  %770 = vmax.xlane.f32.xlu0 %v769
  %v771 = vpop.xlane.xlu0 %770
  %v772 = vsel %vm390, %v755, -inf
  %773 = vmax.xlane.f32.xlu0 %v772
  %v774 = vpop.xlane.xlu0 %773
  %v775 = vsel %vm390, %v758, -inf
  %776 = vmax.xlane.f32.xlu0 %v775
  %v777 = vpop.xlane.xlu0 %776
  %v778 = vsel %vm390, %v761, -inf
  %779 = vmax.xlane.f32.xlu0 %v778
  %v780 = vpop.xlane.xlu0 %779
  %v781 = vsel %vm390, %v764, -inf
  %782 = vmax.xlane.f32.xlu0 %v781
  %v783 = vpop.xlane.xlu0 %782
  %v784 = vsel %vm406, %v767, -inf
  %785 = vmax.xlane.f32.xlu0 %v784
  %v786 = vpop.xlane.xlu0 %785
  %v787 = vsub.f32 %v752, %v771
  %v788 = vsub.f32 %v755, %v774
  %v789 = vsub.f32 %v758, %v777
  %v790 = vsub.f32 %v761, %v780
  %v791 = vsub.f32 %v764, %v783
  %v792 = vsub.f32 %v767, %v786
  %v793 = vmul.f32 %v787, 1.442695
  %v794 = vpow.pop %v793
  %v795 = vmul.f32 %v788, 1.442695
  %v796 = vpow.pop %v795
  %v797 = vmul.f32 %v789, 1.442695
  %v798 = vpow.pop %v797
  %v799 = vmul.f32 %v790, 1.442695
  %v800 = vpow.pop %v799
  %v801 = vmul.f32 %v791, 1.442695
  %v802 = vpow.pop %v801
  %v803 = vmul.f32 %v792, 1.442695
  %v804 = vpow.pop %v803
  %v805 = vsel %vm390, %v794, 0.0
  %806 = vadd.xlane.f32.xlu0 %v805
  %v807 = vpop.xlane.xlu0 %806
  %v808 = vsel %vm390, %v796, 0.0
  %809 = vadd.xlane.f32.xlu0 %v808
  %v810 = vpop.xlane.xlu0 %809
  %v811 = vsel %vm390, %v798, 0.0
  %812 = vadd.xlane.f32.xlu0 %v811
  %v813 = vpop.xlane.xlu0 %812
  %v814 = vsel %vm390, %v800, 0.0
  %815 = vadd.xlane.f32.xlu0 %v814
  %v816 = vpop.xlane.xlu0 %815
  %v817 = vsel %vm390, %v802, 0.0
  %818 = vadd.xlane.f32.xlu0 %v817
  %v819 = vpop.xlane.xlu0 %818
  %v820 = vsel %vm406, %v804, 0.0
  %821 = vadd.xlane.f32.xlu0 %v820
  %v822 = vpop.xlane.xlu0 %821
  %v823 = vrcp.pop %v807
  %v824 = vrcp.pop %v810
  %v825 = vrcp.pop %v813
  %v826 = vrcp.pop %v816
  %v827 = vrcp.pop %v819
  %v828 = vrcp.pop %v822
  %v829 = vmul.f32 %v794, %v823
  %v830 = vmul.f32 %v796, %v824
  %v831 = vmul.f32 %v798, %v825
  %v832 = vmul.f32 %v800, %v826
  %v833 = vmul.f32 %v802, %v827
  %v834 = vmul.f32 %v804, %v828
  %v835 = vmul.f32 %v289, %v132
  %v836 = vmul.f32 %v292, %v132
  %v837 = vmul.f32 %v295, %v132
  %v838 = vmul.f32 %v298, %v132
  %v839 = vmul.f32 %v301, %v132
  %v840 = vmul.f32 %v304, %v132
  %v842 = vsel %vm390, %v829, 0
  %v845 = vsel %vm390, %v830, 0
  %v848 = vsel %vm390, %v831, 0
  %v851 = vsel %vm390, %v832, 0
  %v854 = vsel %vm390, %v833, 0
  %v857 = vsel %vm390, %v834, 0
  %v860 = vsel %vm614, %v840, 0
  %862 = vmatpush.msra.mxu0 0.0
  %863 = vmatpush.msra.mxu0 0.0
  %864 = vmatpush.msra.mxu0 0.0
  %865 = vmatpush.msra.mxu0 0.0
  %866 = vmatpush.msra.mxu0 0.0
  %867 = vmatpush.msra.mxu0 0.0
  %868 = vmatpush.msra.mxu0 0.0
  %869 = vmatpush.msra.mxu0 0.0
  %870 = vmatpush.msra.mxu0 0.0
  %871 = vmatpush.msra.mxu0 0.0
  %872 = vmatpush.msra.mxu0 %v860
  %873 = vmatpush.msra.mxu0 %v839
  %874 = vmatpush.msra.mxu0 %v838
  %875 = vmatpush.msra.mxu0 %v837
  %876 = vmatpush.msra.mxu0 %v836
  %877 = vmatpush.msra.mxu0 %v835
  %878 = vmatmul.f32.gmra.mxu0 %v842
  %v879 = vpop.f32.mrf.mxu0
  %v880 = vadd.f32 0.0, %v879
  %881 = vmatmul.f32.gmra.mxu0 %v845
  %v882 = vpop.f32.mrf.mxu0
  %v883 = vadd.f32 0.0, %v882
  %884 = vmatmul.f32.gmra.mxu0 %v848
  %v885 = vpop.f32.mrf.mxu0
  %v886 = vadd.f32 0.0, %v885
  %887 = vmatmul.f32.gmra.mxu0 %v851
  %v888 = vpop.f32.mrf.mxu0
  %v889 = vadd.f32 0.0, %v888
  %890 = vmatmul.f32.gmra.mxu0 %v854
  %v891 = vpop.f32.mrf.mxu0
  %v892 = vadd.f32 0.0, %v891
  %893 = vmatmul.f32.gmra.mxu0 %v857
  %v894 = vpop.f32.mrf.mxu0
  %v895 = vadd.f32 0.0, %v894
  %896 = vdwg.mxu0
  %v897 = vadd.f32 %v692, %v880
  %v898 = vadd.f32 %v695, %v883
  %v899 = vadd.f32 %v698, %v886
  %v900 = vadd.f32 %v701, %v889
  %v901 = vadd.f32 %v704, %v892
  %v902 = vadd.f32 %v707, %v895
  %v903 = vmul.f32 %v137, 0.35355338
  %v904 = vmul.f32 %v187, %v903
  %v905 = vmul.f32 %v190, %v903
  %v906 = vmul.f32 %v193, %v903
  %v907 = vmul.f32 %v196, %v903
  %v908 = vmul.f32 %v199, %v903
  %v909 = vmul.f32 %v202, %v903
  %v911 = vsel %vm150, %v904, 0
  %v914 = vsel %vm150, %v905, 0
  %v917 = vsel %vm150, %v906, 0
  %v920 = vsel %vm150, %v907, 0
  %v923 = vsel %vm150, %v908, 0
  %v926 = vsel %vm150, %v909, 0
  %928 = vmatpush.xpose.msra.mxu0 0.0
  %929 = vmatpush.xpose.msra.mxu0 0.0
  %930 = vmatpush.xpose.msra.mxu0 0.0
  %931 = vmatpush.xpose.msra.mxu0 0.0
  %932 = vmatpush.xpose.msra.mxu0 0.0
  %933 = vmatpush.xpose.msra.mxu0 0.0
  %934 = vmatpush.xpose.msra.mxu0 0.0
  %935 = vmatpush.xpose.msra.mxu0 0.0
  %936 = vmatpush.xpose.msra.mxu0 0.0
  %937 = vmatpush.xpose.msra.mxu0 0.0
  %938 = vmatpush.xpose.msra.mxu0 %v353
  %939 = vmatpush.xpose.msra.mxu0 %v350
  %940 = vmatpush.xpose.msra.mxu0 %v347
  %941 = vmatpush.xpose.msra.mxu0 %v344
  %942 = vmatpush.xpose.msra.mxu0 %v341
  %943 = vmatpush.xpose.msra.mxu0 %v338
  %944 = vmatmul.f32.gmra.mxu0 %v911
  %v945 = vpop.f32.mrf.mxu0
  %v946 = vadd.f32 %v110, %v945
  %947 = vmatmul.f32.gmra.mxu0 %v914
  %v948 = vpop.f32.mrf.mxu0
  %v949 = vadd.f32 %v111, %v948
  %950 = vmatmul.f32.gmra.mxu0 %v917
  %v951 = vpop.f32.mrf.mxu0
  %v952 = vadd.f32 %v112, %v951
  %953 = vmatmul.f32.gmra.mxu0 %v920
  %v954 = vpop.f32.mrf.mxu0
  %v955 = vadd.f32 %v113, %v954
  %956 = vmatmul.f32.gmra.mxu0 %v923
  %v957 = vpop.f32.mrf.mxu0
  %v958 = vadd.f32 %v114, %v957
  %959 = vmatmul.f32.gmra.mxu0 %v926
  %v960 = vpop.f32.mrf.mxu0
  %v961 = vadd.f32 %v115, %v960
  %962 = vdwg.mxu0
  %v963 = vsel %vm390, %v946, -inf
  %964 = vmax.xlane.f32.xlu0 %v963
  %v965 = vpop.xlane.xlu0 %964
  %v966 = vsel %vm390, %v949, -inf
  %967 = vmax.xlane.f32.xlu0 %v966
  %v968 = vpop.xlane.xlu0 %967
  %v969 = vsel %vm390, %v952, -inf
  %970 = vmax.xlane.f32.xlu0 %v969
  %v971 = vpop.xlane.xlu0 %970
  %v972 = vsel %vm390, %v955, -inf
  %973 = vmax.xlane.f32.xlu0 %v972
  %v974 = vpop.xlane.xlu0 %973
  %v975 = vsel %vm390, %v958, -inf
  %976 = vmax.xlane.f32.xlu0 %v975
  %v977 = vpop.xlane.xlu0 %976
  %v978 = vsel %vm406, %v961, -inf
  %979 = vmax.xlane.f32.xlu0 %v978
  %v980 = vpop.xlane.xlu0 %979
  %v981 = vsub.f32 %v946, %v965
  %v982 = vsub.f32 %v949, %v968
  %v983 = vsub.f32 %v952, %v971
  %v984 = vsub.f32 %v955, %v974
  %v985 = vsub.f32 %v958, %v977
  %v986 = vsub.f32 %v961, %v980
  %v987 = vmul.f32 %v981, 1.442695
  %v988 = vpow.pop %v987
  %v989 = vmul.f32 %v982, 1.442695
  %v990 = vpow.pop %v989
  %v991 = vmul.f32 %v983, 1.442695
  %v992 = vpow.pop %v991
  %v993 = vmul.f32 %v984, 1.442695
  %v994 = vpow.pop %v993
  %v995 = vmul.f32 %v985, 1.442695
  %v996 = vpow.pop %v995
  %v997 = vmul.f32 %v986, 1.442695
  %v998 = vpow.pop %v997
  %v999 = vsel %vm390, %v988, 0.0
  %1000 = vadd.xlane.f32.xlu0 %v999
  %v1001 = vpop.xlane.xlu0 %1000
  %v1002 = vsel %vm390, %v990, 0.0
  %1003 = vadd.xlane.f32.xlu0 %v1002
  %v1004 = vpop.xlane.xlu0 %1003
  %v1005 = vsel %vm390, %v992, 0.0
  %1006 = vadd.xlane.f32.xlu0 %v1005
  %v1007 = vpop.xlane.xlu0 %1006
  %v1008 = vsel %vm390, %v994, 0.0
  %1009 = vadd.xlane.f32.xlu0 %v1008
  %v1010 = vpop.xlane.xlu0 %1009
  %v1011 = vsel %vm390, %v996, 0.0
  %1012 = vadd.xlane.f32.xlu0 %v1011
  %v1013 = vpop.xlane.xlu0 %1012
  %v1014 = vsel %vm406, %v998, 0.0
  %1015 = vadd.xlane.f32.xlu0 %v1014
  %v1016 = vpop.xlane.xlu0 %1015
  %v1017 = vrcp.pop %v1001
  %v1018 = vrcp.pop %v1004
  %v1019 = vrcp.pop %v1007
  %v1020 = vrcp.pop %v1010
  %v1021 = vrcp.pop %v1013
  %v1022 = vrcp.pop %v1016
  %v1023 = vmul.f32 %v988, %v1017
  %v1024 = vmul.f32 %v990, %v1018
  %v1025 = vmul.f32 %v992, %v1019
  %v1026 = vmul.f32 %v994, %v1020
  %v1027 = vmul.f32 %v996, %v1021
  %v1028 = vmul.f32 %v998, %v1022
  %v1029 = vmul.f32 %v289, %v137
  %v1030 = vmul.f32 %v292, %v137
  %v1031 = vmul.f32 %v295, %v137
  %v1032 = vmul.f32 %v298, %v137
  %v1033 = vmul.f32 %v301, %v137
  %v1034 = vmul.f32 %v304, %v137
  %v1036 = vsel %vm390, %v1023, 0
  %v1039 = vsel %vm390, %v1024, 0
  %v1042 = vsel %vm390, %v1025, 0
  %v1045 = vsel %vm390, %v1026, 0
  %v1048 = vsel %vm390, %v1027, 0
  %v1051 = vsel %vm390, %v1028, 0
  %v1054 = vsel %vm614, %v1034, 0
  %1056 = vmatpush.msra.mxu0 0.0
  %1057 = vmatpush.msra.mxu0 0.0
  %1058 = vmatpush.msra.mxu0 0.0
  %1059 = vmatpush.msra.mxu0 0.0
  %1060 = vmatpush.msra.mxu0 0.0
  %1061 = vmatpush.msra.mxu0 0.0
  %1062 = vmatpush.msra.mxu0 0.0
  %1063 = vmatpush.msra.mxu0 0.0
  %1064 = vmatpush.msra.mxu0 0.0
  %1065 = vmatpush.msra.mxu0 0.0
  %1066 = vmatpush.msra.mxu0 %v1054
  %1067 = vmatpush.msra.mxu0 %v1033
  %1068 = vmatpush.msra.mxu0 %v1032
  %1069 = vmatpush.msra.mxu0 %v1031
  %1070 = vmatpush.msra.mxu0 %v1030
  %1071 = vmatpush.msra.mxu0 %v1029
  %1072 = vmatmul.f32.gmra.mxu0 %v1036
  %v1073 = vpop.f32.mrf.mxu0
  %v1074 = vadd.f32 0.0, %v1073
  %1075 = vmatmul.f32.gmra.mxu0 %v1039
  %v1076 = vpop.f32.mrf.mxu0
  %v1077 = vadd.f32 0.0, %v1076
  %1078 = vmatmul.f32.gmra.mxu0 %v1042
  %v1079 = vpop.f32.mrf.mxu0
  %v1080 = vadd.f32 0.0, %v1079
  %1081 = vmatmul.f32.gmra.mxu0 %v1045
  %v1082 = vpop.f32.mrf.mxu0
  %v1083 = vadd.f32 0.0, %v1082
  %1084 = vmatmul.f32.gmra.mxu0 %v1048
  %v1085 = vpop.f32.mrf.mxu0
  %v1086 = vadd.f32 0.0, %v1085
  %1087 = vmatmul.f32.gmra.mxu0 %v1051
  %v1088 = vpop.f32.mrf.mxu0
  %v1089 = vadd.f32 0.0, %v1088
  %1090 = vdwg.mxu0
  %v1091 = vadd.f32 %v897, %v1074
  %v1092 = vadd.f32 %v898, %v1077
  %v1093 = vadd.f32 %v899, %v1080
  %v1094 = vadd.f32 %v900, %v1083
  %v1095 = vadd.f32 %v901, %v1086
  %v1096 = vadd.f32 %v902, %v1089
  %v1097 = vperm.slane %v311, 0
  %v1099 = vsel %vm150, %v1091, 0
  %v1102 = vsel %vm150, %v1092, 0
  %v1105 = vsel %vm150, %v1093, 0
  %v1108 = vsel %vm150, %v1094, 0
  %v1111 = vsel %vm150, %v1095, 0
  %v1114 = vsel %vm150, %v1096, 0
  %1116 = vmatpush.msra.mxu0 0.0
  %1117 = vmatpush.msra.mxu0 0.0
  %1118 = vmatpush.msra.mxu0 0.0
  %1119 = vmatpush.msra.mxu0 0.0
  %1120 = vmatpush.msra.mxu0 0.0
  %1121 = vmatpush.msra.mxu0 0.0
  %1122 = vmatpush.msra.mxu0 0.0
  %1123 = vmatpush.msra.mxu0 0.0
  %1124 = vmatpush.msra.mxu0 0.0
  %1125 = vmatpush.msra.mxu0 0.0
  %1126 = vmatpush.msra.mxu0 0.0
  %1127 = vmatpush.msra.mxu0 0.0
  %1128 = vmatpush.msra.mxu0 %v310
  %1129 = vmatpush.msra.mxu0 %v309
  %1130 = vmatpush.msra.mxu0 %v308
  %1131 = vmatpush.msra.mxu0 %v307
  %1132 = vmatmul.f32.gmra.mxu0 %v1099
  %v1133 = vpop.f32.mrf.mxu0
  %v1134 = vadd.f32 %v1097, %v1133
  %1135 = vmatmul.f32.gmra.mxu0 %v1102
  %v1136 = vpop.f32.mrf.mxu0
  %v1137 = vadd.f32 %v1097, %v1136
  %1138 = vmatmul.f32.gmra.mxu0 %v1105
  %v1139 = vpop.f32.mrf.mxu0
  %v1140 = vadd.f32 %v1097, %v1139
  %1141 = vmatmul.f32.gmra.mxu0 %v1108
  %v1142 = vpop.f32.mrf.mxu0
  %v1143 = vadd.f32 %v1097, %v1142
  %1144 = vmatmul.f32.gmra.mxu0 %v1111
  %v1145 = vpop.f32.mrf.mxu0
  %v1146 = vadd.f32 %v1097, %v1145
  %1147 = vmatmul.f32.gmra.mxu0 %v1114
  %v1148 = vpop.f32.mrf.mxu0
  %v1149 = vadd.f32 %v1097, %v1148
  %1150 = vdwg.mxu0
  %v1151 = vadd.f32 %v41, %v1134
  %v1152 = vadd.f32 %v42, %v1137
  %v1153 = vadd.f32 %v43, %v1140
  %v1154 = vadd.f32 %v44, %v1143
  %v1155 = vadd.f32 %v45, %v1146
  %v1156 = vadd.f32 %v46, %v1149
  %v1157 = vld [vmem:[%s9 + $0x4] sm:$0x1]
  %v1158 = vld [vmem:[%s9 + $0x5] sm:$0x1]
  %v1159 = vsel %vm150, %v1151, 0.0
  %1160 = vadd.xlane.f32.xlu0 %v1159
  %v1161 = vpop.xlane.xlu0 %1160
  %v1162 = vsel %vm150, %v1152, 0.0
  %1163 = vadd.xlane.f32.xlu0 %v1162
  %v1164 = vpop.xlane.xlu0 %1163
  %v1165 = vsel %vm150, %v1153, 0.0
  %1166 = vadd.xlane.f32.xlu0 %v1165
  %v1167 = vpop.xlane.xlu0 %1166
  %v1168 = vsel %vm150, %v1154, 0.0
  %1169 = vadd.xlane.f32.xlu0 %v1168
  %v1170 = vpop.xlane.xlu0 %1169
  %v1171 = vsel %vm150, %v1155, 0.0
  %1172 = vadd.xlane.f32.xlu0 %v1171
  %v1173 = vpop.xlane.xlu0 %1172
  %vm1174 = vcmask 254976
  %v1175 = vsel %vm1174, %v1156, 0.0
  %1176 = vadd.xlane.f32.xlu0 %v1175
  %v1177 = vpop.xlane.xlu0 %1176
  %v1178 = vrcp.pop 32.0
  %v1179 = vmul.f32 32.0, %v1178
  %v1180 = vsub.f32 1.0, %v1179
  %v1181 = vmul.f32 %v1178, %v1180
  %v1182 = vadd.f32 %v1178, %v1181
  %vm1183 = vweird.f32 %v1178
  %v1184 = vsel %vm1183, %v1178, %v1182
  %v1185 = vmul.f32 %v1161, %v1184
  %v1186 = vmul.f32 %v1164, %v1184
  %v1187 = vmul.f32 %v1167, %v1184
  %v1188 = vmul.f32 %v1170, %v1184
  %v1189 = vmul.f32 %v1173, %v1184
  %v1190 = vmul.f32 %v1177, %v1184
  %v1191 = vsub.f32 %v1151, %v1185
  %v1192 = vsub.f32 %v1152, %v1186
  %v1193 = vsub.f32 %v1153, %v1187
  %v1194 = vsub.f32 %v1154, %v1188
  %v1195 = vsub.f32 %v1155, %v1189
  %v1196 = vsub.f32 %v1156, %v1190
  %v1197 = vmul.f32 %v1191, %v1191
  %v1198 = vmul.f32 %v1192, %v1192
  %v1199 = vmul.f32 %v1193, %v1193
  %v1200 = vmul.f32 %v1194, %v1194
  %v1201 = vmul.f32 %v1195, %v1195
  %v1202 = vmul.f32 %v1196, %v1196
  %v1203 = vsel %vm150, %v1197, 0.0
  %1204 = vadd.xlane.f32.xlu0 %v1203
  %v1205 = vpop.xlane.xlu0 %1204
  %v1206 = vsel %vm150, %v1198, 0.0
  %1207 = vadd.xlane.f32.xlu0 %v1206
  %v1208 = vpop.xlane.xlu0 %1207
  %v1209 = vsel %vm150, %v1199, 0.0
  %1210 = vadd.xlane.f32.xlu0 %v1209
  %v1211 = vpop.xlane.xlu0 %1210
  %v1212 = vsel %vm150, %v1200, 0.0
  %1213 = vadd.xlane.f32.xlu0 %v1212
  %v1214 = vpop.xlane.xlu0 %1213
  %v1215 = vsel %vm150, %v1201, 0.0
  %1216 = vadd.xlane.f32.xlu0 %v1215
  %v1217 = vpop.xlane.xlu0 %1216
  %v1218 = vsel %vm1174, %v1202, 0.0
  %1219 = vadd.xlane.f32.xlu0 %v1218
  %v1220 = vpop.xlane.xlu0 %1219
  %v1221 = vmul.f32 %v1205, %v1184
  %v1222 = vmul.f32 %v1208, %v1184
  %v1223 = vmul.f32 %v1211, %v1184
  %v1224 = vmul.f32 %v1214, %v1184
  %v1225 = vmul.f32 %v1217, %v1184
  %v1226 = vmul.f32 %v1220, %v1184
  %v1227 = vadd.f32 %v1221, 1e-05
  %v1228 = vadd.f32 %v1222, 1e-05
  %v1229 = vadd.f32 %v1223, 1e-05
  %v1230 = vadd.f32 %v1224, 1e-05
  %v1231 = vadd.f32 %v1225, 1e-05
  %v1232 = vadd.f32 %v1226, 1e-05
  %v1233 = vrsqrt.pop %v1227
  %v1234 = vmul.f32 %v1233, %v1227
  %v1235 = vmul.f32 %v1234, %v1233
  %v1236 = vmul.f32 0.5, %v1235
  %v1237 = vsub.f32 1.5, %v1236
  %v1238 = vmul.f32 %v1233, %v1237
  %vm1239 = vweird.f32 %v1227
  %vm1240 = vweird.f32 %v1233
  %vm1241 = vmor %vm1239, %vm1240
  %v1242 = vsel %vm1241, %v1233, %v1238
  %v1243 = vrsqrt.pop %v1228
  %v1244 = vmul.f32 %v1243, %v1228
  %v1245 = vmul.f32 %v1244, %v1243
  %v1246 = vmul.f32 0.5, %v1245
  %v1247 = vsub.f32 1.5, %v1246
  %v1248 = vmul.f32 %v1243, %v1247
  %vm1249 = vweird.f32 %v1228
  %vm1250 = vweird.f32 %v1243
  %vm1251 = vmor %vm1249, %vm1250
  %v1252 = vsel %vm1251, %v1243, %v1248
  %v1253 = vrsqrt.pop %v1229
  %v1254 = vmul.f32 %v1253, %v1229
  %v1255 = vmul.f32 %v1254, %v1253
  %v1256 = vmul.f32 0.5, %v1255
  %v1257 = vsub.f32 1.5, %v1256
  %v1258 = vmul.f32 %v1253, %v1257
  %vm1259 = vweird.f32 %v1229
  %vm1260 = vweird.f32 %v1253
  %vm1261 = vmor %vm1259, %vm1260
  %v1262 = vsel %vm1261, %v1253, %v1258
  %v1263 = vrsqrt.pop %v1230
  %v1264 = vmul.f32 %v1263, %v1230
  %v1265 = vmul.f32 %v1264, %v1263
  %v1266 = vmul.f32 0.5, %v1265
  %v1267 = vsub.f32 1.5, %v1266
  %v1268 = vmul.f32 %v1263, %v1267
  %vm1269 = vweird.f32 %v1230
  %vm1270 = vweird.f32 %v1263
  %vm1271 = vmor %vm1269, %vm1270
  %v1272 = vsel %vm1271, %v1263, %v1268
  %v1273 = vrsqrt.pop %v1231
  %v1274 = vmul.f32 %v1273, %v1231
  %v1275 = vmul.f32 %v1274, %v1273
  %v1276 = vmul.f32 0.5, %v1275
  %v1277 = vsub.f32 1.5, %v1276
  %v1278 = vmul.f32 %v1273, %v1277
  %vm1279 = vweird.f32 %v1231
  %vm1280 = vweird.f32 %v1273
  %vm1281 = vmor %vm1279, %vm1280
  %v1282 = vsel %vm1281, %v1273, %v1278
  %v1283 = vrsqrt.pop %v1232
  %v1284 = vmul.f32 %v1283, %v1232
  %v1285 = vmul.f32 %v1284, %v1283
  %v1286 = vmul.f32 0.5, %v1285
  %v1287 = vsub.f32 1.5, %v1286
  %v1288 = vmul.f32 %v1283, %v1287
  %vm1289 = vweird.f32 %v1232
  %vm1290 = vweird.f32 %v1283
  %vm1291 = vmor %vm1289, %vm1290
  %v1292 = vsel %vm1291, %v1283, %v1288
  %v1293 = vmul.f32 %v1191, %v1242
  %v1294 = vmul.f32 %v1192, %v1252
  %v1295 = vmul.f32 %v1193, %v1262
  %v1296 = vmul.f32 %v1194, %v1272
  %v1297 = vmul.f32 %v1195, %v1282
  %v1298 = vmul.f32 %v1196, %v1292
  %v1299 = vperm.slane %v1157, 0
  %v1300 = vmul.f32 %v1293, %v1299
  %v1301 = vmul.f32 %v1294, %v1299
  %v1302 = vmul.f32 %v1295, %v1299
  %v1303 = vmul.f32 %v1296, %v1299
  %v1304 = vmul.f32 %v1297, %v1299
  %v1305 = vmul.f32 %v1298, %v1299
  %v1306 = vperm.slane %v1158, 0
  %v1307 = vadd.f32 %v1300, %v1306
  %v1308 = vadd.f32 %v1301, %v1306
  %v1309 = vadd.f32 %v1302, %v1306
  %v1310 = vadd.f32 %v1303, %v1306
  %v1311 = vadd.f32 %v1304, %v1306
  %v1312 = vadd.f32 %v1305, %v1306
  %v1313 = vld [vmem:[%s7] sm:$0xff]
  %v1314 = vld [vmem:[%s7 + $0x8] sm:$0xff]
  %v1315 = vld [vmem:[%s7 + $0x10] sm:$0xff]
  %v1316 = vld [vmem:[%s7 + $0x18] sm:$0xff]
  %v1317 = vld [vmem:[%s9 + $0x6] sm:$0x1]
  %v1318 = vperm.slane %v1317, 0
  %v1320 = vsel %vm150, %v1307, 0
  %v1323 = vsel %vm150, %v1308, 0
  %v1326 = vsel %vm150, %v1309, 0
  %v1329 = vsel %vm150, %v1310, 0
  %v1332 = vsel %vm150, %v1311, 0
  %v1335 = vsel %vm150, %v1312, 0
  %1337 = vmatpush.msra.mxu0 0.0
  %1338 = vmatpush.msra.mxu0 0.0
  %1339 = vmatpush.msra.mxu0 0.0
  %1340 = vmatpush.msra.mxu0 0.0
  %1341 = vmatpush.msra.mxu0 0.0
  %1342 = vmatpush.msra.mxu0 0.0
  %1343 = vmatpush.msra.mxu0 0.0
  %1344 = vmatpush.msra.mxu0 0.0
  %1345 = vmatpush.msra.mxu0 0.0
  %1346 = vmatpush.msra.mxu0 0.0
  %1347 = vmatpush.msra.mxu0 0.0
  %1348 = vmatpush.msra.mxu0 0.0
  %1349 = vmatpush.msra.mxu0 %v1316
  %1350 = vmatpush.msra.mxu0 %v1315
  %1351 = vmatpush.msra.mxu0 %v1314
  %1352 = vmatpush.msra.mxu0 %v1313
  %1353 = vmatmul.f32.gmra.mxu0 %v1320
  %v1354 = vpop.f32.mrf.mxu0
  %v1355 = vadd.f32 %v1318, %v1354
  %1356 = vmatmul.f32.gmra.mxu0 %v1323
  %v1357 = vpop.f32.mrf.mxu0
  %v1358 = vadd.f32 %v1318, %v1357
  %1359 = vmatmul.f32.gmra.mxu0 %v1326
  %v1360 = vpop.f32.mrf.mxu0
  %v1361 = vadd.f32 %v1318, %v1360
  %1362 = vmatmul.f32.gmra.mxu0 %v1329
  %v1363 = vpop.f32.mrf.mxu0
  %v1364 = vadd.f32 %v1318, %v1363
  %1365 = vmatmul.f32.gmra.mxu0 %v1332
  %v1366 = vpop.f32.mrf.mxu0
  %v1367 = vadd.f32 %v1318, %v1366
  %1368 = vmatmul.f32.gmra.mxu0 %v1335
  %v1369 = vpop.f32.mrf.mxu0
  %v1370 = vadd.f32 %v1318, %v1369
  %1371 = vdwg.mxu0
  %v1372 = vmax.f32 %v1355, 0.0
  %v1373 = vmax.f32 %v1358, 0.0
  %v1374 = vmax.f32 %v1361, 0.0
  %v1375 = vmax.f32 %v1364, 0.0
  %v1376 = vmax.f32 %v1367, 0.0
  %v1377 = vmax.f32 %v1370, 0.0
  %v1378 = vld [vmem:[%s8] sm:$0xff]
  %v1379 = vld [vmem:[%s8 + $0x8] sm:$0xff]
  %v1380 = vld [vmem:[%s8 + $0x10] sm:$0xff]
  %v1381 = vld [vmem:[%s8 + $0x18] sm:$0xff]
  %v1382 = vld [vmem:[%s8 + $0x20] sm:$0xff]
  %v1383 = vld [vmem:[%s8 + $0x28] sm:$0xff]
  %v1384 = vld [vmem:[%s8 + $0x30] sm:$0xff]
  %v1385 = vld [vmem:[%s8 + $0x38] sm:$0xff]
  %v1386 = vld [vmem:[%s9 + $0x7] sm:$0x1]
  %v1387 = vperm.slane %v1386, 0
  %vm1388 = vcmask 523264
  %v1390 = vsel %vm1388, %v1372, 0
  %v1393 = vsel %vm1388, %v1373, 0
  %v1396 = vsel %vm1388, %v1374, 0
  %v1399 = vsel %vm1388, %v1375, 0
  %v1402 = vsel %vm1388, %v1376, 0
  %v1405 = vsel %vm1388, %v1377, 0
  %1407 = vmatpush.msra.mxu0 0.0
  %1408 = vmatpush.msra.mxu0 0.0
  %1409 = vmatpush.msra.mxu0 0.0
  %1410 = vmatpush.msra.mxu0 0.0
  %1411 = vmatpush.msra.mxu0 0.0
  %1412 = vmatpush.msra.mxu0 0.0
  %1413 = vmatpush.msra.mxu0 0.0
  %1414 = vmatpush.msra.mxu0 0.0
  %1415 = vmatpush.msra.mxu0 %v1385
  %1416 = vmatpush.msra.mxu0 %v1384
  %1417 = vmatpush.msra.mxu0 %v1383
  %1418 = vmatpush.msra.mxu0 %v1382
  %1419 = vmatpush.msra.mxu0 %v1381
  %1420 = vmatpush.msra.mxu0 %v1380
  %1421 = vmatpush.msra.mxu0 %v1379
  %1422 = vmatpush.msra.mxu0 %v1378
  %1423 = vmatmul.f32.gmra.mxu0 %v1390
  %v1424 = vpop.f32.mrf.mxu0
  %v1425 = vadd.f32 %v1387, %v1424
  %1426 = vmatmul.f32.gmra.mxu0 %v1393
  %v1427 = vpop.f32.mrf.mxu0
  %v1428 = vadd.f32 %v1387, %v1427
  %1429 = vmatmul.f32.gmra.mxu0 %v1396
  %v1430 = vpop.f32.mrf.mxu0
  %v1431 = vadd.f32 %v1387, %v1430
  %1432 = vmatmul.f32.gmra.mxu0 %v1399
  %v1433 = vpop.f32.mrf.mxu0
  %v1434 = vadd.f32 %v1387, %v1433
  %1435 = vmatmul.f32.gmra.mxu0 %v1402
  %v1436 = vpop.f32.mrf.mxu0
  %v1437 = vadd.f32 %v1387, %v1436
  %1438 = vmatmul.f32.gmra.mxu0 %v1405
  %v1439 = vpop.f32.mrf.mxu0
  %v1440 = vadd.f32 %v1387, %v1439
  %1441 = vdwg.mxu0
  %v1442 = vadd.f32 %v1307, %v1425
  %v1443 = vadd.f32 %v1308, %v1428
  %v1444 = vadd.f32 %v1309, %v1431
  %v1445 = vadd.f32 %v1310, %v1434
  %v1446 = vadd.f32 %v1311, %v1437
  %v1447 = vadd.f32 %v1312, %v1440
  %v1448 = vld [vmem:[%s9 + $0x8] sm:$0x1]
  %v1449 = vld [vmem:[%s9 + $0x9] sm:$0x1]
  %v1450 = vsel %vm150, %v1442, 0.0
  %1451 = vadd.xlane.f32.xlu0 %v1450
  %v1452 = vpop.xlane.xlu0 %1451
  %v1453 = vsel %vm150, %v1443, 0.0
  %1454 = vadd.xlane.f32.xlu0 %v1453
  %v1455 = vpop.xlane.xlu0 %1454
  %v1456 = vsel %vm150, %v1444, 0.0
  %1457 = vadd.xlane.f32.xlu0 %v1456
  %v1458 = vpop.xlane.xlu0 %1457
  %v1459 = vsel %vm150, %v1445, 0.0
  %1460 = vadd.xlane.f32.xlu0 %v1459
  %v1461 = vpop.xlane.xlu0 %1460
  %v1462 = vsel %vm150, %v1446, 0.0
  %1463 = vadd.xlane.f32.xlu0 %v1462
  %v1464 = vpop.xlane.xlu0 %1463
  %v1465 = vsel %vm1174, %v1447, 0.0
  %1466 = vadd.xlane.f32.xlu0 %v1465
  %v1467 = vpop.xlane.xlu0 %1466
  %v1468 = vmul.f32 %v1452, %v1184
  %v1469 = vmul.f32 %v1455, %v1184
  %v1470 = vmul.f32 %v1458, %v1184
  %v1471 = vmul.f32 %v1461, %v1184
  %v1472 = vmul.f32 %v1464, %v1184
  %v1473 = vmul.f32 %v1467, %v1184
  %v1474 = vsub.f32 %v1442, %v1468
  %v1475 = vsub.f32 %v1443, %v1469
  %v1476 = vsub.f32 %v1444, %v1470
  %v1477 = vsub.f32 %v1445, %v1471
  %v1478 = vsub.f32 %v1446, %v1472
  %v1479 = vsub.f32 %v1447, %v1473
  %v1480 = vmul.f32 %v1474, %v1474
  %v1481 = vmul.f32 %v1475, %v1475
  %v1482 = vmul.f32 %v1476, %v1476
  %v1483 = vmul.f32 %v1477, %v1477
  %v1484 = vmul.f32 %v1478, %v1478
  %v1485 = vmul.f32 %v1479, %v1479
  %v1486 = vsel %vm150, %v1480, 0.0
  %1487 = vadd.xlane.f32.xlu0 %v1486
  %v1488 = vpop.xlane.xlu0 %1487
  %v1489 = vsel %vm150, %v1481, 0.0
  %1490 = vadd.xlane.f32.xlu0 %v1489
  %v1491 = vpop.xlane.xlu0 %1490
  %v1492 = vsel %vm150, %v1482, 0.0
  %1493 = vadd.xlane.f32.xlu0 %v1492
  %v1494 = vpop.xlane.xlu0 %1493
  %v1495 = vsel %vm150, %v1483, 0.0
  %1496 = vadd.xlane.f32.xlu0 %v1495
  %v1497 = vpop.xlane.xlu0 %1496
  %v1498 = vsel %vm150, %v1484, 0.0
  %1499 = vadd.xlane.f32.xlu0 %v1498
  %v1500 = vpop.xlane.xlu0 %1499
  %v1501 = vsel %vm1174, %v1485, 0.0
  %1502 = vadd.xlane.f32.xlu0 %v1501
  %v1503 = vpop.xlane.xlu0 %1502
  %v1504 = vmul.f32 %v1488, %v1184
  %v1505 = vmul.f32 %v1491, %v1184
  %v1506 = vmul.f32 %v1494, %v1184
  %v1507 = vmul.f32 %v1497, %v1184
  %v1508 = vmul.f32 %v1500, %v1184
  %v1509 = vmul.f32 %v1503, %v1184
  %v1510 = vadd.f32 %v1504, 1e-05
  %v1511 = vadd.f32 %v1505, 1e-05
  %v1512 = vadd.f32 %v1506, 1e-05
  %v1513 = vadd.f32 %v1507, 1e-05
  %v1514 = vadd.f32 %v1508, 1e-05
  %v1515 = vadd.f32 %v1509, 1e-05
  %v1516 = vrsqrt.pop %v1510
  %v1517 = vmul.f32 %v1516, %v1510
  %v1518 = vmul.f32 %v1517, %v1516
  %v1519 = vmul.f32 0.5, %v1518
  %v1520 = vsub.f32 1.5, %v1519
  %v1521 = vmul.f32 %v1516, %v1520
  %vm1522 = vweird.f32 %v1510
  %vm1523 = vweird.f32 %v1516
  %vm1524 = vmor %vm1522, %vm1523
  %v1525 = vsel %vm1524, %v1516, %v1521
  %v1526 = vrsqrt.pop %v1511
  %v1527 = vmul.f32 %v1526, %v1511
  %v1528 = vmul.f32 %v1527, %v1526
  %v1529 = vmul.f32 0.5, %v1528
  %v1530 = vsub.f32 1.5, %v1529
  %v1531 = vmul.f32 %v1526, %v1530
  %vm1532 = vweird.f32 %v1511
  %vm1533 = vweird.f32 %v1526
  %vm1534 = vmor %vm1532, %vm1533
  %v1535 = vsel %vm1534, %v1526, %v1531
  %v1536 = vrsqrt.pop %v1512
  %v1537 = vmul.f32 %v1536, %v1512
  %v1538 = vmul.f32 %v1537, %v1536
  %v1539 = vmul.f32 0.5, %v1538
  %v1540 = vsub.f32 1.5, %v1539
  %v1541 = vmul.f32 %v1536, %v1540
  %vm1542 = vweird.f32 %v1512
  %vm1543 = vweird.f32 %v1536
  %vm1544 = vmor %vm1542, %vm1543
  %v1545 = vsel %vm1544, %v1536, %v1541
  %v1546 = vrsqrt.pop %v1513
  %v1547 = vmul.f32 %v1546, %v1513
  %v1548 = vmul.f32 %v1547, %v1546
  %v1549 = vmul.f32 0.5, %v1548
  %v1550 = vsub.f32 1.5, %v1549
  %v1551 = vmul.f32 %v1546, %v1550
  %vm1552 = vweird.f32 %v1513
  %vm1553 = vweird.f32 %v1546
  %vm1554 = vmor %vm1552, %vm1553
  %v1555 = vsel %vm1554, %v1546, %v1551
  %v1556 = vrsqrt.pop %v1514
  %v1557 = vmul.f32 %v1556, %v1514
  %v1558 = vmul.f32 %v1557, %v1556
  %v1559 = vmul.f32 0.5, %v1558
  %v1560 = vsub.f32 1.5, %v1559
  %v1561 = vmul.f32 %v1556, %v1560
  %vm1562 = vweird.f32 %v1514
  %vm1563 = vweird.f32 %v1556
  %vm1564 = vmor %vm1562, %vm1563
  %v1565 = vsel %vm1564, %v1556, %v1561
  %v1566 = vrsqrt.pop %v1515
  %v1567 = vmul.f32 %v1566, %v1515
  %v1568 = vmul.f32 %v1567, %v1566
  %v1569 = vmul.f32 0.5, %v1568
  %v1570 = vsub.f32 1.5, %v1569
  %v1571 = vmul.f32 %v1566, %v1570
  %vm1572 = vweird.f32 %v1515
  %vm1573 = vweird.f32 %v1566
  %vm1574 = vmor %vm1572, %vm1573
  %v1575 = vsel %vm1574, %v1566, %v1571
  %v1576 = vmul.f32 %v1474, %v1525
  %v1577 = vmul.f32 %v1475, %v1535
  %v1578 = vmul.f32 %v1476, %v1545
  %v1579 = vmul.f32 %v1477, %v1555
  %v1580 = vmul.f32 %v1478, %v1565
  %v1581 = vmul.f32 %v1479, %v1575
  %v1582 = vperm.slane %v1448, 0
  %v1583 = vmul.f32 %v1576, %v1582
  %v1584 = vmul.f32 %v1577, %v1582
  %v1585 = vmul.f32 %v1578, %v1582
  %v1586 = vmul.f32 %v1579, %v1582
  %v1587 = vmul.f32 %v1580, %v1582
  %v1588 = vmul.f32 %v1581, %v1582
  %v1589 = vperm.slane %v1449, 0
  %v1590 = vadd.f32 %v1583, %v1589
  %v1591 = vadd.f32 %v1584, %v1589
  %v1592 = vadd.f32 %v1585, %v1589
  %v1593 = vadd.f32 %v1586, %v1589
  %v1594 = vadd.f32 %v1587, %v1589
  %v1595 = vadd.f32 %v1588, %v1589
  %v1596 = vadd.f32 %v1590, %v47
  %v1597 = vadd.f32 %v1591, %v48
  %v1598 = vadd.f32 %v1592, %v49
  %v1599 = vadd.f32 %v1593, %v50
  %v1600 = vadd.f32 %v1594, %v51
  %v1601 = vadd.f32 %v1595, %v52
  %s1602 = scalar_lea.vmem %s6, 128
  %v1603 = vld [vmem:[%s1602] sm:$0xff]
  %v1604 = vld [vmem:[%s1602 + $0x8] sm:$0xff]
  %v1605 = vld [vmem:[%s1602 + $0x10] sm:$0xff]
  %v1606 = vld [vmem:[%s1602 + $0x18] sm:$0xff]
  %s1607 = scalar_lea.vmem %s9, 16
  %v1608 = vld [vmem:[%s1607] sm:$0x1]
  %v1609 = vperm.slane %v1608, 0
  %v1611 = vsel %vm150, %v1596, 0
  %v1614 = vsel %vm150, %v1597, 0
  %v1617 = vsel %vm150, %v1598, 0
  %v1620 = vsel %vm150, %v1599, 0
  %v1623 = vsel %vm150, %v1600, 0
  %v1626 = vsel %vm150, %v1601, 0
  %1628 = vmatpush.msra.mxu0 0.0
  %1629 = vmatpush.msra.mxu0 0.0
  %1630 = vmatpush.msra.mxu0 0.0
  %1631 = vmatpush.msra.mxu0 0.0
  %1632 = vmatpush.msra.mxu0 0.0
  %1633 = vmatpush.msra.mxu0 0.0
  %1634 = vmatpush.msra.mxu0 0.0
  %1635 = vmatpush.msra.mxu0 0.0
  %1636 = vmatpush.msra.mxu0 0.0
  %1637 = vmatpush.msra.mxu0 0.0
  %1638 = vmatpush.msra.mxu0 0.0
  %1639 = vmatpush.msra.mxu0 0.0
  %1640 = vmatpush.msra.mxu0 %v1606
  %1641 = vmatpush.msra.mxu0 %v1605
  %1642 = vmatpush.msra.mxu0 %v1604
  %1643 = vmatpush.msra.mxu0 %v1603
  %1644 = vmatmul.f32.gmra.mxu0 %v1611
  %v1645 = vpop.f32.mrf.mxu0
  %v1646 = vadd.f32 %v1609, %v1645
  %1647 = vmatmul.f32.gmra.mxu0 %v1614
  %v1648 = vpop.f32.mrf.mxu0
  %v1649 = vadd.f32 %v1609, %v1648
  %1650 = vmatmul.f32.gmra.mxu0 %v1617
  %v1651 = vpop.f32.mrf.mxu0
  %v1652 = vadd.f32 %v1609, %v1651
  %1653 = vmatmul.f32.gmra.mxu0 %v1620
  %v1654 = vpop.f32.mrf.mxu0
  %v1655 = vadd.f32 %v1609, %v1654
  %1656 = vmatmul.f32.gmra.mxu0 %v1623
  %v1657 = vpop.f32.mrf.mxu0
  %v1658 = vadd.f32 %v1609, %v1657
  %1659 = vmatmul.f32.gmra.mxu0 %v1626
  %v1660 = vpop.f32.mrf.mxu0
  %v1661 = vadd.f32 %v1609, %v1660
  %1662 = vdwg.mxu0
  %s1663 = scalar_lea.vmem %s6, 160
  %v1664 = vld [vmem:[%s1663] sm:$0xff]
  %v1665 = vld [vmem:[%s1663 + $0x8] sm:$0xff]
  %v1666 = vld [vmem:[%s1663 + $0x10] sm:$0xff]
  %v1667 = vld [vmem:[%s1663 + $0x18] sm:$0xff]
  %v1668 = vld [vmem:[%s1607 + $0x1] sm:$0x1]
  %v1669 = vperm.slane %v1668, 0
  %1670 = vmatpush.msra.mxu0 0.0
  %1671 = vmatpush.msra.mxu0 0.0
  %1672 = vmatpush.msra.mxu0 0.0
  %1673 = vmatpush.msra.mxu0 0.0
  %1674 = vmatpush.msra.mxu0 0.0
  %1675 = vmatpush.msra.mxu0 0.0
  %1676 = vmatpush.msra.mxu0 0.0
  %1677 = vmatpush.msra.mxu0 0.0
  %1678 = vmatpush.msra.mxu0 0.0
  %1679 = vmatpush.msra.mxu0 0.0
  %1680 = vmatpush.msra.mxu0 0.0
  %1681 = vmatpush.msra.mxu0 0.0
  %1682 = vmatpush.msra.mxu0 %v1667
  %1683 = vmatpush.msra.mxu0 %v1666
  %1684 = vmatpush.msra.mxu0 %v1665
  %1685 = vmatpush.msra.mxu0 %v1664
  %1686 = vmatmul.f32.gmra.mxu0 %v1611
  %v1687 = vpop.f32.mrf.mxu0
  %v1688 = vadd.f32 %v1669, %v1687
  %1689 = vmatmul.f32.gmra.mxu0 %v1614
  %v1690 = vpop.f32.mrf.mxu0
  %v1691 = vadd.f32 %v1669, %v1690
  %1692 = vmatmul.f32.gmra.mxu0 %v1617
  %v1693 = vpop.f32.mrf.mxu0
  %v1694 = vadd.f32 %v1669, %v1693
  %1695 = vmatmul.f32.gmra.mxu0 %v1620
  %v1696 = vpop.f32.mrf.mxu0
  %v1697 = vadd.f32 %v1669, %v1696
  %1698 = vmatmul.f32.gmra.mxu0 %v1623
  %v1699 = vpop.f32.mrf.mxu0
  %v1700 = vadd.f32 %v1669, %v1699
  %1701 = vmatmul.f32.gmra.mxu0 %v1626
  %v1702 = vpop.f32.mrf.mxu0
  %v1703 = vadd.f32 %v1669, %v1702
  %1704 = vdwg.mxu0
  %s1705 = scalar_lea.vmem %s6, 192
  %v1706 = vld [vmem:[%s1705] sm:$0xff]
  %v1707 = vld [vmem:[%s1705 + $0x8] sm:$0xff]
  %v1708 = vld [vmem:[%s1705 + $0x10] sm:$0xff]
  %v1709 = vld [vmem:[%s1705 + $0x18] sm:$0xff]
  %v1710 = vld [vmem:[%s1607 + $0x2] sm:$0x1]
  %v1711 = vperm.slane %v1710, 0
  %v1713 = vsel %vm150, %v1590, 0
  %v1716 = vsel %vm150, %v1591, 0
  %v1719 = vsel %vm150, %v1592, 0
  %v1722 = vsel %vm150, %v1593, 0
  %v1725 = vsel %vm150, %v1594, 0
  %v1728 = vsel %vm150, %v1595, 0
  %1730 = vmatpush.msra.mxu0 0.0
  %1731 = vmatpush.msra.mxu0 0.0
  %1732 = vmatpush.msra.mxu0 0.0
  %1733 = vmatpush.msra.mxu0 0.0
  %1734 = vmatpush.msra.mxu0 0.0
  %1735 = vmatpush.msra.mxu0 0.0
  %1736 = vmatpush.msra.mxu0 0.0
  %1737 = vmatpush.msra.mxu0 0.0
  %1738 = vmatpush.msra.mxu0 0.0
  %1739 = vmatpush.msra.mxu0 0.0
  %1740 = vmatpush.msra.mxu0 0.0
  %1741 = vmatpush.msra.mxu0 0.0
  %1742 = vmatpush.msra.mxu0 %v1709
  %1743 = vmatpush.msra.mxu0 %v1708
  %1744 = vmatpush.msra.mxu0 %v1707
  %1745 = vmatpush.msra.mxu0 %v1706
  %1746 = vmatmul.f32.gmra.mxu0 %v1713
  %v1747 = vpop.f32.mrf.mxu0
  %v1748 = vadd.f32 %v1711, %v1747
  %1749 = vmatmul.f32.gmra.mxu0 %v1716
  %v1750 = vpop.f32.mrf.mxu0
  %v1751 = vadd.f32 %v1711, %v1750
  %1752 = vmatmul.f32.gmra.mxu0 %v1719
  %v1753 = vpop.f32.mrf.mxu0
  %v1754 = vadd.f32 %v1711, %v1753
  %1755 = vmatmul.f32.gmra.mxu0 %v1722
  %v1756 = vpop.f32.mrf.mxu0
  %v1757 = vadd.f32 %v1711, %v1756
  %1758 = vmatmul.f32.gmra.mxu0 %v1725
  %v1759 = vpop.f32.mrf.mxu0
  %v1760 = vadd.f32 %v1711, %v1759
  %1761 = vmatmul.f32.gmra.mxu0 %v1728
  %v1762 = vpop.f32.mrf.mxu0
  %v1763 = vadd.f32 %v1711, %v1762
  %1764 = vdwg.mxu0
  %s1765 = scalar_lea.vmem %s6, 224
  %v1766 = vld [vmem:[%s1765] sm:$0xff]
  %v1767 = vld [vmem:[%s1765 + $0x8] sm:$0xff]
  %v1768 = vld [vmem:[%s1765 + $0x10] sm:$0xff]
  %v1769 = vld [vmem:[%s1765 + $0x18] sm:$0xff]
  %v1770 = vld [vmem:[%s1607 + $0x3] sm:$0x1]
  %v1771 = vmul.f32 %v1646, %v312
  %v1772 = vmul.f32 %v1649, %v312
  %v1773 = vmul.f32 %v1652, %v312
  %v1774 = vmul.f32 %v1655, %v312
  %v1775 = vmul.f32 %v1658, %v312
  %v1776 = vmul.f32 %v1661, %v312
  %v1778 = vsel %vm150, %v1771, 0
  %v1781 = vsel %vm150, %v1772, 0
  %v1784 = vsel %vm150, %v1773, 0
  %v1787 = vsel %vm150, %v1774, 0
  %v1790 = vsel %vm150, %v1775, 0
  %v1793 = vsel %vm150, %v1776, 0
  %v1796 = vsel %vm150, %v1688, 0
  %v1799 = vsel %vm150, %v1691, 0
  %v1802 = vsel %vm150, %v1694, 0
  %v1805 = vsel %vm150, %v1697, 0
  %v1808 = vsel %vm150, %v1700, 0
  %v1811 = vsel %vm150, %v1703, 0
  %1813 = vmatpush.xpose.msra.mxu0 0.0
  %1814 = vmatpush.xpose.msra.mxu0 0.0
  %1815 = vmatpush.xpose.msra.mxu0 0.0
  %1816 = vmatpush.xpose.msra.mxu0 0.0
  %1817 = vmatpush.xpose.msra.mxu0 0.0
  %1818 = vmatpush.xpose.msra.mxu0 0.0
  %1819 = vmatpush.xpose.msra.mxu0 0.0
  %1820 = vmatpush.xpose.msra.mxu0 0.0
  %1821 = vmatpush.xpose.msra.mxu0 0.0
  %1822 = vmatpush.xpose.msra.mxu0 0.0
  %1823 = vmatpush.xpose.msra.mxu0 %v1811
  %1824 = vmatpush.xpose.msra.mxu0 %v1808
  %1825 = vmatpush.xpose.msra.mxu0 %v1805
  %1826 = vmatpush.xpose.msra.mxu0 %v1802
  %1827 = vmatpush.xpose.msra.mxu0 %v1799
  %1828 = vmatpush.xpose.msra.mxu0 %v1796
  %1829 = vmatmul.f32.gmra.mxu0 %v1778
  %v1830 = vpop.f32.mrf.mxu0
  %v1831 = vadd.f32 %v110, %v1830
  %1832 = vmatmul.f32.gmra.mxu0 %v1781
  %v1833 = vpop.f32.mrf.mxu0
  %v1834 = vadd.f32 %v111, %v1833
  %1835 = vmatmul.f32.gmra.mxu0 %v1784
  %v1836 = vpop.f32.mrf.mxu0
  %v1837 = vadd.f32 %v112, %v1836
  %1838 = vmatmul.f32.gmra.mxu0 %v1787
  %v1839 = vpop.f32.mrf.mxu0
  %v1840 = vadd.f32 %v113, %v1839
  %1841 = vmatmul.f32.gmra.mxu0 %v1790
  %v1842 = vpop.f32.mrf.mxu0
  %v1843 = vadd.f32 %v114, %v1842
  %1844 = vmatmul.f32.gmra.mxu0 %v1793
  %v1845 = vpop.f32.mrf.mxu0
  %v1846 = vadd.f32 %v115, %v1845
  %1847 = vdwg.mxu0
  %v1848 = vsel %vm390, %v1831, -inf
  %1849 = vmax.xlane.f32.xlu0 %v1848
  %v1850 = vpop.xlane.xlu0 %1849
  %v1851 = vsel %vm390, %v1834, -inf
  %1852 = vmax.xlane.f32.xlu0 %v1851
  %v1853 = vpop.xlane.xlu0 %1852
  %v1854 = vsel %vm390, %v1837, -inf
  %1855 = vmax.xlane.f32.xlu0 %v1854
  %v1856 = vpop.xlane.xlu0 %1855
  %v1857 = vsel %vm390, %v1840, -inf
  %1858 = vmax.xlane.f32.xlu0 %v1857
  %v1859 = vpop.xlane.xlu0 %1858
  %v1860 = vsel %vm390, %v1843, -inf
  %1861 = vmax.xlane.f32.xlu0 %v1860
  %v1862 = vpop.xlane.xlu0 %1861
  %v1863 = vsel %vm406, %v1846, -inf
  %1864 = vmax.xlane.f32.xlu0 %v1863
  %v1865 = vpop.xlane.xlu0 %1864
  %v1866 = vsub.f32 %v1831, %v1850
  %v1867 = vsub.f32 %v1834, %v1853
  %v1868 = vsub.f32 %v1837, %v1856
  %v1869 = vsub.f32 %v1840, %v1859
  %v1870 = vsub.f32 %v1843, %v1862
  %v1871 = vsub.f32 %v1846, %v1865
  %v1872 = vmul.f32 %v1866, 1.442695
  %v1873 = vpow.pop %v1872
  %v1874 = vmul.f32 %v1867, 1.442695
  %v1875 = vpow.pop %v1874
  %v1876 = vmul.f32 %v1868, 1.442695
  %v1877 = vpow.pop %v1876
  %v1878 = vmul.f32 %v1869, 1.442695
  %v1879 = vpow.pop %v1878
  %v1880 = vmul.f32 %v1870, 1.442695
  %v1881 = vpow.pop %v1880
  %v1882 = vmul.f32 %v1871, 1.442695
  %v1883 = vpow.pop %v1882
  %v1884 = vsel %vm390, %v1873, 0.0
  %1885 = vadd.xlane.f32.xlu0 %v1884
  %v1886 = vpop.xlane.xlu0 %1885
  %v1887 = vsel %vm390, %v1875, 0.0
  %1888 = vadd.xlane.f32.xlu0 %v1887
  %v1889 = vpop.xlane.xlu0 %1888
  %v1890 = vsel %vm390, %v1877, 0.0
  %1891 = vadd.xlane.f32.xlu0 %v1890
  %v1892 = vpop.xlane.xlu0 %1891
  %v1893 = vsel %vm390, %v1879, 0.0
  %1894 = vadd.xlane.f32.xlu0 %v1893
  %v1895 = vpop.xlane.xlu0 %1894
  %v1896 = vsel %vm390, %v1881, 0.0
  %1897 = vadd.xlane.f32.xlu0 %v1896
  %v1898 = vpop.xlane.xlu0 %1897
  %v1899 = vsel %vm406, %v1883, 0.0
  %1900 = vadd.xlane.f32.xlu0 %v1899
  %v1901 = vpop.xlane.xlu0 %1900
  %v1902 = vrcp.pop %v1886
  %v1903 = vrcp.pop %v1889
  %v1904 = vrcp.pop %v1892
  %v1905 = vrcp.pop %v1895
  %v1906 = vrcp.pop %v1898
  %v1907 = vrcp.pop %v1901
  %v1908 = vmul.f32 %v1873, %v1902
  %v1909 = vmul.f32 %v1875, %v1903
  %v1910 = vmul.f32 %v1877, %v1904
  %v1911 = vmul.f32 %v1879, %v1905
  %v1912 = vmul.f32 %v1881, %v1906
  %v1913 = vmul.f32 %v1883, %v1907
  %v1914 = vmul.f32 %v1748, %v122
  %v1915 = vmul.f32 %v1751, %v122
  %v1916 = vmul.f32 %v1754, %v122
  %v1917 = vmul.f32 %v1757, %v122
  %v1918 = vmul.f32 %v1760, %v122
  %v1919 = vmul.f32 %v1763, %v122
  %v1920 = vmul.f32 %v1646, %v464
  %v1921 = vmul.f32 %v1649, %v464
  %v1922 = vmul.f32 %v1652, %v464
  %v1923 = vmul.f32 %v1655, %v464
  %v1924 = vmul.f32 %v1658, %v464
  %v1925 = vmul.f32 %v1661, %v464
  %v1927 = vsel %vm150, %v1920, 0
  %v1930 = vsel %vm150, %v1921, 0
  %v1933 = vsel %vm150, %v1922, 0
  %v1936 = vsel %vm150, %v1923, 0
  %v1939 = vsel %vm150, %v1924, 0
  %v1942 = vsel %vm150, %v1925, 0
  %1944 = vmatpush.xpose.msra.mxu0 0.0
  %1945 = vmatpush.xpose.msra.mxu0 0.0
  %1946 = vmatpush.xpose.msra.mxu0 0.0
  %1947 = vmatpush.xpose.msra.mxu0 0.0
  %1948 = vmatpush.xpose.msra.mxu0 0.0
  %1949 = vmatpush.xpose.msra.mxu0 0.0
  %1950 = vmatpush.xpose.msra.mxu0 0.0
  %1951 = vmatpush.xpose.msra.mxu0 0.0
  %1952 = vmatpush.xpose.msra.mxu0 0.0
  %1953 = vmatpush.xpose.msra.mxu0 0.0
  %1954 = vmatpush.xpose.msra.mxu0 %v1811
  %1955 = vmatpush.xpose.msra.mxu0 %v1808
  %1956 = vmatpush.xpose.msra.mxu0 %v1805
  %1957 = vmatpush.xpose.msra.mxu0 %v1802
  %1958 = vmatpush.xpose.msra.mxu0 %v1799
  %1959 = vmatpush.xpose.msra.mxu0 %v1796
  %1960 = vmatmul.f32.gmra.mxu0 %v1927
  %v1961 = vpop.f32.mrf.mxu0
  %v1962 = vadd.f32 %v110, %v1961
  %1963 = vmatmul.f32.gmra.mxu0 %v1930
  %v1964 = vpop.f32.mrf.mxu0
  %v1965 = vadd.f32 %v111, %v1964
  %1966 = vmatmul.f32.gmra.mxu0 %v1933
  %v1967 = vpop.f32.mrf.mxu0
  %v1968 = vadd.f32 %v112, %v1967
  %1969 = vmatmul.f32.gmra.mxu0 %v1936
  %v1970 = vpop.f32.mrf.mxu0
  %v1971 = vadd.f32 %v113, %v1970
  %1972 = vmatmul.f32.gmra.mxu0 %v1939
  %v1973 = vpop.f32.mrf.mxu0
  %v1974 = vadd.f32 %v114, %v1973
  %1975 = vmatmul.f32.gmra.mxu0 %v1942
  %v1976 = vpop.f32.mrf.mxu0
  %v1977 = vadd.f32 %v115, %v1976
  %1978 = vdwg.mxu0
  %v1979 = vsel %vm390, %v1962, -inf
  %1980 = vmax.xlane.f32.xlu0 %v1979
  %v1981 = vpop.xlane.xlu0 %1980
  %v1982 = vsel %vm390, %v1965, -inf
  %1983 = vmax.xlane.f32.xlu0 %v1982
  %v1984 = vpop.xlane.xlu0 %1983
  %v1985 = vsel %vm390, %v1968, -inf
  %1986 = vmax.xlane.f32.xlu0 %v1985
  %v1987 = vpop.xlane.xlu0 %1986
  %v1988 = vsel %vm390, %v1971, -inf
  %1989 = vmax.xlane.f32.xlu0 %v1988
  %v1990 = vpop.xlane.xlu0 %1989
  %v1991 = vsel %vm390, %v1974, -inf
  %1992 = vmax.xlane.f32.xlu0 %v1991
  %v1993 = vpop.xlane.xlu0 %1992
  %v1994 = vsel %vm406, %v1977, -inf
  %1995 = vmax.xlane.f32.xlu0 %v1994
  %v1996 = vpop.xlane.xlu0 %1995
  %v1997 = vsub.f32 %v1962, %v1981
  %v1998 = vsub.f32 %v1965, %v1984
  %v1999 = vsub.f32 %v1968, %v1987
  %v2000 = vsub.f32 %v1971, %v1990
  %v2001 = vsub.f32 %v1974, %v1993
  %v2002 = vsub.f32 %v1977, %v1996
  %v2003 = vmul.f32 %v1997, 1.442695
  %v2004 = vpow.pop %v2003
  %v2005 = vmul.f32 %v1998, 1.442695
  %v2006 = vpow.pop %v2005
  %v2007 = vmul.f32 %v1999, 1.442695
  %v2008 = vpow.pop %v2007
  %v2009 = vmul.f32 %v2000, 1.442695
  %v2010 = vpow.pop %v2009
  %v2011 = vmul.f32 %v2001, 1.442695
  %v2012 = vpow.pop %v2011
  %v2013 = vmul.f32 %v2002, 1.442695
  %v2014 = vpow.pop %v2013
  %v2015 = vsel %vm390, %v2004, 0.0
  %2016 = vadd.xlane.f32.xlu0 %v2015
  %v2017 = vpop.xlane.xlu0 %2016
  %v2018 = vsel %vm390, %v2006, 0.0
  %2019 = vadd.xlane.f32.xlu0 %v2018
  %v2020 = vpop.xlane.xlu0 %2019
  %v2021 = vsel %vm390, %v2008, 0.0
  %2022 = vadd.xlane.f32.xlu0 %v2021
  %v2023 = vpop.xlane.xlu0 %2022
  %v2024 = vsel %vm390, %v2010, 0.0
  %2025 = vadd.xlane.f32.xlu0 %v2024
  %v2026 = vpop.xlane.xlu0 %2025
  %v2027 = vsel %vm390, %v2012, 0.0
  %2028 = vadd.xlane.f32.xlu0 %v2027
  %v2029 = vpop.xlane.xlu0 %2028
  %v2030 = vsel %vm406, %v2014, 0.0
  %2031 = vadd.xlane.f32.xlu0 %v2030
  %v2032 = vpop.xlane.xlu0 %2031
  %v2033 = vrcp.pop %v2017
  %v2034 = vrcp.pop %v2020
  %v2035 = vrcp.pop %v2023
  %v2036 = vrcp.pop %v2026
  %v2037 = vrcp.pop %v2029
  %v2038 = vrcp.pop %v2032
  %v2039 = vmul.f32 %v2004, %v2033
  %v2040 = vmul.f32 %v2006, %v2034
  %v2041 = vmul.f32 %v2008, %v2035
  %v2042 = vmul.f32 %v2010, %v2036
  %v2043 = vmul.f32 %v2012, %v2037
  %v2044 = vmul.f32 %v2014, %v2038
  %v2045 = vmul.f32 %v1748, %v127
  %v2046 = vmul.f32 %v1751, %v127
  %v2047 = vmul.f32 %v1754, %v127
  %v2048 = vmul.f32 %v1757, %v127
  %v2049 = vmul.f32 %v1760, %v127
  %v2050 = vmul.f32 %v1763, %v127
  %v2052 = vsel %vm390, %v2039, 0
  %v2055 = vsel %vm390, %v2040, 0
  %v2058 = vsel %vm390, %v2041, 0
  %v2061 = vsel %vm390, %v2042, 0
  %v2064 = vsel %vm390, %v2043, 0
  %v2067 = vsel %vm390, %v2044, 0
  %v2070 = vsel %vm614, %v2050, 0
  %2072 = vmatpush.msra.mxu0 0.0
  %2073 = vmatpush.msra.mxu0 0.0
  %2074 = vmatpush.msra.mxu0 0.0
  %2075 = vmatpush.msra.mxu0 0.0
  %2076 = vmatpush.msra.mxu0 0.0
  %2077 = vmatpush.msra.mxu0 0.0
  %2078 = vmatpush.msra.mxu0 0.0
  %2079 = vmatpush.msra.mxu0 0.0
  %2080 = vmatpush.msra.mxu0 0.0
  %2081 = vmatpush.msra.mxu0 0.0
  %2082 = vmatpush.msra.mxu0 %v2070
  %2083 = vmatpush.msra.mxu0 %v2049
  %2084 = vmatpush.msra.mxu0 %v2048
  %2085 = vmatpush.msra.mxu0 %v2047
  %2086 = vmatpush.msra.mxu0 %v2046
  %2087 = vmatpush.msra.mxu0 %v2045
  %2088 = vmatmul.f32.gmra.mxu0 %v2052
  %v2089 = vpop.f32.mrf.mxu0
  %v2090 = vadd.f32 0.0, %v2089
  %2091 = vmatmul.f32.gmra.mxu0 %v2055
  %v2092 = vpop.f32.mrf.mxu0
  %v2093 = vadd.f32 0.0, %v2092
  %2094 = vmatmul.f32.gmra.mxu0 %v2058
  %v2095 = vpop.f32.mrf.mxu0
  %v2096 = vadd.f32 0.0, %v2095
  %2097 = vmatmul.f32.gmra.mxu0 %v2061
  %v2098 = vpop.f32.mrf.mxu0
  %v2099 = vadd.f32 0.0, %v2098
  %2100 = vmatmul.f32.gmra.mxu0 %v2064
  %v2101 = vpop.f32.mrf.mxu0
  %v2102 = vadd.f32 0.0, %v2101
  %2103 = vmatmul.f32.gmra.mxu0 %v2067
  %v2104 = vpop.f32.mrf.mxu0
  %v2105 = vadd.f32 0.0, %v2104
  %2106 = vdwg.mxu0
  %v2108 = vsel %vm390, %v1908, 0
  %v2111 = vsel %vm390, %v1909, 0
  %v2114 = vsel %vm390, %v1910, 0
  %v2117 = vsel %vm390, %v1911, 0
  %v2120 = vsel %vm390, %v1912, 0
  %v2123 = vsel %vm390, %v1913, 0
  %v2126 = vsel %vm614, %v1919, 0
  %2128 = vmatpush.msra.mxu0 0.0
  %2129 = vmatpush.msra.mxu0 0.0
  %2130 = vmatpush.msra.mxu0 0.0
  %2131 = vmatpush.msra.mxu0 0.0
  %2132 = vmatpush.msra.mxu0 0.0
  %2133 = vmatpush.msra.mxu0 0.0
  %2134 = vmatpush.msra.mxu0 0.0
  %2135 = vmatpush.msra.mxu0 0.0
  %2136 = vmatpush.msra.mxu0 0.0
  %2137 = vmatpush.msra.mxu0 0.0
  %2138 = vmatpush.msra.mxu0 %v2126
  %2139 = vmatpush.msra.mxu0 %v1918
  %2140 = vmatpush.msra.mxu0 %v1917
  %2141 = vmatpush.msra.mxu0 %v1916
  %2142 = vmatpush.msra.mxu0 %v1915
  %2143 = vmatpush.msra.mxu0 %v1914
  %2144 = vmatmul.f32.gmra.mxu0 %v2108
  %v2145 = vpop.f32.mrf.mxu0
  %v2146 = vadd.f32 %v2090, %v2145
  %2147 = vmatmul.f32.gmra.mxu0 %v2111
  %v2148 = vpop.f32.mrf.mxu0
  %v2149 = vadd.f32 %v2093, %v2148
  %2150 = vmatmul.f32.gmra.mxu0 %v2114
  %v2151 = vpop.f32.mrf.mxu0
  %v2152 = vadd.f32 %v2096, %v2151
  %2153 = vmatmul.f32.gmra.mxu0 %v2117
  %v2154 = vpop.f32.mrf.mxu0
  %v2155 = vadd.f32 %v2099, %v2154
  %2156 = vmatmul.f32.gmra.mxu0 %v2120
  %v2157 = vpop.f32.mrf.mxu0
  %v2158 = vadd.f32 %v2102, %v2157
  %2159 = vmatmul.f32.gmra.mxu0 %v2123
  %v2160 = vpop.f32.mrf.mxu0
  %v2161 = vadd.f32 %v2105, %v2160
  %2162 = vdwg.mxu0
  %v2163 = vmul.f32 %v1646, %v709
  %v2164 = vmul.f32 %v1649, %v709
  %v2165 = vmul.f32 %v1652, %v709
  %v2166 = vmul.f32 %v1655, %v709
  %v2167 = vmul.f32 %v1658, %v709
  %v2168 = vmul.f32 %v1661, %v709
  %v2170 = vsel %vm150, %v2163, 0
  %v2173 = vsel %vm150, %v2164, 0
  %v2176 = vsel %vm150, %v2165, 0
  %v2179 = vsel %vm150, %v2166, 0
  %v2182 = vsel %vm150, %v2167, 0
  %v2185 = vsel %vm150, %v2168, 0
  %2187 = vmatpush.xpose.msra.mxu0 0.0
  %2188 = vmatpush.xpose.msra.mxu0 0.0
  %2189 = vmatpush.xpose.msra.mxu0 0.0
  %2190 = vmatpush.xpose.msra.mxu0 0.0
  %2191 = vmatpush.xpose.msra.mxu0 0.0
  %2192 = vmatpush.xpose.msra.mxu0 0.0
  %2193 = vmatpush.xpose.msra.mxu0 0.0
  %2194 = vmatpush.xpose.msra.mxu0 0.0
  %2195 = vmatpush.xpose.msra.mxu0 0.0
  %2196 = vmatpush.xpose.msra.mxu0 0.0
  %2197 = vmatpush.xpose.msra.mxu0 %v1811
  %2198 = vmatpush.xpose.msra.mxu0 %v1808
  %2199 = vmatpush.xpose.msra.mxu0 %v1805
  %2200 = vmatpush.xpose.msra.mxu0 %v1802
  %2201 = vmatpush.xpose.msra.mxu0 %v1799
  %2202 = vmatpush.xpose.msra.mxu0 %v1796
  %2203 = vmatmul.f32.gmra.mxu0 %v2170
  %v2204 = vpop.f32.mrf.mxu0
  %v2205 = vadd.f32 %v110, %v2204
  %2206 = vmatmul.f32.gmra.mxu0 %v2173
  %v2207 = vpop.f32.mrf.mxu0
  %v2208 = vadd.f32 %v111, %v2207
  %2209 = vmatmul.f32.gmra.mxu0 %v2176
  %v2210 = vpop.f32.mrf.mxu0
  %v2211 = vadd.f32 %v112, %v2210
  %2212 = vmatmul.f32.gmra.mxu0 %v2179
  %v2213 = vpop.f32.mrf.mxu0
  %v2214 = vadd.f32 %v113, %v2213
  %2215 = vmatmul.f32.gmra.mxu0 %v2182
  %v2216 = vpop.f32.mrf.mxu0
  %v2217 = vadd.f32 %v114, %v2216
  %2218 = vmatmul.f32.gmra.mxu0 %v2185
  %v2219 = vpop.f32.mrf.mxu0
  %v2220 = vadd.f32 %v115, %v2219
  %2221 = vdwg.mxu0
  %v2222 = vsel %vm390, %v2205, -inf
  %2223 = vmax.xlane.f32.xlu0 %v2222
  %v2224 = vpop.xlane.xlu0 %2223
  %v2225 = vsel %vm390, %v2208, -inf
  %2226 = vmax.xlane.f32.xlu0 %v2225
  %v2227 = vpop.xlane.xlu0 %2226
  %v2228 = vsel %vm390, %v2211, -inf
  %2229 = vmax.xlane.f32.xlu0 %v2228
  %v2230 = vpop.xlane.xlu0 %2229
  %v2231 = vsel %vm390, %v2214, -inf
  %2232 = vmax.xlane.f32.xlu0 %v2231
  %v2233 = vpop.xlane.xlu0 %2232
  %v2234 = vsel %vm390, %v2217, -inf
  %2235 = vmax.xlane.f32.xlu0 %v2234
  %v2236 = vpop.xlane.xlu0 %2235
  %v2237 = vsel %vm406, %v2220, -inf
  %2238 = vmax.xlane.f32.xlu0 %v2237
  %v2239 = vpop.xlane.xlu0 %2238
  %v2240 = vsub.f32 %v2205, %v2224
  %v2241 = vsub.f32 %v2208, %v2227
  %v2242 = vsub.f32 %v2211, %v2230
  %v2243 = vsub.f32 %v2214, %v2233
  %v2244 = vsub.f32 %v2217, %v2236
  %v2245 = vsub.f32 %v2220, %v2239
  %v2246 = vmul.f32 %v2240, 1.442695
  %v2247 = vpow.pop %v2246
  %v2248 = vmul.f32 %v2241, 1.442695
  %v2249 = vpow.pop %v2248
  %v2250 = vmul.f32 %v2242, 1.442695
  %v2251 = vpow.pop %v2250
  %v2252 = vmul.f32 %v2243, 1.442695
  %v2253 = vpow.pop %v2252
  %v2254 = vmul.f32 %v2244, 1.442695
  %v2255 = vpow.pop %v2254
  %v2256 = vmul.f32 %v2245, 1.442695
  %v2257 = vpow.pop %v2256
  %v2258 = vsel %vm390, %v2247, 0.0
  %2259 = vadd.xlane.f32.xlu0 %v2258
  %v2260 = vpop.xlane.xlu0 %2259
  %v2261 = vsel %vm390, %v2249, 0.0
  %2262 = vadd.xlane.f32.xlu0 %v2261
  %v2263 = vpop.xlane.xlu0 %2262
  %v2264 = vsel %vm390, %v2251, 0.0
  %2265 = vadd.xlane.f32.xlu0 %v2264
  %v2266 = vpop.xlane.xlu0 %2265
  %v2267 = vsel %vm390, %v2253, 0.0
  %2268 = vadd.xlane.f32.xlu0 %v2267
  %v2269 = vpop.xlane.xlu0 %2268
  %v2270 = vsel %vm390, %v2255, 0.0
  %2271 = vadd.xlane.f32.xlu0 %v2270
  %v2272 = vpop.xlane.xlu0 %2271
  %v2273 = vsel %vm406, %v2257, 0.0
  %2274 = vadd.xlane.f32.xlu0 %v2273
  %v2275 = vpop.xlane.xlu0 %2274
  %v2276 = vrcp.pop %v2260
  %v2277 = vrcp.pop %v2263
  %v2278 = vrcp.pop %v2266
  %v2279 = vrcp.pop %v2269
  %v2280 = vrcp.pop %v2272
  %v2281 = vrcp.pop %v2275
  %v2282 = vmul.f32 %v2247, %v2276
  %v2283 = vmul.f32 %v2249, %v2277
  %v2284 = vmul.f32 %v2251, %v2278
  %v2285 = vmul.f32 %v2253, %v2279
  %v2286 = vmul.f32 %v2255, %v2280
  %v2287 = vmul.f32 %v2257, %v2281
  %v2288 = vmul.f32 %v1748, %v132
  %v2289 = vmul.f32 %v1751, %v132
  %v2290 = vmul.f32 %v1754, %v132
  %v2291 = vmul.f32 %v1757, %v132
  %v2292 = vmul.f32 %v1760, %v132
  %v2293 = vmul.f32 %v1763, %v132
  %v2295 = vsel %vm390, %v2282, 0
  %v2298 = vsel %vm390, %v2283, 0
  %v2301 = vsel %vm390, %v2284, 0
  %v2304 = vsel %vm390, %v2285, 0
  %v2307 = vsel %vm390, %v2286, 0
  %v2310 = vsel %vm390, %v2287, 0
  %v2313 = vsel %vm614, %v2293, 0
  %2315 = vmatpush.msra.mxu0 0.0
  %2316 = vmatpush.msra.mxu0 0.0
  %2317 = vmatpush.msra.mxu0 0.0
  %2318 = vmatpush.msra.mxu0 0.0
  %2319 = vmatpush.msra.mxu0 0.0
  %2320 = vmatpush.msra.mxu0 0.0
  %2321 = vmatpush.msra.mxu0 0.0
  %2322 = vmatpush.msra.mxu0 0.0
  %2323 = vmatpush.msra.mxu0 0.0
  %2324 = vmatpush.msra.mxu0 0.0
  %2325 = vmatpush.msra.mxu0 %v2313
  %2326 = vmatpush.msra.mxu0 %v2292
  %2327 = vmatpush.msra.mxu0 %v2291
  %2328 = vmatpush.msra.mxu0 %v2290
  %2329 = vmatpush.msra.mxu0 %v2289
  %2330 = vmatpush.msra.mxu0 %v2288
  %2331 = vmatmul.f32.gmra.mxu0 %v2295
  %v2332 = vpop.f32.mrf.mxu0
  %v2333 = vadd.f32 0.0, %v2332
  %2334 = vmatmul.f32.gmra.mxu0 %v2298
  %v2335 = vpop.f32.mrf.mxu0
  %v2336 = vadd.f32 0.0, %v2335
  %2337 = vmatmul.f32.gmra.mxu0 %v2301
  %v2338 = vpop.f32.mrf.mxu0
  %v2339 = vadd.f32 0.0, %v2338
  %2340 = vmatmul.f32.gmra.mxu0 %v2304
  %v2341 = vpop.f32.mrf.mxu0
  %v2342 = vadd.f32 0.0, %v2341
  %2343 = vmatmul.f32.gmra.mxu0 %v2307
  %v2344 = vpop.f32.mrf.mxu0
  %v2345 = vadd.f32 0.0, %v2344
  %2346 = vmatmul.f32.gmra.mxu0 %v2310
  %v2347 = vpop.f32.mrf.mxu0
  %v2348 = vadd.f32 0.0, %v2347
  %2349 = vdwg.mxu0
  %v2350 = vadd.f32 %v2146, %v2333
  %v2351 = vadd.f32 %v2149, %v2336
  %v2352 = vadd.f32 %v2152, %v2339
  %v2353 = vadd.f32 %v2155, %v2342
  %v2354 = vadd.f32 %v2158, %v2345
  %v2355 = vadd.f32 %v2161, %v2348
  %v2356 = vmul.f32 %v1646, %v903
  %v2357 = vmul.f32 %v1649, %v903
  %v2358 = vmul.f32 %v1652, %v903
  %v2359 = vmul.f32 %v1655, %v903
  %v2360 = vmul.f32 %v1658, %v903
  %v2361 = vmul.f32 %v1661, %v903
  %v2363 = vsel %vm150, %v2356, 0
  %v2366 = vsel %vm150, %v2357, 0
  %v2369 = vsel %vm150, %v2358, 0
  %v2372 = vsel %vm150, %v2359, 0
  %v2375 = vsel %vm150, %v2360, 0
  %v2378 = vsel %vm150, %v2361, 0
  %2380 = vmatpush.xpose.msra.mxu0 0.0
  %2381 = vmatpush.xpose.msra.mxu0 0.0
  %2382 = vmatpush.xpose.msra.mxu0 0.0
  %2383 = vmatpush.xpose.msra.mxu0 0.0
  %2384 = vmatpush.xpose.msra.mxu0 0.0
  %2385 = vmatpush.xpose.msra.mxu0 0.0
  %2386 = vmatpush.xpose.msra.mxu0 0.0
  %2387 = vmatpush.xpose.msra.mxu0 0.0
  %2388 = vmatpush.xpose.msra.mxu0 0.0
  %2389 = vmatpush.xpose.msra.mxu0 0.0
  %2390 = vmatpush.xpose.msra.mxu0 %v1811
  %2391 = vmatpush.xpose.msra.mxu0 %v1808
  %2392 = vmatpush.xpose.msra.mxu0 %v1805
  %2393 = vmatpush.xpose.msra.mxu0 %v1802
  %2394 = vmatpush.xpose.msra.mxu0 %v1799
  %2395 = vmatpush.xpose.msra.mxu0 %v1796
  %2396 = vmatmul.f32.gmra.mxu0 %v2363
  %v2397 = vpop.f32.mrf.mxu0
  %v2398 = vadd.f32 %v110, %v2397
  %2399 = vmatmul.f32.gmra.mxu0 %v2366
  %v2400 = vpop.f32.mrf.mxu0
  %v2401 = vadd.f32 %v111, %v2400
  %2402 = vmatmul.f32.gmra.mxu0 %v2369
  %v2403 = vpop.f32.mrf.mxu0
  %v2404 = vadd.f32 %v112, %v2403
  %2405 = vmatmul.f32.gmra.mxu0 %v2372
  %v2406 = vpop.f32.mrf.mxu0
  %v2407 = vadd.f32 %v113, %v2406
  %2408 = vmatmul.f32.gmra.mxu0 %v2375
  %v2409 = vpop.f32.mrf.mxu0
  %v2410 = vadd.f32 %v114, %v2409
  %2411 = vmatmul.f32.gmra.mxu0 %v2378
  %v2412 = vpop.f32.mrf.mxu0
  %v2413 = vadd.f32 %v115, %v2412
  %2414 = vdwg.mxu0
  %v2415 = vsel %vm390, %v2398, -inf
  %2416 = vmax.xlane.f32.xlu0 %v2415
  %v2417 = vpop.xlane.xlu0 %2416
  %v2418 = vsel %vm390, %v2401, -inf
  %2419 = vmax.xlane.f32.xlu0 %v2418
  %v2420 = vpop.xlane.xlu0 %2419
  %v2421 = vsel %vm390, %v2404, -inf
  %2422 = vmax.xlane.f32.xlu0 %v2421
  %v2423 = vpop.xlane.xlu0 %2422
  %v2424 = vsel %vm390, %v2407, -inf
  %2425 = vmax.xlane.f32.xlu0 %v2424
  %v2426 = vpop.xlane.xlu0 %2425
  %v2427 = vsel %vm390, %v2410, -inf
  %2428 = vmax.xlane.f32.xlu0 %v2427
  %v2429 = vpop.xlane.xlu0 %2428
  %v2430 = vsel %vm406, %v2413, -inf
  %2431 = vmax.xlane.f32.xlu0 %v2430
  %v2432 = vpop.xlane.xlu0 %2431
  %v2433 = vsub.f32 %v2398, %v2417
  %v2434 = vsub.f32 %v2401, %v2420
  %v2435 = vsub.f32 %v2404, %v2423
  %v2436 = vsub.f32 %v2407, %v2426
  %v2437 = vsub.f32 %v2410, %v2429
  %v2438 = vsub.f32 %v2413, %v2432
  %v2439 = vmul.f32 %v2433, 1.442695
  %v2440 = vpow.pop %v2439
  %v2441 = vmul.f32 %v2434, 1.442695
  %v2442 = vpow.pop %v2441
  %v2443 = vmul.f32 %v2435, 1.442695
  %v2444 = vpow.pop %v2443
  %v2445 = vmul.f32 %v2436, 1.442695
  %v2446 = vpow.pop %v2445
  %v2447 = vmul.f32 %v2437, 1.442695
  %v2448 = vpow.pop %v2447
  %v2449 = vmul.f32 %v2438, 1.442695
  %v2450 = vpow.pop %v2449
  %v2451 = vsel %vm390, %v2440, 0.0
  %2452 = vadd.xlane.f32.xlu0 %v2451
  %v2453 = vpop.xlane.xlu0 %2452
  %v2454 = vsel %vm390, %v2442, 0.0
  %2455 = vadd.xlane.f32.xlu0 %v2454
  %v2456 = vpop.xlane.xlu0 %2455
  %v2457 = vsel %vm390, %v2444, 0.0
  %2458 = vadd.xlane.f32.xlu0 %v2457
  %v2459 = vpop.xlane.xlu0 %2458
  %v2460 = vsel %vm390, %v2446, 0.0
  %2461 = vadd.xlane.f32.xlu0 %v2460
  %v2462 = vpop.xlane.xlu0 %2461
  %v2463 = vsel %vm390, %v2448, 0.0
  %2464 = vadd.xlane.f32.xlu0 %v2463
  %v2465 = vpop.xlane.xlu0 %2464
  %v2466 = vsel %vm406, %v2450, 0.0
  %2467 = vadd.xlane.f32.xlu0 %v2466
  %v2468 = vpop.xlane.xlu0 %2467
  %v2469 = vrcp.pop %v2453
  %v2470 = vrcp.pop %v2456
  %v2471 = vrcp.pop %v2459
  %v2472 = vrcp.pop %v2462
  %v2473 = vrcp.pop %v2465
  %v2474 = vrcp.pop %v2468
  %v2475 = vmul.f32 %v2440, %v2469
  %v2476 = vmul.f32 %v2442, %v2470
  %v2477 = vmul.f32 %v2444, %v2471
  %v2478 = vmul.f32 %v2446, %v2472
  %v2479 = vmul.f32 %v2448, %v2473
  %v2480 = vmul.f32 %v2450, %v2474
  %v2481 = vmul.f32 %v1748, %v137
  %v2482 = vmul.f32 %v1751, %v137
  %v2483 = vmul.f32 %v1754, %v137
  %v2484 = vmul.f32 %v1757, %v137
  %v2485 = vmul.f32 %v1760, %v137
  %v2486 = vmul.f32 %v1763, %v137
  %v2488 = vsel %vm390, %v2475, 0
  %v2491 = vsel %vm390, %v2476, 0
  %v2494 = vsel %vm390, %v2477, 0
  %v2497 = vsel %vm390, %v2478, 0
  %v2500 = vsel %vm390, %v2479, 0
  %v2503 = vsel %vm390, %v2480, 0
  %v2506 = vsel %vm614, %v2486, 0
  %2508 = vmatpush.msra.mxu0 0.0
  %2509 = vmatpush.msra.mxu0 0.0
  %2510 = vmatpush.msra.mxu0 0.0
  %2511 = vmatpush.msra.mxu0 0.0
  %2512 = vmatpush.msra.mxu0 0.0
  %2513 = vmatpush.msra.mxu0 0.0
  %2514 = vmatpush.msra.mxu0 0.0
  %2515 = vmatpush.msra.mxu0 0.0
  %2516 = vmatpush.msra.mxu0 0.0
  %2517 = vmatpush.msra.mxu0 0.0
  %2518 = vmatpush.msra.mxu0 %v2506
  %2519 = vmatpush.msra.mxu0 %v2485
  %2520 = vmatpush.msra.mxu0 %v2484
  %2521 = vmatpush.msra.mxu0 %v2483
  %2522 = vmatpush.msra.mxu0 %v2482
  %2523 = vmatpush.msra.mxu0 %v2481
  %2524 = vmatmul.f32.gmra.mxu0 %v2488
  %v2525 = vpop.f32.mrf.mxu0
  %v2526 = vadd.f32 0.0, %v2525
  %2527 = vmatmul.f32.gmra.mxu0 %v2491
  %v2528 = vpop.f32.mrf.mxu0
  %v2529 = vadd.f32 0.0, %v2528
  %2530 = vmatmul.f32.gmra.mxu0 %v2494
  %v2531 = vpop.f32.mrf.mxu0
  %v2532 = vadd.f32 0.0, %v2531
  %2533 = vmatmul.f32.gmra.mxu0 %v2497
  %v2534 = vpop.f32.mrf.mxu0
  %v2535 = vadd.f32 0.0, %v2534
  %2536 = vmatmul.f32.gmra.mxu0 %v2500
  %v2537 = vpop.f32.mrf.mxu0
  %v2538 = vadd.f32 0.0, %v2537
  %2539 = vmatmul.f32.gmra.mxu0 %v2503
  %v2540 = vpop.f32.mrf.mxu0
  %v2541 = vadd.f32 0.0, %v2540
  %2542 = vdwg.mxu0
  %v2543 = vadd.f32 %v2350, %v2526
  %v2544 = vadd.f32 %v2351, %v2529
  %v2545 = vadd.f32 %v2352, %v2532
  %v2546 = vadd.f32 %v2353, %v2535
  %v2547 = vadd.f32 %v2354, %v2538
  %v2548 = vadd.f32 %v2355, %v2541
  %v2549 = vperm.slane %v1770, 0
  %v2551 = vsel %vm150, %v2543, 0
  %v2554 = vsel %vm150, %v2544, 0
  %v2557 = vsel %vm150, %v2545, 0
  %v2560 = vsel %vm150, %v2546, 0
  %v2563 = vsel %vm150, %v2547, 0
  %v2566 = vsel %vm150, %v2548, 0
  %2568 = vmatpush.msra.mxu0 0.0
  %2569 = vmatpush.msra.mxu0 0.0
  %2570 = vmatpush.msra.mxu0 0.0
  %2571 = vmatpush.msra.mxu0 0.0
  %2572 = vmatpush.msra.mxu0 0.0
  %2573 = vmatpush.msra.mxu0 0.0
  %2574 = vmatpush.msra.mxu0 0.0
  %2575 = vmatpush.msra.mxu0 0.0
  %2576 = vmatpush.msra.mxu0 0.0
  %2577 = vmatpush.msra.mxu0 0.0
  %2578 = vmatpush.msra.mxu0 0.0
  %2579 = vmatpush.msra.mxu0 0.0
  %2580 = vmatpush.msra.mxu0 %v1769
  %2581 = vmatpush.msra.mxu0 %v1768
  %2582 = vmatpush.msra.mxu0 %v1767
  %2583 = vmatpush.msra.mxu0 %v1766
  %2584 = vmatmul.f32.gmra.mxu0 %v2551
  %v2585 = vpop.f32.mrf.mxu0
  %v2586 = vadd.f32 %v2549, %v2585
  %2587 = vmatmul.f32.gmra.mxu0 %v2554
  %v2588 = vpop.f32.mrf.mxu0
  %v2589 = vadd.f32 %v2549, %v2588
  %2590 = vmatmul.f32.gmra.mxu0 %v2557
  %v2591 = vpop.f32.mrf.mxu0
  %v2592 = vadd.f32 %v2549, %v2591
  %2593 = vmatmul.f32.gmra.mxu0 %v2560
  %v2594 = vpop.f32.mrf.mxu0
  %v2595 = vadd.f32 %v2549, %v2594
  %2596 = vmatmul.f32.gmra.mxu0 %v2563
  %v2597 = vpop.f32.mrf.mxu0
  %v2598 = vadd.f32 %v2549, %v2597
  %2599 = vmatmul.f32.gmra.mxu0 %v2566
  %v2600 = vpop.f32.mrf.mxu0
  %v2601 = vadd.f32 %v2549, %v2600
  %2602 = vdwg.mxu0
  %v2603 = vadd.f32 %v1590, %v2586
  %v2604 = vadd.f32 %v1591, %v2589
  %v2605 = vadd.f32 %v1592, %v2592
  %v2606 = vadd.f32 %v1593, %v2595
  %v2607 = vadd.f32 %v1594, %v2598
  %v2608 = vadd.f32 %v1595, %v2601
  %v2609 = vld [vmem:[%s1607 + $0x4] sm:$0x1]
  %v2610 = vld [vmem:[%s1607 + $0x5] sm:$0x1]
  %v2611 = vsel %vm150, %v2603, 0.0
  %2612 = vadd.xlane.f32.xlu0 %v2611
  %v2613 = vpop.xlane.xlu0 %2612
  %v2614 = vsel %vm150, %v2604, 0.0
  %2615 = vadd.xlane.f32.xlu0 %v2614
  %v2616 = vpop.xlane.xlu0 %2615
  %v2617 = vsel %vm150, %v2605, 0.0
  %2618 = vadd.xlane.f32.xlu0 %v2617
  %v2619 = vpop.xlane.xlu0 %2618
  %v2620 = vsel %vm150, %v2606, 0.0
  %2621 = vadd.xlane.f32.xlu0 %v2620
  %v2622 = vpop.xlane.xlu0 %2621
  %v2623 = vsel %vm150, %v2607, 0.0
  %2624 = vadd.xlane.f32.xlu0 %v2623
  %v2625 = vpop.xlane.xlu0 %2624
  %v2626 = vsel %vm1174, %v2608, 0.0
  %2627 = vadd.xlane.f32.xlu0 %v2626
  %v2628 = vpop.xlane.xlu0 %2627
  %v2629 = vmul.f32 %v2613, %v1184
  %v2630 = vmul.f32 %v2616, %v1184
  %v2631 = vmul.f32 %v2619, %v1184
  %v2632 = vmul.f32 %v2622, %v1184
  %v2633 = vmul.f32 %v2625, %v1184
  %v2634 = vmul.f32 %v2628, %v1184
  %v2635 = vsub.f32 %v2603, %v2629
  %v2636 = vsub.f32 %v2604, %v2630
  %v2637 = vsub.f32 %v2605, %v2631
  %v2638 = vsub.f32 %v2606, %v2632
  %v2639 = vsub.f32 %v2607, %v2633
  %v2640 = vsub.f32 %v2608, %v2634
  %v2641 = vmul.f32 %v2635, %v2635
  %v2642 = vmul.f32 %v2636, %v2636
  %v2643 = vmul.f32 %v2637, %v2637
  %v2644 = vmul.f32 %v2638, %v2638
  %v2645 = vmul.f32 %v2639, %v2639
  %v2646 = vmul.f32 %v2640, %v2640
  %v2647 = vsel %vm150, %v2641, 0.0
  %2648 = vadd.xlane.f32.xlu0 %v2647
  %v2649 = vpop.xlane.xlu0 %2648
  %v2650 = vsel %vm150, %v2642, 0.0
  %2651 = vadd.xlane.f32.xlu0 %v2650
  %v2652 = vpop.xlane.xlu0 %2651
  %v2653 = vsel %vm150, %v2643, 0.0
  %2654 = vadd.xlane.f32.xlu0 %v2653
  %v2655 = vpop.xlane.xlu0 %2654
  %v2656 = vsel %vm150, %v2644, 0.0
  %2657 = vadd.xlane.f32.xlu0 %v2656
  %v2658 = vpop.xlane.xlu0 %2657
  %v2659 = vsel %vm150, %v2645, 0.0
  %2660 = vadd.xlane.f32.xlu0 %v2659
  %v2661 = vpop.xlane.xlu0 %2660
  %v2662 = vsel %vm1174, %v2646, 0.0
  %2663 = vadd.xlane.f32.xlu0 %v2662
  %v2664 = vpop.xlane.xlu0 %2663
  %v2665 = vmul.f32 %v2649, %v1184
  %v2666 = vmul.f32 %v2652, %v1184
  %v2667 = vmul.f32 %v2655, %v1184
  %v2668 = vmul.f32 %v2658, %v1184
  %v2669 = vmul.f32 %v2661, %v1184
  %v2670 = vmul.f32 %v2664, %v1184
  %v2671 = vadd.f32 %v2665, 1e-05
  %v2672 = vadd.f32 %v2666, 1e-05
  %v2673 = vadd.f32 %v2667, 1e-05
  %v2674 = vadd.f32 %v2668, 1e-05
  %v2675 = vadd.f32 %v2669, 1e-05
  %v2676 = vadd.f32 %v2670, 1e-05
  %v2677 = vrsqrt.pop %v2671
  %v2678 = vmul.f32 %v2677, %v2671
  %v2679 = vmul.f32 %v2678, %v2677
  %v2680 = vmul.f32 0.5, %v2679
  %v2681 = vsub.f32 1.5, %v2680
  %v2682 = vmul.f32 %v2677, %v2681
  %vm2683 = vweird.f32 %v2671
  %vm2684 = vweird.f32 %v2677
  %vm2685 = vmor %vm2683, %vm2684
  %v2686 = vsel %vm2685, %v2677, %v2682
  %v2687 = vrsqrt.pop %v2672
  %v2688 = vmul.f32 %v2687, %v2672
  %v2689 = vmul.f32 %v2688, %v2687
  %v2690 = vmul.f32 0.5, %v2689
  %v2691 = vsub.f32 1.5, %v2690
  %v2692 = vmul.f32 %v2687, %v2691
  %vm2693 = vweird.f32 %v2672
  %vm2694 = vweird.f32 %v2687
  %vm2695 = vmor %vm2693, %vm2694
  %v2696 = vsel %vm2695, %v2687, %v2692
  %v2697 = vrsqrt.pop %v2673
  %v2698 = vmul.f32 %v2697, %v2673
  %v2699 = vmul.f32 %v2698, %v2697
  %v2700 = vmul.f32 0.5, %v2699
  %v2701 = vsub.f32 1.5, %v2700
  %v2702 = vmul.f32 %v2697, %v2701
  %vm2703 = vweird.f32 %v2673
  %vm2704 = vweird.f32 %v2697
  %vm2705 = vmor %vm2703, %vm2704
  %v2706 = vsel %vm2705, %v2697, %v2702
  %v2707 = vrsqrt.pop %v2674
  %v2708 = vmul.f32 %v2707, %v2674
  %v2709 = vmul.f32 %v2708, %v2707
  %v2710 = vmul.f32 0.5, %v2709
  %v2711 = vsub.f32 1.5, %v2710
  %v2712 = vmul.f32 %v2707, %v2711
  %vm2713 = vweird.f32 %v2674
  %vm2714 = vweird.f32 %v2707
  %vm2715 = vmor %vm2713, %vm2714
  %v2716 = vsel %vm2715, %v2707, %v2712
  %v2717 = vrsqrt.pop %v2675
  %v2718 = vmul.f32 %v2717, %v2675
  %v2719 = vmul.f32 %v2718, %v2717
  %v2720 = vmul.f32 0.5, %v2719
  %v2721 = vsub.f32 1.5, %v2720
  %v2722 = vmul.f32 %v2717, %v2721
  %vm2723 = vweird.f32 %v2675
  %vm2724 = vweird.f32 %v2717
  %vm2725 = vmor %vm2723, %vm2724
  %v2726 = vsel %vm2725, %v2717, %v2722
  %v2727 = vrsqrt.pop %v2676
  %v2728 = vmul.f32 %v2727, %v2676
  %v2729 = vmul.f32 %v2728, %v2727
  %v2730 = vmul.f32 0.5, %v2729
  %v2731 = vsub.f32 1.5, %v2730
  %v2732 = vmul.f32 %v2727, %v2731
  %vm2733 = vweird.f32 %v2676
  %vm2734 = vweird.f32 %v2727
  %vm2735 = vmor %vm2733, %vm2734
  %v2736 = vsel %vm2735, %v2727, %v2732
  %v2737 = vmul.f32 %v2635, %v2686
  %v2738 = vmul.f32 %v2636, %v2696
  %v2739 = vmul.f32 %v2637, %v2706
  %v2740 = vmul.f32 %v2638, %v2716
  %v2741 = vmul.f32 %v2639, %v2726
  %v2742 = vmul.f32 %v2640, %v2736
  %v2743 = vperm.slane %v2609, 0
  %v2744 = vmul.f32 %v2737, %v2743
  %v2745 = vmul.f32 %v2738, %v2743
  %v2746 = vmul.f32 %v2739, %v2743
  %v2747 = vmul.f32 %v2740, %v2743
  %v2748 = vmul.f32 %v2741, %v2743
  %v2749 = vmul.f32 %v2742, %v2743
  %v2750 = vperm.slane %v2610, 0
  %v2751 = vadd.f32 %v2744, %v2750
  %v2752 = vadd.f32 %v2745, %v2750
  %v2753 = vadd.f32 %v2746, %v2750
  %v2754 = vadd.f32 %v2747, %v2750
  %v2755 = vadd.f32 %v2748, %v2750
  %v2756 = vadd.f32 %v2749, %v2750
  %s2757 = scalar_lea.vmem %s7, 32
  %v2758 = vld [vmem:[%s2757] sm:$0xff]
  %v2759 = vld [vmem:[%s2757 + $0x8] sm:$0xff]
  %v2760 = vld [vmem:[%s2757 + $0x10] sm:$0xff]
  %v2761 = vld [vmem:[%s2757 + $0x18] sm:$0xff]
  %v2762 = vld [vmem:[%s1607 + $0x6] sm:$0x1]
  %v2763 = vperm.slane %v2762, 0
  %v2765 = vsel %vm150, %v2751, 0
  %v2768 = vsel %vm150, %v2752, 0
  %v2771 = vsel %vm150, %v2753, 0
  %v2774 = vsel %vm150, %v2754, 0
  %v2777 = vsel %vm150, %v2755, 0
  %v2780 = vsel %vm150, %v2756, 0
  %2782 = vmatpush.msra.mxu0 0.0
  %2783 = vmatpush.msra.mxu0 0.0
  %2784 = vmatpush.msra.mxu0 0.0
  %2785 = vmatpush.msra.mxu0 0.0
  %2786 = vmatpush.msra.mxu0 0.0
  %2787 = vmatpush.msra.mxu0 0.0
  %2788 = vmatpush.msra.mxu0 0.0
  %2789 = vmatpush.msra.mxu0 0.0
  %2790 = vmatpush.msra.mxu0 0.0
  %2791 = vmatpush.msra.mxu0 0.0
  %2792 = vmatpush.msra.mxu0 0.0
  %2793 = vmatpush.msra.mxu0 0.0
  %2794 = vmatpush.msra.mxu0 %v2761
  %2795 = vmatpush.msra.mxu0 %v2760
  %2796 = vmatpush.msra.mxu0 %v2759
  %2797 = vmatpush.msra.mxu0 %v2758
  %2798 = vmatmul.f32.gmra.mxu0 %v2765
  %v2799 = vpop.f32.mrf.mxu0
  %v2800 = vadd.f32 %v2763, %v2799
  %2801 = vmatmul.f32.gmra.mxu0 %v2768
  %v2802 = vpop.f32.mrf.mxu0
  %v2803 = vadd.f32 %v2763, %v2802
  %2804 = vmatmul.f32.gmra.mxu0 %v2771
  %v2805 = vpop.f32.mrf.mxu0
  %v2806 = vadd.f32 %v2763, %v2805
  %2807 = vmatmul.f32.gmra.mxu0 %v2774
  %v2808 = vpop.f32.mrf.mxu0
  %v2809 = vadd.f32 %v2763, %v2808
  %2810 = vmatmul.f32.gmra.mxu0 %v2777
  %v2811 = vpop.f32.mrf.mxu0
  %v2812 = vadd.f32 %v2763, %v2811
  %2813 = vmatmul.f32.gmra.mxu0 %v2780
  %v2814 = vpop.f32.mrf.mxu0
  %v2815 = vadd.f32 %v2763, %v2814
  %2816 = vdwg.mxu0
  %v2817 = vmax.f32 %v2800, 0.0
  %v2818 = vmax.f32 %v2803, 0.0
  %v2819 = vmax.f32 %v2806, 0.0
  %v2820 = vmax.f32 %v2809, 0.0
  %v2821 = vmax.f32 %v2812, 0.0
  %v2822 = vmax.f32 %v2815, 0.0
  %s2823 = scalar_lea.vmem %s8, 64
  %v2824 = vld [vmem:[%s2823] sm:$0xff]
  %v2825 = vld [vmem:[%s2823 + $0x8] sm:$0xff]
  %v2826 = vld [vmem:[%s2823 + $0x10] sm:$0xff]
  %v2827 = vld [vmem:[%s2823 + $0x18] sm:$0xff]
  %v2828 = vld [vmem:[%s2823 + $0x20] sm:$0xff]
  %v2829 = vld [vmem:[%s2823 + $0x28] sm:$0xff]
  %v2830 = vld [vmem:[%s2823 + $0x30] sm:$0xff]
  %v2831 = vld [vmem:[%s2823 + $0x38] sm:$0xff]
  %v2832 = vld [vmem:[%s1607 + $0x7] sm:$0x1]
  %v2833 = vperm.slane %v2832, 0
  %v2835 = vsel %vm1388, %v2817, 0
  %v2838 = vsel %vm1388, %v2818, 0
  %v2841 = vsel %vm1388, %v2819, 0
  %v2844 = vsel %vm1388, %v2820, 0
  %v2847 = vsel %vm1388, %v2821, 0
  %v2850 = vsel %vm1388, %v2822, 0
  %2852 = vmatpush.msra.mxu0 0.0
  %2853 = vmatpush.msra.mxu0 0.0
  %2854 = vmatpush.msra.mxu0 0.0
  %2855 = vmatpush.msra.mxu0 0.0
  %2856 = vmatpush.msra.mxu0 0.0
  %2857 = vmatpush.msra.mxu0 0.0
  %2858 = vmatpush.msra.mxu0 0.0
  %2859 = vmatpush.msra.mxu0 0.0
  %2860 = vmatpush.msra.mxu0 %v2831
  %2861 = vmatpush.msra.mxu0 %v2830
  %2862 = vmatpush.msra.mxu0 %v2829
  %2863 = vmatpush.msra.mxu0 %v2828
  %2864 = vmatpush.msra.mxu0 %v2827
  %2865 = vmatpush.msra.mxu0 %v2826
  %2866 = vmatpush.msra.mxu0 %v2825
  %2867 = vmatpush.msra.mxu0 %v2824
  %2868 = vmatmul.f32.gmra.mxu0 %v2835
  %v2869 = vpop.f32.mrf.mxu0
  %v2870 = vadd.f32 %v2833, %v2869
  %2871 = vmatmul.f32.gmra.mxu0 %v2838
  %v2872 = vpop.f32.mrf.mxu0
  %v2873 = vadd.f32 %v2833, %v2872
  %2874 = vmatmul.f32.gmra.mxu0 %v2841
  %v2875 = vpop.f32.mrf.mxu0
  %v2876 = vadd.f32 %v2833, %v2875
  %2877 = vmatmul.f32.gmra.mxu0 %v2844
  %v2878 = vpop.f32.mrf.mxu0
  %v2879 = vadd.f32 %v2833, %v2878
  %2880 = vmatmul.f32.gmra.mxu0 %v2847
  %v2881 = vpop.f32.mrf.mxu0
  %v2882 = vadd.f32 %v2833, %v2881
  %2883 = vmatmul.f32.gmra.mxu0 %v2850
  %v2884 = vpop.f32.mrf.mxu0
  %v2885 = vadd.f32 %v2833, %v2884
  %2886 = vdwg.mxu0
  %v2887 = vadd.f32 %v2751, %v2870
  %v2888 = vadd.f32 %v2752, %v2873
  %v2889 = vadd.f32 %v2753, %v2876
  %v2890 = vadd.f32 %v2754, %v2879
  %v2891 = vadd.f32 %v2755, %v2882
  %v2892 = vadd.f32 %v2756, %v2885
  %v2893 = vld [vmem:[%s1607 + $0x8] sm:$0x1]
  %v2894 = vld [vmem:[%s1607 + $0x9] sm:$0x1]
  %v2895 = vsel %vm150, %v2887, 0.0
  %2896 = vadd.xlane.f32.xlu0 %v2895
  %v2897 = vpop.xlane.xlu0 %2896
  %v2898 = vsel %vm150, %v2888, 0.0
  %2899 = vadd.xlane.f32.xlu0 %v2898
  %v2900 = vpop.xlane.xlu0 %2899
  %v2901 = vsel %vm150, %v2889, 0.0
  %2902 = vadd.xlane.f32.xlu0 %v2901
  %v2903 = vpop.xlane.xlu0 %2902
  %v2904 = vsel %vm150, %v2890, 0.0
  %2905 = vadd.xlane.f32.xlu0 %v2904
  %v2906 = vpop.xlane.xlu0 %2905
  %v2907 = vsel %vm150, %v2891, 0.0
  %2908 = vadd.xlane.f32.xlu0 %v2907
  %v2909 = vpop.xlane.xlu0 %2908
  %v2910 = vsel %vm1174, %v2892, 0.0
  %2911 = vadd.xlane.f32.xlu0 %v2910
  %v2912 = vpop.xlane.xlu0 %2911
  %v2913 = vmul.f32 %v2897, %v1184
  %v2914 = vmul.f32 %v2900, %v1184
  %v2915 = vmul.f32 %v2903, %v1184
  %v2916 = vmul.f32 %v2906, %v1184
  %v2917 = vmul.f32 %v2909, %v1184
  %v2918 = vmul.f32 %v2912, %v1184
  %v2919 = vsub.f32 %v2887, %v2913
  %v2920 = vsub.f32 %v2888, %v2914
  %v2921 = vsub.f32 %v2889, %v2915
  %v2922 = vsub.f32 %v2890, %v2916
  %v2923 = vsub.f32 %v2891, %v2917
  %v2924 = vsub.f32 %v2892, %v2918
  %v2925 = vmul.f32 %v2919, %v2919
  %v2926 = vmul.f32 %v2920, %v2920
  %v2927 = vmul.f32 %v2921, %v2921
  %v2928 = vmul.f32 %v2922, %v2922
  %v2929 = vmul.f32 %v2923, %v2923
  %v2930 = vmul.f32 %v2924, %v2924
  %v2931 = vsel %vm150, %v2925, 0.0
  %2932 = vadd.xlane.f32.xlu0 %v2931
  %v2933 = vpop.xlane.xlu0 %2932
  %v2934 = vsel %vm150, %v2926, 0.0
  %2935 = vadd.xlane.f32.xlu0 %v2934
  %v2936 = vpop.xlane.xlu0 %2935
  %v2937 = vsel %vm150, %v2927, 0.0
  %2938 = vadd.xlane.f32.xlu0 %v2937
  %v2939 = vpop.xlane.xlu0 %2938
  %v2940 = vsel %vm150, %v2928, 0.0
  %2941 = vadd.xlane.f32.xlu0 %v2940
  %v2942 = vpop.xlane.xlu0 %2941
  %v2943 = vsel %vm150, %v2929, 0.0
  %2944 = vadd.xlane.f32.xlu0 %v2943
  %v2945 = vpop.xlane.xlu0 %2944
  %v2946 = vsel %vm1174, %v2930, 0.0
  %2947 = vadd.xlane.f32.xlu0 %v2946
  %v2948 = vpop.xlane.xlu0 %2947
  %v2949 = vmul.f32 %v2933, %v1184
  %v2950 = vmul.f32 %v2936, %v1184
  %v2951 = vmul.f32 %v2939, %v1184
  %v2952 = vmul.f32 %v2942, %v1184
  %v2953 = vmul.f32 %v2945, %v1184
  %v2954 = vmul.f32 %v2948, %v1184
  %v2955 = vadd.f32 %v2949, 1e-05
  %v2956 = vadd.f32 %v2950, 1e-05
  %v2957 = vadd.f32 %v2951, 1e-05
  %v2958 = vadd.f32 %v2952, 1e-05
  %v2959 = vadd.f32 %v2953, 1e-05
  %v2960 = vadd.f32 %v2954, 1e-05
  %v2961 = vrsqrt.pop %v2955
  %v2962 = vmul.f32 %v2961, %v2955
  %v2963 = vmul.f32 %v2962, %v2961
  %v2964 = vmul.f32 0.5, %v2963
  %v2965 = vsub.f32 1.5, %v2964
  %v2966 = vmul.f32 %v2961, %v2965
  %vm2967 = vweird.f32 %v2955
  %vm2968 = vweird.f32 %v2961
  %vm2969 = vmor %vm2967, %vm2968
  %v2970 = vsel %vm2969, %v2961, %v2966
  %v2971 = vrsqrt.pop %v2956
  %v2972 = vmul.f32 %v2971, %v2956
  %v2973 = vmul.f32 %v2972, %v2971
  %v2974 = vmul.f32 0.5, %v2973
  %v2975 = vsub.f32 1.5, %v2974
  %v2976 = vmul.f32 %v2971, %v2975
  %vm2977 = vweird.f32 %v2956
  %vm2978 = vweird.f32 %v2971
  %vm2979 = vmor %vm2977, %vm2978
  %v2980 = vsel %vm2979, %v2971, %v2976
  %v2981 = vrsqrt.pop %v2957
  %v2982 = vmul.f32 %v2981, %v2957
  %v2983 = vmul.f32 %v2982, %v2981
  %v2984 = vmul.f32 0.5, %v2983
  %v2985 = vsub.f32 1.5, %v2984
  %v2986 = vmul.f32 %v2981, %v2985
  %vm2987 = vweird.f32 %v2957
  %vm2988 = vweird.f32 %v2981
  %vm2989 = vmor %vm2987, %vm2988
  %v2990 = vsel %vm2989, %v2981, %v2986
  %v2991 = vrsqrt.pop %v2958
  %v2992 = vmul.f32 %v2991, %v2958
  %v2993 = vmul.f32 %v2992, %v2991
  %v2994 = vmul.f32 0.5, %v2993
  %v2995 = vsub.f32 1.5, %v2994
  %v2996 = vmul.f32 %v2991, %v2995
  %vm2997 = vweird.f32 %v2958
  %vm2998 = vweird.f32 %v2991
  %vm2999 = vmor %vm2997, %vm2998
  %v3000 = vsel %vm2999, %v2991, %v2996
  %v3001 = vrsqrt.pop %v2959
  %v3002 = vmul.f32 %v3001, %v2959
  %v3003 = vmul.f32 %v3002, %v3001
  %v3004 = vmul.f32 0.5, %v3003
  %v3005 = vsub.f32 1.5, %v3004
  %v3006 = vmul.f32 %v3001, %v3005
  %vm3007 = vweird.f32 %v2959
  %vm3008 = vweird.f32 %v3001
  %vm3009 = vmor %vm3007, %vm3008
  %v3010 = vsel %vm3009, %v3001, %v3006
  %v3011 = vrsqrt.pop %v2960
  %v3012 = vmul.f32 %v3011, %v2960
  %v3013 = vmul.f32 %v3012, %v3011
  %v3014 = vmul.f32 0.5, %v3013
  %v3015 = vsub.f32 1.5, %v3014
  %v3016 = vmul.f32 %v3011, %v3015
  %vm3017 = vweird.f32 %v2960
  %vm3018 = vweird.f32 %v3011
  %vm3019 = vmor %vm3017, %vm3018
  %v3020 = vsel %vm3019, %v3011, %v3016
  %v3021 = vmul.f32 %v2919, %v2970
  %v3022 = vmul.f32 %v2920, %v2980
  %v3023 = vmul.f32 %v2921, %v2990
  %v3024 = vmul.f32 %v2922, %v3000
  %v3025 = vmul.f32 %v2923, %v3010
  %v3026 = vmul.f32 %v2924, %v3020
  %v3027 = vperm.slane %v2893, 0
  %v3028 = vmul.f32 %v3021, %v3027
  %v3029 = vmul.f32 %v3022, %v3027
  %v3030 = vmul.f32 %v3023, %v3027
  %v3031 = vmul.f32 %v3024, %v3027
  %v3032 = vmul.f32 %v3025, %v3027
  %v3033 = vmul.f32 %v3026, %v3027
  %v3034 = vperm.slane %v2894, 0
  %v3035 = vadd.f32 %v3028, %v3034
  %v3036 = vadd.f32 %v3029, %v3034
  %v3037 = vadd.f32 %v3030, %v3034
  %v3038 = vadd.f32 %v3031, %v3034
  %v3039 = vadd.f32 %v3032, %v3034
  %v3040 = vadd.f32 %v3033, %v3034
  %v3041 = vld [vmem:[%s5] sm:$0xff]
  %v3042 = vld [vmem:[%s5 + $0x8] sm:$0xff]
  %v3043 = vld [vmem:[%s5 + $0x10] sm:$0xff]
  %v3044 = vld [vmem:[%s5 + $0x18] sm:$0xff]
  %v3045 = vld [vmem:[%s5 + $0x20] sm:$0xff]
  %v3046 = vld [vmem:[%s5 + $0x28] sm:$0x3]
  %3048 = vset.pattern.permute.xlu0 0
  %3049 = vperm.xlu0 %3048, %v3041
  %v3050 = vpop.permute.xlu0 %3049
  %3053 = vset.pattern.permute.xlu0 0
  %3054 = vperm.xlu0 %3053, %v3042
  %v3055 = vpop.permute.xlu0 %3054
  %3058 = vset.pattern.permute.xlu0 0
  %3059 = vperm.xlu0 %3058, %v3043
  %v3060 = vpop.permute.xlu0 %3059
  %3063 = vset.pattern.permute.xlu0 0
  %3064 = vperm.xlu0 %3063, %v3044
  %v3065 = vpop.permute.xlu0 %3064
  %3068 = vset.pattern.permute.xlu0 0
  %3069 = vperm.xlu0 %3068, %v3045
  %v3070 = vpop.permute.xlu0 %3069
  %3073 = vset.pattern.permute.xlu0 0
  %3074 = vperm.xlu0 %3073, %v3046
  %v3075 = vpop.permute.xlu0 %3074
  %v3077 = vmul.f32 %v3035, %v3050
  %v3078 = vmul.f32 %v3036, %v3055
  %v3079 = vmul.f32 %v3037, %v3060
  %v3080 = vmul.f32 %v3038, %v3065
  %v3081 = vmul.f32 %v3039, %v3070
  %v3082 = vmul.f32 %v3040, %v3075
  %v3083 = vld [vmem:[%s10] sm:$0xff]
  %v3084 = vld [vmem:[%s10 + $0x8] sm:$0xff]
  %v3085 = vld [vmem:[%s10 + $0x10] sm:$0xff]
  %v3086 = vld [vmem:[%s10 + $0x18] sm:$0xff]
  %v3087 = vld [vmem:[%s11] sm:$0x1]
  %v3088 = vperm.slane %v3087, 0
  %v3090 = vsel %vm150, %v3077, 0
  %v3093 = vsel %vm150, %v3078, 0
  %v3096 = vsel %vm150, %v3079, 0
  %v3099 = vsel %vm150, %v3080, 0
  %v3102 = vsel %vm150, %v3081, 0
  %v3105 = vsel %vm150, %v3082, 0
  %3107 = vmatpush.msra.mxu0 0.0
  %3108 = vmatpush.msra.mxu0 0.0
  %3109 = vmatpush.msra.mxu0 0.0
  %3110 = vmatpush.msra.mxu0 0.0
  %3111 = vmatpush.msra.mxu0 0.0
  %3112 = vmatpush.msra.mxu0 0.0
  %3113 = vmatpush.msra.mxu0 0.0
  %3114 = vmatpush.msra.mxu0 0.0
  %3115 = vmatpush.msra.mxu0 0.0
  %3116 = vmatpush.msra.mxu0 0.0
  %3117 = vmatpush.msra.mxu0 0.0
  %3118 = vmatpush.msra.mxu0 0.0
  %3119 = vmatpush.msra.mxu0 %v3086
  %3120 = vmatpush.msra.mxu0 %v3085
  %3121 = vmatpush.msra.mxu0 %v3084
  %3122 = vmatpush.msra.mxu0 %v3083
  %3123 = vmatmul.f32.gmra.mxu0 %v3090
  %v3124 = vpop.f32.mrf.mxu0
  %v3125 = vadd.f32 %v3088, %v3124
  %3126 = vmatmul.f32.gmra.mxu0 %v3093
  %v3127 = vpop.f32.mrf.mxu0
  %v3128 = vadd.f32 %v3088, %v3127
  %3129 = vmatmul.f32.gmra.mxu0 %v3096
  %v3130 = vpop.f32.mrf.mxu0
  %v3131 = vadd.f32 %v3088, %v3130
  %3132 = vmatmul.f32.gmra.mxu0 %v3099
  %v3133 = vpop.f32.mrf.mxu0
  %v3134 = vadd.f32 %v3088, %v3133
  %3135 = vmatmul.f32.gmra.mxu0 %v3102
  %v3136 = vpop.f32.mrf.mxu0
  %v3137 = vadd.f32 %v3088, %v3136
  %3138 = vmatmul.f32.gmra.mxu0 %v3105
  %v3139 = vpop.f32.mrf.mxu0
  %v3140 = vadd.f32 %v3088, %v3139
  %3141 = vdwg.mxu0
  %v3142 = vld [vmem:[%s11 + $0x1] sm:$0x1]
  %v3143 = vld [vmem:[%s11 + $0x2] sm:$0x1]
  %v3144 = vsel %vm150, %v3125, 0.0
  %3145 = vadd.xlane.f32.xlu0 %v3144
  %v3146 = vpop.xlane.xlu0 %3145
  %v3147 = vsel %vm150, %v3128, 0.0
  %3148 = vadd.xlane.f32.xlu0 %v3147
  %v3149 = vpop.xlane.xlu0 %3148
  %v3150 = vsel %vm150, %v3131, 0.0
  %3151 = vadd.xlane.f32.xlu0 %v3150
  %v3152 = vpop.xlane.xlu0 %3151
  %v3153 = vsel %vm150, %v3134, 0.0
  %3154 = vadd.xlane.f32.xlu0 %v3153
  %v3155 = vpop.xlane.xlu0 %3154
  %v3156 = vsel %vm150, %v3137, 0.0
  %3157 = vadd.xlane.f32.xlu0 %v3156
  %v3158 = vpop.xlane.xlu0 %3157
  %v3159 = vsel %vm1174, %v3140, 0.0
  %3160 = vadd.xlane.f32.xlu0 %v3159
  %v3161 = vpop.xlane.xlu0 %3160
  %v3162 = vmul.f32 %v3146, %v1184
  %v3163 = vmul.f32 %v3149, %v1184
  %v3164 = vmul.f32 %v3152, %v1184
  %v3165 = vmul.f32 %v3155, %v1184
  %v3166 = vmul.f32 %v3158, %v1184
  %v3167 = vmul.f32 %v3161, %v1184
  %v3168 = vsub.f32 %v3125, %v3162
  %v3169 = vsub.f32 %v3128, %v3163
  %v3170 = vsub.f32 %v3131, %v3164
  %v3171 = vsub.f32 %v3134, %v3165
  %v3172 = vsub.f32 %v3137, %v3166
  %v3173 = vsub.f32 %v3140, %v3167
  %v3174 = vmul.f32 %v3168, %v3168
  %v3175 = vmul.f32 %v3169, %v3169
  %v3176 = vmul.f32 %v3170, %v3170
  %v3177 = vmul.f32 %v3171, %v3171
  %v3178 = vmul.f32 %v3172, %v3172
  %v3179 = vmul.f32 %v3173, %v3173
  %v3180 = vsel %vm150, %v3174, 0.0
  %3181 = vadd.xlane.f32.xlu0 %v3180
  %v3182 = vpop.xlane.xlu0 %3181
  %v3183 = vsel %vm150, %v3175, 0.0
  %3184 = vadd.xlane.f32.xlu0 %v3183
  %v3185 = vpop.xlane.xlu0 %3184
  %v3186 = vsel %vm150, %v3176, 0.0
  %3187 = vadd.xlane.f32.xlu0 %v3186
  %v3188 = vpop.xlane.xlu0 %3187
  %v3189 = vsel %vm150, %v3177, 0.0
  %3190 = vadd.xlane.f32.xlu0 %v3189
  %v3191 = vpop.xlane.xlu0 %3190
  %v3192 = vsel %vm150, %v3178, 0.0
  %3193 = vadd.xlane.f32.xlu0 %v3192
  %v3194 = vpop.xlane.xlu0 %3193
  %v3195 = vsel %vm1174, %v3179, 0.0
  %3196 = vadd.xlane.f32.xlu0 %v3195
  %v3197 = vpop.xlane.xlu0 %3196
  %v3198 = vmul.f32 %v3182, %v1184
  %v3199 = vmul.f32 %v3185, %v1184
  %v3200 = vmul.f32 %v3188, %v1184
  %v3201 = vmul.f32 %v3191, %v1184
  %v3202 = vmul.f32 %v3194, %v1184
  %v3203 = vmul.f32 %v3197, %v1184
  %v3204 = vadd.f32 %v3198, 1e-05
  %v3205 = vadd.f32 %v3199, 1e-05
  %v3206 = vadd.f32 %v3200, 1e-05
  %v3207 = vadd.f32 %v3201, 1e-05
  %v3208 = vadd.f32 %v3202, 1e-05
  %v3209 = vadd.f32 %v3203, 1e-05
  %v3210 = vrsqrt.pop %v3204
  %v3211 = vmul.f32 %v3210, %v3204
  %v3212 = vmul.f32 %v3211, %v3210
  %v3213 = vmul.f32 0.5, %v3212
  %v3214 = vsub.f32 1.5, %v3213
  %v3215 = vmul.f32 %v3210, %v3214
  %vm3216 = vweird.f32 %v3204
  %vm3217 = vweird.f32 %v3210
  %vm3218 = vmor %vm3216, %vm3217
  %v3219 = vsel %vm3218, %v3210, %v3215
  %v3220 = vrsqrt.pop %v3205
  %v3221 = vmul.f32 %v3220, %v3205
  %v3222 = vmul.f32 %v3221, %v3220
  %v3223 = vmul.f32 0.5, %v3222
  %v3224 = vsub.f32 1.5, %v3223
  %v3225 = vmul.f32 %v3220, %v3224
  %vm3226 = vweird.f32 %v3205
  %vm3227 = vweird.f32 %v3220
  %vm3228 = vmor %vm3226, %vm3227
  %v3229 = vsel %vm3228, %v3220, %v3225
  %v3230 = vrsqrt.pop %v3206
  %v3231 = vmul.f32 %v3230, %v3206
  %v3232 = vmul.f32 %v3231, %v3230
  %v3233 = vmul.f32 0.5, %v3232
  %v3234 = vsub.f32 1.5, %v3233
  %v3235 = vmul.f32 %v3230, %v3234
  %vm3236 = vweird.f32 %v3206
  %vm3237 = vweird.f32 %v3230
  %vm3238 = vmor %vm3236, %vm3237
  %v3239 = vsel %vm3238, %v3230, %v3235
  %v3240 = vrsqrt.pop %v3207
  %v3241 = vmul.f32 %v3240, %v3207
  %v3242 = vmul.f32 %v3241, %v3240
  %v3243 = vmul.f32 0.5, %v3242
  %v3244 = vsub.f32 1.5, %v3243
  %v3245 = vmul.f32 %v3240, %v3244
  %vm3246 = vweird.f32 %v3207
  %vm3247 = vweird.f32 %v3240
  %vm3248 = vmor %vm3246, %vm3247
  %v3249 = vsel %vm3248, %v3240, %v3245
  %v3250 = vrsqrt.pop %v3208
  %v3251 = vmul.f32 %v3250, %v3208
  %v3252 = vmul.f32 %v3251, %v3250
  %v3253 = vmul.f32 0.5, %v3252
  %v3254 = vsub.f32 1.5, %v3253
  %v3255 = vmul.f32 %v3250, %v3254
  %vm3256 = vweird.f32 %v3208
  %vm3257 = vweird.f32 %v3250
  %vm3258 = vmor %vm3256, %vm3257
  %v3259 = vsel %vm3258, %v3250, %v3255
  %v3260 = vrsqrt.pop %v3209
  %v3261 = vmul.f32 %v3260, %v3209
  %v3262 = vmul.f32 %v3261, %v3260
  %v3263 = vmul.f32 0.5, %v3262
  %v3264 = vsub.f32 1.5, %v3263
  %v3265 = vmul.f32 %v3260, %v3264
  %vm3266 = vweird.f32 %v3209
  %vm3267 = vweird.f32 %v3260
  %vm3268 = vmor %vm3266, %vm3267
  %v3269 = vsel %vm3268, %v3260, %v3265
  %v3270 = vmul.f32 %v3168, %v3219
  %v3271 = vmul.f32 %v3169, %v3229
  %v3272 = vmul.f32 %v3170, %v3239
  %v3273 = vmul.f32 %v3171, %v3249
  %v3274 = vmul.f32 %v3172, %v3259
  %v3275 = vmul.f32 %v3173, %v3269
  %v3276 = vperm.slane %v3142, 0
  %v3277 = vmul.f32 %v3270, %v3276
  %v3278 = vmul.f32 %v3271, %v3276
  %v3279 = vmul.f32 %v3272, %v3276
  %v3280 = vmul.f32 %v3273, %v3276
  %v3281 = vmul.f32 %v3274, %v3276
  %v3282 = vmul.f32 %v3275, %v3276
  %v3283 = vperm.slane %v3143, 0
  %v3284 = vadd.f32 %v3277, %v3283
  %v3285 = vadd.f32 %v3278, %v3283
  %v3286 = vadd.f32 %v3279, %v3283
  %v3287 = vadd.f32 %v3280, %v3283
  %v3288 = vadd.f32 %v3281, %v3283
  %v3289 = vadd.f32 %v3282, %v3283
  %s3290 = scalar_lea.vmem %s10, 128
  %v3291 = vld [vmem:[%s3290] sm:$0xff]
  %v3292 = vld [vmem:[%s3290 + $0x8] sm:$0xff]
  %v3293 = vld [vmem:[%s3290 + $0x10] sm:$0xff]
  %v3294 = vld [vmem:[%s3290 + $0x18] sm:$0xff]
  %v3295 = vld [vmem:[%s11 + $0x6] sm:$0x1]
  %v3296 = vperm.slane %v3295, 0
  %v3298 = vsel %vm150, %v3284, 0
  %v3301 = vsel %vm150, %v3285, 0
  %v3304 = vsel %vm150, %v3286, 0
  %v3307 = vsel %vm150, %v3287, 0
  %v3310 = vsel %vm150, %v3288, 0
  %v3313 = vsel %vm150, %v3289, 0
  %3315 = vmatpush.msra.mxu0 0.0
  %3316 = vmatpush.msra.mxu0 0.0
  %3317 = vmatpush.msra.mxu0 0.0
  %3318 = vmatpush.msra.mxu0 0.0
  %3319 = vmatpush.msra.mxu0 0.0
  %3320 = vmatpush.msra.mxu0 0.0
  %3321 = vmatpush.msra.mxu0 0.0
  %3322 = vmatpush.msra.mxu0 0.0
  %3323 = vmatpush.msra.mxu0 0.0
  %3324 = vmatpush.msra.mxu0 0.0
  %3325 = vmatpush.msra.mxu0 0.0
  %3326 = vmatpush.msra.mxu0 0.0
  %3327 = vmatpush.msra.mxu0 %v3294
  %3328 = vmatpush.msra.mxu0 %v3293
  %3329 = vmatpush.msra.mxu0 %v3292
  %3330 = vmatpush.msra.mxu0 %v3291
  %3331 = vmatmul.f32.gmra.mxu0 %v3298
  %v3332 = vpop.f32.mrf.mxu0
  %v3333 = vadd.f32 %v3296, %v3332
  %3334 = vmatmul.f32.gmra.mxu0 %v3301
  %v3335 = vpop.f32.mrf.mxu0
  %v3336 = vadd.f32 %v3296, %v3335
  %3337 = vmatmul.f32.gmra.mxu0 %v3304
  %v3338 = vpop.f32.mrf.mxu0
  %v3339 = vadd.f32 %v3296, %v3338
  %3340 = vmatmul.f32.gmra.mxu0 %v3307
  %v3341 = vpop.f32.mrf.mxu0
  %v3342 = vadd.f32 %v3296, %v3341
  %3343 = vmatmul.f32.gmra.mxu0 %v3310
  %v3344 = vpop.f32.mrf.mxu0
  %v3345 = vadd.f32 %v3296, %v3344
  %3346 = vmatmul.f32.gmra.mxu0 %v3313
  %v3347 = vpop.f32.mrf.mxu0
  %v3348 = vadd.f32 %v3296, %v3347
  %3349 = vdwg.mxu0
  %s3350 = scalar_lea.vmem %s10, 32
  %v3351 = vld [vmem:[%s3350] sm:$0xff]
  %v3352 = vld [vmem:[%s3350 + $0x8] sm:$0xff]
  %v3353 = vld [vmem:[%s3350 + $0x10] sm:$0xff]
  %v3354 = vld [vmem:[%s3350 + $0x18] sm:$0xff]
  %v3355 = vld [vmem:[%s11 + $0x3] sm:$0x1]
  %v3356 = vperm.slane %v3355, 0
  %3357 = vmatpush.msra.mxu0 0.0
  %3358 = vmatpush.msra.mxu0 0.0
  %3359 = vmatpush.msra.mxu0 0.0
  %3360 = vmatpush.msra.mxu0 0.0
  %3361 = vmatpush.msra.mxu0 0.0
  %3362 = vmatpush.msra.mxu0 0.0
  %3363 = vmatpush.msra.mxu0 0.0
  %3364 = vmatpush.msra.mxu0 0.0
  %3365 = vmatpush.msra.mxu0 0.0
  %3366 = vmatpush.msra.mxu0 0.0
  %3367 = vmatpush.msra.mxu0 0.0
  %3368 = vmatpush.msra.mxu0 0.0
  %3369 = vmatpush.msra.mxu0 %v3354
  %3370 = vmatpush.msra.mxu0 %v3353
  %3371 = vmatpush.msra.mxu0 %v3352
  %3372 = vmatpush.msra.mxu0 %v3351
  %3373 = vmatmul.f32.gmra.mxu0 %v3298
  %v3374 = vpop.f32.mrf.mxu0
  %v3375 = vadd.f32 %v3356, %v3374
  %3376 = vmatmul.f32.gmra.mxu0 %v3301
  %v3377 = vpop.f32.mrf.mxu0
  %v3378 = vadd.f32 %v3356, %v3377
  %3379 = vmatmul.f32.gmra.mxu0 %v3304
  %v3380 = vpop.f32.mrf.mxu0
  %v3381 = vadd.f32 %v3356, %v3380
  %3382 = vmatmul.f32.gmra.mxu0 %v3307
  %v3383 = vpop.f32.mrf.mxu0
  %v3384 = vadd.f32 %v3356, %v3383
  %3385 = vmatmul.f32.gmra.mxu0 %v3310
  %v3386 = vpop.f32.mrf.mxu0
  %v3387 = vadd.f32 %v3356, %v3386
  %3388 = vmatmul.f32.gmra.mxu0 %v3313
  %v3389 = vpop.f32.mrf.mxu0
  %v3390 = vadd.f32 %v3356, %v3389
  %3391 = vdwg.mxu0
  %v3392 = vmax.f32 %v3375, 0.0
  %v3393 = vmax.f32 %v3378, 0.0
  %v3394 = vmax.f32 %v3381, 0.0
  %v3395 = vmax.f32 %v3384, 0.0
  %v3396 = vmax.f32 %v3387, 0.0
  %v3397 = vmax.f32 %v3390, 0.0
  %s3398 = scalar_lea.vmem %s10, 64
  %v3399 = vld [vmem:[%s3398] sm:$0xff]
  %v3400 = vld [vmem:[%s3398 + $0x8] sm:$0xff]
  %v3401 = vld [vmem:[%s3398 + $0x10] sm:$0xff]
  %v3402 = vld [vmem:[%s3398 + $0x18] sm:$0xff]
  %v3403 = vld [vmem:[%s11 + $0x4] sm:$0x1]
  %v3404 = vperm.slane %v3403, 0
  %v3406 = vsel %vm150, %v3392, 0
  %v3409 = vsel %vm150, %v3393, 0
  %v3412 = vsel %vm150, %v3394, 0
  %v3415 = vsel %vm150, %v3395, 0
  %v3418 = vsel %vm150, %v3396, 0
  %v3421 = vsel %vm150, %v3397, 0
  %3423 = vmatpush.msra.mxu0 0.0
  %3424 = vmatpush.msra.mxu0 0.0
  %3425 = vmatpush.msra.mxu0 0.0
  %3426 = vmatpush.msra.mxu0 0.0
  %3427 = vmatpush.msra.mxu0 0.0
  %3428 = vmatpush.msra.mxu0 0.0
  %3429 = vmatpush.msra.mxu0 0.0
  %3430 = vmatpush.msra.mxu0 0.0
  %3431 = vmatpush.msra.mxu0 0.0
  %3432 = vmatpush.msra.mxu0 0.0
  %3433 = vmatpush.msra.mxu0 0.0
  %3434 = vmatpush.msra.mxu0 0.0
  %3435 = vmatpush.msra.mxu0 %v3402
  %3436 = vmatpush.msra.mxu0 %v3401
  %3437 = vmatpush.msra.mxu0 %v3400
  %3438 = vmatpush.msra.mxu0 %v3399
  %3439 = vmatmul.f32.gmra.mxu0 %v3406
  %v3440 = vpop.f32.mrf.mxu0
  %v3441 = vadd.f32 %v3404, %v3440
  %3442 = vmatmul.f32.gmra.mxu0 %v3409
  %v3443 = vpop.f32.mrf.mxu0
  %v3444 = vadd.f32 %v3404, %v3443
  %3445 = vmatmul.f32.gmra.mxu0 %v3412
  %v3446 = vpop.f32.mrf.mxu0
  %v3447 = vadd.f32 %v3404, %v3446
  %3448 = vmatmul.f32.gmra.mxu0 %v3415
  %v3449 = vpop.f32.mrf.mxu0
  %v3450 = vadd.f32 %v3404, %v3449
  %3451 = vmatmul.f32.gmra.mxu0 %v3418
  %v3452 = vpop.f32.mrf.mxu0
  %v3453 = vadd.f32 %v3404, %v3452
  %3454 = vmatmul.f32.gmra.mxu0 %v3421
  %v3455 = vpop.f32.mrf.mxu0
  %v3456 = vadd.f32 %v3404, %v3455
  %3457 = vdwg.mxu0
  %v3458 = vmax.f32 %v3441, 0.0
  %v3459 = vmax.f32 %v3444, 0.0
  %v3460 = vmax.f32 %v3447, 0.0
  %v3461 = vmax.f32 %v3450, 0.0
  %v3462 = vmax.f32 %v3453, 0.0
  %v3463 = vmax.f32 %v3456, 0.0
  %s3464 = scalar_lea.vmem %s10, 96
  %v3465 = vld [vmem:[%s3464] sm:$0xff]
  %v3466 = vld [vmem:[%s3464 + $0x8] sm:$0xff]
  %v3467 = vld [vmem:[%s3464 + $0x10] sm:$0xff]
  %v3468 = vld [vmem:[%s3464 + $0x18] sm:$0xff]
  %v3469 = vld [vmem:[%s11 + $0x5] sm:$0x1]
  %v3470 = vperm.slane %v3469, 0
  %v3472 = vsel %vm150, %v3458, 0
  %v3475 = vsel %vm150, %v3459, 0
  %v3478 = vsel %vm150, %v3460, 0
  %v3481 = vsel %vm150, %v3461, 0
  %v3484 = vsel %vm150, %v3462, 0
  %v3487 = vsel %vm150, %v3463, 0
  %3489 = vmatpush.msra.mxu0 0.0
  %3490 = vmatpush.msra.mxu0 0.0
  %3491 = vmatpush.msra.mxu0 0.0
  %3492 = vmatpush.msra.mxu0 0.0
  %3493 = vmatpush.msra.mxu0 0.0
  %3494 = vmatpush.msra.mxu0 0.0
  %3495 = vmatpush.msra.mxu0 0.0
  %3496 = vmatpush.msra.mxu0 0.0
  %3497 = vmatpush.msra.mxu0 0.0
  %3498 = vmatpush.msra.mxu0 0.0
  %3499 = vmatpush.msra.mxu0 0.0
  %3500 = vmatpush.msra.mxu0 0.0
  %3501 = vmatpush.msra.mxu0 %v3468
  %3502 = vmatpush.msra.mxu0 %v3467
  %3503 = vmatpush.msra.mxu0 %v3466
  %3504 = vmatpush.msra.mxu0 %v3465
  %3505 = vmatmul.f32.gmra.mxu0 %v3472
  %v3506 = vpop.f32.mrf.mxu0
  %v3507 = vadd.f32 %v3470, %v3506
  %3508 = vmatmul.f32.gmra.mxu0 %v3475
  %v3509 = vpop.f32.mrf.mxu0
  %v3510 = vadd.f32 %v3470, %v3509
  %3511 = vmatmul.f32.gmra.mxu0 %v3478
  %v3512 = vpop.f32.mrf.mxu0
  %v3513 = vadd.f32 %v3470, %v3512
  %3514 = vmatmul.f32.gmra.mxu0 %v3481
  %v3515 = vpop.f32.mrf.mxu0
  %v3516 = vadd.f32 %v3470, %v3515
  %3517 = vmatmul.f32.gmra.mxu0 %v3484
  %v3518 = vpop.f32.mrf.mxu0
  %v3519 = vadd.f32 %v3470, %v3518
  %3520 = vmatmul.f32.gmra.mxu0 %v3487
  %v3521 = vpop.f32.mrf.mxu0
  %v3522 = vadd.f32 %v3470, %v3521
  %3523 = vdwg.mxu0
  %3524 = vst.msk [vmem:[%s12] sm:$0xff] %vm150, %v3035
  %3525 = vst.msk [vmem:[%s12 + $0x8] sm:$0xff] %vm150, %v3036
  %3526 = vst.msk [vmem:[%s12 + $0x10] sm:$0xff] %vm150, %v3037
  %3527 = vst.msk [vmem:[%s12 + $0x18] sm:$0xff] %vm150, %v3038
  %3528 = vst.msk [vmem:[%s12 + $0x20] sm:$0xff] %vm150, %v3039
  %3529 = vst.msk [vmem:[%s12 + $0x28] sm:$0x3] %vm1174, %v3040
  %s3530 = scalar_lea.vmem %s12, 48
  %3531 = vst.msk [vmem:[%s3530] sm:$0xff] %vm150, %v3333
  %3532 = vst.msk [vmem:[%s3530 + $0x8] sm:$0xff] %vm150, %v3336
  %3533 = vst.msk [vmem:[%s3530 + $0x10] sm:$0xff] %vm150, %v3339
  %3534 = vst.msk [vmem:[%s3530 + $0x18] sm:$0xff] %vm150, %v3342
  %3535 = vst.msk [vmem:[%s3530 + $0x20] sm:$0xff] %vm150, %v3345
  %3536 = vst.msk [vmem:[%s3530 + $0x28] sm:$0x3] %vm1174, %v3348
  %s3537 = scalar_lea.vmem %s12, 96
  %3538 = vst.msk [vmem:[%s3537] sm:$0xff] %vm150, %v3507
  %3539 = vst.msk [vmem:[%s3537 + $0x8] sm:$0xff] %vm150, %v3510
  %3540 = vst.msk [vmem:[%s3537 + $0x10] sm:$0xff] %vm150, %v3513
  %3541 = vst.msk [vmem:[%s3537 + $0x18] sm:$0xff] %vm150, %v3516
  %3542 = vst.msk [vmem:[%s3537 + $0x20] sm:$0xff] %vm150, %v3519
  %3543 = vst.msk [vmem:[%s3537 + $0x28] sm:$0x3] %vm1174, %v3522
  // Predicated region
  $region50: #{dinodetr_forward.8} parent=0 // pred_check
    _
  $region51: #{dinodetr_forward.8} parent=0 // pred_check_branch
    %3545 = sbr.rel (0) target = $region53
  $region52: #{dinodetr_forward.8} parent=0 // pred_region
    _
  $region53: #{dinodetr_forward.8} parent=0 // pred_fallthru
    _
  // Predicated region
  $region54: #{dinodetr_forward.8} parent=0 // pred_check
    _
  $region55: #{dinodetr_forward.8} parent=0 // pred_check_branch
    %3547 = sbr.rel (0) target = $region57
  $region56: #{dinodetr_forward.8} parent=0 // pred_region
    _
  $region57: #{dinodetr_forward.8} parent=0 // pred_fallthru
    _

// kernel: squeeze.24
$region0: #{squeeze.24}
  %s0 = inlined_call_operand.vmem [shape: f32[1,42,8], index: 0, kind: input, shape index: {}]
  %s1 = inlined_call_operand.vmem [shape: f32[2,21,8], index: 1, kind: output, shape index: {}]
  $region1: #{squeeze.24} parent=0
    #allocation0 [shape = 'u8[32768]{0}', space=vmem, size = 0x8000, scoped, tag = 'scoped mem for output reshape']
    %v2 = vld [vmem:[%s0] sm:$0xff]
    %vm3 = vcmask 171008
    %4 = vst.msk [vmem:[#allocation0] ss:$8 sm:$0xf] %vm3, %v2
    %5 = vst.msk [vmem:[#allocation0] ss:$8 sm:$0xf0] %vm3, %v2
    %v6 = vld [vmem:[%s0] sm:$0xff]
    %7 = vrot.lane.b32.xlu0 %v6, 107
    %v8 = vpop.permute.xlu0 %7
    %vm9 = vcmask 171008
    %s10 = scalar_lea.vmem [#allocation0], 1
    %11 = vst.msk [vmem:[%s10] ss:$8 sm:$0xf] %vm9, %v8
    %s12 = scalar_lea.vmem [#allocation0], 1
    %13 = vst.msk [vmem:[%s12] ss:$8 sm:$0xf0] %vm9, %v8
    %s15 = ssub.s32 4, 1
    %v16 = vld [vmem:[#allocation0] sm:%s15]
    %s18 = ssub.s32 4, 1
    %19 = vst [vmem:[%s1] sm:%s18] %v16
    %s20 = scalar_lea.vmem [#allocation0], 8
    %v21 = vld [vmem:[%s20] sm:%s15]
    %s23 = ssub.s32 4, 1
    %s24 = scalar_lea.vmem %s1, 2
    %25 = vst [vmem:[%s24] sm:%s23] %v21
    %s26 = scalar_lea.vmem [#allocation0], 16
    %v27 = vld [vmem:[%s26] sm:%s15]
    %s29 = ssub.s32 4, 1
    %s30 = scalar_lea.vmem %s1, 4
    %31 = vst [vmem:[%s30] sm:%s29] %v27
    %s32 = scalar_lea.vmem [#allocation0], 24
    %v33 = vld [vmem:[%s32] sm:%s15]
    %s35 = ssub.s32 4, 1
    %s36 = scalar_lea.vmem %s1, 6
    %37 = vst [vmem:[%s36] sm:%s35] %v33
    %s38 = scalar_lea.vmem [#allocation0], 32
    %v39 = vld [vmem:[%s38] sm:%s15]
    %s41 = ssub.s32 4, 1
    %s42 = scalar_lea.vmem %s1, 8
    %43 = vst [vmem:[%s42] sm:%s41] %v39
    %s44 = scalar_lea.vmem [#allocation0], 40
    %v45 = vld [vmem:[%s44] sm:%s15]
    %s47 = ssub.s32 4, 1
    %s48 = scalar_lea.vmem %s1, 10
    %49 = vst [vmem:[%s48] sm:%s47] %v45
    %s50 = scalar_lea.vmem [#allocation0], 48
    %v51 = vld [vmem:[%s50] sm:%s15]
    %s53 = ssub.s32 4, 1
    %s54 = scalar_lea.vmem %s1, 12
    %55 = vst [vmem:[%s54] sm:%s53] %v51
    %s56 = scalar_lea.vmem [#allocation0], 56
    %v57 = vld [vmem:[%s56] sm:%s15]
    %s59 = ssub.s32 4, 1
    %s60 = scalar_lea.vmem %s1, 14
    %61 = vst [vmem:[%s60] sm:%s59] %v57

// kernel: dinodetr_forward.9
$region0: #{dinodetr_forward.9}
  #allocation0 [shape = 'u32[]', space=smem, size = 0x4, offset = 0x4, fixed_abs, tag = 'smem constant byte address 0x4 - core index']
  #allocation1 [shape = 'u32[72,128]{1,0:T(1,128)}', space=vmem, size = 0x9000, scoped, tag = 'internal scratch']
  %s0 = inlined_call_operand.vmem [shape: f32[32,32], index: 0, kind: input, shape index: {}]
  %s1 = inlined_call_operand.vmem [shape: f32[32,32], index: 1, kind: input, shape index: {}]
  %s2 = inlined_call_operand.vmem [shape: f32[42,32], index: 2, kind: input, shape index: {}]
  %s3 = inlined_call_operand.vmem [shape: f32[42,32], index: 3, kind: input, shape index: {}]
  %s4 = inlined_call_operand.vmem [shape: f32[32,1], index: 4, kind: input, shape index: {}]
  %s5 = inlined_call_operand.vmem [shape: f32[1,32], index: 5, kind: input, shape index: {}]
  %s6 = inlined_call_operand.vmem [shape: f32[1,42], index: 6, kind: input, shape index: {}]
  %s7 = inlined_call_operand.vmem [shape: f32[1,42], index: 7, kind: input, shape index: {}]
  %s8 = inlined_call_operand.vmem [shape: f32[2,12,32,32], index: 8, kind: input, shape index: {}]
  %s9 = inlined_call_operand.vmem [shape: f32[2,32,64], index: 9, kind: input, shape index: {}]
  %s10 = inlined_call_operand.vmem [shape: f32[2,64,32], index: 10, kind: input, shape index: {}]
  %s11 = inlined_call_operand.vmem [shape: f32[2,20,64], index: 11, kind: input, shape index: {}]
  %s12 = inlined_call_operand.vmem [shape: f32[2,32,32], index: 12, kind: input, shape index: {}]
  %s13 = inlined_call_operand.vmem [shape: f32[2,32], index: 13, kind: input, shape index: {}]
  %s14 = inlined_call_operand.vmem [shape: f32[2,2,32,32], index: 14, kind: output, shape index: {}]
  %s15 = sld [smem:[#allocation0]]
  $region66: #{dinodetr_forward.9} parent=0
    _
  %s17 = ssub.s32 1, %s15
  %s18 = scalar_select 0, %s17, %s15
  // Predicated region
  $region2: #{dinodetr_forward.9} parent=0 // pred_check
    _
  $region3: #{dinodetr_forward.9} parent=0 // pred_check_branch
    %20 = sbr.rel (0) target = $region5
  $region4: #{dinodetr_forward.9} parent=0 // pred_region
    _
  $region5: #{dinodetr_forward.9} parent=0 // pred_fallthru
    _
  // Predicated region
  $region6: #{dinodetr_forward.9} parent=0 // pred_check
    _
  $region7: #{dinodetr_forward.9} parent=0 // pred_check_branch
    %22 = sbr.rel (0) target = $region9
  $region8: #{dinodetr_forward.9} parent=0 // pred_region
    _
  $region9: #{dinodetr_forward.9} parent=0 // pred_fallthru
    _
  // Predicated region
  $region10: #{dinodetr_forward.9} parent=0 // pred_check
    _
  $region11: #{dinodetr_forward.9} parent=0 // pred_check_branch
    %24 = sbr.rel (0) target = $region13
  $region12: #{dinodetr_forward.9} parent=0 // pred_region
    _
  $region13: #{dinodetr_forward.9} parent=0 // pred_fallthru
    _
  // Predicated region
  $region14: #{dinodetr_forward.9} parent=0 // pred_check
    _
  $region15: #{dinodetr_forward.9} parent=0 // pred_check_branch
    %26 = sbr.rel (0) target = $region17
  $region16: #{dinodetr_forward.9} parent=0 // pred_region
    _
  $region17: #{dinodetr_forward.9} parent=0 // pred_fallthru
    _
  // Predicated region
  $region18: #{dinodetr_forward.9} parent=0 // pred_check
    _
  $region19: #{dinodetr_forward.9} parent=0 // pred_check_branch
    %28 = sbr.rel (0) target = $region21
  $region20: #{dinodetr_forward.9} parent=0 // pred_region
    _
  $region21: #{dinodetr_forward.9} parent=0 // pred_fallthru
    _
  // Predicated region
  $region22: #{dinodetr_forward.9} parent=0 // pred_check
    _
  $region23: #{dinodetr_forward.9} parent=0 // pred_check_branch
    %30 = sbr.rel (0) target = $region25
  $region24: #{dinodetr_forward.9} parent=0 // pred_region
    _
  $region25: #{dinodetr_forward.9} parent=0 // pred_fallthru
    _
  // Predicated region
  $region26: #{dinodetr_forward.9} parent=0 // pred_check
    _
  $region27: #{dinodetr_forward.9} parent=0 // pred_check_branch
    %32 = sbr.rel (0) target = $region29
  $region28: #{dinodetr_forward.9} parent=0 // pred_region
    _
  $region29: #{dinodetr_forward.9} parent=0 // pred_fallthru
    _
  // Predicated region
  $region30: #{dinodetr_forward.9} parent=0 // pred_check
    _
  $region31: #{dinodetr_forward.9} parent=0 // pred_check_branch
    %34 = sbr.rel (0) target = $region33
  $region32: #{dinodetr_forward.9} parent=0 // pred_region
    _
  $region33: #{dinodetr_forward.9} parent=0 // pred_fallthru
    _
  // Predicated region
  $region34: #{dinodetr_forward.9} parent=0 // pred_check
    _
  $region35: #{dinodetr_forward.9} parent=0 // pred_check_branch
    %36 = sbr.rel (0) target = $region37
  $region36: #{dinodetr_forward.9} parent=0 // pred_region
    _
  $region37: #{dinodetr_forward.9} parent=0 // pred_fallthru
    _
  // Predicated region
  $region38: #{dinodetr_forward.9} parent=0 // pred_check
    _
  $region39: #{dinodetr_forward.9} parent=0 // pred_check_branch
    %38 = sbr.rel (0) target = $region41
  $region40: #{dinodetr_forward.9} parent=0 // pred_region
    _
  $region41: #{dinodetr_forward.9} parent=0 // pred_fallthru
    _
  // Predicated region
  $region42: #{dinodetr_forward.9} parent=0 // pred_check
    _
  $region43: #{dinodetr_forward.9} parent=0 // pred_check_branch
    %40 = sbr.rel (0) target = $region45
  $region44: #{dinodetr_forward.9} parent=0 // pred_region
    _
  $region45: #{dinodetr_forward.9} parent=0 // pred_fallthru
    _
  // Predicated region
  $region46: #{dinodetr_forward.9} parent=0 // pred_check
    _
  $region47: #{dinodetr_forward.9} parent=0 // pred_check_branch
    %42 = sbr.rel (0) target = $region49
  $region48: #{dinodetr_forward.9} parent=0 // pred_region
    _
  $region49: #{dinodetr_forward.9} parent=0 // pred_fallthru
    _
  // Predicated region
  $region50: #{dinodetr_forward.9} parent=0 // pred_check
    _
  $region51: #{dinodetr_forward.9} parent=0 // pred_check_branch
    %44 = sbr.rel (0) target = $region53
  $region52: #{dinodetr_forward.9} parent=0 // pred_region
    _
  $region53: #{dinodetr_forward.9} parent=0 // pred_fallthru
    _
  // Predicated region
  $region54: #{dinodetr_forward.9} parent=0 // pred_check
    _
  $region55: #{dinodetr_forward.9} parent=0 // pred_check_branch
    %46 = sbr.rel (0) target = $region57
  $region56: #{dinodetr_forward.9} parent=0 // pred_region
    _
  $region57: #{dinodetr_forward.9} parent=0 // pred_fallthru
    _
  %v47 = vld [vmem:[%s0] sm:$0xff]
  %v48 = vld [vmem:[%s0 + $0x8] sm:$0xff]
  %v49 = vld [vmem:[%s0 + $0x10] sm:$0xff]
  %v50 = vld [vmem:[%s0 + $0x18] sm:$0xff]
  %v51 = vld [vmem:[%s1] sm:$0xff]
  %v52 = vld [vmem:[%s1 + $0x8] sm:$0xff]
  %v53 = vld [vmem:[%s1 + $0x10] sm:$0xff]
  %v54 = vld [vmem:[%s1 + $0x18] sm:$0xff]
  %v55 = vld [vmem:[%s2] sm:$0xff]
  %v56 = vld [vmem:[%s2 + $0x8] sm:$0xff]
  %v57 = vld [vmem:[%s2 + $0x10] sm:$0xff]
  %v58 = vld [vmem:[%s2 + $0x18] sm:$0xff]
  %v59 = vld [vmem:[%s2 + $0x20] sm:$0xff]
  %v60 = vld [vmem:[%s2 + $0x28] sm:$0x3]
  %v61 = vld [vmem:[%s3] sm:$0xff]
  %v62 = vld [vmem:[%s3 + $0x8] sm:$0xff]
  %v63 = vld [vmem:[%s3 + $0x10] sm:$0xff]
  %v64 = vld [vmem:[%s3 + $0x18] sm:$0xff]
  %v65 = vld [vmem:[%s3 + $0x20] sm:$0xff]
  %v66 = vld [vmem:[%s3 + $0x28] sm:$0x3]
  %v67 = vadd.f32 %v55, %v61
  %v68 = vadd.f32 %v56, %v62
  %v69 = vadd.f32 %v57, %v63
  %v70 = vadd.f32 %v58, %v64
  %v71 = vadd.f32 %v59, %v65
  %v72 = vadd.f32 %v60, %v66
  %v73 = vld [vmem:[%s4] sm:$0xff]
  %v74 = vld [vmem:[%s4 + $0x8] sm:$0xff]
  %v75 = vld [vmem:[%s4 + $0x10] sm:$0xff]
  %v76 = vld [vmem:[%s4 + $0x18] sm:$0xff]
  %v77 = vld [vmem:[%s5] sm:$0x1]
  %79 = vset.pattern.permute.xlu0 0
  %80 = vperm.xlu0 %79, %v73
  %v81 = vpop.permute.xlu0 %80
  %84 = vset.pattern.permute.xlu0 0
  %85 = vperm.xlu0 %84, %v74
  %v86 = vpop.permute.xlu0 %85
  %89 = vset.pattern.permute.xlu0 0
  %90 = vperm.xlu0 %89, %v75
  %v91 = vpop.permute.xlu0 %90
  %94 = vset.pattern.permute.xlu0 0
  %95 = vperm.xlu0 %94, %v76
  %v96 = vpop.permute.xlu0 %95
  %v99 = vperm.slane %v77, 0
  %vm101 = vcmp.eq.f32.partialorder %v81, %v99
  %vm102 = vcmp.eq.f32.partialorder %v86, %v99
  %vm103 = vcmp.eq.f32.partialorder %v91, %v99
  %vm104 = vcmp.eq.f32.partialorder %v96, %v99
  %v105 = vsel %vm101, 0.0, -1e+09
  %v106 = vsel %vm102, 0.0, -1e+09
  %v107 = vsel %vm103, 0.0, -1e+09
  %v108 = vsel %vm104, 0.0, -1e+09
  %v109 = vld [vmem:[%s6] sm:$0x1]
  %v111 = vperm.slane %v109, 0
  %vm113 = vcmp.eq.f32.partialorder %v81, %v111
  %vm114 = vcmp.eq.f32.partialorder %v86, %v111
  %vm115 = vcmp.eq.f32.partialorder %v91, %v111
  %vm116 = vcmp.eq.f32.partialorder %v96, %v111
  %v117 = vld [vmem:[%s7] sm:$0x1]
  %vm118 = vcmp.eq.f32.partialorder %v117, 0.0
  %v119 = vsel %vm118, 1, 0
  %v120 = vperm.slane %v119, 0
  %vm121 = vcmp.eq.s32.totalorder %v120, 1
  %vm122 = vmand %vm113, %vm121
  %vm123 = vmand %vm114, %vm121
  %vm124 = vmand %vm115, %vm121
  %vm125 = vmand %vm116, %vm121
  %v126 = vsel %vm122, 0.0, -1e+09
  %v127 = vsel %vm123, 0.0, -1e+09
  %v128 = vsel %vm124, 0.0, -1e+09
  %v129 = vsel %vm125, 0.0, -1e+09
  %v130 = vlaneseq
  %v131 = vand.u32 %v130, 127
  %vm132 = vcmp.ge.s32.totalorder %v131, 0
  %vm133 = vcmp.lt.s32.totalorder %v131, 8
  %vm134 = vmand %vm132, %vm133
  %v135 = vsel %vm134, 1, 0
  %v136 = vcvt.s32.f32 %v135
  %vm137 = vcmp.ge.s32.totalorder %v131, 8
  %vm138 = vcmp.lt.s32.totalorder %v131, 16
  %vm139 = vmand %vm137, %vm138
  %v140 = vsel %vm139, 1, 0
  %v141 = vcvt.s32.f32 %v140
  %vm142 = vcmp.ge.s32.totalorder %v131, 16
  %vm143 = vcmp.lt.s32.totalorder %v131, 24
  %vm144 = vmand %vm142, %vm143
  %v145 = vsel %vm144, 1, 0
  %v146 = vcvt.s32.f32 %v145
  %vm147 = vcmp.ge.s32.totalorder %v131, 24
  %vm148 = vcmp.lt.s32.totalorder %v131, 32
  %vm149 = vmand %vm147, %vm148
  %v150 = vsel %vm149, 1, 0
  %v151 = vcvt.s32.f32 %v150
  %v152 = vld [vmem:[%s12] sm:$0xff]
  %v153 = vld [vmem:[%s12 + $0x8] sm:$0xff]
  %v154 = vld [vmem:[%s12 + $0x10] sm:$0xff]
  %v155 = vld [vmem:[%s12 + $0x18] sm:$0xff]
  %v156 = vld [vmem:[%s13] sm:$0x1]
  %v157 = vperm.slane %v156, 0
  %vm158 = vcmask 261120
  %v160 = vsel %vm158, %v51, 0
  %v163 = vsel %vm158, %v52, 0
  %v166 = vsel %vm158, %v53, 0
  %v169 = vsel %vm158, %v54, 0
  %171 = vmatpush.msra.mxu0 0.0
  %172 = vmatpush.msra.mxu0 0.0
  %173 = vmatpush.msra.mxu0 0.0
  %174 = vmatpush.msra.mxu0 0.0
  %175 = vmatpush.msra.mxu0 0.0
  %176 = vmatpush.msra.mxu0 0.0
  %177 = vmatpush.msra.mxu0 0.0
  %178 = vmatpush.msra.mxu0 0.0
  %179 = vmatpush.msra.mxu0 0.0
  %180 = vmatpush.msra.mxu0 0.0
  %181 = vmatpush.msra.mxu0 0.0
  %182 = vmatpush.msra.mxu0 0.0
  %183 = vmatpush.msra.mxu0 %v155
  %184 = vmatpush.msra.mxu0 %v154
  %185 = vmatpush.msra.mxu0 %v153
  %186 = vmatpush.msra.mxu0 %v152
  %187 = vmatmul.f32.gmra.mxu0 %v160
  %v188 = vpop.f32.mrf.mxu0
  %v189 = vadd.f32 %v157, %v188
  %190 = vmatmul.f32.gmra.mxu0 %v163
  %v191 = vpop.f32.mrf.mxu0
  %v192 = vadd.f32 %v157, %v191
  %193 = vmatmul.f32.gmra.mxu0 %v166
  %v194 = vpop.f32.mrf.mxu0
  %v195 = vadd.f32 %v157, %v194
  %196 = vmatmul.f32.gmra.mxu0 %v169
  %v197 = vpop.f32.mrf.mxu0
  %v198 = vadd.f32 %v157, %v197
  %199 = vdwg.mxu0
  %v200 = vmax.f32 %v189, 0.0
  %v201 = vmax.f32 %v192, 0.0
  %v202 = vmax.f32 %v195, 0.0
  %v203 = vmax.f32 %v198, 0.0
  %s204 = scalar_lea.vmem %s12, 32
  %v205 = vld [vmem:[%s204] sm:$0xff]
  %v206 = vld [vmem:[%s204 + $0x8] sm:$0xff]
  %v207 = vld [vmem:[%s204 + $0x10] sm:$0xff]
  %v208 = vld [vmem:[%s204 + $0x18] sm:$0xff]
  %v209 = vld [vmem:[%s13 + $0x1] sm:$0x1]
  %v210 = vperm.slane %v209, 0
  %v212 = vsel %vm158, %v200, 0
  %v215 = vsel %vm158, %v201, 0
  %v218 = vsel %vm158, %v202, 0
  %v221 = vsel %vm158, %v203, 0
  %223 = vmatpush.msra.mxu0 0.0
  %224 = vmatpush.msra.mxu0 0.0
  %225 = vmatpush.msra.mxu0 0.0
  %226 = vmatpush.msra.mxu0 0.0
  %227 = vmatpush.msra.mxu0 0.0
  %228 = vmatpush.msra.mxu0 0.0
  %229 = vmatpush.msra.mxu0 0.0
  %230 = vmatpush.msra.mxu0 0.0
  %231 = vmatpush.msra.mxu0 0.0
  %232 = vmatpush.msra.mxu0 0.0
  %233 = vmatpush.msra.mxu0 0.0
  %234 = vmatpush.msra.mxu0 0.0
  %235 = vmatpush.msra.mxu0 %v208
  %236 = vmatpush.msra.mxu0 %v207
  %237 = vmatpush.msra.mxu0 %v206
  %238 = vmatpush.msra.mxu0 %v205
  %239 = vmatmul.f32.gmra.mxu0 %v212
  %v240 = vpop.f32.mrf.mxu0
  %v241 = vadd.f32 %v210, %v240
  %242 = vmatmul.f32.gmra.mxu0 %v215
  %v243 = vpop.f32.mrf.mxu0
  %v244 = vadd.f32 %v210, %v243
  %245 = vmatmul.f32.gmra.mxu0 %v218
  %v246 = vpop.f32.mrf.mxu0
  %v247 = vadd.f32 %v210, %v246
  %248 = vmatmul.f32.gmra.mxu0 %v221
  %v249 = vpop.f32.mrf.mxu0
  %v250 = vadd.f32 %v210, %v249
  %251 = vdwg.mxu0
  %v252 = vadd.f32 %v47, %v241
  %v253 = vadd.f32 %v48, %v244
  %v254 = vadd.f32 %v49, %v247
  %v255 = vadd.f32 %v50, %v250
  %v256 = vld [vmem:[%s8] sm:$0xff]
  %v257 = vld [vmem:[%s8 + $0x8] sm:$0xff]
  %v258 = vld [vmem:[%s8 + $0x10] sm:$0xff]
  %v259 = vld [vmem:[%s8 + $0x18] sm:$0xff]
  %v260 = vld [vmem:[%s11] sm:$0x1]
  %v261 = vperm.slane %v260, 0
  %v263 = vsel %vm158, %v252, 0
  %v266 = vsel %vm158, %v253, 0
  %v269 = vsel %vm158, %v254, 0
  %v272 = vsel %vm158, %v255, 0
  %274 = vmatpush.msra.mxu0 0.0
  %275 = vmatpush.msra.mxu0 0.0
  %276 = vmatpush.msra.mxu0 0.0
  %277 = vmatpush.msra.mxu0 0.0
  %278 = vmatpush.msra.mxu0 0.0
  %279 = vmatpush.msra.mxu0 0.0
  %280 = vmatpush.msra.mxu0 0.0
  %281 = vmatpush.msra.mxu0 0.0
  %282 = vmatpush.msra.mxu0 0.0
  %283 = vmatpush.msra.mxu0 0.0
  %284 = vmatpush.msra.mxu0 0.0
  %285 = vmatpush.msra.mxu0 0.0
  %286 = vmatpush.msra.mxu0 %v259
  %287 = vmatpush.msra.mxu0 %v258
  %288 = vmatpush.msra.mxu0 %v257
  %289 = vmatpush.msra.mxu0 %v256
  %290 = vmatmul.f32.gmra.mxu0 %v263
  %v291 = vpop.f32.mrf.mxu0
  %v292 = vadd.f32 %v261, %v291
  %293 = vmatmul.f32.gmra.mxu0 %v266
  %v294 = vpop.f32.mrf.mxu0
  %v295 = vadd.f32 %v261, %v294
  %296 = vmatmul.f32.gmra.mxu0 %v269
  %v297 = vpop.f32.mrf.mxu0
  %v298 = vadd.f32 %v261, %v297
  %299 = vmatmul.f32.gmra.mxu0 %v272
  %v300 = vpop.f32.mrf.mxu0
  %v301 = vadd.f32 %v261, %v300
  %302 = vdwg.mxu0
  %s303 = scalar_lea.vmem %s8, 32
  %v304 = vld [vmem:[%s303] sm:$0xff]
  %v305 = vld [vmem:[%s303 + $0x8] sm:$0xff]
  %v306 = vld [vmem:[%s303 + $0x10] sm:$0xff]
  %v307 = vld [vmem:[%s303 + $0x18] sm:$0xff]
  %v308 = vld [vmem:[%s11 + $0x1] sm:$0x1]
  %v309 = vperm.slane %v308, 0
  %310 = vmatpush.msra.mxu0 0.0
  %311 = vmatpush.msra.mxu0 0.0
  %312 = vmatpush.msra.mxu0 0.0
  %313 = vmatpush.msra.mxu0 0.0
  %314 = vmatpush.msra.mxu0 0.0
  %315 = vmatpush.msra.mxu0 0.0
  %316 = vmatpush.msra.mxu0 0.0
  %317 = vmatpush.msra.mxu0 0.0
  %318 = vmatpush.msra.mxu0 0.0
  %319 = vmatpush.msra.mxu0 0.0
  %320 = vmatpush.msra.mxu0 0.0
  %321 = vmatpush.msra.mxu0 0.0
  %322 = vmatpush.msra.mxu0 %v307
  %323 = vmatpush.msra.mxu0 %v306
  %324 = vmatpush.msra.mxu0 %v305
  %325 = vmatpush.msra.mxu0 %v304
  %326 = vmatmul.f32.gmra.mxu0 %v263
  %v327 = vpop.f32.mrf.mxu0
  %v328 = vadd.f32 %v309, %v327
  %329 = vmatmul.f32.gmra.mxu0 %v266
  %v330 = vpop.f32.mrf.mxu0
  %v331 = vadd.f32 %v309, %v330
  %332 = vmatmul.f32.gmra.mxu0 %v269
  %v333 = vpop.f32.mrf.mxu0
  %v334 = vadd.f32 %v309, %v333
  %335 = vmatmul.f32.gmra.mxu0 %v272
  %v336 = vpop.f32.mrf.mxu0
  %v337 = vadd.f32 %v309, %v336
  %338 = vdwg.mxu0
  %s339 = scalar_lea.vmem %s8, 64
  %v340 = vld [vmem:[%s339] sm:$0xff]
  %v341 = vld [vmem:[%s339 + $0x8] sm:$0xff]
  %v342 = vld [vmem:[%s339 + $0x10] sm:$0xff]
  %v343 = vld [vmem:[%s339 + $0x18] sm:$0xff]
  %v344 = vld [vmem:[%s11 + $0x2] sm:$0x1]
  %v345 = vperm.slane %v344, 0
  %v347 = vsel %vm158, %v47, 0
  %v350 = vsel %vm158, %v48, 0
  %v353 = vsel %vm158, %v49, 0
  %v356 = vsel %vm158, %v50, 0
  %358 = vmatpush.msra.mxu0 0.0
  %359 = vmatpush.msra.mxu0 0.0
  %360 = vmatpush.msra.mxu0 0.0
  %361 = vmatpush.msra.mxu0 0.0
  %362 = vmatpush.msra.mxu0 0.0
  %363 = vmatpush.msra.mxu0 0.0
  %364 = vmatpush.msra.mxu0 0.0
  %365 = vmatpush.msra.mxu0 0.0
  %366 = vmatpush.msra.mxu0 0.0
  %367 = vmatpush.msra.mxu0 0.0
  %368 = vmatpush.msra.mxu0 0.0
  %369 = vmatpush.msra.mxu0 0.0
  %370 = vmatpush.msra.mxu0 %v343
  %371 = vmatpush.msra.mxu0 %v342
  %372 = vmatpush.msra.mxu0 %v341
  %373 = vmatpush.msra.mxu0 %v340
  %374 = vmatmul.f32.gmra.mxu0 %v347
  %v375 = vpop.f32.mrf.mxu0
  %v376 = vadd.f32 %v345, %v375
  %377 = vmatmul.f32.gmra.mxu0 %v350
  %v378 = vpop.f32.mrf.mxu0
  %v379 = vadd.f32 %v345, %v378
  %380 = vmatmul.f32.gmra.mxu0 %v353
  %v381 = vpop.f32.mrf.mxu0
  %v382 = vadd.f32 %v345, %v381
  %383 = vmatmul.f32.gmra.mxu0 %v356
  %v384 = vpop.f32.mrf.mxu0
  %v385 = vadd.f32 %v345, %v384
  %386 = vdwg.mxu0
  %s387 = scalar_lea.vmem %s8, 96
  %v388 = vld [vmem:[%s387] sm:$0xff]
  %v389 = vld [vmem:[%s387 + $0x8] sm:$0xff]
  %v390 = vld [vmem:[%s387 + $0x10] sm:$0xff]
  %v391 = vld [vmem:[%s387 + $0x18] sm:$0xff]
  %v392 = vld [vmem:[%s11 + $0x3] sm:$0x1]
  %v393 = vmul.f32 %v136, 0.35355338
  %v394 = vmul.f32 %v292, %v393
  %v395 = vmul.f32 %v295, %v393
  %v396 = vmul.f32 %v298, %v393
  %v397 = vmul.f32 %v301, %v393
  %v399 = vsel %vm158, %v394, 0
  %v402 = vsel %vm158, %v395, 0
  %v405 = vsel %vm158, %v396, 0
  %v408 = vsel %vm158, %v397, 0
  %v411 = vsel %vm158, %v328, 0
  %v414 = vsel %vm158, %v331, 0
  %v417 = vsel %vm158, %v334, 0
  %v420 = vsel %vm158, %v337, 0
  %422 = vmatpush.xpose.msra.mxu0 0.0
  %423 = vmatpush.xpose.msra.mxu0 0.0
  %424 = vmatpush.xpose.msra.mxu0 0.0
  %425 = vmatpush.xpose.msra.mxu0 0.0
  %426 = vmatpush.xpose.msra.mxu0 0.0
  %427 = vmatpush.xpose.msra.mxu0 0.0
  %428 = vmatpush.xpose.msra.mxu0 0.0
  %429 = vmatpush.xpose.msra.mxu0 0.0
  %430 = vmatpush.xpose.msra.mxu0 0.0
  %431 = vmatpush.xpose.msra.mxu0 0.0
  %432 = vmatpush.xpose.msra.mxu0 0.0
  %433 = vmatpush.xpose.msra.mxu0 0.0
  %434 = vmatpush.xpose.msra.mxu0 %v420
  %435 = vmatpush.xpose.msra.mxu0 %v417
  %436 = vmatpush.xpose.msra.mxu0 %v414
  %437 = vmatpush.xpose.msra.mxu0 %v411
  %438 = vmatmul.f32.gmra.mxu0 %v399
  %v439 = vpop.f32.mrf.mxu0
  %v440 = vadd.f32 %v105, %v439
  %441 = vmatmul.f32.gmra.mxu0 %v402
  %v442 = vpop.f32.mrf.mxu0
  %v443 = vadd.f32 %v106, %v442
  %444 = vmatmul.f32.gmra.mxu0 %v405
  %v445 = vpop.f32.mrf.mxu0
  %v446 = vadd.f32 %v107, %v445
  %447 = vmatmul.f32.gmra.mxu0 %v408
  %v448 = vpop.f32.mrf.mxu0
  %v449 = vadd.f32 %v108, %v448
  %450 = vdwg.mxu0
  %v451 = vsel %vm158, %v440, -inf
  %452 = vmax.xlane.f32.xlu0 %v451
  %v453 = vpop.xlane.xlu0 %452
  %v454 = vsel %vm158, %v443, -inf
  %455 = vmax.xlane.f32.xlu0 %v454
  %v456 = vpop.xlane.xlu0 %455
  %v457 = vsel %vm158, %v446, -inf
  %458 = vmax.xlane.f32.xlu0 %v457
  %v459 = vpop.xlane.xlu0 %458
  %v460 = vsel %vm158, %v449, -inf
  %461 = vmax.xlane.f32.xlu0 %v460
  %v462 = vpop.xlane.xlu0 %461
  %v463 = vsub.f32 %v440, %v453
  %v464 = vsub.f32 %v443, %v456
  %v465 = vsub.f32 %v446, %v459
  %v466 = vsub.f32 %v449, %v462
  %v467 = vmul.f32 %v463, 1.442695
  %v468 = vpow.pop %v467
  %v469 = vmul.f32 %v464, 1.442695
  %v470 = vpow.pop %v469
  %v471 = vmul.f32 %v465, 1.442695
  %v472 = vpow.pop %v471
  %v473 = vmul.f32 %v466, 1.442695
  %v474 = vpow.pop %v473
  %v475 = vsel %vm158, %v468, 0.0
  %476 = vadd.xlane.f32.xlu0 %v475
  %v477 = vpop.xlane.xlu0 %476
  %v478 = vsel %vm158, %v470, 0.0
  %479 = vadd.xlane.f32.xlu0 %v478
  %v480 = vpop.xlane.xlu0 %479
  %v481 = vsel %vm158, %v472, 0.0
  %482 = vadd.xlane.f32.xlu0 %v481
  %v483 = vpop.xlane.xlu0 %482
  %v484 = vsel %vm158, %v474, 0.0
  %485 = vadd.xlane.f32.xlu0 %v484
  %v486 = vpop.xlane.xlu0 %485
  %v487 = vrcp.pop %v477
  %v488 = vrcp.pop %v480
  %v489 = vrcp.pop %v483
  %v490 = vrcp.pop %v486
  %v491 = vmul.f32 %v468, %v487
  %v492 = vmul.f32 %v470, %v488
  %v493 = vmul.f32 %v472, %v489
  %v494 = vmul.f32 %v474, %v490
  %v495 = vmul.f32 %v376, %v136
  %v496 = vmul.f32 %v379, %v136
  %v497 = vmul.f32 %v382, %v136
  %v498 = vmul.f32 %v385, %v136
  %v499 = vmul.f32 %v141, 0.35355338
  %v500 = vmul.f32 %v292, %v499
  %v501 = vmul.f32 %v295, %v499
  %v502 = vmul.f32 %v298, %v499
  %v503 = vmul.f32 %v301, %v499
  %v505 = vsel %vm158, %v500, 0
  %v508 = vsel %vm158, %v501, 0
  %v511 = vsel %vm158, %v502, 0
  %v514 = vsel %vm158, %v503, 0
  %516 = vmatpush.xpose.msra.mxu0 0.0
  %517 = vmatpush.xpose.msra.mxu0 0.0
  %518 = vmatpush.xpose.msra.mxu0 0.0
  %519 = vmatpush.xpose.msra.mxu0 0.0
  %520 = vmatpush.xpose.msra.mxu0 0.0
  %521 = vmatpush.xpose.msra.mxu0 0.0
  %522 = vmatpush.xpose.msra.mxu0 0.0
  %523 = vmatpush.xpose.msra.mxu0 0.0
  %524 = vmatpush.xpose.msra.mxu0 0.0
  %525 = vmatpush.xpose.msra.mxu0 0.0
  %526 = vmatpush.xpose.msra.mxu0 0.0
  %527 = vmatpush.xpose.msra.mxu0 0.0
  %528 = vmatpush.xpose.msra.mxu0 %v420
  %529 = vmatpush.xpose.msra.mxu0 %v417
  %530 = vmatpush.xpose.msra.mxu0 %v414
  %531 = vmatpush.xpose.msra.mxu0 %v411
  %532 = vmatmul.f32.gmra.mxu0 %v505
  %v533 = vpop.f32.mrf.mxu0
  %v534 = vadd.f32 %v105, %v533
  %535 = vmatmul.f32.gmra.mxu0 %v508
  %v536 = vpop.f32.mrf.mxu0
  %v537 = vadd.f32 %v106, %v536
  %538 = vmatmul.f32.gmra.mxu0 %v511
  %v539 = vpop.f32.mrf.mxu0
  %v540 = vadd.f32 %v107, %v539
  %541 = vmatmul.f32.gmra.mxu0 %v514
  %v542 = vpop.f32.mrf.mxu0
  %v543 = vadd.f32 %v108, %v542
  %544 = vdwg.mxu0
  %v545 = vsel %vm158, %v534, -inf
  %546 = vmax.xlane.f32.xlu0 %v545
  %v547 = vpop.xlane.xlu0 %546
  %v548 = vsel %vm158, %v537, -inf
  %549 = vmax.xlane.f32.xlu0 %v548
  %v550 = vpop.xlane.xlu0 %549
  %v551 = vsel %vm158, %v540, -inf
  %552 = vmax.xlane.f32.xlu0 %v551
  %v553 = vpop.xlane.xlu0 %552
  %v554 = vsel %vm158, %v543, -inf
  %555 = vmax.xlane.f32.xlu0 %v554
  %v556 = vpop.xlane.xlu0 %555
  %v557 = vsub.f32 %v534, %v547
  %v558 = vsub.f32 %v537, %v550
  %v559 = vsub.f32 %v540, %v553
  %v560 = vsub.f32 %v543, %v556
  %v561 = vmul.f32 %v557, 1.442695
  %v562 = vpow.pop %v561
  %v563 = vmul.f32 %v558, 1.442695
  %v564 = vpow.pop %v563
  %v565 = vmul.f32 %v559, 1.442695
  %v566 = vpow.pop %v565
  %v567 = vmul.f32 %v560, 1.442695
  %v568 = vpow.pop %v567
  %v569 = vsel %vm158, %v562, 0.0
  %570 = vadd.xlane.f32.xlu0 %v569
  %v571 = vpop.xlane.xlu0 %570
  %v572 = vsel %vm158, %v564, 0.0
  %573 = vadd.xlane.f32.xlu0 %v572
  %v574 = vpop.xlane.xlu0 %573
  %v575 = vsel %vm158, %v566, 0.0
  %576 = vadd.xlane.f32.xlu0 %v575
  %v577 = vpop.xlane.xlu0 %576
  %v578 = vsel %vm158, %v568, 0.0
  %579 = vadd.xlane.f32.xlu0 %v578
  %v580 = vpop.xlane.xlu0 %579
  %v581 = vrcp.pop %v571
  %v582 = vrcp.pop %v574
  %v583 = vrcp.pop %v577
  %v584 = vrcp.pop %v580
  %v585 = vmul.f32 %v562, %v581
  %v586 = vmul.f32 %v564, %v582
  %v587 = vmul.f32 %v566, %v583
  %v588 = vmul.f32 %v568, %v584
  %v589 = vmul.f32 %v376, %v141
  %v590 = vmul.f32 %v379, %v141
  %v591 = vmul.f32 %v382, %v141
  %v592 = vmul.f32 %v385, %v141
  %v594 = vsel %vm158, %v585, 0
  %v597 = vsel %vm158, %v586, 0
  %v600 = vsel %vm158, %v587, 0
  %v603 = vsel %vm158, %v588, 0
  %605 = vmatpush.msra.mxu0 0.0
  %606 = vmatpush.msra.mxu0 0.0
  %607 = vmatpush.msra.mxu0 0.0
  %608 = vmatpush.msra.mxu0 0.0
  %609 = vmatpush.msra.mxu0 0.0
  %610 = vmatpush.msra.mxu0 0.0
  %611 = vmatpush.msra.mxu0 0.0
  %612 = vmatpush.msra.mxu0 0.0
  %613 = vmatpush.msra.mxu0 0.0
  %614 = vmatpush.msra.mxu0 0.0
  %615 = vmatpush.msra.mxu0 0.0
  %616 = vmatpush.msra.mxu0 0.0
  %617 = vmatpush.msra.mxu0 %v592
  %618 = vmatpush.msra.mxu0 %v591
  %619 = vmatpush.msra.mxu0 %v590
  %620 = vmatpush.msra.mxu0 %v589
  %621 = vmatmul.f32.gmra.mxu0 %v594
  %v622 = vpop.f32.mrf.mxu0
  %v623 = vadd.f32 0.0, %v622
  %624 = vmatmul.f32.gmra.mxu0 %v597
  %v625 = vpop.f32.mrf.mxu0
  %v626 = vadd.f32 0.0, %v625
  %627 = vmatmul.f32.gmra.mxu0 %v600
  %v628 = vpop.f32.mrf.mxu0
  %v629 = vadd.f32 0.0, %v628
  %630 = vmatmul.f32.gmra.mxu0 %v603
  %v631 = vpop.f32.mrf.mxu0
  %v632 = vadd.f32 0.0, %v631
  %633 = vdwg.mxu0
  %v635 = vsel %vm158, %v491, 0
  %v638 = vsel %vm158, %v492, 0
  %v641 = vsel %vm158, %v493, 0
  %v644 = vsel %vm158, %v494, 0
  %646 = vmatpush.msra.mxu0 0.0
  %647 = vmatpush.msra.mxu0 0.0
  %648 = vmatpush.msra.mxu0 0.0
  %649 = vmatpush.msra.mxu0 0.0
  %650 = vmatpush.msra.mxu0 0.0
  %651 = vmatpush.msra.mxu0 0.0
  %652 = vmatpush.msra.mxu0 0.0
  %653 = vmatpush.msra.mxu0 0.0
  %654 = vmatpush.msra.mxu0 0.0
  %655 = vmatpush.msra.mxu0 0.0
  %656 = vmatpush.msra.mxu0 0.0
  %657 = vmatpush.msra.mxu0 0.0
  %658 = vmatpush.msra.mxu0 %v498
  %659 = vmatpush.msra.mxu0 %v497
  %660 = vmatpush.msra.mxu0 %v496
  %661 = vmatpush.msra.mxu0 %v495
  %662 = vmatmul.f32.gmra.mxu0 %v635
  %v663 = vpop.f32.mrf.mxu0
  %v664 = vadd.f32 %v623, %v663
  %665 = vmatmul.f32.gmra.mxu0 %v638
  %v666 = vpop.f32.mrf.mxu0
  %v667 = vadd.f32 %v626, %v666
  %668 = vmatmul.f32.gmra.mxu0 %v641
  %v669 = vpop.f32.mrf.mxu0
  %v670 = vadd.f32 %v629, %v669
  %671 = vmatmul.f32.gmra.mxu0 %v644
  %v672 = vpop.f32.mrf.mxu0
  %v673 = vadd.f32 %v632, %v672
  %674 = vdwg.mxu0
  %v675 = vmul.f32 %v146, 0.35355338
  %v676 = vmul.f32 %v292, %v675
  %v677 = vmul.f32 %v295, %v675
  %v678 = vmul.f32 %v298, %v675
  %v679 = vmul.f32 %v301, %v675
  %v681 = vsel %vm158, %v676, 0
  %v684 = vsel %vm158, %v677, 0
  %v687 = vsel %vm158, %v678, 0
  %v690 = vsel %vm158, %v679, 0
  %692 = vmatpush.xpose.msra.mxu0 0.0
  %693 = vmatpush.xpose.msra.mxu0 0.0
  %694 = vmatpush.xpose.msra.mxu0 0.0
  %695 = vmatpush.xpose.msra.mxu0 0.0
  %696 = vmatpush.xpose.msra.mxu0 0.0
  %697 = vmatpush.xpose.msra.mxu0 0.0
  %698 = vmatpush.xpose.msra.mxu0 0.0
  %699 = vmatpush.xpose.msra.mxu0 0.0
  %700 = vmatpush.xpose.msra.mxu0 0.0
  %701 = vmatpush.xpose.msra.mxu0 0.0
  %702 = vmatpush.xpose.msra.mxu0 0.0
  %703 = vmatpush.xpose.msra.mxu0 0.0
  %704 = vmatpush.xpose.msra.mxu0 %v420
  %705 = vmatpush.xpose.msra.mxu0 %v417
  %706 = vmatpush.xpose.msra.mxu0 %v414
  %707 = vmatpush.xpose.msra.mxu0 %v411
  %708 = vmatmul.f32.gmra.mxu0 %v681
  %v709 = vpop.f32.mrf.mxu0
  %v710 = vadd.f32 %v105, %v709
  %711 = vmatmul.f32.gmra.mxu0 %v684
  %v712 = vpop.f32.mrf.mxu0
  %v713 = vadd.f32 %v106, %v712
  %714 = vmatmul.f32.gmra.mxu0 %v687
  %v715 = vpop.f32.mrf.mxu0
  %v716 = vadd.f32 %v107, %v715
  %717 = vmatmul.f32.gmra.mxu0 %v690
  %v718 = vpop.f32.mrf.mxu0
  %v719 = vadd.f32 %v108, %v718
  %720 = vdwg.mxu0
  %v721 = vsel %vm158, %v710, -inf
  %722 = vmax.xlane.f32.xlu0 %v721
  %v723 = vpop.xlane.xlu0 %722
  %v724 = vsel %vm158, %v713, -inf
  %725 = vmax.xlane.f32.xlu0 %v724
  %v726 = vpop.xlane.xlu0 %725
  %v727 = vsel %vm158, %v716, -inf
  %728 = vmax.xlane.f32.xlu0 %v727
  %v729 = vpop.xlane.xlu0 %728
  %v730 = vsel %vm158, %v719, -inf
  %731 = vmax.xlane.f32.xlu0 %v730
  %v732 = vpop.xlane.xlu0 %731
  %v733 = vsub.f32 %v710, %v723
  %v734 = vsub.f32 %v713, %v726
  %v735 = vsub.f32 %v716, %v729
  %v736 = vsub.f32 %v719, %v732
  %v737 = vmul.f32 %v733, 1.442695
  %v738 = vpow.pop %v737
  %v739 = vmul.f32 %v734, 1.442695
  %v740 = vpow.pop %v739
  %v741 = vmul.f32 %v735, 1.442695
  %v742 = vpow.pop %v741
  %v743 = vmul.f32 %v736, 1.442695
  %v744 = vpow.pop %v743
  %v745 = vsel %vm158, %v738, 0.0
  %746 = vadd.xlane.f32.xlu0 %v745
  %v747 = vpop.xlane.xlu0 %746
  %v748 = vsel %vm158, %v740, 0.0
  %749 = vadd.xlane.f32.xlu0 %v748
  %v750 = vpop.xlane.xlu0 %749
  %v751 = vsel %vm158, %v742, 0.0
  %752 = vadd.xlane.f32.xlu0 %v751
  %v753 = vpop.xlane.xlu0 %752
  %v754 = vsel %vm158, %v744, 0.0
  %755 = vadd.xlane.f32.xlu0 %v754
  %v756 = vpop.xlane.xlu0 %755
  %v757 = vrcp.pop %v747
  %v758 = vrcp.pop %v750
  %v759 = vrcp.pop %v753
  %v760 = vrcp.pop %v756
  %v761 = vmul.f32 %v738, %v757
  %v762 = vmul.f32 %v740, %v758
  %v763 = vmul.f32 %v742, %v759
  %v764 = vmul.f32 %v744, %v760
  %v765 = vmul.f32 %v376, %v146
  %v766 = vmul.f32 %v379, %v146
  %v767 = vmul.f32 %v382, %v146
  %v768 = vmul.f32 %v385, %v146
  %v770 = vsel %vm158, %v761, 0
  %v773 = vsel %vm158, %v762, 0
  %v776 = vsel %vm158, %v763, 0
  %v779 = vsel %vm158, %v764, 0
  %781 = vmatpush.msra.mxu0 0.0
  %782 = vmatpush.msra.mxu0 0.0
  %783 = vmatpush.msra.mxu0 0.0
  %784 = vmatpush.msra.mxu0 0.0
  %785 = vmatpush.msra.mxu0 0.0
  %786 = vmatpush.msra.mxu0 0.0
  %787 = vmatpush.msra.mxu0 0.0
  %788 = vmatpush.msra.mxu0 0.0
  %789 = vmatpush.msra.mxu0 0.0
  %790 = vmatpush.msra.mxu0 0.0
  %791 = vmatpush.msra.mxu0 0.0
  %792 = vmatpush.msra.mxu0 0.0
  %793 = vmatpush.msra.mxu0 %v768
  %794 = vmatpush.msra.mxu0 %v767
  %795 = vmatpush.msra.mxu0 %v766
  %796 = vmatpush.msra.mxu0 %v765
  %797 = vmatmul.f32.gmra.mxu0 %v770
  %v798 = vpop.f32.mrf.mxu0
  %v799 = vadd.f32 0.0, %v798
  %800 = vmatmul.f32.gmra.mxu0 %v773
  %v801 = vpop.f32.mrf.mxu0
  %v802 = vadd.f32 0.0, %v801
  %803 = vmatmul.f32.gmra.mxu0 %v776
  %v804 = vpop.f32.mrf.mxu0
  %v805 = vadd.f32 0.0, %v804
  %806 = vmatmul.f32.gmra.mxu0 %v779
  %v807 = vpop.f32.mrf.mxu0
  %v808 = vadd.f32 0.0, %v807
  %809 = vdwg.mxu0
  %v810 = vadd.f32 %v664, %v799
  %v811 = vadd.f32 %v667, %v802
  %v812 = vadd.f32 %v670, %v805
  %v813 = vadd.f32 %v673, %v808
  %v814 = vmul.f32 %v151, 0.35355338
  %v815 = vmul.f32 %v292, %v814
  %v816 = vmul.f32 %v295, %v814
  %v817 = vmul.f32 %v298, %v814
  %v818 = vmul.f32 %v301, %v814
  %v820 = vsel %vm158, %v815, 0
  %v823 = vsel %vm158, %v816, 0
  %v826 = vsel %vm158, %v817, 0
  %v829 = vsel %vm158, %v818, 0
  %831 = vmatpush.xpose.msra.mxu0 0.0
  %832 = vmatpush.xpose.msra.mxu0 0.0
  %833 = vmatpush.xpose.msra.mxu0 0.0
  %834 = vmatpush.xpose.msra.mxu0 0.0
  %835 = vmatpush.xpose.msra.mxu0 0.0
  %836 = vmatpush.xpose.msra.mxu0 0.0
  %837 = vmatpush.xpose.msra.mxu0 0.0
  %838 = vmatpush.xpose.msra.mxu0 0.0
  %839 = vmatpush.xpose.msra.mxu0 0.0
  %840 = vmatpush.xpose.msra.mxu0 0.0
  %841 = vmatpush.xpose.msra.mxu0 0.0
  %842 = vmatpush.xpose.msra.mxu0 0.0
  %843 = vmatpush.xpose.msra.mxu0 %v420
  %844 = vmatpush.xpose.msra.mxu0 %v417
  %845 = vmatpush.xpose.msra.mxu0 %v414
  %846 = vmatpush.xpose.msra.mxu0 %v411
  %847 = vmatmul.f32.gmra.mxu0 %v820
  %v848 = vpop.f32.mrf.mxu0
  %v849 = vadd.f32 %v105, %v848
  %850 = vmatmul.f32.gmra.mxu0 %v823
  %v851 = vpop.f32.mrf.mxu0
  %v852 = vadd.f32 %v106, %v851
  %853 = vmatmul.f32.gmra.mxu0 %v826
  %v854 = vpop.f32.mrf.mxu0
  %v855 = vadd.f32 %v107, %v854
  %856 = vmatmul.f32.gmra.mxu0 %v829
  %v857 = vpop.f32.mrf.mxu0
  %v858 = vadd.f32 %v108, %v857
  %859 = vdwg.mxu0
  %v860 = vsel %vm158, %v849, -inf
  %861 = vmax.xlane.f32.xlu0 %v860
  %v862 = vpop.xlane.xlu0 %861
  %v863 = vsel %vm158, %v852, -inf
  %864 = vmax.xlane.f32.xlu0 %v863
  %v865 = vpop.xlane.xlu0 %864
  %v866 = vsel %vm158, %v855, -inf
  %867 = vmax.xlane.f32.xlu0 %v866
  %v868 = vpop.xlane.xlu0 %867
  %v869 = vsel %vm158, %v858, -inf
  %870 = vmax.xlane.f32.xlu0 %v869
  %v871 = vpop.xlane.xlu0 %870
  %v872 = vsub.f32 %v849, %v862
  %v873 = vsub.f32 %v852, %v865
  %v874 = vsub.f32 %v855, %v868
  %v875 = vsub.f32 %v858, %v871
  %v876 = vmul.f32 %v872, 1.442695
  %v877 = vpow.pop %v876
  %v878 = vmul.f32 %v873, 1.442695
  %v879 = vpow.pop %v878
  %v880 = vmul.f32 %v874, 1.442695
  %v881 = vpow.pop %v880
  %v882 = vmul.f32 %v875, 1.442695
  %v883 = vpow.pop %v882
  %v884 = vsel %vm158, %v877, 0.0
  %885 = vadd.xlane.f32.xlu0 %v884
  %v886 = vpop.xlane.xlu0 %885
  %v887 = vsel %vm158, %v879, 0.0
  %888 = vadd.xlane.f32.xlu0 %v887
  %v889 = vpop.xlane.xlu0 %888
  %v890 = vsel %vm158, %v881, 0.0
  %891 = vadd.xlane.f32.xlu0 %v890
  %v892 = vpop.xlane.xlu0 %891
  %v893 = vsel %vm158, %v883, 0.0
  %894 = vadd.xlane.f32.xlu0 %v893
  %v895 = vpop.xlane.xlu0 %894
  %v896 = vrcp.pop %v886
  %v897 = vrcp.pop %v889
  %v898 = vrcp.pop %v892
  %v899 = vrcp.pop %v895
  %v900 = vmul.f32 %v877, %v896
  %v901 = vmul.f32 %v879, %v897
  %v902 = vmul.f32 %v881, %v898
  %v903 = vmul.f32 %v883, %v899
  %v904 = vmul.f32 %v376, %v151
  %v905 = vmul.f32 %v379, %v151
  %v906 = vmul.f32 %v382, %v151
  %v907 = vmul.f32 %v385, %v151
  %v909 = vsel %vm158, %v900, 0
  %v912 = vsel %vm158, %v901, 0
  %v915 = vsel %vm158, %v902, 0
  %v918 = vsel %vm158, %v903, 0
  %920 = vmatpush.msra.mxu0 0.0
  %921 = vmatpush.msra.mxu0 0.0
  %922 = vmatpush.msra.mxu0 0.0
  %923 = vmatpush.msra.mxu0 0.0
  %924 = vmatpush.msra.mxu0 0.0
  %925 = vmatpush.msra.mxu0 0.0
  %926 = vmatpush.msra.mxu0 0.0
  %927 = vmatpush.msra.mxu0 0.0
  %928 = vmatpush.msra.mxu0 0.0
  %929 = vmatpush.msra.mxu0 0.0
  %930 = vmatpush.msra.mxu0 0.0
  %931 = vmatpush.msra.mxu0 0.0
  %932 = vmatpush.msra.mxu0 %v907
  %933 = vmatpush.msra.mxu0 %v906
  %934 = vmatpush.msra.mxu0 %v905
  %935 = vmatpush.msra.mxu0 %v904
  %936 = vmatmul.f32.gmra.mxu0 %v909
  %v937 = vpop.f32.mrf.mxu0
  %v938 = vadd.f32 0.0, %v937
  %939 = vmatmul.f32.gmra.mxu0 %v912
  %v940 = vpop.f32.mrf.mxu0
  %v941 = vadd.f32 0.0, %v940
  %942 = vmatmul.f32.gmra.mxu0 %v915
  %v943 = vpop.f32.mrf.mxu0
  %v944 = vadd.f32 0.0, %v943
  %945 = vmatmul.f32.gmra.mxu0 %v918
  %v946 = vpop.f32.mrf.mxu0
  %v947 = vadd.f32 0.0, %v946
  %948 = vdwg.mxu0
  %v949 = vadd.f32 %v810, %v938
  %v950 = vadd.f32 %v811, %v941
  %v951 = vadd.f32 %v812, %v944
  %v952 = vadd.f32 %v813, %v947
  %v953 = vperm.slane %v392, 0
  %v955 = vsel %vm158, %v949, 0
  %v958 = vsel %vm158, %v950, 0
  %v961 = vsel %vm158, %v951, 0
  %v964 = vsel %vm158, %v952, 0
  %966 = vmatpush.msra.mxu0 0.0
  %967 = vmatpush.msra.mxu0 0.0
  %968 = vmatpush.msra.mxu0 0.0
  %969 = vmatpush.msra.mxu0 0.0
  %970 = vmatpush.msra.mxu0 0.0
  %971 = vmatpush.msra.mxu0 0.0
  %972 = vmatpush.msra.mxu0 0.0
  %973 = vmatpush.msra.mxu0 0.0
  %974 = vmatpush.msra.mxu0 0.0
  %975 = vmatpush.msra.mxu0 0.0
  %976 = vmatpush.msra.mxu0 0.0
  %977 = vmatpush.msra.mxu0 0.0
  %978 = vmatpush.msra.mxu0 %v391
  %979 = vmatpush.msra.mxu0 %v390
  %980 = vmatpush.msra.mxu0 %v389
  %981 = vmatpush.msra.mxu0 %v388
  %982 = vmatmul.f32.gmra.mxu0 %v955
  %v983 = vpop.f32.mrf.mxu0
  %v984 = vadd.f32 %v953, %v983
  %985 = vmatmul.f32.gmra.mxu0 %v958
  %v986 = vpop.f32.mrf.mxu0
  %v987 = vadd.f32 %v953, %v986
  %988 = vmatmul.f32.gmra.mxu0 %v961
  %v989 = vpop.f32.mrf.mxu0
  %v990 = vadd.f32 %v953, %v989
  %991 = vmatmul.f32.gmra.mxu0 %v964
  %v992 = vpop.f32.mrf.mxu0
  %v993 = vadd.f32 %v953, %v992
  %994 = vdwg.mxu0
  %v995 = vadd.f32 %v47, %v984
  %v996 = vadd.f32 %v48, %v987
  %v997 = vadd.f32 %v49, %v990
  %v998 = vadd.f32 %v50, %v993
  %v999 = vld [vmem:[%s11 + $0x4] sm:$0x1]
  %v1000 = vld [vmem:[%s11 + $0x5] sm:$0x1]
  %v1001 = vsel %vm158, %v995, 0.0
  %1002 = vadd.xlane.f32.xlu0 %v1001
  %v1003 = vpop.xlane.xlu0 %1002
  %v1004 = vsel %vm158, %v996, 0.0
  %1005 = vadd.xlane.f32.xlu0 %v1004
  %v1006 = vpop.xlane.xlu0 %1005
  %v1007 = vsel %vm158, %v997, 0.0
  %1008 = vadd.xlane.f32.xlu0 %v1007
  %v1009 = vpop.xlane.xlu0 %1008
  %v1010 = vsel %vm158, %v998, 0.0
  %1011 = vadd.xlane.f32.xlu0 %v1010
  %v1012 = vpop.xlane.xlu0 %1011
  %v1013 = vrcp.pop 32.0
  %v1014 = vmul.f32 32.0, %v1013
  %v1015 = vsub.f32 1.0, %v1014
  %v1016 = vmul.f32 %v1013, %v1015
  %v1017 = vadd.f32 %v1013, %v1016
  %vm1018 = vweird.f32 %v1013
  %v1019 = vsel %vm1018, %v1013, %v1017
  %v1020 = vmul.f32 %v1003, %v1019
  %v1021 = vmul.f32 %v1006, %v1019
  %v1022 = vmul.f32 %v1009, %v1019
  %v1023 = vmul.f32 %v1012, %v1019
  %v1024 = vsub.f32 %v995, %v1020
  %v1025 = vsub.f32 %v996, %v1021
  %v1026 = vsub.f32 %v997, %v1022
  %v1027 = vsub.f32 %v998, %v1023
  %v1028 = vmul.f32 %v1024, %v1024
  %v1029 = vmul.f32 %v1025, %v1025
  %v1030 = vmul.f32 %v1026, %v1026
  %v1031 = vmul.f32 %v1027, %v1027
  %v1032 = vsel %vm158, %v1028, 0.0
  %1033 = vadd.xlane.f32.xlu0 %v1032
  %v1034 = vpop.xlane.xlu0 %1033
  %v1035 = vsel %vm158, %v1029, 0.0
  %1036 = vadd.xlane.f32.xlu0 %v1035
  %v1037 = vpop.xlane.xlu0 %1036
  %v1038 = vsel %vm158, %v1030, 0.0
  %1039 = vadd.xlane.f32.xlu0 %v1038
  %v1040 = vpop.xlane.xlu0 %1039
  %v1041 = vsel %vm158, %v1031, 0.0
  %1042 = vadd.xlane.f32.xlu0 %v1041
  %v1043 = vpop.xlane.xlu0 %1042
  %v1044 = vmul.f32 %v1034, %v1019
  %v1045 = vmul.f32 %v1037, %v1019
  %v1046 = vmul.f32 %v1040, %v1019
  %v1047 = vmul.f32 %v1043, %v1019
  %v1048 = vadd.f32 %v1044, 1e-05
  %v1049 = vadd.f32 %v1045, 1e-05
  %v1050 = vadd.f32 %v1046, 1e-05
  %v1051 = vadd.f32 %v1047, 1e-05
  %v1052 = vrsqrt.pop %v1048
  %v1053 = vmul.f32 %v1052, %v1048
  %v1054 = vmul.f32 %v1053, %v1052
  %v1055 = vmul.f32 0.5, %v1054
  %v1056 = vsub.f32 1.5, %v1055
  %v1057 = vmul.f32 %v1052, %v1056
  %vm1058 = vweird.f32 %v1048
  %vm1059 = vweird.f32 %v1052
  %vm1060 = vmor %vm1058, %vm1059
  %v1061 = vsel %vm1060, %v1052, %v1057
  %v1062 = vrsqrt.pop %v1049
  %v1063 = vmul.f32 %v1062, %v1049
  %v1064 = vmul.f32 %v1063, %v1062
  %v1065 = vmul.f32 0.5, %v1064
  %v1066 = vsub.f32 1.5, %v1065
  %v1067 = vmul.f32 %v1062, %v1066
  %vm1068 = vweird.f32 %v1049
  %vm1069 = vweird.f32 %v1062
  %vm1070 = vmor %vm1068, %vm1069
  %v1071 = vsel %vm1070, %v1062, %v1067
  %v1072 = vrsqrt.pop %v1050
  %v1073 = vmul.f32 %v1072, %v1050
  %v1074 = vmul.f32 %v1073, %v1072
  %v1075 = vmul.f32 0.5, %v1074
  %v1076 = vsub.f32 1.5, %v1075
  %v1077 = vmul.f32 %v1072, %v1076
  %vm1078 = vweird.f32 %v1050
  %vm1079 = vweird.f32 %v1072
  %vm1080 = vmor %vm1078, %vm1079
  %v1081 = vsel %vm1080, %v1072, %v1077
  %v1082 = vrsqrt.pop %v1051
  %v1083 = vmul.f32 %v1082, %v1051
  %v1084 = vmul.f32 %v1083, %v1082
  %v1085 = vmul.f32 0.5, %v1084
  %v1086 = vsub.f32 1.5, %v1085
  %v1087 = vmul.f32 %v1082, %v1086
  %vm1088 = vweird.f32 %v1051
  %vm1089 = vweird.f32 %v1082
  %vm1090 = vmor %vm1088, %vm1089
  %v1091 = vsel %vm1090, %v1082, %v1087
  %v1092 = vmul.f32 %v1024, %v1061
  %v1093 = vmul.f32 %v1025, %v1071
  %v1094 = vmul.f32 %v1026, %v1081
  %v1095 = vmul.f32 %v1027, %v1091
  %v1096 = vperm.slane %v999, 0
  %v1097 = vmul.f32 %v1092, %v1096
  %v1098 = vmul.f32 %v1093, %v1096
  %v1099 = vmul.f32 %v1094, %v1096
  %v1100 = vmul.f32 %v1095, %v1096
  %v1101 = vperm.slane %v1000, 0
  %v1102 = vadd.f32 %v1097, %v1101
  %v1103 = vadd.f32 %v1098, %v1101
  %v1104 = vadd.f32 %v1099, %v1101
  %v1105 = vadd.f32 %v1100, %v1101
  %v1106 = vadd.f32 %v1102, %v241
  %v1107 = vadd.f32 %v1103, %v244
  %v1108 = vadd.f32 %v1104, %v247
  %v1109 = vadd.f32 %v1105, %v250
  %s1110 = scalar_lea.vmem %s8, 128
  %v1111 = vld [vmem:[%s1110] sm:$0xff]
  %v1112 = vld [vmem:[%s1110 + $0x8] sm:$0xff]
  %v1113 = vld [vmem:[%s1110 + $0x10] sm:$0xff]
  %v1114 = vld [vmem:[%s1110 + $0x18] sm:$0xff]
  %v1115 = vld [vmem:[%s11 + $0x6] sm:$0x1]
  %v1116 = vperm.slane %v1115, 0
  %v1118 = vsel %vm158, %v1106, 0
  %v1121 = vsel %vm158, %v1107, 0
  %v1124 = vsel %vm158, %v1108, 0
  %v1127 = vsel %vm158, %v1109, 0
  %1129 = vmatpush.msra.mxu0 0.0
  %1130 = vmatpush.msra.mxu0 0.0
  %1131 = vmatpush.msra.mxu0 0.0
  %1132 = vmatpush.msra.mxu0 0.0
  %1133 = vmatpush.msra.mxu0 0.0
  %1134 = vmatpush.msra.mxu0 0.0
  %1135 = vmatpush.msra.mxu0 0.0
  %1136 = vmatpush.msra.mxu0 0.0
  %1137 = vmatpush.msra.mxu0 0.0
  %1138 = vmatpush.msra.mxu0 0.0
  %1139 = vmatpush.msra.mxu0 0.0
  %1140 = vmatpush.msra.mxu0 0.0
  %1141 = vmatpush.msra.mxu0 %v1114
  %1142 = vmatpush.msra.mxu0 %v1113
  %1143 = vmatpush.msra.mxu0 %v1112
  %1144 = vmatpush.msra.mxu0 %v1111
  %1145 = vmatmul.f32.gmra.mxu0 %v1118
  %v1146 = vpop.f32.mrf.mxu0
  %v1147 = vadd.f32 %v1116, %v1146
  %1148 = vmatmul.f32.gmra.mxu0 %v1121
  %v1149 = vpop.f32.mrf.mxu0
  %v1150 = vadd.f32 %v1116, %v1149
  %1151 = vmatmul.f32.gmra.mxu0 %v1124
  %v1152 = vpop.f32.mrf.mxu0
  %v1153 = vadd.f32 %v1116, %v1152
  %1154 = vmatmul.f32.gmra.mxu0 %v1127
  %v1155 = vpop.f32.mrf.mxu0
  %v1156 = vadd.f32 %v1116, %v1155
  %1157 = vdwg.mxu0
  %s1158 = scalar_lea.vmem %s8, 160
  %v1159 = vld [vmem:[%s1158] sm:$0xff]
  %v1160 = vld [vmem:[%s1158 + $0x8] sm:$0xff]
  %v1161 = vld [vmem:[%s1158 + $0x10] sm:$0xff]
  %v1162 = vld [vmem:[%s1158 + $0x18] sm:$0xff]
  %v1163 = vld [vmem:[%s11 + $0x7] sm:$0x1]
  %v1164 = vperm.slane %v1163, 0
  %v1166 = vsel %vm158, %v67, 0
  %v1169 = vsel %vm158, %v68, 0
  %v1172 = vsel %vm158, %v69, 0
  %v1175 = vsel %vm158, %v70, 0
  %v1178 = vsel %vm158, %v71, 0
  %v1181 = vsel %vm158, %v72, 0
  %1183 = vmatpush.msra.mxu0 0.0
  %1184 = vmatpush.msra.mxu0 0.0
  %1185 = vmatpush.msra.mxu0 0.0
  %1186 = vmatpush.msra.mxu0 0.0
  %1187 = vmatpush.msra.mxu0 0.0
  %1188 = vmatpush.msra.mxu0 0.0
  %1189 = vmatpush.msra.mxu0 0.0
  %1190 = vmatpush.msra.mxu0 0.0
  %1191 = vmatpush.msra.mxu0 0.0
  %1192 = vmatpush.msra.mxu0 0.0
  %1193 = vmatpush.msra.mxu0 0.0
  %1194 = vmatpush.msra.mxu0 0.0
  %1195 = vmatpush.msra.mxu0 %v1162
  %1196 = vmatpush.msra.mxu0 %v1161
  %1197 = vmatpush.msra.mxu0 %v1160
  %1198 = vmatpush.msra.mxu0 %v1159
  %1199 = vmatmul.f32.gmra.mxu0 %v1166
  %v1200 = vpop.f32.mrf.mxu0
  %v1201 = vadd.f32 %v1164, %v1200
  %1202 = vmatmul.f32.gmra.mxu0 %v1169
  %v1203 = vpop.f32.mrf.mxu0
  %v1204 = vadd.f32 %v1164, %v1203
  %1205 = vmatmul.f32.gmra.mxu0 %v1172
  %v1206 = vpop.f32.mrf.mxu0
  %v1207 = vadd.f32 %v1164, %v1206
  %1208 = vmatmul.f32.gmra.mxu0 %v1175
  %v1209 = vpop.f32.mrf.mxu0
  %v1210 = vadd.f32 %v1164, %v1209
  %1211 = vmatmul.f32.gmra.mxu0 %v1178
  %v1212 = vpop.f32.mrf.mxu0
  %v1213 = vadd.f32 %v1164, %v1212
  %1214 = vmatmul.f32.gmra.mxu0 %v1181
  %v1215 = vpop.f32.mrf.mxu0
  %v1216 = vadd.f32 %v1164, %v1215
  %1217 = vdwg.mxu0
  %s1218 = scalar_lea.vmem %s8, 192
  %v1219 = vld [vmem:[%s1218] sm:$0xff]
  %v1220 = vld [vmem:[%s1218 + $0x8] sm:$0xff]
  %v1221 = vld [vmem:[%s1218 + $0x10] sm:$0xff]
  %v1222 = vld [vmem:[%s1218 + $0x18] sm:$0xff]
  %v1223 = vld [vmem:[%s11 + $0x8] sm:$0x1]
  %v1224 = vperm.slane %v1223, 0
  %v1226 = vsel %vm158, %v55, 0
  %v1229 = vsel %vm158, %v56, 0
  %v1232 = vsel %vm158, %v57, 0
  %v1235 = vsel %vm158, %v58, 0
  %v1238 = vsel %vm158, %v59, 0
  %v1241 = vsel %vm158, %v60, 0
  %1243 = vmatpush.msra.mxu0 0.0
  %1244 = vmatpush.msra.mxu0 0.0
  %1245 = vmatpush.msra.mxu0 0.0
  %1246 = vmatpush.msra.mxu0 0.0
  %1247 = vmatpush.msra.mxu0 0.0
  %1248 = vmatpush.msra.mxu0 0.0
  %1249 = vmatpush.msra.mxu0 0.0
  %1250 = vmatpush.msra.mxu0 0.0
  %1251 = vmatpush.msra.mxu0 0.0
  %1252 = vmatpush.msra.mxu0 0.0
  %1253 = vmatpush.msra.mxu0 0.0
  %1254 = vmatpush.msra.mxu0 0.0
  %1255 = vmatpush.msra.mxu0 %v1222
  %1256 = vmatpush.msra.mxu0 %v1221
  %1257 = vmatpush.msra.mxu0 %v1220
  %1258 = vmatpush.msra.mxu0 %v1219
  %1259 = vmatmul.f32.gmra.mxu0 %v1226
  %v1260 = vpop.f32.mrf.mxu0
  %v1261 = vadd.f32 %v1224, %v1260
  %1262 = vmatmul.f32.gmra.mxu0 %v1229
  %v1263 = vpop.f32.mrf.mxu0
  %v1264 = vadd.f32 %v1224, %v1263
  %1265 = vmatmul.f32.gmra.mxu0 %v1232
  %v1266 = vpop.f32.mrf.mxu0
  %v1267 = vadd.f32 %v1224, %v1266
  %1268 = vmatmul.f32.gmra.mxu0 %v1235
  %v1269 = vpop.f32.mrf.mxu0
  %v1270 = vadd.f32 %v1224, %v1269
  %1271 = vmatmul.f32.gmra.mxu0 %v1238
  %v1272 = vpop.f32.mrf.mxu0
  %v1273 = vadd.f32 %v1224, %v1272
  %1274 = vmatmul.f32.gmra.mxu0 %v1241
  %v1275 = vpop.f32.mrf.mxu0
  %v1276 = vadd.f32 %v1224, %v1275
  %1277 = vdwg.mxu0
  %s1278 = scalar_lea.vmem %s8, 224
  %v1279 = vld [vmem:[%s1278] sm:$0xff]
  %v1280 = vld [vmem:[%s1278 + $0x8] sm:$0xff]
  %v1281 = vld [vmem:[%s1278 + $0x10] sm:$0xff]
  %v1282 = vld [vmem:[%s1278 + $0x18] sm:$0xff]
  %v1283 = vld [vmem:[%s11 + $0x9] sm:$0x1]
  %v1284 = vmul.f32 %v1147, %v393
  %v1285 = vmul.f32 %v1150, %v393
  %v1286 = vmul.f32 %v1153, %v393
  %v1287 = vmul.f32 %v1156, %v393
  %v1289 = vsel %vm158, %v1284, 0
  %v1292 = vsel %vm158, %v1285, 0
  %v1295 = vsel %vm158, %v1286, 0
  %v1298 = vsel %vm158, %v1287, 0
  %v1301 = vsel %vm158, %v1201, 0
  %v1304 = vsel %vm158, %v1204, 0
  %v1307 = vsel %vm158, %v1207, 0
  %v1310 = vsel %vm158, %v1210, 0
  %v1313 = vsel %vm158, %v1213, 0
  %v1316 = vsel %vm158, %v1216, 0
  %1318 = vmatpush.xpose.msra.mxu0 0.0
  %1319 = vmatpush.xpose.msra.mxu0 0.0
  %1320 = vmatpush.xpose.msra.mxu0 0.0
  %1321 = vmatpush.xpose.msra.mxu0 0.0
  %1322 = vmatpush.xpose.msra.mxu0 0.0
  %1323 = vmatpush.xpose.msra.mxu0 0.0
  %1324 = vmatpush.xpose.msra.mxu0 0.0
  %1325 = vmatpush.xpose.msra.mxu0 0.0
  %1326 = vmatpush.xpose.msra.mxu0 0.0
  %1327 = vmatpush.xpose.msra.mxu0 0.0
  %1328 = vmatpush.xpose.msra.mxu0 %v1316
  %1329 = vmatpush.xpose.msra.mxu0 %v1313
  %1330 = vmatpush.xpose.msra.mxu0 %v1310
  %1331 = vmatpush.xpose.msra.mxu0 %v1307
  %1332 = vmatpush.xpose.msra.mxu0 %v1304
  %1333 = vmatpush.xpose.msra.mxu0 %v1301
  %1334 = vmatmul.f32.gmra.mxu0 %v1289
  %v1335 = vpop.f32.mrf.mxu0
  %v1336 = vadd.f32 %v126, %v1335
  %1337 = vmatmul.f32.gmra.mxu0 %v1292
  %v1338 = vpop.f32.mrf.mxu0
  %v1339 = vadd.f32 %v127, %v1338
  %1340 = vmatmul.f32.gmra.mxu0 %v1295
  %v1341 = vpop.f32.mrf.mxu0
  %v1342 = vadd.f32 %v128, %v1341
  %1343 = vmatmul.f32.gmra.mxu0 %v1298
  %v1344 = vpop.f32.mrf.mxu0
  %v1345 = vadd.f32 %v129, %v1344
  %1346 = vdwg.mxu0
  %vm1347 = vcmask 343040
  %v1348 = vsel %vm1347, %v1336, -inf
  %1349 = vmax.xlane.f32.xlu0 %v1348
  %v1350 = vpop.xlane.xlu0 %1349
  %v1351 = vsel %vm1347, %v1339, -inf
  %1352 = vmax.xlane.f32.xlu0 %v1351
  %v1353 = vpop.xlane.xlu0 %1352
  %v1354 = vsel %vm1347, %v1342, -inf
  %1355 = vmax.xlane.f32.xlu0 %v1354
  %v1356 = vpop.xlane.xlu0 %1355
  %v1357 = vsel %vm1347, %v1345, -inf
  %1358 = vmax.xlane.f32.xlu0 %v1357
  %v1359 = vpop.xlane.xlu0 %1358
  %v1360 = vsub.f32 %v1336, %v1350
  %v1361 = vsub.f32 %v1339, %v1353
  %v1362 = vsub.f32 %v1342, %v1356
  %v1363 = vsub.f32 %v1345, %v1359
  %v1364 = vmul.f32 %v1360, 1.442695
  %v1365 = vpow.pop %v1364
  %v1366 = vmul.f32 %v1361, 1.442695
  %v1367 = vpow.pop %v1366
  %v1368 = vmul.f32 %v1362, 1.442695
  %v1369 = vpow.pop %v1368
  %v1370 = vmul.f32 %v1363, 1.442695
  %v1371 = vpow.pop %v1370
  %v1372 = vsel %vm1347, %v1365, 0.0
  %1373 = vadd.xlane.f32.xlu0 %v1372
  %v1374 = vpop.xlane.xlu0 %1373
  %v1375 = vsel %vm1347, %v1367, 0.0
  %1376 = vadd.xlane.f32.xlu0 %v1375
  %v1377 = vpop.xlane.xlu0 %1376
  %v1378 = vsel %vm1347, %v1369, 0.0
  %1379 = vadd.xlane.f32.xlu0 %v1378
  %v1380 = vpop.xlane.xlu0 %1379
  %v1381 = vsel %vm1347, %v1371, 0.0
  %1382 = vadd.xlane.f32.xlu0 %v1381
  %v1383 = vpop.xlane.xlu0 %1382
  %v1384 = vrcp.pop %v1374
  %v1385 = vrcp.pop %v1377
  %v1386 = vrcp.pop %v1380
  %v1387 = vrcp.pop %v1383
  %v1388 = vmul.f32 %v1365, %v1384
  %v1389 = vmul.f32 %v1367, %v1385
  %v1390 = vmul.f32 %v1369, %v1386
  %v1391 = vmul.f32 %v1371, %v1387
  %v1392 = vmul.f32 %v1261, %v136
  %v1393 = vmul.f32 %v1264, %v136
  %v1394 = vmul.f32 %v1267, %v136
  %v1395 = vmul.f32 %v1270, %v136
  %v1396 = vmul.f32 %v1273, %v136
  %v1397 = vmul.f32 %v1276, %v136
  %v1398 = vmul.f32 %v1147, %v499
  %v1399 = vmul.f32 %v1150, %v499
  %v1400 = vmul.f32 %v1153, %v499
  %v1401 = vmul.f32 %v1156, %v499
  %v1403 = vsel %vm158, %v1398, 0
  %v1406 = vsel %vm158, %v1399, 0
  %v1409 = vsel %vm158, %v1400, 0
  %v1412 = vsel %vm158, %v1401, 0
  %1414 = vmatpush.xpose.msra.mxu0 0.0
  %1415 = vmatpush.xpose.msra.mxu0 0.0
  %1416 = vmatpush.xpose.msra.mxu0 0.0
  %1417 = vmatpush.xpose.msra.mxu0 0.0
  %1418 = vmatpush.xpose.msra.mxu0 0.0
  %1419 = vmatpush.xpose.msra.mxu0 0.0
  %1420 = vmatpush.xpose.msra.mxu0 0.0
  %1421 = vmatpush.xpose.msra.mxu0 0.0
  %1422 = vmatpush.xpose.msra.mxu0 0.0
  %1423 = vmatpush.xpose.msra.mxu0 0.0
  %1424 = vmatpush.xpose.msra.mxu0 %v1316
  %1425 = vmatpush.xpose.msra.mxu0 %v1313
  %1426 = vmatpush.xpose.msra.mxu0 %v1310
  %1427 = vmatpush.xpose.msra.mxu0 %v1307
  %1428 = vmatpush.xpose.msra.mxu0 %v1304
  %1429 = vmatpush.xpose.msra.mxu0 %v1301
  %1430 = vmatmul.f32.gmra.mxu0 %v1403
  %v1431 = vpop.f32.mrf.mxu0
  %v1432 = vadd.f32 %v126, %v1431
  %1433 = vmatmul.f32.gmra.mxu0 %v1406
  %v1434 = vpop.f32.mrf.mxu0
  %v1435 = vadd.f32 %v127, %v1434
  %1436 = vmatmul.f32.gmra.mxu0 %v1409
  %v1437 = vpop.f32.mrf.mxu0
  %v1438 = vadd.f32 %v128, %v1437
  %1439 = vmatmul.f32.gmra.mxu0 %v1412
  %v1440 = vpop.f32.mrf.mxu0
  %v1441 = vadd.f32 %v129, %v1440
  %1442 = vdwg.mxu0
  %v1443 = vsel %vm1347, %v1432, -inf
  %1444 = vmax.xlane.f32.xlu0 %v1443
  %v1445 = vpop.xlane.xlu0 %1444
  %v1446 = vsel %vm1347, %v1435, -inf
  %1447 = vmax.xlane.f32.xlu0 %v1446
  %v1448 = vpop.xlane.xlu0 %1447
  %v1449 = vsel %vm1347, %v1438, -inf
  %1450 = vmax.xlane.f32.xlu0 %v1449
  %v1451 = vpop.xlane.xlu0 %1450
  %v1452 = vsel %vm1347, %v1441, -inf
  %1453 = vmax.xlane.f32.xlu0 %v1452
  %v1454 = vpop.xlane.xlu0 %1453
  %v1455 = vsub.f32 %v1432, %v1445
  %v1456 = vsub.f32 %v1435, %v1448
  %v1457 = vsub.f32 %v1438, %v1451
  %v1458 = vsub.f32 %v1441, %v1454
  %v1459 = vmul.f32 %v1455, 1.442695
  %v1460 = vpow.pop %v1459
  %v1461 = vmul.f32 %v1456, 1.442695
  %v1462 = vpow.pop %v1461
  %v1463 = vmul.f32 %v1457, 1.442695
  %v1464 = vpow.pop %v1463
  %v1465 = vmul.f32 %v1458, 1.442695
  %v1466 = vpow.pop %v1465
  %v1467 = vsel %vm1347, %v1460, 0.0
  %1468 = vadd.xlane.f32.xlu0 %v1467
  %v1469 = vpop.xlane.xlu0 %1468
  %v1470 = vsel %vm1347, %v1462, 0.0
  %1471 = vadd.xlane.f32.xlu0 %v1470
  %v1472 = vpop.xlane.xlu0 %1471
  %v1473 = vsel %vm1347, %v1464, 0.0
  %1474 = vadd.xlane.f32.xlu0 %v1473
  %v1475 = vpop.xlane.xlu0 %1474
  %v1476 = vsel %vm1347, %v1466, 0.0
  %1477 = vadd.xlane.f32.xlu0 %v1476
  %v1478 = vpop.xlane.xlu0 %1477
  %v1479 = vrcp.pop %v1469
  %v1480 = vrcp.pop %v1472
  %v1481 = vrcp.pop %v1475
  %v1482 = vrcp.pop %v1478
  %v1483 = vmul.f32 %v1460, %v1479
  %v1484 = vmul.f32 %v1462, %v1480
  %v1485 = vmul.f32 %v1464, %v1481
  %v1486 = vmul.f32 %v1466, %v1482
  %v1487 = vmul.f32 %v1261, %v141
  %v1488 = vmul.f32 %v1264, %v141
  %v1489 = vmul.f32 %v1267, %v141
  %v1490 = vmul.f32 %v1270, %v141
  %v1491 = vmul.f32 %v1273, %v141
  %v1492 = vmul.f32 %v1276, %v141
  %v1494 = vsel %vm1347, %v1483, 0
  %v1497 = vsel %vm1347, %v1484, 0
  %v1500 = vsel %vm1347, %v1485, 0
  %v1503 = vsel %vm1347, %v1486, 0
  %vm1505 = vcmask 1041408
  %v1507 = vsel %vm1505, %v1492, 0
  %1509 = vmatpush.msra.mxu0 0.0
  %1510 = vmatpush.msra.mxu0 0.0
  %1511 = vmatpush.msra.mxu0 0.0
  %1512 = vmatpush.msra.mxu0 0.0
  %1513 = vmatpush.msra.mxu0 0.0
  %1514 = vmatpush.msra.mxu0 0.0
  %1515 = vmatpush.msra.mxu0 0.0
  %1516 = vmatpush.msra.mxu0 0.0
  %1517 = vmatpush.msra.mxu0 0.0
  %1518 = vmatpush.msra.mxu0 0.0
  %1519 = vmatpush.msra.mxu0 %v1507
  %1520 = vmatpush.msra.mxu0 %v1491
  %1521 = vmatpush.msra.mxu0 %v1490
  %1522 = vmatpush.msra.mxu0 %v1489
  %1523 = vmatpush.msra.mxu0 %v1488
  %1524 = vmatpush.msra.mxu0 %v1487
  %1525 = vmatmul.f32.gmra.mxu0 %v1494
  %v1526 = vpop.f32.mrf.mxu0
  %v1527 = vadd.f32 0.0, %v1526
  %1528 = vmatmul.f32.gmra.mxu0 %v1497
  %v1529 = vpop.f32.mrf.mxu0
  %v1530 = vadd.f32 0.0, %v1529
  %1531 = vmatmul.f32.gmra.mxu0 %v1500
  %v1532 = vpop.f32.mrf.mxu0
  %v1533 = vadd.f32 0.0, %v1532
  %1534 = vmatmul.f32.gmra.mxu0 %v1503
  %v1535 = vpop.f32.mrf.mxu0
  %v1536 = vadd.f32 0.0, %v1535
  %1537 = vdwg.mxu0
  %v1539 = vsel %vm1347, %v1388, 0
  %v1542 = vsel %vm1347, %v1389, 0
  %v1545 = vsel %vm1347, %v1390, 0
  %v1548 = vsel %vm1347, %v1391, 0
  %v1551 = vsel %vm1505, %v1397, 0
  %1553 = vmatpush.msra.mxu0 0.0
  %1554 = vmatpush.msra.mxu0 0.0
  %1555 = vmatpush.msra.mxu0 0.0
  %1556 = vmatpush.msra.mxu0 0.0
  %1557 = vmatpush.msra.mxu0 0.0
  %1558 = vmatpush.msra.mxu0 0.0
  %1559 = vmatpush.msra.mxu0 0.0
  %1560 = vmatpush.msra.mxu0 0.0
  %1561 = vmatpush.msra.mxu0 0.0
  %1562 = vmatpush.msra.mxu0 0.0
  %1563 = vmatpush.msra.mxu0 %v1551
  %1564 = vmatpush.msra.mxu0 %v1396
  %1565 = vmatpush.msra.mxu0 %v1395
  %1566 = vmatpush.msra.mxu0 %v1394
  %1567 = vmatpush.msra.mxu0 %v1393
  %1568 = vmatpush.msra.mxu0 %v1392
  %1569 = vmatmul.f32.gmra.mxu0 %v1539
  %v1570 = vpop.f32.mrf.mxu0
  %v1571 = vadd.f32 %v1527, %v1570
  %1572 = vmatmul.f32.gmra.mxu0 %v1542
  %v1573 = vpop.f32.mrf.mxu0
  %v1574 = vadd.f32 %v1530, %v1573
  %1575 = vmatmul.f32.gmra.mxu0 %v1545
  %v1576 = vpop.f32.mrf.mxu0
  %v1577 = vadd.f32 %v1533, %v1576
  %1578 = vmatmul.f32.gmra.mxu0 %v1548
  %v1579 = vpop.f32.mrf.mxu0
  %v1580 = vadd.f32 %v1536, %v1579
  %1581 = vdwg.mxu0
  %v1582 = vmul.f32 %v1147, %v675
  %v1583 = vmul.f32 %v1150, %v675
  %v1584 = vmul.f32 %v1153, %v675
  %v1585 = vmul.f32 %v1156, %v675
  %v1587 = vsel %vm158, %v1582, 0
  %v1590 = vsel %vm158, %v1583, 0
  %v1593 = vsel %vm158, %v1584, 0
  %v1596 = vsel %vm158, %v1585, 0
  %1598 = vmatpush.xpose.msra.mxu0 0.0
  %1599 = vmatpush.xpose.msra.mxu0 0.0
  %1600 = vmatpush.xpose.msra.mxu0 0.0
  %1601 = vmatpush.xpose.msra.mxu0 0.0
  %1602 = vmatpush.xpose.msra.mxu0 0.0
  %1603 = vmatpush.xpose.msra.mxu0 0.0
  %1604 = vmatpush.xpose.msra.mxu0 0.0
  %1605 = vmatpush.xpose.msra.mxu0 0.0
  %1606 = vmatpush.xpose.msra.mxu0 0.0
  %1607 = vmatpush.xpose.msra.mxu0 0.0
  %1608 = vmatpush.xpose.msra.mxu0 %v1316
  %1609 = vmatpush.xpose.msra.mxu0 %v1313
  %1610 = vmatpush.xpose.msra.mxu0 %v1310
  %1611 = vmatpush.xpose.msra.mxu0 %v1307
  %1612 = vmatpush.xpose.msra.mxu0 %v1304
  %1613 = vmatpush.xpose.msra.mxu0 %v1301
  %1614 = vmatmul.f32.gmra.mxu0 %v1587
  %v1615 = vpop.f32.mrf.mxu0
  %v1616 = vadd.f32 %v126, %v1615
  %1617 = vmatmul.f32.gmra.mxu0 %v1590
  %v1618 = vpop.f32.mrf.mxu0
  %v1619 = vadd.f32 %v127, %v1618
  %1620 = vmatmul.f32.gmra.mxu0 %v1593
  %v1621 = vpop.f32.mrf.mxu0
  %v1622 = vadd.f32 %v128, %v1621
  %1623 = vmatmul.f32.gmra.mxu0 %v1596
  %v1624 = vpop.f32.mrf.mxu0
  %v1625 = vadd.f32 %v129, %v1624
  %1626 = vdwg.mxu0
  %v1627 = vsel %vm1347, %v1616, -inf
  %1628 = vmax.xlane.f32.xlu0 %v1627
  %v1629 = vpop.xlane.xlu0 %1628
  %v1630 = vsel %vm1347, %v1619, -inf
  %1631 = vmax.xlane.f32.xlu0 %v1630
  %v1632 = vpop.xlane.xlu0 %1631
  %v1633 = vsel %vm1347, %v1622, -inf
  %1634 = vmax.xlane.f32.xlu0 %v1633
  %v1635 = vpop.xlane.xlu0 %1634
  %v1636 = vsel %vm1347, %v1625, -inf
  %1637 = vmax.xlane.f32.xlu0 %v1636
  %v1638 = vpop.xlane.xlu0 %1637
  %v1639 = vsub.f32 %v1616, %v1629
  %v1640 = vsub.f32 %v1619, %v1632
  %v1641 = vsub.f32 %v1622, %v1635
  %v1642 = vsub.f32 %v1625, %v1638
  %v1643 = vmul.f32 %v1639, 1.442695
  %v1644 = vpow.pop %v1643
  %v1645 = vmul.f32 %v1640, 1.442695
  %v1646 = vpow.pop %v1645
  %v1647 = vmul.f32 %v1641, 1.442695
  %v1648 = vpow.pop %v1647
  %v1649 = vmul.f32 %v1642, 1.442695
  %v1650 = vpow.pop %v1649
  %v1651 = vsel %vm1347, %v1644, 0.0
  %1652 = vadd.xlane.f32.xlu0 %v1651
  %v1653 = vpop.xlane.xlu0 %1652
  %v1654 = vsel %vm1347, %v1646, 0.0
  %1655 = vadd.xlane.f32.xlu0 %v1654
  %v1656 = vpop.xlane.xlu0 %1655
  %v1657 = vsel %vm1347, %v1648, 0.0
  %1658 = vadd.xlane.f32.xlu0 %v1657
  %v1659 = vpop.xlane.xlu0 %1658
  %v1660 = vsel %vm1347, %v1650, 0.0
  %1661 = vadd.xlane.f32.xlu0 %v1660
  %v1662 = vpop.xlane.xlu0 %1661
  %v1663 = vrcp.pop %v1653
  %v1664 = vrcp.pop %v1656
  %v1665 = vrcp.pop %v1659
  %v1666 = vrcp.pop %v1662
  %v1667 = vmul.f32 %v1644, %v1663
  %v1668 = vmul.f32 %v1646, %v1664
  %v1669 = vmul.f32 %v1648, %v1665
  %v1670 = vmul.f32 %v1650, %v1666
  %v1671 = vmul.f32 %v1261, %v146
  %v1672 = vmul.f32 %v1264, %v146
  %v1673 = vmul.f32 %v1267, %v146
  %v1674 = vmul.f32 %v1270, %v146
  %v1675 = vmul.f32 %v1273, %v146
  %v1676 = vmul.f32 %v1276, %v146
  %v1678 = vsel %vm1347, %v1667, 0
  %v1681 = vsel %vm1347, %v1668, 0
  %v1684 = vsel %vm1347, %v1669, 0
  %v1687 = vsel %vm1347, %v1670, 0
  %v1690 = vsel %vm1505, %v1676, 0
  %1692 = vmatpush.msra.mxu0 0.0
  %1693 = vmatpush.msra.mxu0 0.0
  %1694 = vmatpush.msra.mxu0 0.0
  %1695 = vmatpush.msra.mxu0 0.0
  %1696 = vmatpush.msra.mxu0 0.0
  %1697 = vmatpush.msra.mxu0 0.0
  %1698 = vmatpush.msra.mxu0 0.0
  %1699 = vmatpush.msra.mxu0 0.0
  %1700 = vmatpush.msra.mxu0 0.0
  %1701 = vmatpush.msra.mxu0 0.0
  %1702 = vmatpush.msra.mxu0 %v1690
  %1703 = vmatpush.msra.mxu0 %v1675
  %1704 = vmatpush.msra.mxu0 %v1674
  %1705 = vmatpush.msra.mxu0 %v1673
  %1706 = vmatpush.msra.mxu0 %v1672
  %1707 = vmatpush.msra.mxu0 %v1671
  %1708 = vmatmul.f32.gmra.mxu0 %v1678
  %v1709 = vpop.f32.mrf.mxu0
  %v1710 = vadd.f32 0.0, %v1709
  %1711 = vmatmul.f32.gmra.mxu0 %v1681
  %v1712 = vpop.f32.mrf.mxu0
  %v1713 = vadd.f32 0.0, %v1712
  %1714 = vmatmul.f32.gmra.mxu0 %v1684
  %v1715 = vpop.f32.mrf.mxu0
  %v1716 = vadd.f32 0.0, %v1715
  %1717 = vmatmul.f32.gmra.mxu0 %v1687
  %v1718 = vpop.f32.mrf.mxu0
  %v1719 = vadd.f32 0.0, %v1718
  %1720 = vdwg.mxu0
  %v1721 = vadd.f32 %v1571, %v1710
  %v1722 = vadd.f32 %v1574, %v1713
  %v1723 = vadd.f32 %v1577, %v1716
  %v1724 = vadd.f32 %v1580, %v1719
  %v1725 = vmul.f32 %v1147, %v814
  %v1726 = vmul.f32 %v1150, %v814
  %v1727 = vmul.f32 %v1153, %v814
  %v1728 = vmul.f32 %v1156, %v814
  %v1730 = vsel %vm158, %v1725, 0
  %v1733 = vsel %vm158, %v1726, 0
  %v1736 = vsel %vm158, %v1727, 0
  %v1739 = vsel %vm158, %v1728, 0
  %1741 = vmatpush.xpose.msra.mxu0 0.0
  %1742 = vmatpush.xpose.msra.mxu0 0.0
  %1743 = vmatpush.xpose.msra.mxu0 0.0
  %1744 = vmatpush.xpose.msra.mxu0 0.0
  %1745 = vmatpush.xpose.msra.mxu0 0.0
  %1746 = vmatpush.xpose.msra.mxu0 0.0
  %1747 = vmatpush.xpose.msra.mxu0 0.0
  %1748 = vmatpush.xpose.msra.mxu0 0.0
  %1749 = vmatpush.xpose.msra.mxu0 0.0
  %1750 = vmatpush.xpose.msra.mxu0 0.0
  %1751 = vmatpush.xpose.msra.mxu0 %v1316
  %1752 = vmatpush.xpose.msra.mxu0 %v1313
  %1753 = vmatpush.xpose.msra.mxu0 %v1310
  %1754 = vmatpush.xpose.msra.mxu0 %v1307
  %1755 = vmatpush.xpose.msra.mxu0 %v1304
  %1756 = vmatpush.xpose.msra.mxu0 %v1301
  %1757 = vmatmul.f32.gmra.mxu0 %v1730
  %v1758 = vpop.f32.mrf.mxu0
  %v1759 = vadd.f32 %v126, %v1758
  %1760 = vmatmul.f32.gmra.mxu0 %v1733
  %v1761 = vpop.f32.mrf.mxu0
  %v1762 = vadd.f32 %v127, %v1761
  %1763 = vmatmul.f32.gmra.mxu0 %v1736
  %v1764 = vpop.f32.mrf.mxu0
  %v1765 = vadd.f32 %v128, %v1764
  %1766 = vmatmul.f32.gmra.mxu0 %v1739
  %v1767 = vpop.f32.mrf.mxu0
  %v1768 = vadd.f32 %v129, %v1767
  %1769 = vdwg.mxu0
  %v1770 = vsel %vm1347, %v1759, -inf
  %1771 = vmax.xlane.f32.xlu0 %v1770
  %v1772 = vpop.xlane.xlu0 %1771
  %v1773 = vsel %vm1347, %v1762, -inf
  %1774 = vmax.xlane.f32.xlu0 %v1773
  %v1775 = vpop.xlane.xlu0 %1774
  %v1776 = vsel %vm1347, %v1765, -inf
  %1777 = vmax.xlane.f32.xlu0 %v1776
  %v1778 = vpop.xlane.xlu0 %1777
  %v1779 = vsel %vm1347, %v1768, -inf
  %1780 = vmax.xlane.f32.xlu0 %v1779
  %v1781 = vpop.xlane.xlu0 %1780
  %v1782 = vsub.f32 %v1759, %v1772
  %v1783 = vsub.f32 %v1762, %v1775
  %v1784 = vsub.f32 %v1765, %v1778
  %v1785 = vsub.f32 %v1768, %v1781
  %v1786 = vmul.f32 %v1782, 1.442695
  %v1787 = vpow.pop %v1786
  %v1788 = vmul.f32 %v1783, 1.442695
  %v1789 = vpow.pop %v1788
  %v1790 = vmul.f32 %v1784, 1.442695
  %v1791 = vpow.pop %v1790
  %v1792 = vmul.f32 %v1785, 1.442695
  %v1793 = vpow.pop %v1792
  %v1794 = vsel %vm1347, %v1787, 0.0
  %1795 = vadd.xlane.f32.xlu0 %v1794
  %v1796 = vpop.xlane.xlu0 %1795
  %v1797 = vsel %vm1347, %v1789, 0.0
  %1798 = vadd.xlane.f32.xlu0 %v1797
  %v1799 = vpop.xlane.xlu0 %1798
  %v1800 = vsel %vm1347, %v1791, 0.0
  %1801 = vadd.xlane.f32.xlu0 %v1800
  %v1802 = vpop.xlane.xlu0 %1801
  %v1803 = vsel %vm1347, %v1793, 0.0
  %1804 = vadd.xlane.f32.xlu0 %v1803
  %v1805 = vpop.xlane.xlu0 %1804
  %v1806 = vrcp.pop %v1796
  %v1807 = vrcp.pop %v1799
  %v1808 = vrcp.pop %v1802
  %v1809 = vrcp.pop %v1805
  %v1810 = vmul.f32 %v1787, %v1806
  %v1811 = vmul.f32 %v1789, %v1807
  %v1812 = vmul.f32 %v1791, %v1808
  %v1813 = vmul.f32 %v1793, %v1809
  %v1814 = vmul.f32 %v1261, %v151
  %v1815 = vmul.f32 %v1264, %v151
  %v1816 = vmul.f32 %v1267, %v151
  %v1817 = vmul.f32 %v1270, %v151
  %v1818 = vmul.f32 %v1273, %v151
  %v1819 = vmul.f32 %v1276, %v151
  %v1821 = vsel %vm1347, %v1810, 0
  %v1824 = vsel %vm1347, %v1811, 0
  %v1827 = vsel %vm1347, %v1812, 0
  %v1830 = vsel %vm1347, %v1813, 0
  %v1833 = vsel %vm1505, %v1819, 0
  %1835 = vmatpush.msra.mxu0 0.0
  %1836 = vmatpush.msra.mxu0 0.0
  %1837 = vmatpush.msra.mxu0 0.0
  %1838 = vmatpush.msra.mxu0 0.0
  %1839 = vmatpush.msra.mxu0 0.0
  %1840 = vmatpush.msra.mxu0 0.0
  %1841 = vmatpush.msra.mxu0 0.0
  %1842 = vmatpush.msra.mxu0 0.0
  %1843 = vmatpush.msra.mxu0 0.0
  %1844 = vmatpush.msra.mxu0 0.0
  %1845 = vmatpush.msra.mxu0 %v1833
  %1846 = vmatpush.msra.mxu0 %v1818
  %1847 = vmatpush.msra.mxu0 %v1817
  %1848 = vmatpush.msra.mxu0 %v1816
  %1849 = vmatpush.msra.mxu0 %v1815
  %1850 = vmatpush.msra.mxu0 %v1814
  %1851 = vmatmul.f32.gmra.mxu0 %v1821
  %v1852 = vpop.f32.mrf.mxu0
  %v1853 = vadd.f32 0.0, %v1852
  %1854 = vmatmul.f32.gmra.mxu0 %v1824
  %v1855 = vpop.f32.mrf.mxu0
  %v1856 = vadd.f32 0.0, %v1855
  %1857 = vmatmul.f32.gmra.mxu0 %v1827
  %v1858 = vpop.f32.mrf.mxu0
  %v1859 = vadd.f32 0.0, %v1858
  %1860 = vmatmul.f32.gmra.mxu0 %v1830
  %v1861 = vpop.f32.mrf.mxu0
  %v1862 = vadd.f32 0.0, %v1861
  %1863 = vdwg.mxu0
  %v1864 = vadd.f32 %v1721, %v1853
  %v1865 = vadd.f32 %v1722, %v1856
  %v1866 = vadd.f32 %v1723, %v1859
  %v1867 = vadd.f32 %v1724, %v1862
  %v1868 = vperm.slane %v1283, 0
  %v1870 = vsel %vm158, %v1864, 0
  %v1873 = vsel %vm158, %v1865, 0
  %v1876 = vsel %vm158, %v1866, 0
  %v1879 = vsel %vm158, %v1867, 0
  %1881 = vmatpush.msra.mxu0 0.0
  %1882 = vmatpush.msra.mxu0 0.0
  %1883 = vmatpush.msra.mxu0 0.0
  %1884 = vmatpush.msra.mxu0 0.0
  %1885 = vmatpush.msra.mxu0 0.0
  %1886 = vmatpush.msra.mxu0 0.0
  %1887 = vmatpush.msra.mxu0 0.0
  %1888 = vmatpush.msra.mxu0 0.0
  %1889 = vmatpush.msra.mxu0 0.0
  %1890 = vmatpush.msra.mxu0 0.0
  %1891 = vmatpush.msra.mxu0 0.0
  %1892 = vmatpush.msra.mxu0 0.0
  %1893 = vmatpush.msra.mxu0 %v1282
  %1894 = vmatpush.msra.mxu0 %v1281
  %1895 = vmatpush.msra.mxu0 %v1280
  %1896 = vmatpush.msra.mxu0 %v1279
  %1897 = vmatmul.f32.gmra.mxu0 %v1870
  %v1898 = vpop.f32.mrf.mxu0
  %v1899 = vadd.f32 %v1868, %v1898
  %1900 = vmatmul.f32.gmra.mxu0 %v1873
  %v1901 = vpop.f32.mrf.mxu0
  %v1902 = vadd.f32 %v1868, %v1901
  %1903 = vmatmul.f32.gmra.mxu0 %v1876
  %v1904 = vpop.f32.mrf.mxu0
  %v1905 = vadd.f32 %v1868, %v1904
  %1906 = vmatmul.f32.gmra.mxu0 %v1879
  %v1907 = vpop.f32.mrf.mxu0
  %v1908 = vadd.f32 %v1868, %v1907
  %1909 = vdwg.mxu0
  %v1910 = vadd.f32 %v1102, %v1899
  %v1911 = vadd.f32 %v1103, %v1902
  %v1912 = vadd.f32 %v1104, %v1905
  %v1913 = vadd.f32 %v1105, %v1908
  %v1914 = vld [vmem:[%s11 + $0xa] sm:$0x1]
  %v1915 = vld [vmem:[%s11 + $0xb] sm:$0x1]
  %v1916 = vsel %vm158, %v1910, 0.0
  %1917 = vadd.xlane.f32.xlu0 %v1916
  %v1918 = vpop.xlane.xlu0 %1917
  %v1919 = vsel %vm158, %v1911, 0.0
  %1920 = vadd.xlane.f32.xlu0 %v1919
  %v1921 = vpop.xlane.xlu0 %1920
  %v1922 = vsel %vm158, %v1912, 0.0
  %1923 = vadd.xlane.f32.xlu0 %v1922
  %v1924 = vpop.xlane.xlu0 %1923
  %v1925 = vsel %vm158, %v1913, 0.0
  %1926 = vadd.xlane.f32.xlu0 %v1925
  %v1927 = vpop.xlane.xlu0 %1926
  %v1928 = vmul.f32 %v1918, %v1019
  %v1929 = vmul.f32 %v1921, %v1019
  %v1930 = vmul.f32 %v1924, %v1019
  %v1931 = vmul.f32 %v1927, %v1019
  %v1932 = vsub.f32 %v1910, %v1928
  %v1933 = vsub.f32 %v1911, %v1929
  %v1934 = vsub.f32 %v1912, %v1930
  %v1935 = vsub.f32 %v1913, %v1931
  %v1936 = vmul.f32 %v1932, %v1932
  %v1937 = vmul.f32 %v1933, %v1933
  %v1938 = vmul.f32 %v1934, %v1934
  %v1939 = vmul.f32 %v1935, %v1935
  %v1940 = vsel %vm158, %v1936, 0.0
  %1941 = vadd.xlane.f32.xlu0 %v1940
  %v1942 = vpop.xlane.xlu0 %1941
  %v1943 = vsel %vm158, %v1937, 0.0
  %1944 = vadd.xlane.f32.xlu0 %v1943
  %v1945 = vpop.xlane.xlu0 %1944
  %v1946 = vsel %vm158, %v1938, 0.0
  %1947 = vadd.xlane.f32.xlu0 %v1946
  %v1948 = vpop.xlane.xlu0 %1947
  %v1949 = vsel %vm158, %v1939, 0.0
  %1950 = vadd.xlane.f32.xlu0 %v1949
  %v1951 = vpop.xlane.xlu0 %1950
  %v1952 = vmul.f32 %v1942, %v1019
  %v1953 = vmul.f32 %v1945, %v1019
  %v1954 = vmul.f32 %v1948, %v1019
  %v1955 = vmul.f32 %v1951, %v1019
  %v1956 = vadd.f32 %v1952, 1e-05
  %v1957 = vadd.f32 %v1953, 1e-05
  %v1958 = vadd.f32 %v1954, 1e-05
  %v1959 = vadd.f32 %v1955, 1e-05
  %v1960 = vrsqrt.pop %v1956
  %v1961 = vmul.f32 %v1960, %v1956
  %v1962 = vmul.f32 %v1961, %v1960
  %v1963 = vmul.f32 0.5, %v1962
  %v1964 = vsub.f32 1.5, %v1963
  %v1965 = vmul.f32 %v1960, %v1964
  %vm1966 = vweird.f32 %v1956
  %vm1967 = vweird.f32 %v1960
  %vm1968 = vmor %vm1966, %vm1967
  %v1969 = vsel %vm1968, %v1960, %v1965
  %v1970 = vrsqrt.pop %v1957
  %v1971 = vmul.f32 %v1970, %v1957
  %v1972 = vmul.f32 %v1971, %v1970
  %v1973 = vmul.f32 0.5, %v1972
  %v1974 = vsub.f32 1.5, %v1973
  %v1975 = vmul.f32 %v1970, %v1974
  %vm1976 = vweird.f32 %v1957
  %vm1977 = vweird.f32 %v1970
  %vm1978 = vmor %vm1976, %vm1977
  %v1979 = vsel %vm1978, %v1970, %v1975
  %v1980 = vrsqrt.pop %v1958
  %v1981 = vmul.f32 %v1980, %v1958
  %v1982 = vmul.f32 %v1981, %v1980
  %v1983 = vmul.f32 0.5, %v1982
  %v1984 = vsub.f32 1.5, %v1983
  %v1985 = vmul.f32 %v1980, %v1984
  %vm1986 = vweird.f32 %v1958
  %vm1987 = vweird.f32 %v1980
  %vm1988 = vmor %vm1986, %vm1987
  %v1989 = vsel %vm1988, %v1980, %v1985
  %v1990 = vrsqrt.pop %v1959
  %v1991 = vmul.f32 %v1990, %v1959
  %v1992 = vmul.f32 %v1991, %v1990
  %v1993 = vmul.f32 0.5, %v1992
  %v1994 = vsub.f32 1.5, %v1993
  %v1995 = vmul.f32 %v1990, %v1994
  %vm1996 = vweird.f32 %v1959
  %vm1997 = vweird.f32 %v1990
  %vm1998 = vmor %vm1996, %vm1997
  %v1999 = vsel %vm1998, %v1990, %v1995
  %v2000 = vmul.f32 %v1932, %v1969
  %v2001 = vmul.f32 %v1933, %v1979
  %v2002 = vmul.f32 %v1934, %v1989
  %v2003 = vmul.f32 %v1935, %v1999
  %v2004 = vperm.slane %v1914, 0
  %v2005 = vmul.f32 %v2000, %v2004
  %v2006 = vmul.f32 %v2001, %v2004
  %v2007 = vmul.f32 %v2002, %v2004
  %v2008 = vmul.f32 %v2003, %v2004
  %v2009 = vperm.slane %v1915, 0
  %v2010 = vadd.f32 %v2005, %v2009
  %v2011 = vadd.f32 %v2006, %v2009
  %v2012 = vadd.f32 %v2007, %v2009
  %v2013 = vadd.f32 %v2008, %v2009
  %v2014 = vld [vmem:[%s9] sm:$0xff]
  %v2015 = vld [vmem:[%s9 + $0x8] sm:$0xff]
  %v2016 = vld [vmem:[%s9 + $0x10] sm:$0xff]
  %v2017 = vld [vmem:[%s9 + $0x18] sm:$0xff]
  %v2018 = vld [vmem:[%s11 + $0xc] sm:$0x1]
  %v2019 = vperm.slane %v2018, 0
  %v2021 = vsel %vm158, %v2010, 0
  %v2024 = vsel %vm158, %v2011, 0
  %v2027 = vsel %vm158, %v2012, 0
  %v2030 = vsel %vm158, %v2013, 0
  %2032 = vmatpush.msra.mxu0 0.0
  %2033 = vmatpush.msra.mxu0 0.0
  %2034 = vmatpush.msra.mxu0 0.0
  %2035 = vmatpush.msra.mxu0 0.0
  %2036 = vmatpush.msra.mxu0 0.0
  %2037 = vmatpush.msra.mxu0 0.0
  %2038 = vmatpush.msra.mxu0 0.0
  %2039 = vmatpush.msra.mxu0 0.0
  %2040 = vmatpush.msra.mxu0 0.0
  %2041 = vmatpush.msra.mxu0 0.0
  %2042 = vmatpush.msra.mxu0 0.0
  %2043 = vmatpush.msra.mxu0 0.0
  %2044 = vmatpush.msra.mxu0 %v2017
  %2045 = vmatpush.msra.mxu0 %v2016
  %2046 = vmatpush.msra.mxu0 %v2015
  %2047 = vmatpush.msra.mxu0 %v2014
  %2048 = vmatmul.f32.gmra.mxu0 %v2021
  %v2049 = vpop.f32.mrf.mxu0
  %v2050 = vadd.f32 %v2019, %v2049
  %2051 = vmatmul.f32.gmra.mxu0 %v2024
  %v2052 = vpop.f32.mrf.mxu0
  %v2053 = vadd.f32 %v2019, %v2052
  %2054 = vmatmul.f32.gmra.mxu0 %v2027
  %v2055 = vpop.f32.mrf.mxu0
  %v2056 = vadd.f32 %v2019, %v2055
  %2057 = vmatmul.f32.gmra.mxu0 %v2030
  %v2058 = vpop.f32.mrf.mxu0
  %v2059 = vadd.f32 %v2019, %v2058
  %2060 = vdwg.mxu0
  %v2061 = vmax.f32 %v2050, 0.0
  %v2062 = vmax.f32 %v2053, 0.0
  %v2063 = vmax.f32 %v2056, 0.0
  %v2064 = vmax.f32 %v2059, 0.0
  %v2065 = vld [vmem:[%s10] sm:$0xff]
  %v2066 = vld [vmem:[%s10 + $0x8] sm:$0xff]
  %v2067 = vld [vmem:[%s10 + $0x10] sm:$0xff]
  %v2068 = vld [vmem:[%s10 + $0x18] sm:$0xff]
  %v2069 = vld [vmem:[%s10 + $0x20] sm:$0xff]
  %v2070 = vld [vmem:[%s10 + $0x28] sm:$0xff]
  %v2071 = vld [vmem:[%s10 + $0x30] sm:$0xff]
  %v2072 = vld [vmem:[%s10 + $0x38] sm:$0xff]
  %v2073 = vld [vmem:[%s11 + $0xd] sm:$0x1]
  %v2074 = vperm.slane %v2073, 0
  %vm2075 = vcmask 523264
  %v2077 = vsel %vm2075, %v2061, 0
  %v2080 = vsel %vm2075, %v2062, 0
  %v2083 = vsel %vm2075, %v2063, 0
  %v2086 = vsel %vm2075, %v2064, 0
  %2088 = vmatpush.msra.mxu0 0.0
  %2089 = vmatpush.msra.mxu0 0.0
  %2090 = vmatpush.msra.mxu0 0.0
  %2091 = vmatpush.msra.mxu0 0.0
  %2092 = vmatpush.msra.mxu0 0.0
  %2093 = vmatpush.msra.mxu0 0.0
  %2094 = vmatpush.msra.mxu0 0.0
  %2095 = vmatpush.msra.mxu0 0.0
  %2096 = vmatpush.msra.mxu0 %v2072
  %2097 = vmatpush.msra.mxu0 %v2071
  %2098 = vmatpush.msra.mxu0 %v2070
  %2099 = vmatpush.msra.mxu0 %v2069
  %2100 = vmatpush.msra.mxu0 %v2068
  %2101 = vmatpush.msra.mxu0 %v2067
  %2102 = vmatpush.msra.mxu0 %v2066
  %2103 = vmatpush.msra.mxu0 %v2065
  %2104 = vmatmul.f32.gmra.mxu0 %v2077
  %v2105 = vpop.f32.mrf.mxu0
  %v2106 = vadd.f32 %v2074, %v2105
  %2107 = vmatmul.f32.gmra.mxu0 %v2080
  %v2108 = vpop.f32.mrf.mxu0
  %v2109 = vadd.f32 %v2074, %v2108
  %2110 = vmatmul.f32.gmra.mxu0 %v2083
  %v2111 = vpop.f32.mrf.mxu0
  %v2112 = vadd.f32 %v2074, %v2111
  %2113 = vmatmul.f32.gmra.mxu0 %v2086
  %v2114 = vpop.f32.mrf.mxu0
  %v2115 = vadd.f32 %v2074, %v2114
  %2116 = vdwg.mxu0
  %v2117 = vadd.f32 %v2010, %v2106
  %v2118 = vadd.f32 %v2011, %v2109
  %v2119 = vadd.f32 %v2012, %v2112
  %v2120 = vadd.f32 %v2013, %v2115
  %v2121 = vld [vmem:[%s11 + $0xe] sm:$0x1]
  %v2122 = vld [vmem:[%s11 + $0xf] sm:$0x1]
  %v2123 = vsel %vm158, %v2117, 0.0
  %2124 = vadd.xlane.f32.xlu0 %v2123
  %v2125 = vpop.xlane.xlu0 %2124
  %v2126 = vsel %vm158, %v2118, 0.0
  %2127 = vadd.xlane.f32.xlu0 %v2126
  %v2128 = vpop.xlane.xlu0 %2127
  %v2129 = vsel %vm158, %v2119, 0.0
  %2130 = vadd.xlane.f32.xlu0 %v2129
  %v2131 = vpop.xlane.xlu0 %2130
  %v2132 = vsel %vm158, %v2120, 0.0
  %2133 = vadd.xlane.f32.xlu0 %v2132
  %v2134 = vpop.xlane.xlu0 %2133
  %v2135 = vmul.f32 %v2125, %v1019
  %v2136 = vmul.f32 %v2128, %v1019
  %v2137 = vmul.f32 %v2131, %v1019
  %v2138 = vmul.f32 %v2134, %v1019
  %v2139 = vsub.f32 %v2117, %v2135
  %v2140 = vsub.f32 %v2118, %v2136
  %v2141 = vsub.f32 %v2119, %v2137
  %v2142 = vsub.f32 %v2120, %v2138
  %v2143 = vmul.f32 %v2139, %v2139
  %v2144 = vmul.f32 %v2140, %v2140
  %v2145 = vmul.f32 %v2141, %v2141
  %v2146 = vmul.f32 %v2142, %v2142
  %v2147 = vsel %vm158, %v2143, 0.0
  %2148 = vadd.xlane.f32.xlu0 %v2147
  %v2149 = vpop.xlane.xlu0 %2148
  %v2150 = vsel %vm158, %v2144, 0.0
  %2151 = vadd.xlane.f32.xlu0 %v2150
  %v2152 = vpop.xlane.xlu0 %2151
  %v2153 = vsel %vm158, %v2145, 0.0
  %2154 = vadd.xlane.f32.xlu0 %v2153
  %v2155 = vpop.xlane.xlu0 %2154
  %v2156 = vsel %vm158, %v2146, 0.0
  %2157 = vadd.xlane.f32.xlu0 %v2156
  %v2158 = vpop.xlane.xlu0 %2157
  %v2159 = vmul.f32 %v2149, %v1019
  %v2160 = vmul.f32 %v2152, %v1019
  %v2161 = vmul.f32 %v2155, %v1019
  %v2162 = vmul.f32 %v2158, %v1019
  %v2163 = vadd.f32 %v2159, 1e-05
  %v2164 = vadd.f32 %v2160, 1e-05
  %v2165 = vadd.f32 %v2161, 1e-05
  %v2166 = vadd.f32 %v2162, 1e-05
  %v2167 = vrsqrt.pop %v2163
  %v2168 = vmul.f32 %v2167, %v2163
  %v2169 = vmul.f32 %v2168, %v2167
  %v2170 = vmul.f32 0.5, %v2169
  %v2171 = vsub.f32 1.5, %v2170
  %v2172 = vmul.f32 %v2167, %v2171
  %vm2173 = vweird.f32 %v2163
  %vm2174 = vweird.f32 %v2167
  %vm2175 = vmor %vm2173, %vm2174
  %v2176 = vsel %vm2175, %v2167, %v2172
  %v2177 = vrsqrt.pop %v2164
  %v2178 = vmul.f32 %v2177, %v2164
  %v2179 = vmul.f32 %v2178, %v2177
  %v2180 = vmul.f32 0.5, %v2179
  %v2181 = vsub.f32 1.5, %v2180
  %v2182 = vmul.f32 %v2177, %v2181
  %vm2183 = vweird.f32 %v2164
  %vm2184 = vweird.f32 %v2177
  %vm2185 = vmor %vm2183, %vm2184
  %v2186 = vsel %vm2185, %v2177, %v2182
  %v2187 = vrsqrt.pop %v2165
  %v2188 = vmul.f32 %v2187, %v2165
  %v2189 = vmul.f32 %v2188, %v2187
  %v2190 = vmul.f32 0.5, %v2189
  %v2191 = vsub.f32 1.5, %v2190
  %v2192 = vmul.f32 %v2187, %v2191
  %vm2193 = vweird.f32 %v2165
  %vm2194 = vweird.f32 %v2187
  %vm2195 = vmor %vm2193, %vm2194
  %v2196 = vsel %vm2195, %v2187, %v2192
  %v2197 = vrsqrt.pop %v2166
  %v2198 = vmul.f32 %v2197, %v2166
  %v2199 = vmul.f32 %v2198, %v2197
  %v2200 = vmul.f32 0.5, %v2199
  %v2201 = vsub.f32 1.5, %v2200
  %v2202 = vmul.f32 %v2197, %v2201
  %vm2203 = vweird.f32 %v2166
  %vm2204 = vweird.f32 %v2197
  %vm2205 = vmor %vm2203, %vm2204
  %v2206 = vsel %vm2205, %v2197, %v2202
  %v2207 = vmul.f32 %v2139, %v2176
  %v2208 = vmul.f32 %v2140, %v2186
  %v2209 = vmul.f32 %v2141, %v2196
  %v2210 = vmul.f32 %v2142, %v2206
  %v2211 = vperm.slane %v2121, 0
  %v2212 = vmul.f32 %v2207, %v2211
  %v2213 = vmul.f32 %v2208, %v2211
  %v2214 = vmul.f32 %v2209, %v2211
  %v2215 = vmul.f32 %v2210, %v2211
  %v2216 = vperm.slane %v2122, 0
  %v2217 = vadd.f32 %v2212, %v2216
  %v2218 = vadd.f32 %v2213, %v2216
  %v2219 = vadd.f32 %v2214, %v2216
  %v2220 = vadd.f32 %v2215, %v2216
  %s2221 = scalar_lea.vmem %s8, 256
  %v2222 = vld [vmem:[%s2221] sm:$0xff]
  %v2223 = vld [vmem:[%s2221 + $0x8] sm:$0xff]
  %v2224 = vld [vmem:[%s2221 + $0x10] sm:$0xff]
  %v2225 = vld [vmem:[%s2221 + $0x18] sm:$0xff]
  %v2226 = vld [vmem:[%s11 + $0x10] sm:$0x1]
  %v2227 = vperm.slane %v2226, 0
  %v2229 = vsel %vm158, %v2217, 0
  %v2232 = vsel %vm158, %v2218, 0
  %v2235 = vsel %vm158, %v2219, 0
  %v2238 = vsel %vm158, %v2220, 0
  %2240 = vmatpush.msra.mxu0 0.0
  %2241 = vmatpush.msra.mxu0 0.0
  %2242 = vmatpush.msra.mxu0 0.0
  %2243 = vmatpush.msra.mxu0 0.0
  %2244 = vmatpush.msra.mxu0 0.0
  %2245 = vmatpush.msra.mxu0 0.0
  %2246 = vmatpush.msra.mxu0 0.0
  %2247 = vmatpush.msra.mxu0 0.0
  %2248 = vmatpush.msra.mxu0 0.0
  %2249 = vmatpush.msra.mxu0 0.0
  %2250 = vmatpush.msra.mxu0 0.0
  %2251 = vmatpush.msra.mxu0 0.0
  %2252 = vmatpush.msra.mxu0 %v2225
  %2253 = vmatpush.msra.mxu0 %v2224
  %2254 = vmatpush.msra.mxu0 %v2223
  %2255 = vmatpush.msra.mxu0 %v2222
  %2256 = vmatmul.f32.gmra.mxu0 %v2229
  %v2257 = vpop.f32.mrf.mxu0
  %v2258 = vadd.f32 %v2227, %v2257
  %2259 = vmatmul.f32.gmra.mxu0 %v2232
  %v2260 = vpop.f32.mrf.mxu0
  %v2261 = vadd.f32 %v2227, %v2260
  %2262 = vmatmul.f32.gmra.mxu0 %v2235
  %v2263 = vpop.f32.mrf.mxu0
  %v2264 = vadd.f32 %v2227, %v2263
  %2265 = vmatmul.f32.gmra.mxu0 %v2238
  %v2266 = vpop.f32.mrf.mxu0
  %v2267 = vadd.f32 %v2227, %v2266
  %2268 = vdwg.mxu0
  %v2269 = vmax.f32 %v2258, 0.0
  %v2270 = vmax.f32 %v2261, 0.0
  %v2271 = vmax.f32 %v2264, 0.0
  %v2272 = vmax.f32 %v2267, 0.0
  %s2273 = scalar_lea.vmem %s8, 288
  %v2274 = vld [vmem:[%s2273] sm:$0xff]
  %v2275 = vld [vmem:[%s2273 + $0x8] sm:$0xff]
  %v2276 = vld [vmem:[%s2273 + $0x10] sm:$0xff]
  %v2277 = vld [vmem:[%s2273 + $0x18] sm:$0xff]
  %v2278 = vld [vmem:[%s11 + $0x11] sm:$0x1]
  %v2279 = vperm.slane %v2278, 0
  %v2281 = vsel %vm158, %v2269, 0
  %v2284 = vsel %vm158, %v2270, 0
  %v2287 = vsel %vm158, %v2271, 0
  %v2290 = vsel %vm158, %v2272, 0
  %2292 = vmatpush.msra.mxu0 0.0
  %2293 = vmatpush.msra.mxu0 0.0
  %2294 = vmatpush.msra.mxu0 0.0
  %2295 = vmatpush.msra.mxu0 0.0
  %2296 = vmatpush.msra.mxu0 0.0
  %2297 = vmatpush.msra.mxu0 0.0
  %2298 = vmatpush.msra.mxu0 0.0
  %2299 = vmatpush.msra.mxu0 0.0
  %2300 = vmatpush.msra.mxu0 0.0
  %2301 = vmatpush.msra.mxu0 0.0
  %2302 = vmatpush.msra.mxu0 0.0
  %2303 = vmatpush.msra.mxu0 0.0
  %2304 = vmatpush.msra.mxu0 %v2277
  %2305 = vmatpush.msra.mxu0 %v2276
  %2306 = vmatpush.msra.mxu0 %v2275
  %2307 = vmatpush.msra.mxu0 %v2274
  %2308 = vmatmul.f32.gmra.mxu0 %v2281
  %v2309 = vpop.f32.mrf.mxu0
  %v2310 = vadd.f32 %v2279, %v2309
  %2311 = vmatmul.f32.gmra.mxu0 %v2284
  %v2312 = vpop.f32.mrf.mxu0
  %v2313 = vadd.f32 %v2279, %v2312
  %2314 = vmatmul.f32.gmra.mxu0 %v2287
  %v2315 = vpop.f32.mrf.mxu0
  %v2316 = vadd.f32 %v2279, %v2315
  %2317 = vmatmul.f32.gmra.mxu0 %v2290
  %v2318 = vpop.f32.mrf.mxu0
  %v2319 = vadd.f32 %v2279, %v2318
  %2320 = vdwg.mxu0
  %v2321 = vmax.f32 %v2310, 0.0
  %v2322 = vmax.f32 %v2313, 0.0
  %v2323 = vmax.f32 %v2316, 0.0
  %v2324 = vmax.f32 %v2319, 0.0
  %s2325 = scalar_lea.vmem %s8, 320
  %v2326 = vld [vmem:[%s2325] sm:$0xff]
  %v2327 = vld [vmem:[%s2325 + $0x8] sm:$0xff]
  %v2328 = vld [vmem:[%s2325 + $0x10] sm:$0xff]
  %v2329 = vld [vmem:[%s2325 + $0x18] sm:$0xff]
  %v2330 = vld [vmem:[%s11 + $0x12] sm:$0x1]
  %v2331 = vperm.slane %v2330, 0
  %v2333 = vsel %vm158, %v2321, 0
  %v2336 = vsel %vm158, %v2322, 0
  %v2339 = vsel %vm158, %v2323, 0
  %v2342 = vsel %vm158, %v2324, 0
  %2344 = vmatpush.msra.mxu0 0.0
  %2345 = vmatpush.msra.mxu0 0.0
  %2346 = vmatpush.msra.mxu0 0.0
  %2347 = vmatpush.msra.mxu0 0.0
  %2348 = vmatpush.msra.mxu0 0.0
  %2349 = vmatpush.msra.mxu0 0.0
  %2350 = vmatpush.msra.mxu0 0.0
  %2351 = vmatpush.msra.mxu0 0.0
  %2352 = vmatpush.msra.mxu0 0.0
  %2353 = vmatpush.msra.mxu0 0.0
  %2354 = vmatpush.msra.mxu0 0.0
  %2355 = vmatpush.msra.mxu0 0.0
  %2356 = vmatpush.msra.mxu0 %v2329
  %2357 = vmatpush.msra.mxu0 %v2328
  %2358 = vmatpush.msra.mxu0 %v2327
  %2359 = vmatpush.msra.mxu0 %v2326
  %2360 = vmatmul.f32.gmra.mxu0 %v2333
  %v2361 = vpop.f32.mrf.mxu0
  %v2362 = vadd.f32 %v2331, %v2361
  %2363 = vmatmul.f32.gmra.mxu0 %v2336
  %v2364 = vpop.f32.mrf.mxu0
  %v2365 = vadd.f32 %v2331, %v2364
  %2366 = vmatmul.f32.gmra.mxu0 %v2339
  %v2367 = vpop.f32.mrf.mxu0
  %v2368 = vadd.f32 %v2331, %v2367
  %2369 = vmatmul.f32.gmra.mxu0 %v2342
  %v2370 = vpop.f32.mrf.mxu0
  %v2371 = vadd.f32 %v2331, %v2370
  %2372 = vdwg.mxu0
  %s2373 = scalar_lea.vmem %s8, 352
  %v2374 = vld [vmem:[%s2373] sm:$0xff]
  %v2375 = vld [vmem:[%s2373 + $0x8] sm:$0xff]
  %v2376 = vld [vmem:[%s2373 + $0x10] sm:$0xff]
  %v2377 = vld [vmem:[%s2373 + $0x18] sm:$0xff]
  %v2378 = vld [vmem:[%s11 + $0x13] sm:$0x1]
  %v2379 = vperm.slane %v2378, 0
  %2380 = vmatpush.msra.mxu0 0.0
  %2381 = vmatpush.msra.mxu0 0.0
  %2382 = vmatpush.msra.mxu0 0.0
  %2383 = vmatpush.msra.mxu0 0.0
  %2384 = vmatpush.msra.mxu0 0.0
  %2385 = vmatpush.msra.mxu0 0.0
  %2386 = vmatpush.msra.mxu0 0.0
  %2387 = vmatpush.msra.mxu0 0.0
  %2388 = vmatpush.msra.mxu0 0.0
  %2389 = vmatpush.msra.mxu0 0.0
  %2390 = vmatpush.msra.mxu0 0.0
  %2391 = vmatpush.msra.mxu0 0.0
  %2392 = vmatpush.msra.mxu0 %v2377
  %2393 = vmatpush.msra.mxu0 %v2376
  %2394 = vmatpush.msra.mxu0 %v2375
  %2395 = vmatpush.msra.mxu0 %v2374
  %2396 = vmatmul.f32.gmra.mxu0 %v2229
  %v2397 = vpop.f32.mrf.mxu0
  %v2398 = vadd.f32 %v2379, %v2397
  %2399 = vmatmul.f32.gmra.mxu0 %v2232
  %v2400 = vpop.f32.mrf.mxu0
  %v2401 = vadd.f32 %v2379, %v2400
  %2402 = vmatmul.f32.gmra.mxu0 %v2235
  %v2403 = vpop.f32.mrf.mxu0
  %v2404 = vadd.f32 %v2379, %v2403
  %2405 = vmatmul.f32.gmra.mxu0 %v2238
  %v2406 = vpop.f32.mrf.mxu0
  %v2407 = vadd.f32 %v2379, %v2406
  %2408 = vdwg.mxu0
  %v2409 = vmax.f32 %v51, 0.0
  %v2410 = vmax.f32 %v52, 0.0
  %v2411 = vmax.f32 %v53, 0.0
  %v2412 = vmax.f32 %v54, 0.0
  %v2413 = vmin.f32 %v2409, 1.0
  %v2414 = vmin.f32 %v2410, 1.0
  %v2415 = vmin.f32 %v2411, 1.0
  %v2416 = vmin.f32 %v2412, 1.0
  %v2417 = vmax.f32 %v2413, 0.0001
  %v2418 = vmax.f32 %v2414, 0.0001
  %v2419 = vmax.f32 %v2415, 0.0001
  %v2420 = vmax.f32 %v2416, 0.0001
  %v2421 = vsub.f32 1.0, %v2413
  %v2422 = vsub.f32 1.0, %v2414
  %v2423 = vsub.f32 1.0, %v2415
  %v2424 = vsub.f32 1.0, %v2416
  %v2425 = vmax.f32 %v2421, 0.0001
  %v2426 = vmax.f32 %v2422, 0.0001
  %v2427 = vmax.f32 %v2423, 0.0001
  %v2428 = vmax.f32 %v2424, 0.0001
  %v2429 = vrcp.pop %v2425
  %v2430 = vmul.f32 %v2425, %v2429
  %v2431 = vsub.f32 1.0, %v2430
  %v2432 = vmul.f32 %v2429, %v2431
  %v2433 = vadd.f32 %v2429, %v2432
  %vm2434 = vweird.f32 %v2425
  %vm2435 = vweird.f32 %v2429
  %vm2436 = vmor %vm2434, %vm2435
  %v2437 = vsel %vm2436, %v2429, %v2433
  %v2438 = vand.u32 2147483647, %v2425
  %vm2439 = vcmp.eq.f32.partialorder %v2438, 8.507059e+37
  %v2440 = vand.u32 %v2425, 2147483648
  %v2441 = vor.u32 1.1754944e-38, %v2440
  %v2442 = vsel %vm2439, %v2441, %v2437
  %v2443 = vmul.f32 %v2417, %v2442
  %v2444 = vrcp.pop %v2426
  %v2445 = vmul.f32 %v2426, %v2444
  %v2446 = vsub.f32 1.0, %v2445
  %v2447 = vmul.f32 %v2444, %v2446
  %v2448 = vadd.f32 %v2444, %v2447
  %vm2449 = vweird.f32 %v2426
  %vm2450 = vweird.f32 %v2444
  %vm2451 = vmor %vm2449, %vm2450
  %v2452 = vsel %vm2451, %v2444, %v2448
  %v2453 = vand.u32 2147483647, %v2426
  %vm2454 = vcmp.eq.f32.partialorder %v2453, 8.507059e+37
  %v2455 = vand.u32 %v2426, 2147483648
  %v2456 = vor.u32 1.1754944e-38, %v2455
  %v2457 = vsel %vm2454, %v2456, %v2452
  %v2458 = vmul.f32 %v2418, %v2457
  %v2459 = vrcp.pop %v2427
  %v2460 = vmul.f32 %v2427, %v2459
  %v2461 = vsub.f32 1.0, %v2460
  %v2462 = vmul.f32 %v2459, %v2461
  %v2463 = vadd.f32 %v2459, %v2462
  %vm2464 = vweird.f32 %v2427
  %vm2465 = vweird.f32 %v2459
  %vm2466 = vmor %vm2464, %vm2465
  %v2467 = vsel %vm2466, %v2459, %v2463
  %v2468 = vand.u32 2147483647, %v2427
  %vm2469 = vcmp.eq.f32.partialorder %v2468, 8.507059e+37
  %v2470 = vand.u32 %v2427, 2147483648
  %v2471 = vor.u32 1.1754944e-38, %v2470
  %v2472 = vsel %vm2469, %v2471, %v2467
  %v2473 = vmul.f32 %v2419, %v2472
  %v2474 = vrcp.pop %v2428
  %v2475 = vmul.f32 %v2428, %v2474
  %v2476 = vsub.f32 1.0, %v2475
  %v2477 = vmul.f32 %v2474, %v2476
  %v2478 = vadd.f32 %v2474, %v2477
  %vm2479 = vweird.f32 %v2428
  %vm2480 = vweird.f32 %v2474
  %vm2481 = vmor %vm2479, %vm2480
  %v2482 = vsel %vm2481, %v2474, %v2478
  %v2483 = vand.u32 2147483647, %v2428
  %vm2484 = vcmp.eq.f32.partialorder %v2483, 8.507059e+37
  %v2485 = vand.u32 %v2428, 2147483648
  %v2486 = vor.u32 1.1754944e-38, %v2485
  %v2487 = vsel %vm2484, %v2486, %v2482
  %v2488 = vmul.f32 %v2420, %v2487
  %v2489 = vlog2.pop %v2443
  %v2490 = vmul.f32 %v2489, 0.6931472
  %v2491 = vlog2.pop %v2458
  %v2492 = vmul.f32 %v2491, 0.6931472
  %v2493 = vlog2.pop %v2473
  %v2494 = vmul.f32 %v2493, 0.6931472
  %v2495 = vlog2.pop %v2488
  %v2496 = vmul.f32 %v2495, 0.6931472
  %v2497 = vadd.f32 %v2362, %v2490
  %v2498 = vadd.f32 %v2365, %v2492
  %v2499 = vadd.f32 %v2368, %v2494
  %v2500 = vadd.f32 %v2371, %v2496
  %v2501 = vsub.f32 0.0, %v2497
  %v2502 = vsub.f32 0.0, %v2498
  %v2503 = vsub.f32 0.0, %v2499
  %v2504 = vsub.f32 0.0, %v2500
  %v2505 = vmul.f32 %v2501, 1.442695
  %v2506 = vpow.pop %v2505
  %v2507 = vmul.f32 %v2502, 1.442695
  %v2508 = vpow.pop %v2507
  %v2509 = vmul.f32 %v2503, 1.442695
  %v2510 = vpow.pop %v2509
  %v2511 = vmul.f32 %v2504, 1.442695
  %v2512 = vpow.pop %v2511
  %v2513 = vadd.f32 %v2506, 1.0
  %v2514 = vadd.f32 %v2508, 1.0
  %v2515 = vadd.f32 %v2510, 1.0
  %v2516 = vadd.f32 %v2512, 1.0
  %v2517 = vrcp.pop %v2513
  %v2518 = vmul.f32 %v2513, %v2517
  %v2519 = vsub.f32 1.0, %v2518
  %v2520 = vmul.f32 %v2517, %v2519
  %v2521 = vadd.f32 %v2517, %v2520
  %vm2522 = vweird.f32 %v2513
  %vm2523 = vweird.f32 %v2517
  %vm2524 = vmor %vm2522, %vm2523
  %v2525 = vsel %vm2524, %v2517, %v2521
  %v2526 = vand.u32 2147483647, %v2513
  %vm2527 = vcmp.eq.f32.partialorder %v2526, 8.507059e+37
  %v2528 = vand.u32 %v2513, 2147483648
  %v2529 = vor.u32 1.1754944e-38, %v2528
  %v2530 = vsel %vm2527, %v2529, %v2525
  %v2531 = vmul.f32 1.0, %v2530
  %v2532 = vrcp.pop %v2514
  %v2533 = vmul.f32 %v2514, %v2532
  %v2534 = vsub.f32 1.0, %v2533
  %v2535 = vmul.f32 %v2532, %v2534
  %v2536 = vadd.f32 %v2532, %v2535
  %vm2537 = vweird.f32 %v2514
  %vm2538 = vweird.f32 %v2532
  %vm2539 = vmor %vm2537, %vm2538
  %v2540 = vsel %vm2539, %v2532, %v2536
  %v2541 = vand.u32 2147483647, %v2514
  %vm2542 = vcmp.eq.f32.partialorder %v2541, 8.507059e+37
  %v2543 = vand.u32 %v2514, 2147483648
  %v2544 = vor.u32 1.1754944e-38, %v2543
  %v2545 = vsel %vm2542, %v2544, %v2540
  %v2546 = vmul.f32 1.0, %v2545
  %v2547 = vrcp.pop %v2515
  %v2548 = vmul.f32 %v2515, %v2547
  %v2549 = vsub.f32 1.0, %v2548
  %v2550 = vmul.f32 %v2547, %v2549
  %v2551 = vadd.f32 %v2547, %v2550
  %vm2552 = vweird.f32 %v2515
  %vm2553 = vweird.f32 %v2547
  %vm2554 = vmor %vm2552, %vm2553
  %v2555 = vsel %vm2554, %v2547, %v2551
  %v2556 = vand.u32 2147483647, %v2515
  %vm2557 = vcmp.eq.f32.partialorder %v2556, 8.507059e+37
  %v2558 = vand.u32 %v2515, 2147483648
  %v2559 = vor.u32 1.1754944e-38, %v2558
  %v2560 = vsel %vm2557, %v2559, %v2555
  %v2561 = vmul.f32 1.0, %v2560
  %v2562 = vrcp.pop %v2516
  %v2563 = vmul.f32 %v2516, %v2562
  %v2564 = vsub.f32 1.0, %v2563
  %v2565 = vmul.f32 %v2562, %v2564
  %v2566 = vadd.f32 %v2562, %v2565
  %vm2567 = vweird.f32 %v2516
  %vm2568 = vweird.f32 %v2562
  %vm2569 = vmor %vm2567, %vm2568
  %v2570 = vsel %vm2569, %v2562, %v2566
  %v2571 = vand.u32 2147483647, %v2516
  %vm2572 = vcmp.eq.f32.partialorder %v2571, 8.507059e+37
  %v2573 = vand.u32 %v2516, 2147483648
  %v2574 = vor.u32 1.1754944e-38, %v2573
  %v2575 = vsel %vm2572, %v2574, %v2570
  %v2576 = vmul.f32 1.0, %v2575
  %2577 = vst.msk [vmem:[%s14] sm:$0xff] %vm158, %v2531
  %2578 = vst.msk [vmem:[%s14 + $0x8] sm:$0xff] %vm158, %v2546
  %2579 = vst.msk [vmem:[%s14 + $0x10] sm:$0xff] %vm158, %v2561
  %2580 = vst.msk [vmem:[%s14 + $0x18] sm:$0xff] %vm158, %v2576
  %s2581 = scalar_lea.vmem %s14, 32
  %2582 = vst.msk [vmem:[%s2581] sm:$0xff] %vm158, %v2398
  %2583 = vst.msk [vmem:[%s2581 + $0x8] sm:$0xff] %vm158, %v2401
  %2584 = vst.msk [vmem:[%s2581 + $0x10] sm:$0xff] %vm158, %v2404
  %2585 = vst.msk [vmem:[%s2581 + $0x18] sm:$0xff] %vm158, %v2407
  %v2586 = vld [vmem:[%s12] sm:$0xff]
  %v2587 = vld [vmem:[%s12 + $0x8] sm:$0xff]
  %v2588 = vld [vmem:[%s12 + $0x10] sm:$0xff]
  %v2589 = vld [vmem:[%s12 + $0x18] sm:$0xff]
  %v2590 = vld [vmem:[%s13] sm:$0x1]
  %v2591 = vperm.slane %v2590, 0
  %v2593 = vsel %vm158, %v2531, 0
  %v2596 = vsel %vm158, %v2546, 0
  %v2599 = vsel %vm158, %v2561, 0
  %v2602 = vsel %vm158, %v2576, 0
  %2604 = vmatpush.msra.mxu0 0.0
  %2605 = vmatpush.msra.mxu0 0.0
  %2606 = vmatpush.msra.mxu0 0.0
  %2607 = vmatpush.msra.mxu0 0.0
  %2608 = vmatpush.msra.mxu0 0.0
  %2609 = vmatpush.msra.mxu0 0.0
  %2610 = vmatpush.msra.mxu0 0.0
  %2611 = vmatpush.msra.mxu0 0.0
  %2612 = vmatpush.msra.mxu0 0.0
  %2613 = vmatpush.msra.mxu0 0.0
  %2614 = vmatpush.msra.mxu0 0.0
  %2615 = vmatpush.msra.mxu0 0.0
  %2616 = vmatpush.msra.mxu0 %v2589
  %2617 = vmatpush.msra.mxu0 %v2588
  %2618 = vmatpush.msra.mxu0 %v2587
  %2619 = vmatpush.msra.mxu0 %v2586
  %2620 = vmatmul.f32.gmra.mxu0 %v2593
  %v2621 = vpop.f32.mrf.mxu0
  %v2622 = vadd.f32 %v2591, %v2621
  %2623 = vmatmul.f32.gmra.mxu0 %v2596
  %v2624 = vpop.f32.mrf.mxu0
  %v2625 = vadd.f32 %v2591, %v2624
  %2626 = vmatmul.f32.gmra.mxu0 %v2599
  %v2627 = vpop.f32.mrf.mxu0
  %v2628 = vadd.f32 %v2591, %v2627
  %2629 = vmatmul.f32.gmra.mxu0 %v2602
  %v2630 = vpop.f32.mrf.mxu0
  %v2631 = vadd.f32 %v2591, %v2630
  %2632 = vdwg.mxu0
  %v2633 = vmax.f32 %v2622, 0.0
  %v2634 = vmax.f32 %v2625, 0.0
  %v2635 = vmax.f32 %v2628, 0.0
  %v2636 = vmax.f32 %v2631, 0.0
  %v2637 = vld [vmem:[%s204] sm:$0xff]
  %v2638 = vld [vmem:[%s204 + $0x8] sm:$0xff]
  %v2639 = vld [vmem:[%s204 + $0x10] sm:$0xff]
  %v2640 = vld [vmem:[%s204 + $0x18] sm:$0xff]
  %v2641 = vld [vmem:[%s13 + $0x1] sm:$0x1]
  %v2642 = vperm.slane %v2641, 0
  %v2644 = vsel %vm158, %v2633, 0
  %v2647 = vsel %vm158, %v2634, 0
  %v2650 = vsel %vm158, %v2635, 0
  %v2653 = vsel %vm158, %v2636, 0
  %2655 = vmatpush.msra.mxu0 0.0
  %2656 = vmatpush.msra.mxu0 0.0
  %2657 = vmatpush.msra.mxu0 0.0
  %2658 = vmatpush.msra.mxu0 0.0
  %2659 = vmatpush.msra.mxu0 0.0
  %2660 = vmatpush.msra.mxu0 0.0
  %2661 = vmatpush.msra.mxu0 0.0
  %2662 = vmatpush.msra.mxu0 0.0
  %2663 = vmatpush.msra.mxu0 0.0
  %2664 = vmatpush.msra.mxu0 0.0
  %2665 = vmatpush.msra.mxu0 0.0
  %2666 = vmatpush.msra.mxu0 0.0
  %2667 = vmatpush.msra.mxu0 %v2640
  %2668 = vmatpush.msra.mxu0 %v2639
  %2669 = vmatpush.msra.mxu0 %v2638
  %2670 = vmatpush.msra.mxu0 %v2637
  %2671 = vmatmul.f32.gmra.mxu0 %v2644
  %v2672 = vpop.f32.mrf.mxu0
  %v2673 = vadd.f32 %v2642, %v2672
  %2674 = vmatmul.f32.gmra.mxu0 %v2647
  %v2675 = vpop.f32.mrf.mxu0
  %v2676 = vadd.f32 %v2642, %v2675
  %2677 = vmatmul.f32.gmra.mxu0 %v2650
  %v2678 = vpop.f32.mrf.mxu0
  %v2679 = vadd.f32 %v2642, %v2678
  %2680 = vmatmul.f32.gmra.mxu0 %v2653
  %v2681 = vpop.f32.mrf.mxu0
  %v2682 = vadd.f32 %v2642, %v2681
  %2683 = vdwg.mxu0
  %v2684 = vadd.f32 %v2217, %v2673
  %v2685 = vadd.f32 %v2218, %v2676
  %v2686 = vadd.f32 %v2219, %v2679
  %v2687 = vadd.f32 %v2220, %v2682
  %s2688 = scalar_lea.vmem %s8, 384
  %v2689 = vld [vmem:[%s2688] sm:$0xff]
  %v2690 = vld [vmem:[%s2688 + $0x8] sm:$0xff]
  %v2691 = vld [vmem:[%s2688 + $0x10] sm:$0xff]
  %v2692 = vld [vmem:[%s2688 + $0x18] sm:$0xff]
  %s2693 = scalar_lea.vmem %s11, 24
  %v2694 = vld [vmem:[%s2693] sm:$0x1]
  %v2695 = vperm.slane %v2694, 0
  %v2697 = vsel %vm158, %v2684, 0
  %v2700 = vsel %vm158, %v2685, 0
  %v2703 = vsel %vm158, %v2686, 0
  %v2706 = vsel %vm158, %v2687, 0
  %2708 = vmatpush.msra.mxu0 0.0
  %2709 = vmatpush.msra.mxu0 0.0
  %2710 = vmatpush.msra.mxu0 0.0
  %2711 = vmatpush.msra.mxu0 0.0
  %2712 = vmatpush.msra.mxu0 0.0
  %2713 = vmatpush.msra.mxu0 0.0
  %2714 = vmatpush.msra.mxu0 0.0
  %2715 = vmatpush.msra.mxu0 0.0
  %2716 = vmatpush.msra.mxu0 0.0
  %2717 = vmatpush.msra.mxu0 0.0
  %2718 = vmatpush.msra.mxu0 0.0
  %2719 = vmatpush.msra.mxu0 0.0
  %2720 = vmatpush.msra.mxu0 %v2692
  %2721 = vmatpush.msra.mxu0 %v2691
  %2722 = vmatpush.msra.mxu0 %v2690
  %2723 = vmatpush.msra.mxu0 %v2689
  %2724 = vmatmul.f32.gmra.mxu0 %v2697
  %v2725 = vpop.f32.mrf.mxu0
  %v2726 = vadd.f32 %v2695, %v2725
  %2727 = vmatmul.f32.gmra.mxu0 %v2700
  %v2728 = vpop.f32.mrf.mxu0
  %v2729 = vadd.f32 %v2695, %v2728
  %2730 = vmatmul.f32.gmra.mxu0 %v2703
  %v2731 = vpop.f32.mrf.mxu0
  %v2732 = vadd.f32 %v2695, %v2731
  %2733 = vmatmul.f32.gmra.mxu0 %v2706
  %v2734 = vpop.f32.mrf.mxu0
  %v2735 = vadd.f32 %v2695, %v2734
  %2736 = vdwg.mxu0
  %s2737 = scalar_lea.vmem %s8, 416
  %v2738 = vld [vmem:[%s2737] sm:$0xff]
  %v2739 = vld [vmem:[%s2737 + $0x8] sm:$0xff]
  %v2740 = vld [vmem:[%s2737 + $0x10] sm:$0xff]
  %v2741 = vld [vmem:[%s2737 + $0x18] sm:$0xff]
  %v2742 = vld [vmem:[%s2693 + $0x1] sm:$0x1]
  %v2743 = vperm.slane %v2742, 0
  %2744 = vmatpush.msra.mxu0 0.0
  %2745 = vmatpush.msra.mxu0 0.0
  %2746 = vmatpush.msra.mxu0 0.0
  %2747 = vmatpush.msra.mxu0 0.0
  %2748 = vmatpush.msra.mxu0 0.0
  %2749 = vmatpush.msra.mxu0 0.0
  %2750 = vmatpush.msra.mxu0 0.0
  %2751 = vmatpush.msra.mxu0 0.0
  %2752 = vmatpush.msra.mxu0 0.0
  %2753 = vmatpush.msra.mxu0 0.0
  %2754 = vmatpush.msra.mxu0 0.0
  %2755 = vmatpush.msra.mxu0 0.0
  %2756 = vmatpush.msra.mxu0 %v2741
  %2757 = vmatpush.msra.mxu0 %v2740
  %2758 = vmatpush.msra.mxu0 %v2739
  %2759 = vmatpush.msra.mxu0 %v2738
  %2760 = vmatmul.f32.gmra.mxu0 %v2697
  %v2761 = vpop.f32.mrf.mxu0
  %v2762 = vadd.f32 %v2743, %v2761
  %2763 = vmatmul.f32.gmra.mxu0 %v2700
  %v2764 = vpop.f32.mrf.mxu0
  %v2765 = vadd.f32 %v2743, %v2764
  %2766 = vmatmul.f32.gmra.mxu0 %v2703
  %v2767 = vpop.f32.mrf.mxu0
  %v2768 = vadd.f32 %v2743, %v2767
  %2769 = vmatmul.f32.gmra.mxu0 %v2706
  %v2770 = vpop.f32.mrf.mxu0
  %v2771 = vadd.f32 %v2743, %v2770
  %2772 = vdwg.mxu0
  %s2773 = scalar_lea.vmem %s8, 448
  %v2774 = vld [vmem:[%s2773] sm:$0xff]
  %v2775 = vld [vmem:[%s2773 + $0x8] sm:$0xff]
  %v2776 = vld [vmem:[%s2773 + $0x10] sm:$0xff]
  %v2777 = vld [vmem:[%s2773 + $0x18] sm:$0xff]
  %v2778 = vld [vmem:[%s2693 + $0x2] sm:$0x1]
  %v2779 = vperm.slane %v2778, 0
  %2780 = vmatpush.msra.mxu0 0.0
  %2781 = vmatpush.msra.mxu0 0.0
  %2782 = vmatpush.msra.mxu0 0.0
  %2783 = vmatpush.msra.mxu0 0.0
  %2784 = vmatpush.msra.mxu0 0.0
  %2785 = vmatpush.msra.mxu0 0.0
  %2786 = vmatpush.msra.mxu0 0.0
  %2787 = vmatpush.msra.mxu0 0.0
  %2788 = vmatpush.msra.mxu0 0.0
  %2789 = vmatpush.msra.mxu0 0.0
  %2790 = vmatpush.msra.mxu0 0.0
  %2791 = vmatpush.msra.mxu0 0.0
  %2792 = vmatpush.msra.mxu0 %v2777
  %2793 = vmatpush.msra.mxu0 %v2776
  %2794 = vmatpush.msra.mxu0 %v2775
  %2795 = vmatpush.msra.mxu0 %v2774
  %2796 = vmatmul.f32.gmra.mxu0 %v2229
  %v2797 = vpop.f32.mrf.mxu0
  %v2798 = vadd.f32 %v2779, %v2797
  %2799 = vmatmul.f32.gmra.mxu0 %v2232
  %v2800 = vpop.f32.mrf.mxu0
  %v2801 = vadd.f32 %v2779, %v2800
  %2802 = vmatmul.f32.gmra.mxu0 %v2235
  %v2803 = vpop.f32.mrf.mxu0
  %v2804 = vadd.f32 %v2779, %v2803
  %2805 = vmatmul.f32.gmra.mxu0 %v2238
  %v2806 = vpop.f32.mrf.mxu0
  %v2807 = vadd.f32 %v2779, %v2806
  %2808 = vdwg.mxu0
  %s2809 = scalar_lea.vmem %s8, 480
  %v2810 = vld [vmem:[%s2809] sm:$0xff]
  %v2811 = vld [vmem:[%s2809 + $0x8] sm:$0xff]
  %v2812 = vld [vmem:[%s2809 + $0x10] sm:$0xff]
  %v2813 = vld [vmem:[%s2809 + $0x18] sm:$0xff]
  %v2814 = vld [vmem:[%s2693 + $0x3] sm:$0x1]
  %v2815 = vmul.f32 %v2726, %v393
  %v2816 = vmul.f32 %v2729, %v393
  %v2817 = vmul.f32 %v2732, %v393
  %v2818 = vmul.f32 %v2735, %v393
  %v2820 = vsel %vm158, %v2815, 0
  %v2823 = vsel %vm158, %v2816, 0
  %v2826 = vsel %vm158, %v2817, 0
  %v2829 = vsel %vm158, %v2818, 0
  %v2832 = vsel %vm158, %v2762, 0
  %v2835 = vsel %vm158, %v2765, 0
  %v2838 = vsel %vm158, %v2768, 0
  %v2841 = vsel %vm158, %v2771, 0
  %2843 = vmatpush.xpose.msra.mxu0 0.0
  %2844 = vmatpush.xpose.msra.mxu0 0.0
  %2845 = vmatpush.xpose.msra.mxu0 0.0
  %2846 = vmatpush.xpose.msra.mxu0 0.0
  %2847 = vmatpush.xpose.msra.mxu0 0.0
  %2848 = vmatpush.xpose.msra.mxu0 0.0
  %2849 = vmatpush.xpose.msra.mxu0 0.0
  %2850 = vmatpush.xpose.msra.mxu0 0.0
  %2851 = vmatpush.xpose.msra.mxu0 0.0
  %2852 = vmatpush.xpose.msra.mxu0 0.0
  %2853 = vmatpush.xpose.msra.mxu0 0.0
  %2854 = vmatpush.xpose.msra.mxu0 0.0
  %2855 = vmatpush.xpose.msra.mxu0 %v2841
  %2856 = vmatpush.xpose.msra.mxu0 %v2838
  %2857 = vmatpush.xpose.msra.mxu0 %v2835
  %2858 = vmatpush.xpose.msra.mxu0 %v2832
  %2859 = vmatmul.f32.gmra.mxu0 %v2820
  %v2860 = vpop.f32.mrf.mxu0
  %v2861 = vadd.f32 %v105, %v2860
  %2862 = vmatmul.f32.gmra.mxu0 %v2823
  %v2863 = vpop.f32.mrf.mxu0
  %v2864 = vadd.f32 %v106, %v2863
  %2865 = vmatmul.f32.gmra.mxu0 %v2826
  %v2866 = vpop.f32.mrf.mxu0
  %v2867 = vadd.f32 %v107, %v2866
  %2868 = vmatmul.f32.gmra.mxu0 %v2829
  %v2869 = vpop.f32.mrf.mxu0
  %v2870 = vadd.f32 %v108, %v2869
  %2871 = vdwg.mxu0
  %v2872 = vsel %vm158, %v2861, -inf
  %2873 = vmax.xlane.f32.xlu0 %v2872
  %v2874 = vpop.xlane.xlu0 %2873
  %v2875 = vsel %vm158, %v2864, -inf
  %2876 = vmax.xlane.f32.xlu0 %v2875
  %v2877 = vpop.xlane.xlu0 %2876
  %v2878 = vsel %vm158, %v2867, -inf
  %2879 = vmax.xlane.f32.xlu0 %v2878
  %v2880 = vpop.xlane.xlu0 %2879
  %v2881 = vsel %vm158, %v2870, -inf
  %2882 = vmax.xlane.f32.xlu0 %v2881
  %v2883 = vpop.xlane.xlu0 %2882
  %v2884 = vsub.f32 %v2861, %v2874
  %v2885 = vsub.f32 %v2864, %v2877
  %v2886 = vsub.f32 %v2867, %v2880
  %v2887 = vsub.f32 %v2870, %v2883
  %v2888 = vmul.f32 %v2884, 1.442695
  %v2889 = vpow.pop %v2888
  %v2890 = vmul.f32 %v2885, 1.442695
  %v2891 = vpow.pop %v2890
  %v2892 = vmul.f32 %v2886, 1.442695
  %v2893 = vpow.pop %v2892
  %v2894 = vmul.f32 %v2887, 1.442695
  %v2895 = vpow.pop %v2894
  %v2896 = vsel %vm158, %v2889, 0.0
  %2897 = vadd.xlane.f32.xlu0 %v2896
  %v2898 = vpop.xlane.xlu0 %2897
  %v2899 = vsel %vm158, %v2891, 0.0
  %2900 = vadd.xlane.f32.xlu0 %v2899
  %v2901 = vpop.xlane.xlu0 %2900
  %v2902 = vsel %vm158, %v2893, 0.0
  %2903 = vadd.xlane.f32.xlu0 %v2902
  %v2904 = vpop.xlane.xlu0 %2903
  %v2905 = vsel %vm158, %v2895, 0.0
  %2906 = vadd.xlane.f32.xlu0 %v2905
  %v2907 = vpop.xlane.xlu0 %2906
  %v2908 = vrcp.pop %v2898
  %v2909 = vrcp.pop %v2901
  %v2910 = vrcp.pop %v2904
  %v2911 = vrcp.pop %v2907
  %v2912 = vmul.f32 %v2889, %v2908
  %v2913 = vmul.f32 %v2891, %v2909
  %v2914 = vmul.f32 %v2893, %v2910
  %v2915 = vmul.f32 %v2895, %v2911
  %v2916 = vmul.f32 %v2798, %v136
  %v2917 = vmul.f32 %v2801, %v136
  %v2918 = vmul.f32 %v2804, %v136
  %v2919 = vmul.f32 %v2807, %v136
  %v2920 = vmul.f32 %v2726, %v499
  %v2921 = vmul.f32 %v2729, %v499
  %v2922 = vmul.f32 %v2732, %v499
  %v2923 = vmul.f32 %v2735, %v499
  %v2925 = vsel %vm158, %v2920, 0
  %v2928 = vsel %vm158, %v2921, 0
  %v2931 = vsel %vm158, %v2922, 0
  %v2934 = vsel %vm158, %v2923, 0
  %2936 = vmatpush.xpose.msra.mxu0 0.0
  %2937 = vmatpush.xpose.msra.mxu0 0.0
  %2938 = vmatpush.xpose.msra.mxu0 0.0
  %2939 = vmatpush.xpose.msra.mxu0 0.0
  %2940 = vmatpush.xpose.msra.mxu0 0.0
  %2941 = vmatpush.xpose.msra.mxu0 0.0
  %2942 = vmatpush.xpose.msra.mxu0 0.0
  %2943 = vmatpush.xpose.msra.mxu0 0.0
  %2944 = vmatpush.xpose.msra.mxu0 0.0
  %2945 = vmatpush.xpose.msra.mxu0 0.0
  %2946 = vmatpush.xpose.msra.mxu0 0.0
  %2947 = vmatpush.xpose.msra.mxu0 0.0
  %2948 = vmatpush.xpose.msra.mxu0 %v2841
  %2949 = vmatpush.xpose.msra.mxu0 %v2838
  %2950 = vmatpush.xpose.msra.mxu0 %v2835
  %2951 = vmatpush.xpose.msra.mxu0 %v2832
  %2952 = vmatmul.f32.gmra.mxu0 %v2925
  %v2953 = vpop.f32.mrf.mxu0
  %v2954 = vadd.f32 %v105, %v2953
  %2955 = vmatmul.f32.gmra.mxu0 %v2928
  %v2956 = vpop.f32.mrf.mxu0
  %v2957 = vadd.f32 %v106, %v2956
  %2958 = vmatmul.f32.gmra.mxu0 %v2931
  %v2959 = vpop.f32.mrf.mxu0
  %v2960 = vadd.f32 %v107, %v2959
  %2961 = vmatmul.f32.gmra.mxu0 %v2934
  %v2962 = vpop.f32.mrf.mxu0
  %v2963 = vadd.f32 %v108, %v2962
  %2964 = vdwg.mxu0
  %v2965 = vsel %vm158, %v2954, -inf
  %2966 = vmax.xlane.f32.xlu0 %v2965
  %v2967 = vpop.xlane.xlu0 %2966
  %v2968 = vsel %vm158, %v2957, -inf
  %2969 = vmax.xlane.f32.xlu0 %v2968
  %v2970 = vpop.xlane.xlu0 %2969
  %v2971 = vsel %vm158, %v2960, -inf
  %2972 = vmax.xlane.f32.xlu0 %v2971
  %v2973 = vpop.xlane.xlu0 %2972
  %v2974 = vsel %vm158, %v2963, -inf
  %2975 = vmax.xlane.f32.xlu0 %v2974
  %v2976 = vpop.xlane.xlu0 %2975
  %v2977 = vsub.f32 %v2954, %v2967
  %v2978 = vsub.f32 %v2957, %v2970
  %v2979 = vsub.f32 %v2960, %v2973
  %v2980 = vsub.f32 %v2963, %v2976
  %v2981 = vmul.f32 %v2977, 1.442695
  %v2982 = vpow.pop %v2981
  %v2983 = vmul.f32 %v2978, 1.442695
  %v2984 = vpow.pop %v2983
  %v2985 = vmul.f32 %v2979, 1.442695
  %v2986 = vpow.pop %v2985
  %v2987 = vmul.f32 %v2980, 1.442695
  %v2988 = vpow.pop %v2987
  %v2989 = vsel %vm158, %v2982, 0.0
  %2990 = vadd.xlane.f32.xlu0 %v2989
  %v2991 = vpop.xlane.xlu0 %2990
  %v2992 = vsel %vm158, %v2984, 0.0
  %2993 = vadd.xlane.f32.xlu0 %v2992
  %v2994 = vpop.xlane.xlu0 %2993
  %v2995 = vsel %vm158, %v2986, 0.0
  %2996 = vadd.xlane.f32.xlu0 %v2995
  %v2997 = vpop.xlane.xlu0 %2996
  %v2998 = vsel %vm158, %v2988, 0.0
  %2999 = vadd.xlane.f32.xlu0 %v2998
  %v3000 = vpop.xlane.xlu0 %2999
  %v3001 = vrcp.pop %v2991
  %v3002 = vrcp.pop %v2994
  %v3003 = vrcp.pop %v2997
  %v3004 = vrcp.pop %v3000
  %v3005 = vmul.f32 %v2982, %v3001
  %v3006 = vmul.f32 %v2984, %v3002
  %v3007 = vmul.f32 %v2986, %v3003
  %v3008 = vmul.f32 %v2988, %v3004
  %v3009 = vmul.f32 %v2798, %v141
  %v3010 = vmul.f32 %v2801, %v141
  %v3011 = vmul.f32 %v2804, %v141
  %v3012 = vmul.f32 %v2807, %v141
  %v3014 = vsel %vm158, %v3005, 0
  %v3017 = vsel %vm158, %v3006, 0
  %v3020 = vsel %vm158, %v3007, 0
  %v3023 = vsel %vm158, %v3008, 0
  %3025 = vmatpush.msra.mxu0 0.0
  %3026 = vmatpush.msra.mxu0 0.0
  %3027 = vmatpush.msra.mxu0 0.0
  %3028 = vmatpush.msra.mxu0 0.0
  %3029 = vmatpush.msra.mxu0 0.0
  %3030 = vmatpush.msra.mxu0 0.0
  %3031 = vmatpush.msra.mxu0 0.0
  %3032 = vmatpush.msra.mxu0 0.0
  %3033 = vmatpush.msra.mxu0 0.0
  %3034 = vmatpush.msra.mxu0 0.0
  %3035 = vmatpush.msra.mxu0 0.0
  %3036 = vmatpush.msra.mxu0 0.0
  %3037 = vmatpush.msra.mxu0 %v3012
  %3038 = vmatpush.msra.mxu0 %v3011
  %3039 = vmatpush.msra.mxu0 %v3010
  %3040 = vmatpush.msra.mxu0 %v3009
  %3041 = vmatmul.f32.gmra.mxu0 %v3014
  %v3042 = vpop.f32.mrf.mxu0
  %v3043 = vadd.f32 0.0, %v3042
  %3044 = vmatmul.f32.gmra.mxu0 %v3017
  %v3045 = vpop.f32.mrf.mxu0
  %v3046 = vadd.f32 0.0, %v3045
  %3047 = vmatmul.f32.gmra.mxu0 %v3020
  %v3048 = vpop.f32.mrf.mxu0
  %v3049 = vadd.f32 0.0, %v3048
  %3050 = vmatmul.f32.gmra.mxu0 %v3023
  %v3051 = vpop.f32.mrf.mxu0
  %v3052 = vadd.f32 0.0, %v3051
  %3053 = vdwg.mxu0
  %v3055 = vsel %vm158, %v2912, 0
  %v3058 = vsel %vm158, %v2913, 0
  %v3061 = vsel %vm158, %v2914, 0
  %v3064 = vsel %vm158, %v2915, 0
  %3066 = vmatpush.msra.mxu0 0.0
  %3067 = vmatpush.msra.mxu0 0.0
  %3068 = vmatpush.msra.mxu0 0.0
  %3069 = vmatpush.msra.mxu0 0.0
  %3070 = vmatpush.msra.mxu0 0.0
  %3071 = vmatpush.msra.mxu0 0.0
  %3072 = vmatpush.msra.mxu0 0.0
  %3073 = vmatpush.msra.mxu0 0.0
  %3074 = vmatpush.msra.mxu0 0.0
  %3075 = vmatpush.msra.mxu0 0.0
  %3076 = vmatpush.msra.mxu0 0.0
  %3077 = vmatpush.msra.mxu0 0.0
  %3078 = vmatpush.msra.mxu0 %v2919
  %3079 = vmatpush.msra.mxu0 %v2918
  %3080 = vmatpush.msra.mxu0 %v2917
  %3081 = vmatpush.msra.mxu0 %v2916
  %3082 = vmatmul.f32.gmra.mxu0 %v3055
  %v3083 = vpop.f32.mrf.mxu0
  %v3084 = vadd.f32 %v3043, %v3083
  %3085 = vmatmul.f32.gmra.mxu0 %v3058
  %v3086 = vpop.f32.mrf.mxu0
  %v3087 = vadd.f32 %v3046, %v3086
  %3088 = vmatmul.f32.gmra.mxu0 %v3061
  %v3089 = vpop.f32.mrf.mxu0
  %v3090 = vadd.f32 %v3049, %v3089
  %3091 = vmatmul.f32.gmra.mxu0 %v3064
  %v3092 = vpop.f32.mrf.mxu0
  %v3093 = vadd.f32 %v3052, %v3092
  %3094 = vdwg.mxu0
  %v3095 = vmul.f32 %v2726, %v675
  %v3096 = vmul.f32 %v2729, %v675
  %v3097 = vmul.f32 %v2732, %v675
  %v3098 = vmul.f32 %v2735, %v675
  %v3100 = vsel %vm158, %v3095, 0
  %v3103 = vsel %vm158, %v3096, 0
  %v3106 = vsel %vm158, %v3097, 0
  %v3109 = vsel %vm158, %v3098, 0
  %3111 = vmatpush.xpose.msra.mxu0 0.0
  %3112 = vmatpush.xpose.msra.mxu0 0.0
  %3113 = vmatpush.xpose.msra.mxu0 0.0
  %3114 = vmatpush.xpose.msra.mxu0 0.0
  %3115 = vmatpush.xpose.msra.mxu0 0.0
  %3116 = vmatpush.xpose.msra.mxu0 0.0
  %3117 = vmatpush.xpose.msra.mxu0 0.0
  %3118 = vmatpush.xpose.msra.mxu0 0.0
  %3119 = vmatpush.xpose.msra.mxu0 0.0
  %3120 = vmatpush.xpose.msra.mxu0 0.0
  %3121 = vmatpush.xpose.msra.mxu0 0.0
  %3122 = vmatpush.xpose.msra.mxu0 0.0
  %3123 = vmatpush.xpose.msra.mxu0 %v2841
  %3124 = vmatpush.xpose.msra.mxu0 %v2838
  %3125 = vmatpush.xpose.msra.mxu0 %v2835
  %3126 = vmatpush.xpose.msra.mxu0 %v2832
  %3127 = vmatmul.f32.gmra.mxu0 %v3100
  %v3128 = vpop.f32.mrf.mxu0
  %v3129 = vadd.f32 %v105, %v3128
  %3130 = vmatmul.f32.gmra.mxu0 %v3103
  %v3131 = vpop.f32.mrf.mxu0
  %v3132 = vadd.f32 %v106, %v3131
  %3133 = vmatmul.f32.gmra.mxu0 %v3106
  %v3134 = vpop.f32.mrf.mxu0
  %v3135 = vadd.f32 %v107, %v3134
  %3136 = vmatmul.f32.gmra.mxu0 %v3109
  %v3137 = vpop.f32.mrf.mxu0
  %v3138 = vadd.f32 %v108, %v3137
  %3139 = vdwg.mxu0
  %v3140 = vsel %vm158, %v3129, -inf
  %3141 = vmax.xlane.f32.xlu0 %v3140
  %v3142 = vpop.xlane.xlu0 %3141
  %v3143 = vsel %vm158, %v3132, -inf
  %3144 = vmax.xlane.f32.xlu0 %v3143
  %v3145 = vpop.xlane.xlu0 %3144
  %v3146 = vsel %vm158, %v3135, -inf
  %3147 = vmax.xlane.f32.xlu0 %v3146
  %v3148 = vpop.xlane.xlu0 %3147
  %v3149 = vsel %vm158, %v3138, -inf
  %3150 = vmax.xlane.f32.xlu0 %v3149
  %v3151 = vpop.xlane.xlu0 %3150
  %v3152 = vsub.f32 %v3129, %v3142
  %v3153 = vsub.f32 %v3132, %v3145
  %v3154 = vsub.f32 %v3135, %v3148
  %v3155 = vsub.f32 %v3138, %v3151
  %v3156 = vmul.f32 %v3152, 1.442695
  %v3157 = vpow.pop %v3156
  %v3158 = vmul.f32 %v3153, 1.442695
  %v3159 = vpow.pop %v3158
  %v3160 = vmul.f32 %v3154, 1.442695
  %v3161 = vpow.pop %v3160
  %v3162 = vmul.f32 %v3155, 1.442695
  %v3163 = vpow.pop %v3162
  %v3164 = vsel %vm158, %v3157, 0.0
  %3165 = vadd.xlane.f32.xlu0 %v3164
  %v3166 = vpop.xlane.xlu0 %3165
  %v3167 = vsel %vm158, %v3159, 0.0
  %3168 = vadd.xlane.f32.xlu0 %v3167
  %v3169 = vpop.xlane.xlu0 %3168
  %v3170 = vsel %vm158, %v3161, 0.0
  %3171 = vadd.xlane.f32.xlu0 %v3170
  %v3172 = vpop.xlane.xlu0 %3171
  %v3173 = vsel %vm158, %v3163, 0.0
  %3174 = vadd.xlane.f32.xlu0 %v3173
  %v3175 = vpop.xlane.xlu0 %3174
  %v3176 = vrcp.pop %v3166
  %v3177 = vrcp.pop %v3169
  %v3178 = vrcp.pop %v3172
  %v3179 = vrcp.pop %v3175
  %v3180 = vmul.f32 %v3157, %v3176
  %v3181 = vmul.f32 %v3159, %v3177
  %v3182 = vmul.f32 %v3161, %v3178
  %v3183 = vmul.f32 %v3163, %v3179
  %v3184 = vmul.f32 %v2798, %v146
  %v3185 = vmul.f32 %v2801, %v146
  %v3186 = vmul.f32 %v2804, %v146
  %v3187 = vmul.f32 %v2807, %v146
  %v3189 = vsel %vm158, %v3180, 0
  %v3192 = vsel %vm158, %v3181, 0
  %v3195 = vsel %vm158, %v3182, 0
  %v3198 = vsel %vm158, %v3183, 0
  %3200 = vmatpush.msra.mxu0 0.0
  %3201 = vmatpush.msra.mxu0 0.0
  %3202 = vmatpush.msra.mxu0 0.0
  %3203 = vmatpush.msra.mxu0 0.0
  %3204 = vmatpush.msra.mxu0 0.0
  %3205 = vmatpush.msra.mxu0 0.0
  %3206 = vmatpush.msra.mxu0 0.0
  %3207 = vmatpush.msra.mxu0 0.0
  %3208 = vmatpush.msra.mxu0 0.0
  %3209 = vmatpush.msra.mxu0 0.0
  %3210 = vmatpush.msra.mxu0 0.0
  %3211 = vmatpush.msra.mxu0 0.0
  %3212 = vmatpush.msra.mxu0 %v3187
  %3213 = vmatpush.msra.mxu0 %v3186
  %3214 = vmatpush.msra.mxu0 %v3185
  %3215 = vmatpush.msra.mxu0 %v3184
  %3216 = vmatmul.f32.gmra.mxu0 %v3189
  %v3217 = vpop.f32.mrf.mxu0
  %v3218 = vadd.f32 0.0, %v3217
  %3219 = vmatmul.f32.gmra.mxu0 %v3192
  %v3220 = vpop.f32.mrf.mxu0
  %v3221 = vadd.f32 0.0, %v3220
  %3222 = vmatmul.f32.gmra.mxu0 %v3195
  %v3223 = vpop.f32.mrf.mxu0
  %v3224 = vadd.f32 0.0, %v3223
  %3225 = vmatmul.f32.gmra.mxu0 %v3198
  %v3226 = vpop.f32.mrf.mxu0
  %v3227 = vadd.f32 0.0, %v3226
  %3228 = vdwg.mxu0
  %v3229 = vadd.f32 %v3084, %v3218
  %v3230 = vadd.f32 %v3087, %v3221
  %v3231 = vadd.f32 %v3090, %v3224
  %v3232 = vadd.f32 %v3093, %v3227
  %v3233 = vmul.f32 %v2726, %v814
  %v3234 = vmul.f32 %v2729, %v814
  %v3235 = vmul.f32 %v2732, %v814
  %v3236 = vmul.f32 %v2735, %v814
  %v3238 = vsel %vm158, %v3233, 0
  %v3241 = vsel %vm158, %v3234, 0
  %v3244 = vsel %vm158, %v3235, 0
  %v3247 = vsel %vm158, %v3236, 0
  %3249 = vmatpush.xpose.msra.mxu0 0.0
  %3250 = vmatpush.xpose.msra.mxu0 0.0
  %3251 = vmatpush.xpose.msra.mxu0 0.0
  %3252 = vmatpush.xpose.msra.mxu0 0.0
  %3253 = vmatpush.xpose.msra.mxu0 0.0
  %3254 = vmatpush.xpose.msra.mxu0 0.0
  %3255 = vmatpush.xpose.msra.mxu0 0.0
  %3256 = vmatpush.xpose.msra.mxu0 0.0
  %3257 = vmatpush.xpose.msra.mxu0 0.0
  %3258 = vmatpush.xpose.msra.mxu0 0.0
  %3259 = vmatpush.xpose.msra.mxu0 0.0
  %3260 = vmatpush.xpose.msra.mxu0 0.0
  %3261 = vmatpush.xpose.msra.mxu0 %v2841
  %3262 = vmatpush.xpose.msra.mxu0 %v2838
  %3263 = vmatpush.xpose.msra.mxu0 %v2835
  %3264 = vmatpush.xpose.msra.mxu0 %v2832
  %3265 = vmatmul.f32.gmra.mxu0 %v3238
  %v3266 = vpop.f32.mrf.mxu0
  %v3267 = vadd.f32 %v105, %v3266
  %3268 = vmatmul.f32.gmra.mxu0 %v3241
  %v3269 = vpop.f32.mrf.mxu0
  %v3270 = vadd.f32 %v106, %v3269
  %3271 = vmatmul.f32.gmra.mxu0 %v3244
  %v3272 = vpop.f32.mrf.mxu0
  %v3273 = vadd.f32 %v107, %v3272
  %3274 = vmatmul.f32.gmra.mxu0 %v3247
  %v3275 = vpop.f32.mrf.mxu0
  %v3276 = vadd.f32 %v108, %v3275
  %3277 = vdwg.mxu0
  %v3278 = vsel %vm158, %v3267, -inf
  %3279 = vmax.xlane.f32.xlu0 %v3278
  %v3280 = vpop.xlane.xlu0 %3279
  %v3281 = vsel %vm158, %v3270, -inf
  %3282 = vmax.xlane.f32.xlu0 %v3281
  %v3283 = vpop.xlane.xlu0 %3282
  %v3284 = vsel %vm158, %v3273, -inf
  %3285 = vmax.xlane.f32.xlu0 %v3284
  %v3286 = vpop.xlane.xlu0 %3285
  %v3287 = vsel %vm158, %v3276, -inf
  %3288 = vmax.xlane.f32.xlu0 %v3287
  %v3289 = vpop.xlane.xlu0 %3288
  %v3290 = vsub.f32 %v3267, %v3280
  %v3291 = vsub.f32 %v3270, %v3283
  %v3292 = vsub.f32 %v3273, %v3286
  %v3293 = vsub.f32 %v3276, %v3289
  %v3294 = vmul.f32 %v3290, 1.442695
  %v3295 = vpow.pop %v3294
  %v3296 = vmul.f32 %v3291, 1.442695
  %v3297 = vpow.pop %v3296
  %v3298 = vmul.f32 %v3292, 1.442695
  %v3299 = vpow.pop %v3298
  %v3300 = vmul.f32 %v3293, 1.442695
  %v3301 = vpow.pop %v3300
  %v3302 = vsel %vm158, %v3295, 0.0
  %3303 = vadd.xlane.f32.xlu0 %v3302
  %v3304 = vpop.xlane.xlu0 %3303
  %v3305 = vsel %vm158, %v3297, 0.0
  %3306 = vadd.xlane.f32.xlu0 %v3305
  %v3307 = vpop.xlane.xlu0 %3306
  %v3308 = vsel %vm158, %v3299, 0.0
  %3309 = vadd.xlane.f32.xlu0 %v3308
  %v3310 = vpop.xlane.xlu0 %3309
  %v3311 = vsel %vm158, %v3301, 0.0
  %3312 = vadd.xlane.f32.xlu0 %v3311
  %v3313 = vpop.xlane.xlu0 %3312
  %v3314 = vrcp.pop %v3304
  %v3315 = vrcp.pop %v3307
  %v3316 = vrcp.pop %v3310
  %v3317 = vrcp.pop %v3313
  %v3318 = vmul.f32 %v3295, %v3314
  %v3319 = vmul.f32 %v3297, %v3315
  %v3320 = vmul.f32 %v3299, %v3316
  %v3321 = vmul.f32 %v3301, %v3317
  %v3322 = vmul.f32 %v2798, %v151
  %v3323 = vmul.f32 %v2801, %v151
  %v3324 = vmul.f32 %v2804, %v151
  %v3325 = vmul.f32 %v2807, %v151
  %v3327 = vsel %vm158, %v3318, 0
  %v3330 = vsel %vm158, %v3319, 0
  %v3333 = vsel %vm158, %v3320, 0
  %v3336 = vsel %vm158, %v3321, 0
  %3338 = vmatpush.msra.mxu0 0.0
  %3339 = vmatpush.msra.mxu0 0.0
  %3340 = vmatpush.msra.mxu0 0.0
  %3341 = vmatpush.msra.mxu0 0.0
  %3342 = vmatpush.msra.mxu0 0.0
  %3343 = vmatpush.msra.mxu0 0.0
  %3344 = vmatpush.msra.mxu0 0.0
  %3345 = vmatpush.msra.mxu0 0.0
  %3346 = vmatpush.msra.mxu0 0.0
  %3347 = vmatpush.msra.mxu0 0.0
  %3348 = vmatpush.msra.mxu0 0.0
  %3349 = vmatpush.msra.mxu0 0.0
  %3350 = vmatpush.msra.mxu0 %v3325
  %3351 = vmatpush.msra.mxu0 %v3324
  %3352 = vmatpush.msra.mxu0 %v3323
  %3353 = vmatpush.msra.mxu0 %v3322
  %3354 = vmatmul.f32.gmra.mxu0 %v3327
  %v3355 = vpop.f32.mrf.mxu0
  %v3356 = vadd.f32 0.0, %v3355
  %3357 = vmatmul.f32.gmra.mxu0 %v3330
  %v3358 = vpop.f32.mrf.mxu0
  %v3359 = vadd.f32 0.0, %v3358
  %3360 = vmatmul.f32.gmra.mxu0 %v3333
  %v3361 = vpop.f32.mrf.mxu0
  %v3362 = vadd.f32 0.0, %v3361
  %3363 = vmatmul.f32.gmra.mxu0 %v3336
  %v3364 = vpop.f32.mrf.mxu0
  %v3365 = vadd.f32 0.0, %v3364
  %3366 = vdwg.mxu0
  %v3367 = vadd.f32 %v3229, %v3356
  %v3368 = vadd.f32 %v3230, %v3359
  %v3369 = vadd.f32 %v3231, %v3362
  %v3370 = vadd.f32 %v3232, %v3365
  %v3371 = vperm.slane %v2814, 0
  %v3373 = vsel %vm158, %v3367, 0
  %v3376 = vsel %vm158, %v3368, 0
  %v3379 = vsel %vm158, %v3369, 0
  %v3382 = vsel %vm158, %v3370, 0
  %3384 = vmatpush.msra.mxu0 0.0
  %3385 = vmatpush.msra.mxu0 0.0
  %3386 = vmatpush.msra.mxu0 0.0
  %3387 = vmatpush.msra.mxu0 0.0
  %3388 = vmatpush.msra.mxu0 0.0
  %3389 = vmatpush.msra.mxu0 0.0
  %3390 = vmatpush.msra.mxu0 0.0
  %3391 = vmatpush.msra.mxu0 0.0
  %3392 = vmatpush.msra.mxu0 0.0
  %3393 = vmatpush.msra.mxu0 0.0
  %3394 = vmatpush.msra.mxu0 0.0
  %3395 = vmatpush.msra.mxu0 0.0
  %3396 = vmatpush.msra.mxu0 %v2813
  %3397 = vmatpush.msra.mxu0 %v2812
  %3398 = vmatpush.msra.mxu0 %v2811
  %3399 = vmatpush.msra.mxu0 %v2810
  %3400 = vmatmul.f32.gmra.mxu0 %v3373
  %v3401 = vpop.f32.mrf.mxu0
  %v3402 = vadd.f32 %v3371, %v3401
  %3403 = vmatmul.f32.gmra.mxu0 %v3376
  %v3404 = vpop.f32.mrf.mxu0
  %v3405 = vadd.f32 %v3371, %v3404
  %3406 = vmatmul.f32.gmra.mxu0 %v3379
  %v3407 = vpop.f32.mrf.mxu0
  %v3408 = vadd.f32 %v3371, %v3407
  %3409 = vmatmul.f32.gmra.mxu0 %v3382
  %v3410 = vpop.f32.mrf.mxu0
  %v3411 = vadd.f32 %v3371, %v3410
  %3412 = vdwg.mxu0
  %v3413 = vadd.f32 %v2217, %v3402
  %v3414 = vadd.f32 %v2218, %v3405
  %v3415 = vadd.f32 %v2219, %v3408
  %v3416 = vadd.f32 %v2220, %v3411
  %v3417 = vld [vmem:[%s2693 + $0x4] sm:$0x1]
  %v3418 = vld [vmem:[%s2693 + $0x5] sm:$0x1]
  %v3419 = vsel %vm158, %v3413, 0.0
  %3420 = vadd.xlane.f32.xlu0 %v3419
  %v3421 = vpop.xlane.xlu0 %3420
  %v3422 = vsel %vm158, %v3414, 0.0
  %3423 = vadd.xlane.f32.xlu0 %v3422
  %v3424 = vpop.xlane.xlu0 %3423
  %v3425 = vsel %vm158, %v3415, 0.0
  %3426 = vadd.xlane.f32.xlu0 %v3425
  %v3427 = vpop.xlane.xlu0 %3426
  %v3428 = vsel %vm158, %v3416, 0.0
  %3429 = vadd.xlane.f32.xlu0 %v3428
  %v3430 = vpop.xlane.xlu0 %3429
  %v3431 = vmul.f32 %v3421, %v1019
  %v3432 = vmul.f32 %v3424, %v1019
  %v3433 = vmul.f32 %v3427, %v1019
  %v3434 = vmul.f32 %v3430, %v1019
  %v3435 = vsub.f32 %v3413, %v3431
  %v3436 = vsub.f32 %v3414, %v3432
  %v3437 = vsub.f32 %v3415, %v3433
  %v3438 = vsub.f32 %v3416, %v3434
  %v3439 = vmul.f32 %v3435, %v3435
  %v3440 = vmul.f32 %v3436, %v3436
  %v3441 = vmul.f32 %v3437, %v3437
  %v3442 = vmul.f32 %v3438, %v3438
  %v3443 = vsel %vm158, %v3439, 0.0
  %3444 = vadd.xlane.f32.xlu0 %v3443
  %v3445 = vpop.xlane.xlu0 %3444
  %v3446 = vsel %vm158, %v3440, 0.0
  %3447 = vadd.xlane.f32.xlu0 %v3446
  %v3448 = vpop.xlane.xlu0 %3447
  %v3449 = vsel %vm158, %v3441, 0.0
  %3450 = vadd.xlane.f32.xlu0 %v3449
  %v3451 = vpop.xlane.xlu0 %3450
  %v3452 = vsel %vm158, %v3442, 0.0
  %3453 = vadd.xlane.f32.xlu0 %v3452
  %v3454 = vpop.xlane.xlu0 %3453
  %v3455 = vmul.f32 %v3445, %v1019
  %v3456 = vmul.f32 %v3448, %v1019
  %v3457 = vmul.f32 %v3451, %v1019
  %v3458 = vmul.f32 %v3454, %v1019
  %v3459 = vadd.f32 %v3455, 1e-05
  %v3460 = vadd.f32 %v3456, 1e-05
  %v3461 = vadd.f32 %v3457, 1e-05
  %v3462 = vadd.f32 %v3458, 1e-05
  %v3463 = vrsqrt.pop %v3459
  %v3464 = vmul.f32 %v3463, %v3459
  %v3465 = vmul.f32 %v3464, %v3463
  %v3466 = vmul.f32 0.5, %v3465
  %v3467 = vsub.f32 1.5, %v3466
  %v3468 = vmul.f32 %v3463, %v3467
  %vm3469 = vweird.f32 %v3459
  %vm3470 = vweird.f32 %v3463
  %vm3471 = vmor %vm3469, %vm3470
  %v3472 = vsel %vm3471, %v3463, %v3468
  %v3473 = vrsqrt.pop %v3460
  %v3474 = vmul.f32 %v3473, %v3460
  %v3475 = vmul.f32 %v3474, %v3473
  %v3476 = vmul.f32 0.5, %v3475
  %v3477 = vsub.f32 1.5, %v3476
  %v3478 = vmul.f32 %v3473, %v3477
  %vm3479 = vweird.f32 %v3460
  %vm3480 = vweird.f32 %v3473
  %vm3481 = vmor %vm3479, %vm3480
  %v3482 = vsel %vm3481, %v3473, %v3478
  %v3483 = vrsqrt.pop %v3461
  %v3484 = vmul.f32 %v3483, %v3461
  %v3485 = vmul.f32 %v3484, %v3483
  %v3486 = vmul.f32 0.5, %v3485
  %v3487 = vsub.f32 1.5, %v3486
  %v3488 = vmul.f32 %v3483, %v3487
  %vm3489 = vweird.f32 %v3461
  %vm3490 = vweird.f32 %v3483
  %vm3491 = vmor %vm3489, %vm3490
  %v3492 = vsel %vm3491, %v3483, %v3488
  %v3493 = vrsqrt.pop %v3462
  %v3494 = vmul.f32 %v3493, %v3462
  %v3495 = vmul.f32 %v3494, %v3493
  %v3496 = vmul.f32 0.5, %v3495
  %v3497 = vsub.f32 1.5, %v3496
  %v3498 = vmul.f32 %v3493, %v3497
  %vm3499 = vweird.f32 %v3462
  %vm3500 = vweird.f32 %v3493
  %vm3501 = vmor %vm3499, %vm3500
  %v3502 = vsel %vm3501, %v3493, %v3498
  %v3503 = vmul.f32 %v3435, %v3472
  %v3504 = vmul.f32 %v3436, %v3482
  %v3505 = vmul.f32 %v3437, %v3492
  %v3506 = vmul.f32 %v3438, %v3502
  %v3507 = vperm.slane %v3417, 0
  %v3508 = vmul.f32 %v3503, %v3507
  %v3509 = vmul.f32 %v3504, %v3507
  %v3510 = vmul.f32 %v3505, %v3507
  %v3511 = vmul.f32 %v3506, %v3507
  %v3512 = vperm.slane %v3418, 0
  %v3513 = vadd.f32 %v3508, %v3512
  %v3514 = vadd.f32 %v3509, %v3512
  %v3515 = vadd.f32 %v3510, %v3512
  %v3516 = vadd.f32 %v3511, %v3512
  %v3517 = vadd.f32 %v3513, %v2673
  %v3518 = vadd.f32 %v3514, %v2676
  %v3519 = vadd.f32 %v3515, %v2679
  %v3520 = vadd.f32 %v3516, %v2682
  %s3521 = scalar_lea.vmem %s8, 512
  %v3522 = vld [vmem:[%s3521] sm:$0xff]
  %v3523 = vld [vmem:[%s3521 + $0x8] sm:$0xff]
  %v3524 = vld [vmem:[%s3521 + $0x10] sm:$0xff]
  %v3525 = vld [vmem:[%s3521 + $0x18] sm:$0xff]
  %v3526 = vld [vmem:[%s2693 + $0x6] sm:$0x1]
  %v3527 = vperm.slane %v3526, 0
  %v3529 = vsel %vm158, %v3517, 0
  %v3532 = vsel %vm158, %v3518, 0
  %v3535 = vsel %vm158, %v3519, 0
  %v3538 = vsel %vm158, %v3520, 0
  %3540 = vmatpush.msra.mxu0 0.0
  %3541 = vmatpush.msra.mxu0 0.0
  %3542 = vmatpush.msra.mxu0 0.0
  %3543 = vmatpush.msra.mxu0 0.0
  %3544 = vmatpush.msra.mxu0 0.0
  %3545 = vmatpush.msra.mxu0 0.0
  %3546 = vmatpush.msra.mxu0 0.0
  %3547 = vmatpush.msra.mxu0 0.0
  %3548 = vmatpush.msra.mxu0 0.0
  %3549 = vmatpush.msra.mxu0 0.0
  %3550 = vmatpush.msra.mxu0 0.0
  %3551 = vmatpush.msra.mxu0 0.0
  %3552 = vmatpush.msra.mxu0 %v3525
  %3553 = vmatpush.msra.mxu0 %v3524
  %3554 = vmatpush.msra.mxu0 %v3523
  %3555 = vmatpush.msra.mxu0 %v3522
  %3556 = vmatmul.f32.gmra.mxu0 %v3529
  %v3557 = vpop.f32.mrf.mxu0
  %v3558 = vadd.f32 %v3527, %v3557
  %3559 = vmatmul.f32.gmra.mxu0 %v3532
  %v3560 = vpop.f32.mrf.mxu0
  %v3561 = vadd.f32 %v3527, %v3560
  %3562 = vmatmul.f32.gmra.mxu0 %v3535
  %v3563 = vpop.f32.mrf.mxu0
  %v3564 = vadd.f32 %v3527, %v3563
  %3565 = vmatmul.f32.gmra.mxu0 %v3538
  %v3566 = vpop.f32.mrf.mxu0
  %v3567 = vadd.f32 %v3527, %v3566
  %3568 = vdwg.mxu0
  %s3569 = scalar_lea.vmem %s8, 544
  %v3570 = vld [vmem:[%s3569] sm:$0xff]
  %v3571 = vld [vmem:[%s3569 + $0x8] sm:$0xff]
  %v3572 = vld [vmem:[%s3569 + $0x10] sm:$0xff]
  %v3573 = vld [vmem:[%s3569 + $0x18] sm:$0xff]
  %v3574 = vld [vmem:[%s2693 + $0x7] sm:$0x1]
  %v3575 = vperm.slane %v3574, 0
  %3576 = vmatpush.msra.mxu0 0.0
  %3577 = vmatpush.msra.mxu0 0.0
  %3578 = vmatpush.msra.mxu0 0.0
  %3579 = vmatpush.msra.mxu0 0.0
  %3580 = vmatpush.msra.mxu0 0.0
  %3581 = vmatpush.msra.mxu0 0.0
  %3582 = vmatpush.msra.mxu0 0.0
  %3583 = vmatpush.msra.mxu0 0.0
  %3584 = vmatpush.msra.mxu0 0.0
  %3585 = vmatpush.msra.mxu0 0.0
  %3586 = vmatpush.msra.mxu0 0.0
  %3587 = vmatpush.msra.mxu0 0.0
  %3588 = vmatpush.msra.mxu0 %v3573
  %3589 = vmatpush.msra.mxu0 %v3572
  %3590 = vmatpush.msra.mxu0 %v3571
  %3591 = vmatpush.msra.mxu0 %v3570
  %3592 = vmatmul.f32.gmra.mxu0 %v1166
  %v3593 = vpop.f32.mrf.mxu0
  %v3594 = vadd.f32 %v3575, %v3593
  %3595 = vmatmul.f32.gmra.mxu0 %v1169
  %v3596 = vpop.f32.mrf.mxu0
  %v3597 = vadd.f32 %v3575, %v3596
  %3598 = vmatmul.f32.gmra.mxu0 %v1172
  %v3599 = vpop.f32.mrf.mxu0
  %v3600 = vadd.f32 %v3575, %v3599
  %3601 = vmatmul.f32.gmra.mxu0 %v1175
  %v3602 = vpop.f32.mrf.mxu0
  %v3603 = vadd.f32 %v3575, %v3602
  %3604 = vmatmul.f32.gmra.mxu0 %v1178
  %v3605 = vpop.f32.mrf.mxu0
  %v3606 = vadd.f32 %v3575, %v3605
  %3607 = vmatmul.f32.gmra.mxu0 %v1181
  %v3608 = vpop.f32.mrf.mxu0
  %v3609 = vadd.f32 %v3575, %v3608
  %3610 = vdwg.mxu0
  %s3611 = scalar_lea.vmem %s8, 576
  %v3612 = vld [vmem:[%s3611] sm:$0xff]
  %v3613 = vld [vmem:[%s3611 + $0x8] sm:$0xff]
  %v3614 = vld [vmem:[%s3611 + $0x10] sm:$0xff]
  %v3615 = vld [vmem:[%s3611 + $0x18] sm:$0xff]
  %v3616 = vld [vmem:[%s2693 + $0x8] sm:$0x1]
  %v3617 = vperm.slane %v3616, 0
  %3618 = vmatpush.msra.mxu0 0.0
  %3619 = vmatpush.msra.mxu0 0.0
  %3620 = vmatpush.msra.mxu0 0.0
  %3621 = vmatpush.msra.mxu0 0.0
  %3622 = vmatpush.msra.mxu0 0.0
  %3623 = vmatpush.msra.mxu0 0.0
  %3624 = vmatpush.msra.mxu0 0.0
  %3625 = vmatpush.msra.mxu0 0.0
  %3626 = vmatpush.msra.mxu0 0.0
  %3627 = vmatpush.msra.mxu0 0.0
  %3628 = vmatpush.msra.mxu0 0.0
  %3629 = vmatpush.msra.mxu0 0.0
  %3630 = vmatpush.msra.mxu0 %v3615
  %3631 = vmatpush.msra.mxu0 %v3614
  %3632 = vmatpush.msra.mxu0 %v3613
  %3633 = vmatpush.msra.mxu0 %v3612
  %3634 = vmatmul.f32.gmra.mxu0 %v1226
  %v3635 = vpop.f32.mrf.mxu0
  %v3636 = vadd.f32 %v3617, %v3635
  %3637 = vmatmul.f32.gmra.mxu0 %v1229
  %v3638 = vpop.f32.mrf.mxu0
  %v3639 = vadd.f32 %v3617, %v3638
  %3640 = vmatmul.f32.gmra.mxu0 %v1232
  %v3641 = vpop.f32.mrf.mxu0
  %v3642 = vadd.f32 %v3617, %v3641
  %3643 = vmatmul.f32.gmra.mxu0 %v1235
  %v3644 = vpop.f32.mrf.mxu0
  %v3645 = vadd.f32 %v3617, %v3644
  %3646 = vmatmul.f32.gmra.mxu0 %v1238
  %v3647 = vpop.f32.mrf.mxu0
  %v3648 = vadd.f32 %v3617, %v3647
  %3649 = vmatmul.f32.gmra.mxu0 %v1241
  %v3650 = vpop.f32.mrf.mxu0
  %v3651 = vadd.f32 %v3617, %v3650
  %3652 = vdwg.mxu0
  %s3653 = scalar_lea.vmem %s8, 608
  %v3654 = vld [vmem:[%s3653] sm:$0xff]
  %v3655 = vld [vmem:[%s3653 + $0x8] sm:$0xff]
  %v3656 = vld [vmem:[%s3653 + $0x10] sm:$0xff]
  %v3657 = vld [vmem:[%s3653 + $0x18] sm:$0xff]
  %v3658 = vld [vmem:[%s2693 + $0x9] sm:$0x1]
  %v3659 = vmul.f32 %v3558, %v393
  %v3660 = vmul.f32 %v3561, %v393
  %v3661 = vmul.f32 %v3564, %v393
  %v3662 = vmul.f32 %v3567, %v393
  %v3664 = vsel %vm158, %v3659, 0
  %v3667 = vsel %vm158, %v3660, 0
  %v3670 = vsel %vm158, %v3661, 0
  %v3673 = vsel %vm158, %v3662, 0
  %v3676 = vsel %vm158, %v3594, 0
  %v3679 = vsel %vm158, %v3597, 0
  %v3682 = vsel %vm158, %v3600, 0
  %v3685 = vsel %vm158, %v3603, 0
  %v3688 = vsel %vm158, %v3606, 0
  %v3691 = vsel %vm158, %v3609, 0
  %3693 = vmatpush.xpose.msra.mxu0 0.0
  %3694 = vmatpush.xpose.msra.mxu0 0.0
  %3695 = vmatpush.xpose.msra.mxu0 0.0
  %3696 = vmatpush.xpose.msra.mxu0 0.0
  %3697 = vmatpush.xpose.msra.mxu0 0.0
  %3698 = vmatpush.xpose.msra.mxu0 0.0
  %3699 = vmatpush.xpose.msra.mxu0 0.0
  %3700 = vmatpush.xpose.msra.mxu0 0.0
  %3701 = vmatpush.xpose.msra.mxu0 0.0
  %3702 = vmatpush.xpose.msra.mxu0 0.0
  %3703 = vmatpush.xpose.msra.mxu0 %v3691
  %3704 = vmatpush.xpose.msra.mxu0 %v3688
  %3705 = vmatpush.xpose.msra.mxu0 %v3685
  %3706 = vmatpush.xpose.msra.mxu0 %v3682
  %3707 = vmatpush.xpose.msra.mxu0 %v3679
  %3708 = vmatpush.xpose.msra.mxu0 %v3676
  %3709 = vmatmul.f32.gmra.mxu0 %v3664
  %v3710 = vpop.f32.mrf.mxu0
  %v3711 = vadd.f32 %v126, %v3710
  %3712 = vmatmul.f32.gmra.mxu0 %v3667
  %v3713 = vpop.f32.mrf.mxu0
  %v3714 = vadd.f32 %v127, %v3713
  %3715 = vmatmul.f32.gmra.mxu0 %v3670
  %v3716 = vpop.f32.mrf.mxu0
  %v3717 = vadd.f32 %v128, %v3716
  %3718 = vmatmul.f32.gmra.mxu0 %v3673
  %v3719 = vpop.f32.mrf.mxu0
  %v3720 = vadd.f32 %v129, %v3719
  %3721 = vdwg.mxu0
  %v3722 = vsel %vm1347, %v3711, -inf
  %3723 = vmax.xlane.f32.xlu0 %v3722
  %v3724 = vpop.xlane.xlu0 %3723
  %v3725 = vsel %vm1347, %v3714, -inf
  %3726 = vmax.xlane.f32.xlu0 %v3725
  %v3727 = vpop.xlane.xlu0 %3726
  %v3728 = vsel %vm1347, %v3717, -inf
  %3729 = vmax.xlane.f32.xlu0 %v3728
  %v3730 = vpop.xlane.xlu0 %3729
  %v3731 = vsel %vm1347, %v3720, -inf
  %3732 = vmax.xlane.f32.xlu0 %v3731
  %v3733 = vpop.xlane.xlu0 %3732
  %v3734 = vsub.f32 %v3711, %v3724
  %v3735 = vsub.f32 %v3714, %v3727
  %v3736 = vsub.f32 %v3717, %v3730
  %v3737 = vsub.f32 %v3720, %v3733
  %v3738 = vmul.f32 %v3734, 1.442695
  %v3739 = vpow.pop %v3738
  %v3740 = vmul.f32 %v3735, 1.442695
  %v3741 = vpow.pop %v3740
  %v3742 = vmul.f32 %v3736, 1.442695
  %v3743 = vpow.pop %v3742
  %v3744 = vmul.f32 %v3737, 1.442695
  %v3745 = vpow.pop %v3744
  %v3746 = vsel %vm1347, %v3739, 0.0
  %3747 = vadd.xlane.f32.xlu0 %v3746
  %v3748 = vpop.xlane.xlu0 %3747
  %v3749 = vsel %vm1347, %v3741, 0.0
  %3750 = vadd.xlane.f32.xlu0 %v3749
  %v3751 = vpop.xlane.xlu0 %3750
  %v3752 = vsel %vm1347, %v3743, 0.0
  %3753 = vadd.xlane.f32.xlu0 %v3752
  %v3754 = vpop.xlane.xlu0 %3753
  %v3755 = vsel %vm1347, %v3745, 0.0
  %3756 = vadd.xlane.f32.xlu0 %v3755
  %v3757 = vpop.xlane.xlu0 %3756
  %v3758 = vrcp.pop %v3748
  %v3759 = vrcp.pop %v3751
  %v3760 = vrcp.pop %v3754
  %v3761 = vrcp.pop %v3757
  %v3762 = vmul.f32 %v3739, %v3758
  %v3763 = vmul.f32 %v3741, %v3759
  %v3764 = vmul.f32 %v3743, %v3760
  %v3765 = vmul.f32 %v3745, %v3761
  %v3766 = vmul.f32 %v3636, %v136
  %v3767 = vmul.f32 %v3639, %v136
  %v3768 = vmul.f32 %v3642, %v136
  %v3769 = vmul.f32 %v3645, %v136
  %v3770 = vmul.f32 %v3648, %v136
  %v3771 = vmul.f32 %v3651, %v136
  %v3772 = vmul.f32 %v3558, %v499
  %v3773 = vmul.f32 %v3561, %v499
  %v3774 = vmul.f32 %v3564, %v499
  %v3775 = vmul.f32 %v3567, %v499
  %v3777 = vsel %vm158, %v3772, 0
  %v3780 = vsel %vm158, %v3773, 0
  %v3783 = vsel %vm158, %v3774, 0
  %v3786 = vsel %vm158, %v3775, 0
  %3788 = vmatpush.xpose.msra.mxu0 0.0
  %3789 = vmatpush.xpose.msra.mxu0 0.0
  %3790 = vmatpush.xpose.msra.mxu0 0.0
  %3791 = vmatpush.xpose.msra.mxu0 0.0
  %3792 = vmatpush.xpose.msra.mxu0 0.0
  %3793 = vmatpush.xpose.msra.mxu0 0.0
  %3794 = vmatpush.xpose.msra.mxu0 0.0
  %3795 = vmatpush.xpose.msra.mxu0 0.0
  %3796 = vmatpush.xpose.msra.mxu0 0.0
  %3797 = vmatpush.xpose.msra.mxu0 0.0
  %3798 = vmatpush.xpose.msra.mxu0 %v3691
  %3799 = vmatpush.xpose.msra.mxu0 %v3688
  %3800 = vmatpush.xpose.msra.mxu0 %v3685
  %3801 = vmatpush.xpose.msra.mxu0 %v3682
  %3802 = vmatpush.xpose.msra.mxu0 %v3679
  %3803 = vmatpush.xpose.msra.mxu0 %v3676
  %3804 = vmatmul.f32.gmra.mxu0 %v3777
  %v3805 = vpop.f32.mrf.mxu0
  %v3806 = vadd.f32 %v126, %v3805
  %3807 = vmatmul.f32.gmra.mxu0 %v3780
  %v3808 = vpop.f32.mrf.mxu0
  %v3809 = vadd.f32 %v127, %v3808
  %3810 = vmatmul.f32.gmra.mxu0 %v3783
  %v3811 = vpop.f32.mrf.mxu0
  %v3812 = vadd.f32 %v128, %v3811
  %3813 = vmatmul.f32.gmra.mxu0 %v3786
  %v3814 = vpop.f32.mrf.mxu0
  %v3815 = vadd.f32 %v129, %v3814
  %3816 = vdwg.mxu0
  %v3817 = vsel %vm1347, %v3806, -inf
  %3818 = vmax.xlane.f32.xlu0 %v3817
  %v3819 = vpop.xlane.xlu0 %3818
  %v3820 = vsel %vm1347, %v3809, -inf
  %3821 = vmax.xlane.f32.xlu0 %v3820
  %v3822 = vpop.xlane.xlu0 %3821
  %v3823 = vsel %vm1347, %v3812, -inf
  %3824 = vmax.xlane.f32.xlu0 %v3823
  %v3825 = vpop.xlane.xlu0 %3824
  %v3826 = vsel %vm1347, %v3815, -inf
  %3827 = vmax.xlane.f32.xlu0 %v3826
  %v3828 = vpop.xlane.xlu0 %3827
  %v3829 = vsub.f32 %v3806, %v3819
  %v3830 = vsub.f32 %v3809, %v3822
  %v3831 = vsub.f32 %v3812, %v3825
  %v3832 = vsub.f32 %v3815, %v3828
  %v3833 = vmul.f32 %v3829, 1.442695
  %v3834 = vpow.pop %v3833
  %v3835 = vmul.f32 %v3830, 1.442695
  %v3836 = vpow.pop %v3835
  %v3837 = vmul.f32 %v3831, 1.442695
  %v3838 = vpow.pop %v3837
  %v3839 = vmul.f32 %v3832, 1.442695
  %v3840 = vpow.pop %v3839
  %v3841 = vsel %vm1347, %v3834, 0.0
  %3842 = vadd.xlane.f32.xlu0 %v3841
  %v3843 = vpop.xlane.xlu0 %3842
  %v3844 = vsel %vm1347, %v3836, 0.0
  %3845 = vadd.xlane.f32.xlu0 %v3844
  %v3846 = vpop.xlane.xlu0 %3845
  %v3847 = vsel %vm1347, %v3838, 0.0
  %3848 = vadd.xlane.f32.xlu0 %v3847
  %v3849 = vpop.xlane.xlu0 %3848
  %v3850 = vsel %vm1347, %v3840, 0.0
  %3851 = vadd.xlane.f32.xlu0 %v3850
  %v3852 = vpop.xlane.xlu0 %3851
  %v3853 = vrcp.pop %v3843
  %v3854 = vrcp.pop %v3846
  %v3855 = vrcp.pop %v3849
  %v3856 = vrcp.pop %v3852
  %v3857 = vmul.f32 %v3834, %v3853
  %v3858 = vmul.f32 %v3836, %v3854
  %v3859 = vmul.f32 %v3838, %v3855
  %v3860 = vmul.f32 %v3840, %v3856
  %v3861 = vmul.f32 %v3636, %v141
  %v3862 = vmul.f32 %v3639, %v141
  %v3863 = vmul.f32 %v3642, %v141
  %v3864 = vmul.f32 %v3645, %v141
  %v3865 = vmul.f32 %v3648, %v141
  %v3866 = vmul.f32 %v3651, %v141
  %v3868 = vsel %vm1347, %v3857, 0
  %v3871 = vsel %vm1347, %v3858, 0
  %v3874 = vsel %vm1347, %v3859, 0
  %v3877 = vsel %vm1347, %v3860, 0
  %v3880 = vsel %vm1505, %v3866, 0
  %3882 = vmatpush.msra.mxu0 0.0
  %3883 = vmatpush.msra.mxu0 0.0
  %3884 = vmatpush.msra.mxu0 0.0
  %3885 = vmatpush.msra.mxu0 0.0
  %3886 = vmatpush.msra.mxu0 0.0
  %3887 = vmatpush.msra.mxu0 0.0
  %3888 = vmatpush.msra.mxu0 0.0
  %3889 = vmatpush.msra.mxu0 0.0
  %3890 = vmatpush.msra.mxu0 0.0
  %3891 = vmatpush.msra.mxu0 0.0
  %3892 = vmatpush.msra.mxu0 %v3880
  %3893 = vmatpush.msra.mxu0 %v3865
  %3894 = vmatpush.msra.mxu0 %v3864
  %3895 = vmatpush.msra.mxu0 %v3863
  %3896 = vmatpush.msra.mxu0 %v3862
  %3897 = vmatpush.msra.mxu0 %v3861
  %3898 = vmatmul.f32.gmra.mxu0 %v3868
  %v3899 = vpop.f32.mrf.mxu0
  %v3900 = vadd.f32 0.0, %v3899
  %3901 = vmatmul.f32.gmra.mxu0 %v3871
  %v3902 = vpop.f32.mrf.mxu0
  %v3903 = vadd.f32 0.0, %v3902
  %3904 = vmatmul.f32.gmra.mxu0 %v3874
  %v3905 = vpop.f32.mrf.mxu0
  %v3906 = vadd.f32 0.0, %v3905
  %3907 = vmatmul.f32.gmra.mxu0 %v3877
  %v3908 = vpop.f32.mrf.mxu0
  %v3909 = vadd.f32 0.0, %v3908
  %3910 = vdwg.mxu0
  %v3912 = vsel %vm1347, %v3762, 0
  %v3915 = vsel %vm1347, %v3763, 0
  %v3918 = vsel %vm1347, %v3764, 0
  %v3921 = vsel %vm1347, %v3765, 0
  %v3924 = vsel %vm1505, %v3771, 0
  %3926 = vmatpush.msra.mxu0 0.0
  %3927 = vmatpush.msra.mxu0 0.0
  %3928 = vmatpush.msra.mxu0 0.0
  %3929 = vmatpush.msra.mxu0 0.0
  %3930 = vmatpush.msra.mxu0 0.0
  %3931 = vmatpush.msra.mxu0 0.0
  %3932 = vmatpush.msra.mxu0 0.0
  %3933 = vmatpush.msra.mxu0 0.0
  %3934 = vmatpush.msra.mxu0 0.0
  %3935 = vmatpush.msra.mxu0 0.0
  %3936 = vmatpush.msra.mxu0 %v3924
  %3937 = vmatpush.msra.mxu0 %v3770
  %3938 = vmatpush.msra.mxu0 %v3769
  %3939 = vmatpush.msra.mxu0 %v3768
  %3940 = vmatpush.msra.mxu0 %v3767
  %3941 = vmatpush.msra.mxu0 %v3766
  %3942 = vmatmul.f32.gmra.mxu0 %v3912
  %v3943 = vpop.f32.mrf.mxu0
  %v3944 = vadd.f32 %v3900, %v3943
  %3945 = vmatmul.f32.gmra.mxu0 %v3915
  %v3946 = vpop.f32.mrf.mxu0
  %v3947 = vadd.f32 %v3903, %v3946
  %3948 = vmatmul.f32.gmra.mxu0 %v3918
  %v3949 = vpop.f32.mrf.mxu0
  %v3950 = vadd.f32 %v3906, %v3949
  %3951 = vmatmul.f32.gmra.mxu0 %v3921
  %v3952 = vpop.f32.mrf.mxu0
  %v3953 = vadd.f32 %v3909, %v3952
  %3954 = vdwg.mxu0
  %v3955 = vmul.f32 %v3558, %v675
  %v3956 = vmul.f32 %v3561, %v675
  %v3957 = vmul.f32 %v3564, %v675
  %v3958 = vmul.f32 %v3567, %v675
  %v3960 = vsel %vm158, %v3955, 0
  %v3963 = vsel %vm158, %v3956, 0
  %v3966 = vsel %vm158, %v3957, 0
  %v3969 = vsel %vm158, %v3958, 0
  %3971 = vmatpush.xpose.msra.mxu0 0.0
  %3972 = vmatpush.xpose.msra.mxu0 0.0
  %3973 = vmatpush.xpose.msra.mxu0 0.0
  %3974 = vmatpush.xpose.msra.mxu0 0.0
  %3975 = vmatpush.xpose.msra.mxu0 0.0
  %3976 = vmatpush.xpose.msra.mxu0 0.0
  %3977 = vmatpush.xpose.msra.mxu0 0.0
  %3978 = vmatpush.xpose.msra.mxu0 0.0
  %3979 = vmatpush.xpose.msra.mxu0 0.0
  %3980 = vmatpush.xpose.msra.mxu0 0.0
  %3981 = vmatpush.xpose.msra.mxu0 %v3691
  %3982 = vmatpush.xpose.msra.mxu0 %v3688
  %3983 = vmatpush.xpose.msra.mxu0 %v3685
  %3984 = vmatpush.xpose.msra.mxu0 %v3682
  %3985 = vmatpush.xpose.msra.mxu0 %v3679
  %3986 = vmatpush.xpose.msra.mxu0 %v3676
  %3987 = vmatmul.f32.gmra.mxu0 %v3960
  %v3988 = vpop.f32.mrf.mxu0
  %v3989 = vadd.f32 %v126, %v3988
  %3990 = vmatmul.f32.gmra.mxu0 %v3963
  %v3991 = vpop.f32.mrf.mxu0
  %v3992 = vadd.f32 %v127, %v3991
  %3993 = vmatmul.f32.gmra.mxu0 %v3966
  %v3994 = vpop.f32.mrf.mxu0
  %v3995 = vadd.f32 %v128, %v3994
  %3996 = vmatmul.f32.gmra.mxu0 %v3969
  %v3997 = vpop.f32.mrf.mxu0
  %v3998 = vadd.f32 %v129, %v3997
  %3999 = vdwg.mxu0
  %v4000 = vsel %vm1347, %v3989, -inf
  %4001 = vmax.xlane.f32.xlu0 %v4000
  %v4002 = vpop.xlane.xlu0 %4001
  %v4003 = vsel %vm1347, %v3992, -inf
  %4004 = vmax.xlane.f32.xlu0 %v4003
  %v4005 = vpop.xlane.xlu0 %4004
  %v4006 = vsel %vm1347, %v3995, -inf
  %4007 = vmax.xlane.f32.xlu0 %v4006
  %v4008 = vpop.xlane.xlu0 %4007
  %v4009 = vsel %vm1347, %v3998, -inf
  %4010 = vmax.xlane.f32.xlu0 %v4009
  %v4011 = vpop.xlane.xlu0 %4010
  %v4012 = vsub.f32 %v3989, %v4002
  %v4013 = vsub.f32 %v3992, %v4005
  %v4014 = vsub.f32 %v3995, %v4008
  %v4015 = vsub.f32 %v3998, %v4011
  %v4016 = vmul.f32 %v4012, 1.442695
  %v4017 = vpow.pop %v4016
  %v4018 = vmul.f32 %v4013, 1.442695
  %v4019 = vpow.pop %v4018
  %v4020 = vmul.f32 %v4014, 1.442695
  %v4021 = vpow.pop %v4020
  %v4022 = vmul.f32 %v4015, 1.442695
  %v4023 = vpow.pop %v4022
  %v4024 = vsel %vm1347, %v4017, 0.0
  %4025 = vadd.xlane.f32.xlu0 %v4024
  %v4026 = vpop.xlane.xlu0 %4025
  %v4027 = vsel %vm1347, %v4019, 0.0
  %4028 = vadd.xlane.f32.xlu0 %v4027
  %v4029 = vpop.xlane.xlu0 %4028
  %v4030 = vsel %vm1347, %v4021, 0.0
  %4031 = vadd.xlane.f32.xlu0 %v4030
  %v4032 = vpop.xlane.xlu0 %4031
  %v4033 = vsel %vm1347, %v4023, 0.0
  %4034 = vadd.xlane.f32.xlu0 %v4033
  %v4035 = vpop.xlane.xlu0 %4034
  %v4036 = vrcp.pop %v4026
  %v4037 = vrcp.pop %v4029
  %v4038 = vrcp.pop %v4032
  %v4039 = vrcp.pop %v4035
  %v4040 = vmul.f32 %v4017, %v4036
  %v4041 = vmul.f32 %v4019, %v4037
  %v4042 = vmul.f32 %v4021, %v4038
  %v4043 = vmul.f32 %v4023, %v4039
  %v4044 = vmul.f32 %v3636, %v146
  %v4045 = vmul.f32 %v3639, %v146
  %v4046 = vmul.f32 %v3642, %v146
  %v4047 = vmul.f32 %v3645, %v146
  %v4048 = vmul.f32 %v3648, %v146
  %v4049 = vmul.f32 %v3651, %v146
  %v4051 = vsel %vm1347, %v4040, 0
  %v4054 = vsel %vm1347, %v4041, 0
  %v4057 = vsel %vm1347, %v4042, 0
  %v4060 = vsel %vm1347, %v4043, 0
  %v4063 = vsel %vm1505, %v4049, 0
  %4065 = vmatpush.msra.mxu0 0.0
  %4066 = vmatpush.msra.mxu0 0.0
  %4067 = vmatpush.msra.mxu0 0.0
  %4068 = vmatpush.msra.mxu0 0.0
  %4069 = vmatpush.msra.mxu0 0.0
  %4070 = vmatpush.msra.mxu0 0.0
  %4071 = vmatpush.msra.mxu0 0.0
  %4072 = vmatpush.msra.mxu0 0.0
  %4073 = vmatpush.msra.mxu0 0.0
  %4074 = vmatpush.msra.mxu0 0.0
  %4075 = vmatpush.msra.mxu0 %v4063
  %4076 = vmatpush.msra.mxu0 %v4048
  %4077 = vmatpush.msra.mxu0 %v4047
  %4078 = vmatpush.msra.mxu0 %v4046
  %4079 = vmatpush.msra.mxu0 %v4045
  %4080 = vmatpush.msra.mxu0 %v4044
  %4081 = vmatmul.f32.gmra.mxu0 %v4051
  %v4082 = vpop.f32.mrf.mxu0
  %v4083 = vadd.f32 0.0, %v4082
  %4084 = vmatmul.f32.gmra.mxu0 %v4054
  %v4085 = vpop.f32.mrf.mxu0
  %v4086 = vadd.f32 0.0, %v4085
  %4087 = vmatmul.f32.gmra.mxu0 %v4057
  %v4088 = vpop.f32.mrf.mxu0
  %v4089 = vadd.f32 0.0, %v4088
  %4090 = vmatmul.f32.gmra.mxu0 %v4060
  %v4091 = vpop.f32.mrf.mxu0
  %v4092 = vadd.f32 0.0, %v4091
  %4093 = vdwg.mxu0
  %v4094 = vadd.f32 %v3944, %v4083
  %v4095 = vadd.f32 %v3947, %v4086
  %v4096 = vadd.f32 %v3950, %v4089
  %v4097 = vadd.f32 %v3953, %v4092
  %v4098 = vmul.f32 %v3558, %v814
  %v4099 = vmul.f32 %v3561, %v814
  %v4100 = vmul.f32 %v3564, %v814
  %v4101 = vmul.f32 %v3567, %v814
  %v4103 = vsel %vm158, %v4098, 0
  %v4106 = vsel %vm158, %v4099, 0
  %v4109 = vsel %vm158, %v4100, 0
  %v4112 = vsel %vm158, %v4101, 0
  %4114 = vmatpush.xpose.msra.mxu0 0.0
  %4115 = vmatpush.xpose.msra.mxu0 0.0
  %4116 = vmatpush.xpose.msra.mxu0 0.0
  %4117 = vmatpush.xpose.msra.mxu0 0.0
  %4118 = vmatpush.xpose.msra.mxu0 0.0
  %4119 = vmatpush.xpose.msra.mxu0 0.0
  %4120 = vmatpush.xpose.msra.mxu0 0.0
  %4121 = vmatpush.xpose.msra.mxu0 0.0
  %4122 = vmatpush.xpose.msra.mxu0 0.0
  %4123 = vmatpush.xpose.msra.mxu0 0.0
  %4124 = vmatpush.xpose.msra.mxu0 %v3691
  %4125 = vmatpush.xpose.msra.mxu0 %v3688
  %4126 = vmatpush.xpose.msra.mxu0 %v3685
  %4127 = vmatpush.xpose.msra.mxu0 %v3682
  %4128 = vmatpush.xpose.msra.mxu0 %v3679
  %4129 = vmatpush.xpose.msra.mxu0 %v3676
  %4130 = vmatmul.f32.gmra.mxu0 %v4103
  %v4131 = vpop.f32.mrf.mxu0
  %v4132 = vadd.f32 %v126, %v4131
  %4133 = vmatmul.f32.gmra.mxu0 %v4106
  %v4134 = vpop.f32.mrf.mxu0
  %v4135 = vadd.f32 %v127, %v4134
  %4136 = vmatmul.f32.gmra.mxu0 %v4109
  %v4137 = vpop.f32.mrf.mxu0
  %v4138 = vadd.f32 %v128, %v4137
  %4139 = vmatmul.f32.gmra.mxu0 %v4112
  %v4140 = vpop.f32.mrf.mxu0
  %v4141 = vadd.f32 %v129, %v4140
  %4142 = vdwg.mxu0
  %v4143 = vsel %vm1347, %v4132, -inf
  %4144 = vmax.xlane.f32.xlu0 %v4143
  %v4145 = vpop.xlane.xlu0 %4144
  %v4146 = vsel %vm1347, %v4135, -inf
  %4147 = vmax.xlane.f32.xlu0 %v4146
  %v4148 = vpop.xlane.xlu0 %4147
  %v4149 = vsel %vm1347, %v4138, -inf
  %4150 = vmax.xlane.f32.xlu0 %v4149
  %v4151 = vpop.xlane.xlu0 %4150
  %v4152 = vsel %vm1347, %v4141, -inf
  %4153 = vmax.xlane.f32.xlu0 %v4152
  %v4154 = vpop.xlane.xlu0 %4153
  %v4155 = vsub.f32 %v4132, %v4145
  %v4156 = vsub.f32 %v4135, %v4148
  %v4157 = vsub.f32 %v4138, %v4151
  %v4158 = vsub.f32 %v4141, %v4154
  %v4159 = vmul.f32 %v4155, 1.442695
  %v4160 = vpow.pop %v4159
  %v4161 = vmul.f32 %v4156, 1.442695
  %v4162 = vpow.pop %v4161
  %v4163 = vmul.f32 %v4157, 1.442695
  %v4164 = vpow.pop %v4163
  %v4165 = vmul.f32 %v4158, 1.442695
  %v4166 = vpow.pop %v4165
  %v4167 = vsel %vm1347, %v4160, 0.0
  %4168 = vadd.xlane.f32.xlu0 %v4167
  %v4169 = vpop.xlane.xlu0 %4168
  %v4170 = vsel %vm1347, %v4162, 0.0
  %4171 = vadd.xlane.f32.xlu0 %v4170
  %v4172 = vpop.xlane.xlu0 %4171
  %v4173 = vsel %vm1347, %v4164, 0.0
  %4174 = vadd.xlane.f32.xlu0 %v4173
  %v4175 = vpop.xlane.xlu0 %4174
  %v4176 = vsel %vm1347, %v4166, 0.0
  %4177 = vadd.xlane.f32.xlu0 %v4176
  %v4178 = vpop.xlane.xlu0 %4177
  %v4179 = vrcp.pop %v4169
  %v4180 = vrcp.pop %v4172
  %v4181 = vrcp.pop %v4175
  %v4182 = vrcp.pop %v4178
  %v4183 = vmul.f32 %v4160, %v4179
  %v4184 = vmul.f32 %v4162, %v4180
  %v4185 = vmul.f32 %v4164, %v4181
  %v4186 = vmul.f32 %v4166, %v4182
  %v4187 = vmul.f32 %v3636, %v151
  %v4188 = vmul.f32 %v3639, %v151
  %v4189 = vmul.f32 %v3642, %v151
  %v4190 = vmul.f32 %v3645, %v151
  %v4191 = vmul.f32 %v3648, %v151
  %v4192 = vmul.f32 %v3651, %v151
  %v4194 = vsel %vm1347, %v4183, 0
  %v4197 = vsel %vm1347, %v4184, 0
  %v4200 = vsel %vm1347, %v4185, 0
  %v4203 = vsel %vm1347, %v4186, 0
  %v4206 = vsel %vm1505, %v4192, 0
  %4208 = vmatpush.msra.mxu0 0.0
  %4209 = vmatpush.msra.mxu0 0.0
  %4210 = vmatpush.msra.mxu0 0.0
  %4211 = vmatpush.msra.mxu0 0.0
  %4212 = vmatpush.msra.mxu0 0.0
  %4213 = vmatpush.msra.mxu0 0.0
  %4214 = vmatpush.msra.mxu0 0.0
  %4215 = vmatpush.msra.mxu0 0.0
  %4216 = vmatpush.msra.mxu0 0.0
  %4217 = vmatpush.msra.mxu0 0.0
  %4218 = vmatpush.msra.mxu0 %v4206
  %4219 = vmatpush.msra.mxu0 %v4191
  %4220 = vmatpush.msra.mxu0 %v4190
  %4221 = vmatpush.msra.mxu0 %v4189
  %4222 = vmatpush.msra.mxu0 %v4188
  %4223 = vmatpush.msra.mxu0 %v4187
  %4224 = vmatmul.f32.gmra.mxu0 %v4194
  %v4225 = vpop.f32.mrf.mxu0
  %v4226 = vadd.f32 0.0, %v4225
  %4227 = vmatmul.f32.gmra.mxu0 %v4197
  %v4228 = vpop.f32.mrf.mxu0
  %v4229 = vadd.f32 0.0, %v4228
  %4230 = vmatmul.f32.gmra.mxu0 %v4200
  %v4231 = vpop.f32.mrf.mxu0
  %v4232 = vadd.f32 0.0, %v4231
  %4233 = vmatmul.f32.gmra.mxu0 %v4203
  %v4234 = vpop.f32.mrf.mxu0
  %v4235 = vadd.f32 0.0, %v4234
  %4236 = vdwg.mxu0
  %v4237 = vadd.f32 %v4094, %v4226
  %v4238 = vadd.f32 %v4095, %v4229
  %v4239 = vadd.f32 %v4096, %v4232
  %v4240 = vadd.f32 %v4097, %v4235
  %v4241 = vperm.slane %v3658, 0
  %v4243 = vsel %vm158, %v4237, 0
  %v4246 = vsel %vm158, %v4238, 0
  %v4249 = vsel %vm158, %v4239, 0
  %v4252 = vsel %vm158, %v4240, 0
  %4254 = vmatpush.msra.mxu0 0.0
  %4255 = vmatpush.msra.mxu0 0.0
  %4256 = vmatpush.msra.mxu0 0.0
  %4257 = vmatpush.msra.mxu0 0.0
  %4258 = vmatpush.msra.mxu0 0.0
  %4259 = vmatpush.msra.mxu0 0.0
  %4260 = vmatpush.msra.mxu0 0.0
  %4261 = vmatpush.msra.mxu0 0.0
  %4262 = vmatpush.msra.mxu0 0.0
  %4263 = vmatpush.msra.mxu0 0.0
  %4264 = vmatpush.msra.mxu0 0.0
  %4265 = vmatpush.msra.mxu0 0.0
  %4266 = vmatpush.msra.mxu0 %v3657
  %4267 = vmatpush.msra.mxu0 %v3656
  %4268 = vmatpush.msra.mxu0 %v3655
  %4269 = vmatpush.msra.mxu0 %v3654
  %4270 = vmatmul.f32.gmra.mxu0 %v4243
  %v4271 = vpop.f32.mrf.mxu0
  %v4272 = vadd.f32 %v4241, %v4271
  %4273 = vmatmul.f32.gmra.mxu0 %v4246
  %v4274 = vpop.f32.mrf.mxu0
  %v4275 = vadd.f32 %v4241, %v4274
  %4276 = vmatmul.f32.gmra.mxu0 %v4249
  %v4277 = vpop.f32.mrf.mxu0
  %v4278 = vadd.f32 %v4241, %v4277
  %4279 = vmatmul.f32.gmra.mxu0 %v4252
  %v4280 = vpop.f32.mrf.mxu0
  %v4281 = vadd.f32 %v4241, %v4280
  %4282 = vdwg.mxu0
  %v4283 = vadd.f32 %v3513, %v4272
  %v4284 = vadd.f32 %v3514, %v4275
  %v4285 = vadd.f32 %v3515, %v4278
  %v4286 = vadd.f32 %v3516, %v4281
  %v4287 = vld [vmem:[%s2693 + $0xa] sm:$0x1]
  %v4288 = vld [vmem:[%s2693 + $0xb] sm:$0x1]
  %v4289 = vsel %vm158, %v4283, 0.0
  %4290 = vadd.xlane.f32.xlu0 %v4289
  %v4291 = vpop.xlane.xlu0 %4290
  %v4292 = vsel %vm158, %v4284, 0.0
  %4293 = vadd.xlane.f32.xlu0 %v4292
  %v4294 = vpop.xlane.xlu0 %4293
  %v4295 = vsel %vm158, %v4285, 0.0
  %4296 = vadd.xlane.f32.xlu0 %v4295
  %v4297 = vpop.xlane.xlu0 %4296
  %v4298 = vsel %vm158, %v4286, 0.0
  %4299 = vadd.xlane.f32.xlu0 %v4298
  %v4300 = vpop.xlane.xlu0 %4299
  %v4301 = vmul.f32 %v4291, %v1019
  %v4302 = vmul.f32 %v4294, %v1019
  %v4303 = vmul.f32 %v4297, %v1019
  %v4304 = vmul.f32 %v4300, %v1019
  %v4305 = vsub.f32 %v4283, %v4301
  %v4306 = vsub.f32 %v4284, %v4302
  %v4307 = vsub.f32 %v4285, %v4303
  %v4308 = vsub.f32 %v4286, %v4304
  %v4309 = vmul.f32 %v4305, %v4305
  %v4310 = vmul.f32 %v4306, %v4306
  %v4311 = vmul.f32 %v4307, %v4307
  %v4312 = vmul.f32 %v4308, %v4308
  %v4313 = vsel %vm158, %v4309, 0.0
  %4314 = vadd.xlane.f32.xlu0 %v4313
  %v4315 = vpop.xlane.xlu0 %4314
  %v4316 = vsel %vm158, %v4310, 0.0
  %4317 = vadd.xlane.f32.xlu0 %v4316
  %v4318 = vpop.xlane.xlu0 %4317
  %v4319 = vsel %vm158, %v4311, 0.0
  %4320 = vadd.xlane.f32.xlu0 %v4319
  %v4321 = vpop.xlane.xlu0 %4320
  %v4322 = vsel %vm158, %v4312, 0.0
  %4323 = vadd.xlane.f32.xlu0 %v4322
  %v4324 = vpop.xlane.xlu0 %4323
  %v4325 = vmul.f32 %v4315, %v1019
  %v4326 = vmul.f32 %v4318, %v1019
  %v4327 = vmul.f32 %v4321, %v1019
  %v4328 = vmul.f32 %v4324, %v1019
  %v4329 = vadd.f32 %v4325, 1e-05
  %v4330 = vadd.f32 %v4326, 1e-05
  %v4331 = vadd.f32 %v4327, 1e-05
  %v4332 = vadd.f32 %v4328, 1e-05
  %v4333 = vrsqrt.pop %v4329
  %v4334 = vmul.f32 %v4333, %v4329
  %v4335 = vmul.f32 %v4334, %v4333
  %v4336 = vmul.f32 0.5, %v4335
  %v4337 = vsub.f32 1.5, %v4336
  %v4338 = vmul.f32 %v4333, %v4337
  %vm4339 = vweird.f32 %v4329
  %vm4340 = vweird.f32 %v4333
  %vm4341 = vmor %vm4339, %vm4340
  %v4342 = vsel %vm4341, %v4333, %v4338
  %v4343 = vrsqrt.pop %v4330
  %v4344 = vmul.f32 %v4343, %v4330
  %v4345 = vmul.f32 %v4344, %v4343
  %v4346 = vmul.f32 0.5, %v4345
  %v4347 = vsub.f32 1.5, %v4346
  %v4348 = vmul.f32 %v4343, %v4347
  %vm4349 = vweird.f32 %v4330
  %vm4350 = vweird.f32 %v4343
  %vm4351 = vmor %vm4349, %vm4350
  %v4352 = vsel %vm4351, %v4343, %v4348
  %v4353 = vrsqrt.pop %v4331
  %v4354 = vmul.f32 %v4353, %v4331
  %v4355 = vmul.f32 %v4354, %v4353
  %v4356 = vmul.f32 0.5, %v4355
  %v4357 = vsub.f32 1.5, %v4356
  %v4358 = vmul.f32 %v4353, %v4357
  %vm4359 = vweird.f32 %v4331
  %vm4360 = vweird.f32 %v4353
  %vm4361 = vmor %vm4359, %vm4360
  %v4362 = vsel %vm4361, %v4353, %v4358
  %v4363 = vrsqrt.pop %v4332
  %v4364 = vmul.f32 %v4363, %v4332
  %v4365 = vmul.f32 %v4364, %v4363
  %v4366 = vmul.f32 0.5, %v4365
  %v4367 = vsub.f32 1.5, %v4366
  %v4368 = vmul.f32 %v4363, %v4367
  %vm4369 = vweird.f32 %v4332
  %vm4370 = vweird.f32 %v4363
  %vm4371 = vmor %vm4369, %vm4370
  %v4372 = vsel %vm4371, %v4363, %v4368
  %v4373 = vmul.f32 %v4305, %v4342
  %v4374 = vmul.f32 %v4306, %v4352
  %v4375 = vmul.f32 %v4307, %v4362
  %v4376 = vmul.f32 %v4308, %v4372
  %v4377 = vperm.slane %v4287, 0
  %v4378 = vmul.f32 %v4373, %v4377
  %v4379 = vmul.f32 %v4374, %v4377
  %v4380 = vmul.f32 %v4375, %v4377
  %v4381 = vmul.f32 %v4376, %v4377
  %v4382 = vperm.slane %v4288, 0
  %v4383 = vadd.f32 %v4378, %v4382
  %v4384 = vadd.f32 %v4379, %v4382
  %v4385 = vadd.f32 %v4380, %v4382
  %v4386 = vadd.f32 %v4381, %v4382
  %s4387 = scalar_lea.vmem %s9, 32
  %v4388 = vld [vmem:[%s4387] sm:$0xff]
  %v4389 = vld [vmem:[%s4387 + $0x8] sm:$0xff]
  %v4390 = vld [vmem:[%s4387 + $0x10] sm:$0xff]
  %v4391 = vld [vmem:[%s4387 + $0x18] sm:$0xff]
  %v4392 = vld [vmem:[%s2693 + $0xc] sm:$0x1]
  %v4393 = vperm.slane %v4392, 0
  %v4395 = vsel %vm158, %v4383, 0
  %v4398 = vsel %vm158, %v4384, 0
  %v4401 = vsel %vm158, %v4385, 0
  %v4404 = vsel %vm158, %v4386, 0
  %4406 = vmatpush.msra.mxu0 0.0
  %4407 = vmatpush.msra.mxu0 0.0
  %4408 = vmatpush.msra.mxu0 0.0
  %4409 = vmatpush.msra.mxu0 0.0
  %4410 = vmatpush.msra.mxu0 0.0
  %4411 = vmatpush.msra.mxu0 0.0
  %4412 = vmatpush.msra.mxu0 0.0
  %4413 = vmatpush.msra.mxu0 0.0
  %4414 = vmatpush.msra.mxu0 0.0
  %4415 = vmatpush.msra.mxu0 0.0
  %4416 = vmatpush.msra.mxu0 0.0
  %4417 = vmatpush.msra.mxu0 0.0
  %4418 = vmatpush.msra.mxu0 %v4391
  %4419 = vmatpush.msra.mxu0 %v4390
  %4420 = vmatpush.msra.mxu0 %v4389
  %4421 = vmatpush.msra.mxu0 %v4388
  %4422 = vmatmul.f32.gmra.mxu0 %v4395
  %v4423 = vpop.f32.mrf.mxu0
  %v4424 = vadd.f32 %v4393, %v4423
  %4425 = vmatmul.f32.gmra.mxu0 %v4398
  %v4426 = vpop.f32.mrf.mxu0
  %v4427 = vadd.f32 %v4393, %v4426
  %4428 = vmatmul.f32.gmra.mxu0 %v4401
  %v4429 = vpop.f32.mrf.mxu0
  %v4430 = vadd.f32 %v4393, %v4429
  %4431 = vmatmul.f32.gmra.mxu0 %v4404
  %v4432 = vpop.f32.mrf.mxu0
  %v4433 = vadd.f32 %v4393, %v4432
  %4434 = vdwg.mxu0
  %v4435 = vmax.f32 %v4424, 0.0
  %v4436 = vmax.f32 %v4427, 0.0
  %v4437 = vmax.f32 %v4430, 0.0
  %v4438 = vmax.f32 %v4433, 0.0
  %s4439 = scalar_lea.vmem %s10, 64
  %v4440 = vld [vmem:[%s4439] sm:$0xff]
  %v4441 = vld [vmem:[%s4439 + $0x8] sm:$0xff]
  %v4442 = vld [vmem:[%s4439 + $0x10] sm:$0xff]
  %v4443 = vld [vmem:[%s4439 + $0x18] sm:$0xff]
  %v4444 = vld [vmem:[%s4439 + $0x20] sm:$0xff]
  %v4445 = vld [vmem:[%s4439 + $0x28] sm:$0xff]
  %v4446 = vld [vmem:[%s4439 + $0x30] sm:$0xff]
  %v4447 = vld [vmem:[%s4439 + $0x38] sm:$0xff]
  %v4448 = vld [vmem:[%s2693 + $0xd] sm:$0x1]
  %v4449 = vperm.slane %v4448, 0
  %v4451 = vsel %vm2075, %v4435, 0
  %v4454 = vsel %vm2075, %v4436, 0
  %v4457 = vsel %vm2075, %v4437, 0
  %v4460 = vsel %vm2075, %v4438, 0
  %4462 = vmatpush.msra.mxu0 0.0
  %4463 = vmatpush.msra.mxu0 0.0
  %4464 = vmatpush.msra.mxu0 0.0
  %4465 = vmatpush.msra.mxu0 0.0
  %4466 = vmatpush.msra.mxu0 0.0
  %4467 = vmatpush.msra.mxu0 0.0
  %4468 = vmatpush.msra.mxu0 0.0
  %4469 = vmatpush.msra.mxu0 0.0
  %4470 = vmatpush.msra.mxu0 %v4447
  %4471 = vmatpush.msra.mxu0 %v4446
  %4472 = vmatpush.msra.mxu0 %v4445
  %4473 = vmatpush.msra.mxu0 %v4444
  %4474 = vmatpush.msra.mxu0 %v4443
  %4475 = vmatpush.msra.mxu0 %v4442
  %4476 = vmatpush.msra.mxu0 %v4441
  %4477 = vmatpush.msra.mxu0 %v4440
  %4478 = vmatmul.f32.gmra.mxu0 %v4451
  %v4479 = vpop.f32.mrf.mxu0
  %v4480 = vadd.f32 %v4449, %v4479
  %4481 = vmatmul.f32.gmra.mxu0 %v4454
  %v4482 = vpop.f32.mrf.mxu0
  %v4483 = vadd.f32 %v4449, %v4482
  %4484 = vmatmul.f32.gmra.mxu0 %v4457
  %v4485 = vpop.f32.mrf.mxu0
  %v4486 = vadd.f32 %v4449, %v4485
  %4487 = vmatmul.f32.gmra.mxu0 %v4460
  %v4488 = vpop.f32.mrf.mxu0
  %v4489 = vadd.f32 %v4449, %v4488
  %4490 = vdwg.mxu0
  %v4491 = vadd.f32 %v4383, %v4480
  %v4492 = vadd.f32 %v4384, %v4483
  %v4493 = vadd.f32 %v4385, %v4486
  %v4494 = vadd.f32 %v4386, %v4489
  %v4495 = vld [vmem:[%s2693 + $0xe] sm:$0x1]
  %v4496 = vld [vmem:[%s2693 + $0xf] sm:$0x1]
  %v4497 = vsel %vm158, %v4491, 0.0
  %4498 = vadd.xlane.f32.xlu0 %v4497
  %v4499 = vpop.xlane.xlu0 %4498
  %v4500 = vsel %vm158, %v4492, 0.0
  %4501 = vadd.xlane.f32.xlu0 %v4500
  %v4502 = vpop.xlane.xlu0 %4501
  %v4503 = vsel %vm158, %v4493, 0.0
  %4504 = vadd.xlane.f32.xlu0 %v4503
  %v4505 = vpop.xlane.xlu0 %4504
  %v4506 = vsel %vm158, %v4494, 0.0
  %4507 = vadd.xlane.f32.xlu0 %v4506
  %v4508 = vpop.xlane.xlu0 %4507
  %v4509 = vmul.f32 %v4499, %v1019
  %v4510 = vmul.f32 %v4502, %v1019
  %v4511 = vmul.f32 %v4505, %v1019
  %v4512 = vmul.f32 %v4508, %v1019
  %v4513 = vsub.f32 %v4491, %v4509
  %v4514 = vsub.f32 %v4492, %v4510
  %v4515 = vsub.f32 %v4493, %v4511
  %v4516 = vsub.f32 %v4494, %v4512
  %v4517 = vmul.f32 %v4513, %v4513
  %v4518 = vmul.f32 %v4514, %v4514
  %v4519 = vmul.f32 %v4515, %v4515
  %v4520 = vmul.f32 %v4516, %v4516
  %v4521 = vsel %vm158, %v4517, 0.0
  %4522 = vadd.xlane.f32.xlu0 %v4521
  %v4523 = vpop.xlane.xlu0 %4522
  %v4524 = vsel %vm158, %v4518, 0.0
  %4525 = vadd.xlane.f32.xlu0 %v4524
  %v4526 = vpop.xlane.xlu0 %4525
  %v4527 = vsel %vm158, %v4519, 0.0
  %4528 = vadd.xlane.f32.xlu0 %v4527
  %v4529 = vpop.xlane.xlu0 %4528
  %v4530 = vsel %vm158, %v4520, 0.0
  %4531 = vadd.xlane.f32.xlu0 %v4530
  %v4532 = vpop.xlane.xlu0 %4531
  %v4533 = vmul.f32 %v4523, %v1019
  %v4534 = vmul.f32 %v4526, %v1019
  %v4535 = vmul.f32 %v4529, %v1019
  %v4536 = vmul.f32 %v4532, %v1019
  %v4537 = vadd.f32 %v4533, 1e-05
  %v4538 = vadd.f32 %v4534, 1e-05
  %v4539 = vadd.f32 %v4535, 1e-05
  %v4540 = vadd.f32 %v4536, 1e-05
  %v4541 = vrsqrt.pop %v4537
  %v4542 = vmul.f32 %v4541, %v4537
  %v4543 = vmul.f32 %v4542, %v4541
  %v4544 = vmul.f32 0.5, %v4543
  %v4545 = vsub.f32 1.5, %v4544
  %v4546 = vmul.f32 %v4541, %v4545
  %vm4547 = vweird.f32 %v4537
  %vm4548 = vweird.f32 %v4541
  %vm4549 = vmor %vm4547, %vm4548
  %v4550 = vsel %vm4549, %v4541, %v4546
  %v4551 = vrsqrt.pop %v4538
  %v4552 = vmul.f32 %v4551, %v4538
  %v4553 = vmul.f32 %v4552, %v4551
  %v4554 = vmul.f32 0.5, %v4553
  %v4555 = vsub.f32 1.5, %v4554
  %v4556 = vmul.f32 %v4551, %v4555
  %vm4557 = vweird.f32 %v4538
  %vm4558 = vweird.f32 %v4551
  %vm4559 = vmor %vm4557, %vm4558
  %v4560 = vsel %vm4559, %v4551, %v4556
  %v4561 = vrsqrt.pop %v4539
  %v4562 = vmul.f32 %v4561, %v4539
  %v4563 = vmul.f32 %v4562, %v4561
  %v4564 = vmul.f32 0.5, %v4563
  %v4565 = vsub.f32 1.5, %v4564
  %v4566 = vmul.f32 %v4561, %v4565
  %vm4567 = vweird.f32 %v4539
  %vm4568 = vweird.f32 %v4561
  %vm4569 = vmor %vm4567, %vm4568
  %v4570 = vsel %vm4569, %v4561, %v4566
  %v4571 = vrsqrt.pop %v4540
  %v4572 = vmul.f32 %v4571, %v4540
  %v4573 = vmul.f32 %v4572, %v4571
  %v4574 = vmul.f32 0.5, %v4573
  %v4575 = vsub.f32 1.5, %v4574
  %v4576 = vmul.f32 %v4571, %v4575
  %vm4577 = vweird.f32 %v4540
  %vm4578 = vweird.f32 %v4571
  %vm4579 = vmor %vm4577, %vm4578
  %v4580 = vsel %vm4579, %v4571, %v4576
  %v4581 = vmul.f32 %v4513, %v4550
  %v4582 = vmul.f32 %v4514, %v4560
  %v4583 = vmul.f32 %v4515, %v4570
  %v4584 = vmul.f32 %v4516, %v4580
  %v4585 = vperm.slane %v4495, 0
  %v4586 = vmul.f32 %v4581, %v4585
  %v4587 = vmul.f32 %v4582, %v4585
  %v4588 = vmul.f32 %v4583, %v4585
  %v4589 = vmul.f32 %v4584, %v4585
  %v4590 = vperm.slane %v4496, 0
  %v4591 = vadd.f32 %v4586, %v4590
  %v4592 = vadd.f32 %v4587, %v4590
  %v4593 = vadd.f32 %v4588, %v4590
  %v4594 = vadd.f32 %v4589, %v4590
  %s4595 = scalar_lea.vmem %s8, 640
  %v4596 = vld [vmem:[%s4595] sm:$0xff]
  %v4597 = vld [vmem:[%s4595 + $0x8] sm:$0xff]
  %v4598 = vld [vmem:[%s4595 + $0x10] sm:$0xff]
  %v4599 = vld [vmem:[%s4595 + $0x18] sm:$0xff]
  %v4600 = vld [vmem:[%s2693 + $0x10] sm:$0x1]
  %v4601 = vperm.slane %v4600, 0
  %v4603 = vsel %vm158, %v4591, 0
  %v4606 = vsel %vm158, %v4592, 0
  %v4609 = vsel %vm158, %v4593, 0
  %v4612 = vsel %vm158, %v4594, 0
  %4614 = vmatpush.msra.mxu0 0.0
  %4615 = vmatpush.msra.mxu0 0.0
  %4616 = vmatpush.msra.mxu0 0.0
  %4617 = vmatpush.msra.mxu0 0.0
  %4618 = vmatpush.msra.mxu0 0.0
  %4619 = vmatpush.msra.mxu0 0.0
  %4620 = vmatpush.msra.mxu0 0.0
  %4621 = vmatpush.msra.mxu0 0.0
  %4622 = vmatpush.msra.mxu0 0.0
  %4623 = vmatpush.msra.mxu0 0.0
  %4624 = vmatpush.msra.mxu0 0.0
  %4625 = vmatpush.msra.mxu0 0.0
  %4626 = vmatpush.msra.mxu0 %v4599
  %4627 = vmatpush.msra.mxu0 %v4598
  %4628 = vmatpush.msra.mxu0 %v4597
  %4629 = vmatpush.msra.mxu0 %v4596
  %4630 = vmatmul.f32.gmra.mxu0 %v4603
  %v4631 = vpop.f32.mrf.mxu0
  %v4632 = vadd.f32 %v4601, %v4631
  %4633 = vmatmul.f32.gmra.mxu0 %v4606
  %v4634 = vpop.f32.mrf.mxu0
  %v4635 = vadd.f32 %v4601, %v4634
  %4636 = vmatmul.f32.gmra.mxu0 %v4609
  %v4637 = vpop.f32.mrf.mxu0
  %v4638 = vadd.f32 %v4601, %v4637
  %4639 = vmatmul.f32.gmra.mxu0 %v4612
  %v4640 = vpop.f32.mrf.mxu0
  %v4641 = vadd.f32 %v4601, %v4640
  %4642 = vdwg.mxu0
  %v4643 = vmax.f32 %v4632, 0.0
  %v4644 = vmax.f32 %v4635, 0.0
  %v4645 = vmax.f32 %v4638, 0.0
  %v4646 = vmax.f32 %v4641, 0.0
  %s4647 = scalar_lea.vmem %s8, 672
  %v4648 = vld [vmem:[%s4647] sm:$0xff]
  %v4649 = vld [vmem:[%s4647 + $0x8] sm:$0xff]
  %v4650 = vld [vmem:[%s4647 + $0x10] sm:$0xff]
  %v4651 = vld [vmem:[%s4647 + $0x18] sm:$0xff]
  %v4652 = vld [vmem:[%s2693 + $0x11] sm:$0x1]
  %v4653 = vperm.slane %v4652, 0
  %v4655 = vsel %vm158, %v4643, 0
  %v4658 = vsel %vm158, %v4644, 0
  %v4661 = vsel %vm158, %v4645, 0
  %v4664 = vsel %vm158, %v4646, 0
  %4666 = vmatpush.msra.mxu0 0.0
  %4667 = vmatpush.msra.mxu0 0.0
  %4668 = vmatpush.msra.mxu0 0.0
  %4669 = vmatpush.msra.mxu0 0.0
  %4670 = vmatpush.msra.mxu0 0.0
  %4671 = vmatpush.msra.mxu0 0.0
  %4672 = vmatpush.msra.mxu0 0.0
  %4673 = vmatpush.msra.mxu0 0.0
  %4674 = vmatpush.msra.mxu0 0.0
  %4675 = vmatpush.msra.mxu0 0.0
  %4676 = vmatpush.msra.mxu0 0.0
  %4677 = vmatpush.msra.mxu0 0.0
  %4678 = vmatpush.msra.mxu0 %v4651
  %4679 = vmatpush.msra.mxu0 %v4650
  %4680 = vmatpush.msra.mxu0 %v4649
  %4681 = vmatpush.msra.mxu0 %v4648
  %4682 = vmatmul.f32.gmra.mxu0 %v4655
  %v4683 = vpop.f32.mrf.mxu0
  %v4684 = vadd.f32 %v4653, %v4683
  %4685 = vmatmul.f32.gmra.mxu0 %v4658
  %v4686 = vpop.f32.mrf.mxu0
  %v4687 = vadd.f32 %v4653, %v4686
  %4688 = vmatmul.f32.gmra.mxu0 %v4661
  %v4689 = vpop.f32.mrf.mxu0
  %v4690 = vadd.f32 %v4653, %v4689
  %4691 = vmatmul.f32.gmra.mxu0 %v4664
  %v4692 = vpop.f32.mrf.mxu0
  %v4693 = vadd.f32 %v4653, %v4692
  %4694 = vdwg.mxu0
  %v4695 = vmax.f32 %v4684, 0.0
  %v4696 = vmax.f32 %v4687, 0.0
  %v4697 = vmax.f32 %v4690, 0.0
  %v4698 = vmax.f32 %v4693, 0.0
  %s4699 = scalar_lea.vmem %s8, 704
  %v4700 = vld [vmem:[%s4699] sm:$0xff]
  %v4701 = vld [vmem:[%s4699 + $0x8] sm:$0xff]
  %v4702 = vld [vmem:[%s4699 + $0x10] sm:$0xff]
  %v4703 = vld [vmem:[%s4699 + $0x18] sm:$0xff]
  %v4704 = vld [vmem:[%s2693 + $0x12] sm:$0x1]
  %v4705 = vperm.slane %v4704, 0
  %v4707 = vsel %vm158, %v4695, 0
  %v4710 = vsel %vm158, %v4696, 0
  %v4713 = vsel %vm158, %v4697, 0
  %v4716 = vsel %vm158, %v4698, 0
  %4718 = vmatpush.msra.mxu0 0.0
  %4719 = vmatpush.msra.mxu0 0.0
  %4720 = vmatpush.msra.mxu0 0.0
  %4721 = vmatpush.msra.mxu0 0.0
  %4722 = vmatpush.msra.mxu0 0.0
  %4723 = vmatpush.msra.mxu0 0.0
  %4724 = vmatpush.msra.mxu0 0.0
  %4725 = vmatpush.msra.mxu0 0.0
  %4726 = vmatpush.msra.mxu0 0.0
  %4727 = vmatpush.msra.mxu0 0.0
  %4728 = vmatpush.msra.mxu0 0.0
  %4729 = vmatpush.msra.mxu0 0.0
  %4730 = vmatpush.msra.mxu0 %v4703
  %4731 = vmatpush.msra.mxu0 %v4702
  %4732 = vmatpush.msra.mxu0 %v4701
  %4733 = vmatpush.msra.mxu0 %v4700
  %4734 = vmatmul.f32.gmra.mxu0 %v4707
  %v4735 = vpop.f32.mrf.mxu0
  %v4736 = vadd.f32 %v4705, %v4735
  %4737 = vmatmul.f32.gmra.mxu0 %v4710
  %v4738 = vpop.f32.mrf.mxu0
  %v4739 = vadd.f32 %v4705, %v4738
  %4740 = vmatmul.f32.gmra.mxu0 %v4713
  %v4741 = vpop.f32.mrf.mxu0
  %v4742 = vadd.f32 %v4705, %v4741
  %4743 = vmatmul.f32.gmra.mxu0 %v4716
  %v4744 = vpop.f32.mrf.mxu0
  %v4745 = vadd.f32 %v4705, %v4744
  %4746 = vdwg.mxu0
  %s4747 = scalar_lea.vmem %s8, 736
  %v4748 = vld [vmem:[%s4747] sm:$0xff]
  %v4749 = vld [vmem:[%s4747 + $0x8] sm:$0xff]
  %v4750 = vld [vmem:[%s4747 + $0x10] sm:$0xff]
  %v4751 = vld [vmem:[%s4747 + $0x18] sm:$0xff]
  %v4752 = vld [vmem:[%s2693 + $0x13] sm:$0x1]
  %v4753 = vperm.slane %v4752, 0
  %4754 = vmatpush.msra.mxu0 0.0
  %4755 = vmatpush.msra.mxu0 0.0
  %4756 = vmatpush.msra.mxu0 0.0
  %4757 = vmatpush.msra.mxu0 0.0
  %4758 = vmatpush.msra.mxu0 0.0
  %4759 = vmatpush.msra.mxu0 0.0
  %4760 = vmatpush.msra.mxu0 0.0
  %4761 = vmatpush.msra.mxu0 0.0
  %4762 = vmatpush.msra.mxu0 0.0
  %4763 = vmatpush.msra.mxu0 0.0
  %4764 = vmatpush.msra.mxu0 0.0
  %4765 = vmatpush.msra.mxu0 0.0
  %4766 = vmatpush.msra.mxu0 %v4751
  %4767 = vmatpush.msra.mxu0 %v4750
  %4768 = vmatpush.msra.mxu0 %v4749
  %4769 = vmatpush.msra.mxu0 %v4748
  %4770 = vmatmul.f32.gmra.mxu0 %v4603
  %v4771 = vpop.f32.mrf.mxu0
  %v4772 = vadd.f32 %v4753, %v4771
  %4773 = vmatmul.f32.gmra.mxu0 %v4606
  %v4774 = vpop.f32.mrf.mxu0
  %v4775 = vadd.f32 %v4753, %v4774
  %4776 = vmatmul.f32.gmra.mxu0 %v4609
  %v4777 = vpop.f32.mrf.mxu0
  %v4778 = vadd.f32 %v4753, %v4777
  %4779 = vmatmul.f32.gmra.mxu0 %v4612
  %v4780 = vpop.f32.mrf.mxu0
  %v4781 = vadd.f32 %v4753, %v4780
  %4782 = vdwg.mxu0
  %v4783 = vmax.f32 %v2531, 0.0
  %v4784 = vmax.f32 %v2546, 0.0
  %v4785 = vmax.f32 %v2561, 0.0
  %v4786 = vmax.f32 %v2576, 0.0
  %v4787 = vmin.f32 %v4783, 1.0
  %v4788 = vmin.f32 %v4784, 1.0
  %v4789 = vmin.f32 %v4785, 1.0
  %v4790 = vmin.f32 %v4786, 1.0
  %v4791 = vmax.f32 %v4787, 0.0001
  %v4792 = vmax.f32 %v4788, 0.0001
  %v4793 = vmax.f32 %v4789, 0.0001
  %v4794 = vmax.f32 %v4790, 0.0001
  %v4795 = vsub.f32 1.0, %v4787
  %v4796 = vsub.f32 1.0, %v4788
  %v4797 = vsub.f32 1.0, %v4789
  %v4798 = vsub.f32 1.0, %v4790
  %v4799 = vmax.f32 %v4795, 0.0001
  %v4800 = vmax.f32 %v4796, 0.0001
  %v4801 = vmax.f32 %v4797, 0.0001
  %v4802 = vmax.f32 %v4798, 0.0001
  %v4803 = vrcp.pop %v4799
  %v4804 = vmul.f32 %v4799, %v4803
  %v4805 = vsub.f32 1.0, %v4804
  %v4806 = vmul.f32 %v4803, %v4805
  %v4807 = vadd.f32 %v4803, %v4806
  %vm4808 = vweird.f32 %v4799
  %vm4809 = vweird.f32 %v4803
  %vm4810 = vmor %vm4808, %vm4809
  %v4811 = vsel %vm4810, %v4803, %v4807
  %v4812 = vand.u32 2147483647, %v4799
  %vm4813 = vcmp.eq.f32.partialorder %v4812, 8.507059e+37
  %v4814 = vand.u32 %v4799, 2147483648
  %v4815 = vor.u32 1.1754944e-38, %v4814
  %v4816 = vsel %vm4813, %v4815, %v4811
  %v4817 = vmul.f32 %v4791, %v4816
  %v4818 = vrcp.pop %v4800
  %v4819 = vmul.f32 %v4800, %v4818
  %v4820 = vsub.f32 1.0, %v4819
  %v4821 = vmul.f32 %v4818, %v4820
  %v4822 = vadd.f32 %v4818, %v4821
  %vm4823 = vweird.f32 %v4800
  %vm4824 = vweird.f32 %v4818
  %vm4825 = vmor %vm4823, %vm4824
  %v4826 = vsel %vm4825, %v4818, %v4822
  %v4827 = vand.u32 2147483647, %v4800
  %vm4828 = vcmp.eq.f32.partialorder %v4827, 8.507059e+37
  %v4829 = vand.u32 %v4800, 2147483648
  %v4830 = vor.u32 1.1754944e-38, %v4829
  %v4831 = vsel %vm4828, %v4830, %v4826
  %v4832 = vmul.f32 %v4792, %v4831
  %v4833 = vrcp.pop %v4801
  %v4834 = vmul.f32 %v4801, %v4833
  %v4835 = vsub.f32 1.0, %v4834
  %v4836 = vmul.f32 %v4833, %v4835
  %v4837 = vadd.f32 %v4833, %v4836
  %vm4838 = vweird.f32 %v4801
  %vm4839 = vweird.f32 %v4833
  %vm4840 = vmor %vm4838, %vm4839
  %v4841 = vsel %vm4840, %v4833, %v4837
  %v4842 = vand.u32 2147483647, %v4801
  %vm4843 = vcmp.eq.f32.partialorder %v4842, 8.507059e+37
  %v4844 = vand.u32 %v4801, 2147483648
  %v4845 = vor.u32 1.1754944e-38, %v4844
  %v4846 = vsel %vm4843, %v4845, %v4841
  %v4847 = vmul.f32 %v4793, %v4846
  %v4848 = vrcp.pop %v4802
  %v4849 = vmul.f32 %v4802, %v4848
  %v4850 = vsub.f32 1.0, %v4849
  %v4851 = vmul.f32 %v4848, %v4850
  %v4852 = vadd.f32 %v4848, %v4851
  %vm4853 = vweird.f32 %v4802
  %vm4854 = vweird.f32 %v4848
  %vm4855 = vmor %vm4853, %vm4854
  %v4856 = vsel %vm4855, %v4848, %v4852
  %v4857 = vand.u32 2147483647, %v4802
  %vm4858 = vcmp.eq.f32.partialorder %v4857, 8.507059e+37
  %v4859 = vand.u32 %v4802, 2147483648
  %v4860 = vor.u32 1.1754944e-38, %v4859
  %v4861 = vsel %vm4858, %v4860, %v4856
  %v4862 = vmul.f32 %v4794, %v4861
  %v4863 = vlog2.pop %v4817
  %v4864 = vmul.f32 %v4863, 0.6931472
  %v4865 = vlog2.pop %v4832
  %v4866 = vmul.f32 %v4865, 0.6931472
  %v4867 = vlog2.pop %v4847
  %v4868 = vmul.f32 %v4867, 0.6931472
  %v4869 = vlog2.pop %v4862
  %v4870 = vmul.f32 %v4869, 0.6931472
  %v4871 = vadd.f32 %v4736, %v4864
  %v4872 = vadd.f32 %v4739, %v4866
  %v4873 = vadd.f32 %v4742, %v4868
  %v4874 = vadd.f32 %v4745, %v4870
  %v4875 = vsub.f32 0.0, %v4871
  %v4876 = vsub.f32 0.0, %v4872
  %v4877 = vsub.f32 0.0, %v4873
  %v4878 = vsub.f32 0.0, %v4874
  %v4879 = vmul.f32 %v4875, 1.442695
  %v4880 = vpow.pop %v4879
  %v4881 = vmul.f32 %v4876, 1.442695
  %v4882 = vpow.pop %v4881
  %v4883 = vmul.f32 %v4877, 1.442695
  %v4884 = vpow.pop %v4883
  %v4885 = vmul.f32 %v4878, 1.442695
  %v4886 = vpow.pop %v4885
  %v4887 = vadd.f32 %v4880, 1.0
  %v4888 = vadd.f32 %v4882, 1.0
  %v4889 = vadd.f32 %v4884, 1.0
  %v4890 = vadd.f32 %v4886, 1.0
  %v4891 = vrcp.pop %v4887
  %v4892 = vmul.f32 %v4887, %v4891
  %v4893 = vsub.f32 1.0, %v4892
  %v4894 = vmul.f32 %v4891, %v4893
  %v4895 = vadd.f32 %v4891, %v4894
  %vm4896 = vweird.f32 %v4887
  %vm4897 = vweird.f32 %v4891
  %vm4898 = vmor %vm4896, %vm4897
  %v4899 = vsel %vm4898, %v4891, %v4895
  %v4900 = vand.u32 2147483647, %v4887
  %vm4901 = vcmp.eq.f32.partialorder %v4900, 8.507059e+37
  %v4902 = vand.u32 %v4887, 2147483648
  %v4903 = vor.u32 1.1754944e-38, %v4902
  %v4904 = vsel %vm4901, %v4903, %v4899
  %v4905 = vmul.f32 1.0, %v4904
  %v4906 = vrcp.pop %v4888
  %v4907 = vmul.f32 %v4888, %v4906
  %v4908 = vsub.f32 1.0, %v4907
  %v4909 = vmul.f32 %v4906, %v4908
  %v4910 = vadd.f32 %v4906, %v4909
  %vm4911 = vweird.f32 %v4888
  %vm4912 = vweird.f32 %v4906
  %vm4913 = vmor %vm4911, %vm4912
  %v4914 = vsel %vm4913, %v4906, %v4910
  %v4915 = vand.u32 2147483647, %v4888
  %vm4916 = vcmp.eq.f32.partialorder %v4915, 8.507059e+37
  %v4917 = vand.u32 %v4888, 2147483648
  %v4918 = vor.u32 1.1754944e-38, %v4917
  %v4919 = vsel %vm4916, %v4918, %v4914
  %v4920 = vmul.f32 1.0, %v4919
  %v4921 = vrcp.pop %v4889
  %v4922 = vmul.f32 %v4889, %v4921
  %v4923 = vsub.f32 1.0, %v4922
  %v4924 = vmul.f32 %v4921, %v4923
  %v4925 = vadd.f32 %v4921, %v4924
  %vm4926 = vweird.f32 %v4889
  %vm4927 = vweird.f32 %v4921
  %vm4928 = vmor %vm4926, %vm4927
  %v4929 = vsel %vm4928, %v4921, %v4925
  %v4930 = vand.u32 2147483647, %v4889
  %vm4931 = vcmp.eq.f32.partialorder %v4930, 8.507059e+37
  %v4932 = vand.u32 %v4889, 2147483648
  %v4933 = vor.u32 1.1754944e-38, %v4932
  %v4934 = vsel %vm4931, %v4933, %v4929
  %v4935 = vmul.f32 1.0, %v4934
  %v4936 = vrcp.pop %v4890
  %v4937 = vmul.f32 %v4890, %v4936
  %v4938 = vsub.f32 1.0, %v4937
  %v4939 = vmul.f32 %v4936, %v4938
  %v4940 = vadd.f32 %v4936, %v4939
  %vm4941 = vweird.f32 %v4890
  %vm4942 = vweird.f32 %v4936
  %vm4943 = vmor %vm4941, %vm4942
  %v4944 = vsel %vm4943, %v4936, %v4940
  %v4945 = vand.u32 2147483647, %v4890
  %vm4946 = vcmp.eq.f32.partialorder %v4945, 8.507059e+37
  %v4947 = vand.u32 %v4890, 2147483648
  %v4948 = vor.u32 1.1754944e-38, %v4947
  %v4949 = vsel %vm4946, %v4948, %v4944
  %v4950 = vmul.f32 1.0, %v4949
  %s4951 = scalar_lea.vmem %s14, 64
  %4952 = vst.msk [vmem:[%s4951] sm:$0xff] %vm158, %v4905
  %4953 = vst.msk [vmem:[%s4951 + $0x8] sm:$0xff] %vm158, %v4920
  %4954 = vst.msk [vmem:[%s4951 + $0x10] sm:$0xff] %vm158, %v4935
  %4955 = vst.msk [vmem:[%s4951 + $0x18] sm:$0xff] %vm158, %v4950
  %s4956 = scalar_lea.vmem %s14, 96
  %4957 = vst.msk [vmem:[%s4956] sm:$0xff] %vm158, %v4772
  %4958 = vst.msk [vmem:[%s4956 + $0x8] sm:$0xff] %vm158, %v4775
  %4959 = vst.msk [vmem:[%s4956 + $0x10] sm:$0xff] %vm158, %v4778
  %4960 = vst.msk [vmem:[%s4956 + $0x18] sm:$0xff] %vm158, %v4781
  // Predicated region
  $region58: #{dinodetr_forward.9} parent=0 // pred_check
    _
  $region59: #{dinodetr_forward.9} parent=0 // pred_check_branch
    %4962 = sbr.rel (0) target = $region61
  $region60: #{dinodetr_forward.9} parent=0 // pred_region
    _
  $region61: #{dinodetr_forward.9} parent=0 // pred_fallthru
    _
  // Predicated region
  $region62: #{dinodetr_forward.9} parent=0 // pred_check
    _
  $region63: #{dinodetr_forward.9} parent=0 // pred_check_branch
    %4964 = sbr.rel (0) target = $region65
  $region64: #{dinodetr_forward.9} parent=0 // pred_region
    _
  $region65: #{dinodetr_forward.9} parent=0 // pred_fallthru
    _

</llo_original>
